<compile_context>
chip_gen: v7x
topology: tpu7x:2x2x1
jax: 0.10.0
libtpu: 0.0.40
codegen_flags: <defaults>
</compile_context>

<pallas_src>
import jax
import jax.numpy as jnp
from jax import lax
from jax.experimental import pallas as pl
from jax.experimental.pallas import tpu as pltpu


# --------------------------------------------------------------------------- #
# Kernel                                                                      #
# --------------------------------------------------------------------------- #
def _convt_rows_kernel(x_ref, w_ref, e_ref, b_ref, o_ref):
    # x_ref: (1, Cin, R, W)           input dtype (f32 or bf16)
    # w_ref: (4*Cout, Cin)  bf16      rows ordered [dj, di, oc]
    # e_ref: (W, 2W)        bf16      placement: column w -> lanes 2w and 2w+1
    # b_ref: (2*Cout, 1)    f32       bias tiled over di
    # o_ref: (1, 2R, Cout, 2W)        final interleaved layout (rows-major)
    rows = x_ref.shape[2]           # R input rows in this block (static)
    cout = o_ref.shape[2]
    two_w = o_ref.shape[3]

    w = w_ref[...]                  # resident weight (constant index_map)
    erep = e_ref[...]
    b = b_ref[...]
    even = (lax.broadcasted_iota(jnp.int32, (1, two_w), 1) % 2) == 0

    # Per-row compute: strictly per-(row, lane-group) so Pallas partial-block
    # semantics are safe on the last (ragged) H tile without explicit masks.
    for r in range(rows):
        xr = x_ref[0, :, r, :].astype(jnp.bfloat16)                     # (Cin, W)
        # Exact lane expansion (0/1 matrix -> values unchanged, bf16-exact).
        xe = jnp.dot(xr, erep, preferred_element_type=jnp.float32)      # (Cin, 2W)
        xe = xe.astype(jnp.bfloat16)
        # Main matmul: both dj weight planes at once, f32 accumulate.
        a = jnp.dot(w, xe, preferred_element_type=jnp.float32)          # (4C, 2W)
        # Even lanes (dj=0) come from rows [0:2C], odd lanes (dj=1) from [2C:4C].
        y = jnp.where(even, a[: 2 * cout], a[2 * cout:]) + b            # (2C, 2W)
        o_ref[0, 2 * r, :, :] = y[:cout].astype(o_ref.dtype)            # di = 0
        o_ref[0, 2 * r + 1, :, :] = y[cout:].astype(o_ref.dtype)        # di = 1


# --------------------------------------------------------------------------- #
# Tiling / VMEM helpers                                                       #
# --------------------------------------------------------------------------- #
def _vmem_limit_bytes():
    """Generation-aware scoped-VMEM limit: half of physical, capped at 64 MiB
    (-> 64 MiB on 128 MiB v5e/v6e, 32 MiB on 64 MiB v7x, 32 MiB fallback)."""
    cap = None
    try:
        cap = getattr(pltpu.get_tpu_info(), "vmem_capacity_bytes", None)
    except Exception:
        cap = None
    if not cap or cap <= 0:
        cap = 64 * 1024 * 1024
    return int(min(cap // 2, 64 * 1024 * 1024))


def _pick_rows(H, W, Cin, Cout, N, budget_bytes, row_cap=32):
    """Largest row tile R (multiple of 8, or the full H) whose double-buffered
    blocks + resident weight/placement matrices + live temporaries fit the
    budget.  Keeps >= 2 spatial tiles when N == 1 so v7x megacore has work for
    both TensorCores."""
    lane = lambda d: -(-d // 128) * 128
    sub = lambda d: -(-d // 8) * 8

    def vmem_bytes(r):
        x_blk = 2 * Cin * sub(r) * lane(W) * 4               # dbl-buffered f32 x tile
        o_blk = 2 * (2 * r) * sub(Cout) * lane(2 * W) * 4    # dbl-buffered f32 out tile
        w_res = 2 * sub(4 * Cout) * lane(Cin) * 2            # resident bf16 weight
        e_res = 2 * sub(W) * lane(2 * W) * 2                 # resident bf16 placement
        b_res = 2 * sub(2 * Cout) * 128 * 4                  # resident bias
        tmp = Cin * lane(2 * W) * 6 + 4 * Cout * lane(2 * W) * 4   # xe / a live values
        return x_blk + o_blk + w_res + e_res + b_res + tmp

    cands = {r for r in range(8, min(H, row_cap) + 1, 8)}
    if H <= row_cap:
        cands.add(H)
    cands = sorted(cands, reverse=True) or [H]
    if N == 1:                                               # v7x: >= 2 grid steps
        two_tile = [r for r in cands if -(-H // r) >= 2]
        cands = two_tile or cands
    for r in cands:
        if vmem_bytes(r) <= budget_bytes:
            return r
    return cands[-1]


# --------------------------------------------------------------------------- #
# ConvTranspose2d(k=2, s=2) forward                                           #
# --------------------------------------------------------------------------- #
def conv_transpose2x2_stride2(x_nchw, weight, bias, *, out_dtype=jnp.float32,
                              row_cap=32):
    """nn.ConvTranspose2d(Cin, Cout, kernel_size=2, stride=2) forward.

    x_nchw: (N, Cin, H, W) f32 (or bf16), weight: (Cin, Cout, 2, 2) [PyTorch
    layout], bias: (Cout,).  Returns (N, Cout, 2H, 2W) in `out_dtype`.
    """
    N, Cin, H, W = x_nchw.shape
    Cout = weight.shape[1]

    # Weight rows ordered [dj, di, oc] so the even/odd-lane select and the di
    # row split in the kernel are contiguous slices: row = dj*2*Cout + di*Cout + oc.
    w4 = jnp.transpose(weight, (3, 2, 1, 0)).reshape(4 * Cout, Cin).astype(jnp.bfloat16)
    b2 = jnp.tile(bias, 2).reshape(2 * Cout, 1).astype(jnp.float32)
    # Exact 0/1 placement matrix: input column w -> output lanes 2w and 2w+1.
    erep = (jnp.arange(2 * W)[None, :] // 2 == jnp.arange(W)[:, None]).astype(jnp.bfloat16)

    vmem_limit = _vmem_limit_bytes()
    R = _pick_rows(H, W, Cin, Cout, N, (vmem_limit * 3) // 4, row_cap)
    grid = (N, pl.cdiv(H, R))
    # TODO(synk): for extremely deep decoder stages (Cin >= ~2048) add a third
    # grid axis splitting the 4*Cout weight rows (and single-buffer the weight
    # via pipeline_mode=pl.Buffered(1)) so the resident panel stays small on
    # v7x's 64 MiB VMEM.

    flops = N * H * (2 * (4 * Cout) * Cin * (2 * W) + 2 * Cin * W * (2 * W))
    bytes_accessed = (N * Cin * H * W * x_nchw.dtype.itemsize
                      + 4 * Cout * Cin * 2
                      + N * (2 * H) * Cout * (2 * W) * jnp.dtype(out_dtype).itemsize)

    y2 = pl.pallas_call(
        _convt_rows_kernel,
        out_shape=jax.ShapeDtypeStruct((N, 2 * H, Cout, 2 * W), out_dtype),
        grid=grid,
        in_specs=[
            pl.BlockSpec((1, Cin, R, W), lambda n, h: (n, 0, h, 0)),
            pl.BlockSpec((4 * Cout, Cin), lambda n, h: (0, 0)),   # resident weight
            pl.BlockSpec((W, 2 * W), lambda n, h: (0, 0)),        # resident placement
            pl.BlockSpec((2 * Cout, 1), lambda n, h: (0, 0)),     # resident bias
        ],
        out_specs=pl.BlockSpec((1, 2 * R, Cout, 2 * W), lambda n, h: (n, h, 0, 0)),
        compiler_params=pltpu.CompilerParams(
            dimension_semantics=("parallel", "parallel"),
            vmem_limit_bytes=vmem_limit),
        cost_estimate=pl.CostEstimate(flops=flops, transcendentals=0,
                                      bytes_accessed=bytes_accessed),
    )(x_nchw, w4, erep, b2)

    # (N, 2H, Cout, 2W) -> (N, Cout, 2H, 2W).  Minor-dim-preserving transpose:
    # XLA fuses it into the downstream pad/concat loop fusion (no separate
    # minor-dim relayout pass, unlike the old (N, 4*Cout, H*W) intermediate).
    return jnp.transpose(y2, (0, 2, 1, 3))


def _pad_or_crop_to(y, target_h, target_w):
    """F.pad semantics: positive diffs pad with zeros, negative diffs crop."""
    dY = target_h - y.shape[2]
    dX = target_w - y.shape[3]
    top, left = dY // 2, dX // 2
    bottom, right = dY - top, dX - left
    y = jnp.pad(y, ((0, 0), (0, 0),
                    (max(top, 0), max(bottom, 0)),
                    (max(left, 0), max(right, 0))))
    h0, w0 = max(-top, 0), max(-left, 0)
    return y[:, :, h0:h0 + target_h, w0:w0 + target_w]


@jax.jit
def upsample_forward(x, skip, weight, bias):
    """UpSample.forward: transpose-conv upsample -> pad to skip's HxW -> concat."""
    y = conv_transpose2x2_stride2(x, weight, bias)     # f32: module semantics
    y = _pad_or_crop_to(y, skip.shape[2], skip.shape[3])
    # TODO(synk): a fully NHWC / bf16 UNet++ pipeline could make the kernel
    # emit bf16 and fold the concat target directly into out_specs, saving the
    # remaining output pass.
    return jnp.concatenate([y, skip], axis=1)


if __name__ == "__main__":
    key = jax.random.PRNGKey(0)
    k1, k2, k3, k4 = jax.random.split(key, 4)

    # Small but representative shapes:
    #   x:    (N, Cin, H, W)           -> upsampled to (N, Cin//2, 2H, 2W)
    #   skip: (N, Cin//2, 2H+2, 2W+2)  -> exercises the F.pad branch
    N, Cin, H, W = 2, 64, 16, 16
    Cout = Cin // 2

    x = jax.random.normal(k1, (N, Cin, H, W), dtype=jnp.float32)
    skip = jax.random.normal(k2, (N, Cout, 2 * H + 2, 2 * W + 2), dtype=jnp.float32)

    # PyTorch ConvTranspose2d parameter shapes: W (Cin, Cout, 2, 2), b (Cout,)
    bound = 1.0 / float(Cin * 2 * 2) ** 0.5
    weight = jax.random.uniform(k3, (Cin, Cout, 2, 2), jnp.float32, -bound, bound)
    bias = jax.random.uniform(k4, (Cout,), jnp.float32, -bound, bound)

    out = jax.block_until_ready(upsample_forward(x, skip, weight, bias))
    assert out.shape == (N, Cin, 2 * H + 2, 2 * W + 2), out.shape

    # Pure-JAX reference with the same bf16-rounded operands (f32 accumulate),
    # so the comparison stays tight despite the bf16 MXU path.
    xb = x.astype(jnp.bfloat16).astype(jnp.float32)
    wb = weight.astype(jnp.bfloat16).astype(jnp.float32)
    y_ref = jnp.einsum("ncij,codb->noidjb", xb, wb,
                       precision=lax.Precision.HIGHEST)
    y_ref = y_ref.reshape(N, Cout, 2 * H, 2 * W) + bias[None, :, None, None]
    dY = skip.shape[2] - y_ref.shape[2]
    dX = skip.shape[3] - y_ref.shape[3]
    y_ref = jnp.pad(y_ref, ((0, 0), (0, 0),
                            (dY // 2, dY - dY // 2),
                            (dX // 2, dX - dX // 2)))
    ref = jnp.concatenate([y_ref, skip], axis=1)

    err = float(jnp.max(jnp.abs(out - ref)))
    assert jnp.allclose(out, ref, atol=2e-4, rtol=2e-4), err
    print("KERNEL_OK")
</pallas_src>

<mosaic_0001>
module attributes {stable_mosaic.version = 11 : i64} {
  func.func @_convt_rows_kernel(%arg0: i32, %arg1: i32, %arg2: memref<1x64x16x16xf32, #tpu.memory_space<vmem>>, %arg3: memref<128x64xbf16, #tpu.memory_space<vmem>>, %arg4: memref<16x32xbf16, #tpu.memory_space<vmem>>, %arg5: memref<64x1xf32, #tpu.memory_space<vmem>>, %arg6: memref<1x32x32x32xf32, #tpu.memory_space<vmem>>) attributes {dimension_semantics = [#tpu.dimension_semantics<parallel>, #tpu.dimension_semantics<parallel>], iteration_bounds = array<i64: 2, 1>, scalar_prefetch = 0 : i64, scratch_operands = 0 : i64, tpu.core_type = #tpu.core_type<tc>, window_params = [{transform_indices = @transform_0, window_bounds = array<i64: 1, 64, 16, 16>}, {pipeline_mode = #tpu.pipeline_mode<synchronous>, transform_indices = @transform_1, window_bounds = array<i64: 128, 64>}, {pipeline_mode = #tpu.pipeline_mode<synchronous>, transform_indices = @transform_2, window_bounds = array<i64: 16, 32>}, {pipeline_mode = #tpu.pipeline_mode<synchronous>, transform_indices = @transform_3, window_bounds = array<i64: 64, 1>}, {transform_indices = @transform_4, window_bounds = array<i64: 1, 32, 32, 32>}]} {
    %c0 = arith.constant 0 : index
    %c0_0 = arith.constant 0 : index
    %0 = vector.load %arg3[%c0, %c0_0] : memref<128x64xbf16, #tpu.memory_space<vmem>>, vector<128x64xbf16>
    %c0_1 = arith.constant 0 : index
    %c0_2 = arith.constant 0 : index
    %1 = vector.load %arg4[%c0_1, %c0_2] : memref<16x32xbf16, #tpu.memory_space<vmem>>, vector<16x32xbf16>
    %c0_3 = arith.constant 0 : index
    %c0_4 = arith.constant 0 : index
    %2 = vector.load %arg5[%c0_3, %c0_4] : memref<64x1xf32, #tpu.memory_space<vmem>>, vector<64x1xf32>
    %3 = tpu.iota {dimensions = array<i32: 1>} : vector<1x32xi32>
    %c2_i32 = arith.constant 2 : i32
    %c0_i32 = arith.constant 0 : i32
    %4 = arith.cmpi eq, %c2_i32, %c0_i32 : i32
    %c1_i32 = arith.constant 1 : i32
    %5 = arith.select %4, %c1_i32, %c2_i32 : i32
    %6 = vector.broadcast %5 : i32 to vector<1x32xi32>
    %7 = arith.remsi %3, %6 : vector<1x32xi32>
    %c0_i32_5 = arith.constant 0 : i32
    %8 = vector.broadcast %c0_i32_5 : i32 to vector<1x32xi32>
    %9 = arith.cmpi ne, %7, %8 : vector<1x32xi32>
    %c0_i32_6 = arith.constant 0 : i32
    %10 = vector.broadcast %c0_i32_6 : i32 to vector<1x32xi32>
    %11 = arith.cmpi slt, %7, %10 : vector<1x32xi32>
    %c0_i32_7 = arith.constant 0 : i32
    %12 = arith.cmpi slt, %5, %c0_i32_7 : i32
    %13 = vector.broadcast %12 : i1 to vector<1x32xi1>
    %14 = vector.broadcast %13 : vector<1x32xi1> to vector<1x32xi1>
    %15 = arith.xori %11, %14 : vector<1x32xi1>
    %16 = arith.andi %15, %9 : vector<1x32xi1>
    %17 = vector.broadcast %5 : i32 to vector<1x32xi32>
    %18 = arith.addi %7, %17 : vector<1x32xi32>
    %19 = arith.select %16, %18, %7 : vector<1x32xi1>, vector<1x32xi32>
    %c0_i32_8 = arith.constant 0 : i32
    %20 = vector.broadcast %c0_i32_8 : i32 to vector<1x32xi32>
    %21 = arith.cmpi eq, %19, %20 : vector<1x32xi32>
    %c0_9 = arith.constant 0 : index
    %c0_10 = arith.constant 0 : index
    %c0_11 = arith.constant 0 : index
    %c0_12 = arith.constant 0 : index
    %22 = vector.load %arg2[%c0_9, %c0_10, %c0_11, %c0_12] : memref<1x64x16x16xf32, #tpu.memory_space<vmem>>, vector<1x64x1x16xf32>
    %23 = vector.shape_cast %22 : vector<1x64x1x16xf32> to vector<64x16xf32>
    %24 = arith.truncf %23 : vector<64x16xf32> to vector<64x16xbf16>
    %cst = arith.constant dense<0.000000e+00> : vector<64x32xf32>
    %25 = tpu.matmul %24, %1, %cst {dimension_numbers = #tpu.dot_dimension_numbers<[1], [0], [0], [1], [0, 0, 1, 1], [], []>} : vector<64x16xbf16>, vector<16x32xbf16>, vector<64x32xf32> -> vector<64x32xf32>
    %26 = arith.truncf %25 : vector<64x32xf32> to vector<64x32xbf16>
    %cst_13 = arith.constant dense<0.000000e+00> : vector<128x32xf32>
    %27 = tpu.matmul %0, %26, %cst_13 {dimension_numbers = #tpu.dot_dimension_numbers<[1], [0], [0], [1], [0, 0, 1, 1], [], []>} : vector<128x64xbf16>, vector<64x32xbf16>, vector<128x32xf32> -> vector<128x32xf32>
    %28 = vector.extract_strided_slice %27 {offsets = [0, 0], sizes = [64, 32], strides = [1, 1]} : vector<128x32xf32> to vector<64x32xf32>
    %29 = vector.extract_strided_slice %27 {offsets = [64, 0], sizes = [64, 32], strides = [1, 1]} : vector<128x32xf32> to vector<64x32xf32>
    %30 = vector.shape_cast %21 : vector<1x32xi1> to vector<1x32xi1>
    %31 = vector.broadcast %30 : vector<1x32xi1> to vector<64x32xi1>
    %32 = arith.select %31, %28, %29 : vector<64x32xi1>, vector<64x32xf32>
    %33 = vector.broadcast %2 : vector<64x1xf32> to vector<64x32xf32>
    %34 = arith.addf %32, %33 : vector<64x32xf32>
    %35 = vector.extract_strided_slice %34 {offsets = [0, 0], sizes = [32, 32], strides = [1, 1]} : vector<64x32xf32> to vector<32x32xf32>
    %c0_14 = arith.constant 0 : index
    %c0_15 = arith.constant 0 : index
    %c0_16 = arith.constant 0 : index
    %c0_17 = arith.constant 0 : index
    %36 = vector.load %arg6[%c0_14, %c0_15, %c0_16, %c0_17] : memref<1x32x32x32xf32, #tpu.memory_space<vmem>>, vector<1x1x32x32xf32>
    %37 = vector.shape_cast %36 : vector<1x1x32x32xf32> to vector<32x32xf32>
    %38 = vector.shape_cast %35 : vector<32x32xf32> to vector<1x1x32x32xf32>
    tpu.vector_store %arg6[%c0_14, %c0_15, %c0_16, %c0_17], %38 {strides = array<i32>} : memref<1x32x32x32xf32, #tpu.memory_space<vmem>>, vector<1x1x32x32xf32>,
    %39 = vector.extract_strided_slice %34 {offsets = [32, 0], sizes = [32, 32], strides = [1, 1]} : vector<64x32xf32> to vector<32x32xf32>
    %c0_18 = arith.constant 0 : index
    %c1 = arith.constant 1 : index
    %c0_19 = arith.constant 0 : index
    %c0_20 = arith.constant 0 : index
    %40 = vector.load %arg6[%c0_18, %c1, %c0_19, %c0_20] : memref<1x32x32x32xf32, #tpu.memory_space<vmem>>, vector<1x1x32x32xf32>
    %41 = vector.shape_cast %40 : vector<1x1x32x32xf32> to vector<32x32xf32>
    %42 = vector.shape_cast %39 : vector<32x32xf32> to vector<1x1x32x32xf32>
    tpu.vector_store %arg6[%c0_18, %c1, %c0_19, %c0_20], %42 {strides = array<i32>} : memref<1x32x32x32xf32, #tpu.memory_space<vmem>>, vector<1x1x32x32xf32>,
    %c0_21 = arith.constant 0 : index
    %c0_22 = arith.constant 0 : index
    %c1_23 = arith.constant 1 : index
    %c0_24 = arith.constant 0 : index
    %43 = vector.load %arg2[%c0_21, %c0_22, %c1_23, %c0_24] : memref<1x64x16x16xf32, #tpu.memory_space<vmem>>, vector<1x64x1x16xf32>
    %44 = vector.shape_cast %43 : vector<1x64x1x16xf32> to vector<64x16xf32>
    %45 = arith.truncf %44 : vector<64x16xf32> to vector<64x16xbf16>
    %cst_25 = arith.constant dense<0.000000e+00> : vector<64x32xf32>
    %46 = tpu.matmul %45, %1, %cst_25 {dimension_numbers = #tpu.dot_dimension_numbers<[1], [0], [0], [1], [0, 0, 1, 1], [], []>} : vector<64x16xbf16>, vector<16x32xbf16>, vector<64x32xf32> -> vector<64x32xf32>
    %47 = arith.truncf %46 : vector<64x32xf32> to vector<64x32xbf16>
    %cst_26 = arith.constant dense<0.000000e+00> : vector<128x32xf32>
    %48 = tpu.matmul %0, %47, %cst_26 {dimension_numbers = #tpu.dot_dimension_numbers<[1], [0], [0], [1], [0, 0, 1, 1], [], []>} : vector<128x64xbf16>, vector<64x32xbf16>, vector<128x32xf32> -> vector<128x32xf32>
    %49 = vector.extract_strided_slice %48 {offsets = [0, 0], sizes = [64, 32], strides = [1, 1]} : vector<128x32xf32> to vector<64x32xf32>
    %50 = vector.extract_strided_slice %48 {offsets = [64, 0], sizes = [64, 32], strides = [1, 1]} : vector<128x32xf32> to vector<64x32xf32>
    %51 = vector.shape_cast %21 : vector<1x32xi1> to vector<1x32xi1>
    %52 = vector.broadcast %51 : vector<1x32xi1> to vector<64x32xi1>
    %53 = arith.select %52, %49, %50 : vector<64x32xi1>, vector<64x32xf32>
    %54 = vector.broadcast %2 : vector<64x1xf32> to vector<64x32xf32>
    %55 = arith.addf %53, %54 : vector<64x32xf32>
    %56 = vector.extract_strided_slice %55 {offsets = [0, 0], sizes = [32, 32], strides = [1, 1]} : vector<64x32xf32> to vector<32x32xf32>
    %c0_27 = arith.constant 0 : index
    %c2 = arith.constant 2 : index
    %c0_28 = arith.constant 0 : index
    %c0_29 = arith.constant 0 : index
    %57 = vector.load %arg6[%c0_27, %c2, %c0_28, %c0_29] : memref<1x32x32x32xf32, #tpu.memory_space<vmem>>, vector<1x1x32x32xf32>
    %58 = vector.shape_cast %57 : vector<1x1x32x32xf32> to vector<32x32xf32>
    %59 = vector.shape_cast %56 : vector<32x32xf32> to vector<1x1x32x32xf32>
    tpu.vector_store %arg6[%c0_27, %c2, %c0_28, %c0_29], %59 {strides = array<i32>} : memref<1x32x32x32xf32, #tpu.memory_space<vmem>>, vector<1x1x32x32xf32>,
    %60 = vector.extract_strided_slice %55 {offsets = [32, 0], sizes = [32, 32], strides = [1, 1]} : vector<64x32xf32> to vector<32x32xf32>
    %c0_30 = arith.constant 0 : index
    %c3 = arith.constant 3 : index
    %c0_31 = arith.constant 0 : index
    %c0_32 = arith.constant 0 : index
    %61 = vector.load %arg6[%c0_30, %c3, %c0_31, %c0_32] : memref<1x32x32x32xf32, #tpu.memory_space<vmem>>, vector<1x1x32x32xf32>
    %62 = vector.shape_cast %61 : vector<1x1x32x32xf32> to vector<32x32xf32>
    %63 = vector.shape_cast %60 : vector<32x32xf32> to vector<1x1x32x32xf32>
    tpu.vector_store %arg6[%c0_30, %c3, %c0_31, %c0_32], %63 {strides = array<i32>} : memref<1x32x32x32xf32, #tpu.memory_space<vmem>>, vector<1x1x32x32xf32>,
    %c0_33 = arith.constant 0 : index
    %c0_34 = arith.constant 0 : index
    %c2_35 = arith.constant 2 : index
    %c0_36 = arith.constant 0 : index
    %64 = vector.load %arg2[%c0_33, %c0_34, %c2_35, %c0_36] : memref<1x64x16x16xf32, #tpu.memory_space<vmem>>, vector<1x64x1x16xf32>
    %65 = vector.shape_cast %64 : vector<1x64x1x16xf32> to vector<64x16xf32>
    %66 = arith.truncf %65 : vector<64x16xf32> to vector<64x16xbf16>
    %cst_37 = arith.constant dense<0.000000e+00> : vector<64x32xf32>
    %67 = tpu.matmul %66, %1, %cst_37 {dimension_numbers = #tpu.dot_dimension_numbers<[1], [0], [0], [1], [0, 0, 1, 1], [], []>} : vector<64x16xbf16>, vector<16x32xbf16>, vector<64x32xf32> -> vector<64x32xf32>
    %68 = arith.truncf %67 : vector<64x32xf32> to vector<64x32xbf16>
    %cst_38 = arith.constant dense<0.000000e+00> : vector<128x32xf32>
    %69 = tpu.matmul %0, %68, %cst_38 {dimension_numbers = #tpu.dot_dimension_numbers<[1], [0], [0], [1], [0, 0, 1, 1], [], []>} : vector<128x64xbf16>, vector<64x32xbf16>, vector<128x32xf32> -> vector<128x32xf32>
    %70 = vector.extract_strided_slice %69 {offsets = [0, 0], sizes = [64, 32], strides = [1, 1]} : vector<128x32xf32> to vector<64x32xf32>
    %71 = vector.extract_strided_slice %69 {offsets = [64, 0], sizes = [64, 32], strides = [1, 1]} : vector<128x32xf32> to vector<64x32xf32>
    %72 = vector.shape_cast %21 : vector<1x32xi1> to vector<1x32xi1>
    %73 = vector.broadcast %72 : vector<1x32xi1> to vector<64x32xi1>
    %74 = arith.select %73, %70, %71 : vector<64x32xi1>, vector<64x32xf32>
    %75 = vector.broadcast %2 : vector<64x1xf32> to vector<64x32xf32>
    %76 = arith.addf %74, %75 : vector<64x32xf32>
    %77 = vector.extract_strided_slice %76 {offsets = [0, 0], sizes = [32, 32], strides = [1, 1]} : vector<64x32xf32> to vector<32x32xf32>
    %c0_39 = arith.constant 0 : index
    %c4 = arith.constant 4 : index
    %c0_40 = arith.constant 0 : index
    %c0_41 = arith.constant 0 : index
    %78 = vector.load %arg6[%c0_39, %c4, %c0_40, %c0_41] : memref<1x32x32x32xf32, #tpu.memory_space<vmem>>, vector<1x1x32x32xf32>
    %79 = vector.shape_cast %78 : vector<1x1x32x32xf32> to vector<32x32xf32>
    %80 = vector.shape_cast %77 : vector<32x32xf32> to vector<1x1x32x32xf32>
    tpu.vector_store %arg6[%c0_39, %c4, %c0_40, %c0_41], %80 {strides = array<i32>} : memref<1x32x32x32xf32, #tpu.memory_space<vmem>>, vector<1x1x32x32xf32>,
    %81 = vector.extract_strided_slice %76 {offsets = [32, 0], sizes = [32, 32], strides = [1, 1]} : vector<64x32xf32> to vector<32x32xf32>
    %c0_42 = arith.constant 0 : index
    %c5 = arith.constant 5 : index
    %c0_43 = arith.constant 0 : index
    %c0_44 = arith.constant 0 : index
    %82 = vector.load %arg6[%c0_42, %c5, %c0_43, %c0_44] : memref<1x32x32x32xf32, #tpu.memory_space<vmem>>, vector<1x1x32x32xf32>
    %83 = vector.shape_cast %82 : vector<1x1x32x32xf32> to vector<32x32xf32>
    %84 = vector.shape_cast %81 : vector<32x32xf32> to vector<1x1x32x32xf32>
    tpu.vector_store %arg6[%c0_42, %c5, %c0_43, %c0_44], %84 {strides = array<i32>} : memref<1x32x32x32xf32, #tpu.memory_space<vmem>>, vector<1x1x32x32xf32>,
    %c0_45 = arith.constant 0 : index
    %c0_46 = arith.constant 0 : index
    %c3_47 = arith.constant 3 : index
    %c0_48 = arith.constant 0 : index
    %85 = vector.load %arg2[%c0_45, %c0_46, %c3_47, %c0_48] : memref<1x64x16x16xf32, #tpu.memory_space<vmem>>, vector<1x64x1x16xf32>
    %86 = vector.shape_cast %85 : vector<1x64x1x16xf32> to vector<64x16xf32>
    %87 = arith.truncf %86 : vector<64x16xf32> to vector<64x16xbf16>
    %cst_49 = arith.constant dense<0.000000e+00> : vector<64x32xf32>
    %88 = tpu.matmul %87, %1, %cst_49 {dimension_numbers = #tpu.dot_dimension_numbers<[1], [0], [0], [1], [0, 0, 1, 1], [], []>} : vector<64x16xbf16>, vector<16x32xbf16>, vector<64x32xf32> -> vector<64x32xf32>
    %89 = arith.truncf %88 : vector<64x32xf32> to vector<64x32xbf16>
    %cst_50 = arith.constant dense<0.000000e+00> : vector<128x32xf32>
    %90 = tpu.matmul %0, %89, %cst_50 {dimension_numbers = #tpu.dot_dimension_numbers<[1], [0], [0], [1], [0, 0, 1, 1], [], []>} : vector<128x64xbf16>, vector<64x32xbf16>, vector<128x32xf32> -> vector<128x32xf32>
    %91 = vector.extract_strided_slice %90 {offsets = [0, 0], sizes = [64, 32], strides = [1, 1]} : vector<128x32xf32> to vector<64x32xf32>
    %92 = vector.extract_strided_slice %90 {offsets = [64, 0], sizes = [64, 32], strides = [1, 1]} : vector<128x32xf32> to vector<64x32xf32>
    %93 = vector.shape_cast %21 : vector<1x32xi1> to vector<1x32xi1>
    %94 = vector.broadcast %93 : vector<1x32xi1> to vector<64x32xi1>
    %95 = arith.select %94, %91, %92 : vector<64x32xi1>, vector<64x32xf32>
    %96 = vector.broadcast %2 : vector<64x1xf32> to vector<64x32xf32>
    %97 = arith.addf %95, %96 : vector<64x32xf32>
    %98 = vector.extract_strided_slice %97 {offsets = [0, 0], sizes = [32, 32], strides = [1, 1]} : vector<64x32xf32> to vector<32x32xf32>
    %c0_51 = arith.constant 0 : index
    %c6 = arith.constant 6 : index
    %c0_52 = arith.constant 0 : index
    %c0_53 = arith.constant 0 : index
    %99 = vector.load %arg6[%c0_51, %c6, %c0_52, %c0_53] : memref<1x32x32x32xf32, #tpu.memory_space<vmem>>, vector<1x1x32x32xf32>
    %100 = vector.shape_cast %99 : vector<1x1x32x32xf32> to vector<32x32xf32>
    %101 = vector.shape_cast %98 : vector<32x32xf32> to vector<1x1x32x32xf32>
    tpu.vector_store %arg6[%c0_51, %c6, %c0_52, %c0_53], %101 {strides = array<i32>} : memref<1x32x32x32xf32, #tpu.memory_space<vmem>>, vector<1x1x32x32xf32>,
    %102 = vector.extract_strided_slice %97 {offsets = [32, 0], sizes = [32, 32], strides = [1, 1]} : vector<64x32xf32> to vector<32x32xf32>
    %c0_54 = arith.constant 0 : index
    %c7 = arith.constant 7 : index
    %c0_55 = arith.constant 0 : index
    %c0_56 = arith.constant 0 : index
    %103 = vector.load %arg6[%c0_54, %c7, %c0_55, %c0_56] : memref<1x32x32x32xf32, #tpu.memory_space<vmem>>, vector<1x1x32x32xf32>
    %104 = vector.shape_cast %103 : vector<1x1x32x32xf32> to vector<32x32xf32>
    %105 = vector.shape_cast %102 : vector<32x32xf32> to vector<1x1x32x32xf32>
    tpu.vector_store %arg6[%c0_54, %c7, %c0_55, %c0_56], %105 {strides = array<i32>} : memref<1x32x32x32xf32, #tpu.memory_space<vmem>>, vector<1x1x32x32xf32>,
    %c0_57 = arith.constant 0 : index
    %c0_58 = arith.constant 0 : index
    %c4_59 = arith.constant 4 : index
    %c0_60 = arith.constant 0 : index
    %106 = vector.load %arg2[%c0_57, %c0_58, %c4_59, %c0_60] : memref<1x64x16x16xf32, #tpu.memory_space<vmem>>, vector<1x64x1x16xf32>
    %107 = vector.shape_cast %106 : vector<1x64x1x16xf32> to vector<64x16xf32>
    %108 = arith.truncf %107 : vector<64x16xf32> to vector<64x16xbf16>
    %cst_61 = arith.constant dense<0.000000e+00> : vector<64x32xf32>
    %109 = tpu.matmul %108, %1, %cst_61 {dimension_numbers = #tpu.dot_dimension_numbers<[1], [0], [0], [1], [0, 0, 1, 1], [], []>} : vector<64x16xbf16>, vector<16x32xbf16>, vector<64x32xf32> -> vector<64x32xf32>
    %110 = arith.truncf %109 : vector<64x32xf32> to vector<64x32xbf16>
    %cst_62 = arith.constant dense<0.000000e+00> : vector<128x32xf32>
    %111 = tpu.matmul %0, %110, %cst_62 {dimension_numbers = #tpu.dot_dimension_numbers<[1], [0], [0], [1], [0, 0, 1, 1], [], []>} : vector<128x64xbf16>, vector<64x32xbf16>, vector<128x32xf32> -> vector<128x32xf32>
    %112 = vector.extract_strided_slice %111 {offsets = [0, 0], sizes = [64, 32], strides = [1, 1]} : vector<128x32xf32> to vector<64x32xf32>
    %113 = vector.extract_strided_slice %111 {offsets = [64, 0], sizes = [64, 32], strides = [1, 1]} : vector<128x32xf32> to vector<64x32xf32>
    %114 = vector.shape_cast %21 : vector<1x32xi1> to vector<1x32xi1>
    %115 = vector.broadcast %114 : vector<1x32xi1> to vector<64x32xi1>
    %116 = arith.select %115, %112, %113 : vector<64x32xi1>, vector<64x32xf32>
    %117 = vector.broadcast %2 : vector<64x1xf32> to vector<64x32xf32>
    %118 = arith.addf %116, %117 : vector<64x32xf32>
    %119 = vector.extract_strided_slice %118 {offsets = [0, 0], sizes = [32, 32], strides = [1, 1]} : vector<64x32xf32> to vector<32x32xf32>
    %c0_63 = arith.constant 0 : index
    %c8 = arith.constant 8 : index
    %c0_64 = arith.constant 0 : index
    %c0_65 = arith.constant 0 : index
    %120 = vector.load %arg6[%c0_63, %c8, %c0_64, %c0_65] : memref<1x32x32x32xf32, #tpu.memory_space<vmem>>, vector<1x1x32x32xf32>
    %121 = vector.shape_cast %120 : vector<1x1x32x32xf32> to vector<32x32xf32>
    %122 = vector.shape_cast %119 : vector<32x32xf32> to vector<1x1x32x32xf32>
    tpu.vector_store %arg6[%c0_63, %c8, %c0_64, %c0_65], %122 {strides = array<i32>} : memref<1x32x32x32xf32, #tpu.memory_space<vmem>>, vector<1x1x32x32xf32>,
    %123 = vector.extract_strided_slice %118 {offsets = [32, 0], sizes = [32, 32], strides = [1, 1]} : vector<64x32xf32> to vector<32x32xf32>
    %c0_66 = arith.constant 0 : index
    %c9 = arith.constant 9 : index
    %c0_67 = arith.constant 0 : index
    %c0_68 = arith.constant 0 : index
    %124 = vector.load %arg6[%c0_66, %c9, %c0_67, %c0_68] : memref<1x32x32x32xf32, #tpu.memory_space<vmem>>, vector<1x1x32x32xf32>
    %125 = vector.shape_cast %124 : vector<1x1x32x32xf32> to vector<32x32xf32>
    %126 = vector.shape_cast %123 : vector<32x32xf32> to vector<1x1x32x32xf32>
    tpu.vector_store %arg6[%c0_66, %c9, %c0_67, %c0_68], %126 {strides = array<i32>} : memref<1x32x32x32xf32, #tpu.memory_space<vmem>>, vector<1x1x32x32xf32>,
    %c0_69 = arith.constant 0 : index
    %c0_70 = arith.constant 0 : index
    %c5_71 = arith.constant 5 : index
    %c0_72 = arith.constant 0 : index
    %127 = vector.load %arg2[%c0_69, %c0_70, %c5_71, %c0_72] : memref<1x64x16x16xf32, #tpu.memory_space<vmem>>, vector<1x64x1x16xf32>
    %128 = vector.shape_cast %127 : vector<1x64x1x16xf32> to vector<64x16xf32>
    %129 = arith.truncf %128 : vector<64x16xf32> to vector<64x16xbf16>
    %cst_73 = arith.constant dense<0.000000e+00> : vector<64x32xf32>
    %130 = tpu.matmul %129, %1, %cst_73 {dimension_numbers = #tpu.dot_dimension_numbers<[1], [0], [0], [1], [0, 0, 1, 1], [], []>} : vector<64x16xbf16>, vector<16x32xbf16>, vector<64x32xf32> -> vector<64x32xf32>
    %131 = arith.truncf %130 : vector<64x32xf32> to vector<64x32xbf16>
    %cst_74 = arith.constant dense<0.000000e+00> : vector<128x32xf32>
    %132 = tpu.matmul %0, %131, %cst_74 {dimension_numbers = #tpu.dot_dimension_numbers<[1], [0], [0], [1], [0, 0, 1, 1], [], []>} : vector<128x64xbf16>, vector<64x32xbf16>, vector<128x32xf32> -> vector<128x32xf32>
    %133 = vector.extract_strided_slice %132 {offsets = [0, 0], sizes = [64, 32], strides = [1, 1]} : vector<128x32xf32> to vector<64x32xf32>
    %134 = vector.extract_strided_slice %132 {offsets = [64, 0], sizes = [64, 32], strides = [1, 1]} : vector<128x32xf32> to vector<64x32xf32>
    %135 = vector.shape_cast %21 : vector<1x32xi1> to vector<1x32xi1>
    %136 = vector.broadcast %135 : vector<1x32xi1> to vector<64x32xi1>
    %137 = arith.select %136, %133, %134 : vector<64x32xi1>, vector<64x32xf32>
    %138 = vector.broadcast %2 : vector<64x1xf32> to vector<64x32xf32>
    %139 = arith.addf %137, %138 : vector<64x32xf32>
    %140 = vector.extract_strided_slice %139 {offsets = [0, 0], sizes = [32, 32], strides = [1, 1]} : vector<64x32xf32> to vector<32x32xf32>
    %c0_75 = arith.constant 0 : index
    %c10 = arith.constant 10 : index
    %c0_76 = arith.constant 0 : index
    %c0_77 = arith.constant 0 : index
    %141 = vector.load %arg6[%c0_75, %c10, %c0_76, %c0_77] : memref<1x32x32x32xf32, #tpu.memory_space<vmem>>, vector<1x1x32x32xf32>
    %142 = vector.shape_cast %141 : vector<1x1x32x32xf32> to vector<32x32xf32>
    %143 = vector.shape_cast %140 : vector<32x32xf32> to vector<1x1x32x32xf32>
    tpu.vector_store %arg6[%c0_75, %c10, %c0_76, %c0_77], %143 {strides = array<i32>} : memref<1x32x32x32xf32, #tpu.memory_space<vmem>>, vector<1x1x32x32xf32>,
    %144 = vector.extract_strided_slice %139 {offsets = [32, 0], sizes = [32, 32], strides = [1, 1]} : vector<64x32xf32> to vector<32x32xf32>
    %c0_78 = arith.constant 0 : index
    %c11 = arith.constant 11 : index
    %c0_79 = arith.constant 0 : index
    %c0_80 = arith.constant 0 : index
    %145 = vector.load %arg6[%c0_78, %c11, %c0_79, %c0_80] : memref<1x32x32x32xf32, #tpu.memory_space<vmem>>, vector<1x1x32x32xf32>
    %146 = vector.shape_cast %145 : vector<1x1x32x32xf32> to vector<32x32xf32>
    %147 = vector.shape_cast %144 : vector<32x32xf32> to vector<1x1x32x32xf32>
    tpu.vector_store %arg6[%c0_78, %c11, %c0_79, %c0_80], %147 {strides = array<i32>} : memref<1x32x32x32xf32, #tpu.memory_space<vmem>>, vector<1x1x32x32xf32>,
    %c0_81 = arith.constant 0 : index
    %c0_82 = arith.constant 0 : index
    %c6_83 = arith.constant 6 : index
    %c0_84 = arith.constant 0 : index
    %148 = vector.load %arg2[%c0_81, %c0_82, %c6_83, %c0_84] : memref<1x64x16x16xf32, #tpu.memory_space<vmem>>, vector<1x64x1x16xf32>
    %149 = vector.shape_cast %148 : vector<1x64x1x16xf32> to vector<64x16xf32>
    %150 = arith.truncf %149 : vector<64x16xf32> to vector<64x16xbf16>
    %cst_85 = arith.constant dense<0.000000e+00> : vector<64x32xf32>
    %151 = tpu.matmul %150, %1, %cst_85 {dimension_numbers = #tpu.dot_dimension_numbers<[1], [0], [0], [1], [0, 0, 1, 1], [], []>} : vector<64x16xbf16>, vector<16x32xbf16>, vector<64x32xf32> -> vector<64x32xf32>
    %152 = arith.truncf %151 : vector<64x32xf32> to vector<64x32xbf16>
    %cst_86 = arith.constant dense<0.000000e+00> : vector<128x32xf32>
    %153 = tpu.matmul %0, %152, %cst_86 {dimension_numbers = #tpu.dot_dimension_numbers<[1], [0], [0], [1], [0, 0, 1, 1], [], []>} : vector<128x64xbf16>, vector<64x32xbf16>, vector<128x32xf32> -> vector<128x32xf32>
    %154 = vector.extract_strided_slice %153 {offsets = [0, 0], sizes = [64, 32], strides = [1, 1]} : vector<128x32xf32> to vector<64x32xf32>
    %155 = vector.extract_strided_slice %153 {offsets = [64, 0], sizes = [64, 32], strides = [1, 1]} : vector<128x32xf32> to vector<64x32xf32>
    %156 = vector.shape_cast %21 : vector<1x32xi1> to vector<1x32xi1>
    %157 = vector.broadcast %156 : vector<1x32xi1> to vector<64x32xi1>
    %158 = arith.select %157, %154, %155 : vector<64x32xi1>, vector<64x32xf32>
    %159 = vector.broadcast %2 : vector<64x1xf32> to vector<64x32xf32>
    %160 = arith.addf %158, %159 : vector<64x32xf32>
    %161 = vector.extract_strided_slice %160 {offsets = [0, 0], sizes = [32, 32], strides = [1, 1]} : vector<64x32xf32> to vector<32x32xf32>
    %c0_87 = arith.constant 0 : index
    %c12 = arith.constant 12 : index
    %c0_88 = arith.constant 0 : index
    %c0_89 = arith.constant 0 : index
    %162 = vector.load %arg6[%c0_87, %c12, %c0_88, %c0_89] : memref<1x32x32x32xf32, #tpu.memory_space<vmem>>, vector<1x1x32x32xf32>
    %163 = vector.shape_cast %162 : vector<1x1x32x32xf32> to vector<32x32xf32>
    %164 = vector.shape_cast %161 : vector<32x32xf32> to vector<1x1x32x32xf32>
    tpu.vector_store %arg6[%c0_87, %c12, %c0_88, %c0_89], %164 {strides = array<i32>} : memref<1x32x32x32xf32, #tpu.memory_space<vmem>>, vector<1x1x32x32xf32>,
    %165 = vector.extract_strided_slice %160 {offsets = [32, 0], sizes = [32, 32], strides = [1, 1]} : vector<64x32xf32> to vector<32x32xf32>
    %c0_90 = arith.constant 0 : index
    %c13 = arith.constant 13 : index
    %c0_91 = arith.constant 0 : index
    %c0_92 = arith.constant 0 : index
    %166 = vector.load %arg6[%c0_90, %c13, %c0_91, %c0_92] : memref<1x32x32x32xf32, #tpu.memory_space<vmem>>, vector<1x1x32x32xf32>
    %167 = vector.shape_cast %166 : vector<1x1x32x32xf32> to vector<32x32xf32>
    %168 = vector.shape_cast %165 : vector<32x32xf32> to vector<1x1x32x32xf32>
    tpu.vector_store %arg6[%c0_90, %c13, %c0_91, %c0_92], %168 {strides = array<i32>} : memref<1x32x32x32xf32, #tpu.memory_space<vmem>>, vector<1x1x32x32xf32>,
    %c0_93 = arith.constant 0 : index
    %c0_94 = arith.constant 0 : index
    %c7_95 = arith.constant 7 : index
    %c0_96 = arith.constant 0 : index
    %169 = vector.load %arg2[%c0_93, %c0_94, %c7_95, %c0_96] : memref<1x64x16x16xf32, #tpu.memory_space<vmem>>, vector<1x64x1x16xf32>
    %170 = vector.shape_cast %169 : vector<1x64x1x16xf32> to vector<64x16xf32>
    %171 = arith.truncf %170 : vector<64x16xf32> to vector<64x16xbf16>
    %cst_97 = arith.constant dense<0.000000e+00> : vector<64x32xf32>
    %172 = tpu.matmul %171, %1, %cst_97 {dimension_numbers = #tpu.dot_dimension_numbers<[1], [0], [0], [1], [0, 0, 1, 1], [], []>} : vector<64x16xbf16>, vector<16x32xbf16>, vector<64x32xf32> -> vector<64x32xf32>
    %173 = arith.truncf %172 : vector<64x32xf32> to vector<64x32xbf16>
    %cst_98 = arith.constant dense<0.000000e+00> : vector<128x32xf32>
    %174 = tpu.matmul %0, %173, %cst_98 {dimension_numbers = #tpu.dot_dimension_numbers<[1], [0], [0], [1], [0, 0, 1, 1], [], []>} : vector<128x64xbf16>, vector<64x32xbf16>, vector<128x32xf32> -> vector<128x32xf32>
    %175 = vector.extract_strided_slice %174 {offsets = [0, 0], sizes = [64, 32], strides = [1, 1]} : vector<128x32xf32> to vector<64x32xf32>
    %176 = vector.extract_strided_slice %174 {offsets = [64, 0], sizes = [64, 32], strides = [1, 1]} : vector<128x32xf32> to vector<64x32xf32>
    %177 = vector.shape_cast %21 : vector<1x32xi1> to vector<1x32xi1>
    %178 = vector.broadcast %177 : vector<1x32xi1> to vector<64x32xi1>
    %179 = arith.select %178, %175, %176 : vector<64x32xi1>, vector<64x32xf32>
    %180 = vector.broadcast %2 : vector<64x1xf32> to vector<64x32xf32>
    %181 = arith.addf %179, %180 : vector<64x32xf32>
    %182 = vector.extract_strided_slice %181 {offsets = [0, 0], sizes = [32, 32], strides = [1, 1]} : vector<64x32xf32> to vector<32x32xf32>
    %c0_99 = arith.constant 0 : index
    %c14 = arith.constant 14 : index
    %c0_100 = arith.constant 0 : index
    %c0_101 = arith.constant 0 : index
    %183 = vector.load %arg6[%c0_99, %c14, %c0_100, %c0_101] : memref<1x32x32x32xf32, #tpu.memory_space<vmem>>, vector<1x1x32x32xf32>
    %184 = vector.shape_cast %183 : vector<1x1x32x32xf32> to vector<32x32xf32>
    %185 = vector.shape_cast %182 : vector<32x32xf32> to vector<1x1x32x32xf32>
    tpu.vector_store %arg6[%c0_99, %c14, %c0_100, %c0_101], %185 {strides = array<i32>} : memref<1x32x32x32xf32, #tpu.memory_space<vmem>>, vector<1x1x32x32xf32>,
    %186 = vector.extract_strided_slice %181 {offsets = [32, 0], sizes = [32, 32], strides = [1, 1]} : vector<64x32xf32> to vector<32x32xf32>
    %c0_102 = arith.constant 0 : index
    %c15 = arith.constant 15 : index
    %c0_103 = arith.constant 0 : index
    %c0_104 = arith.constant 0 : index
    %187 = vector.load %arg6[%c0_102, %c15, %c0_103, %c0_104] : memref<1x32x32x32xf32, #tpu.memory_space<vmem>>, vector<1x1x32x32xf32>
    %188 = vector.shape_cast %187 : vector<1x1x32x32xf32> to vector<32x32xf32>
    %189 = vector.shape_cast %186 : vector<32x32xf32> to vector<1x1x32x32xf32>
    tpu.vector_store %arg6[%c0_102, %c15, %c0_103, %c0_104], %189 {strides = array<i32>} : memref<1x32x32x32xf32, #tpu.memory_space<vmem>>, vector<1x1x32x32xf32>,
    %c0_105 = arith.constant 0 : index
    %c0_106 = arith.constant 0 : index
    %c8_107 = arith.constant 8 : index
    %c0_108 = arith.constant 0 : index
    %190 = vector.load %arg2[%c0_105, %c0_106, %c8_107, %c0_108] : memref<1x64x16x16xf32, #tpu.memory_space<vmem>>, vector<1x64x1x16xf32>
    %191 = vector.shape_cast %190 : vector<1x64x1x16xf32> to vector<64x16xf32>
    %192 = arith.truncf %191 : vector<64x16xf32> to vector<64x16xbf16>
    %cst_109 = arith.constant dense<0.000000e+00> : vector<64x32xf32>
    %193 = tpu.matmul %192, %1, %cst_109 {dimension_numbers = #tpu.dot_dimension_numbers<[1], [0], [0], [1], [0, 0, 1, 1], [], []>} : vector<64x16xbf16>, vector<16x32xbf16>, vector<64x32xf32> -> vector<64x32xf32>
    %194 = arith.truncf %193 : vector<64x32xf32> to vector<64x32xbf16>
    %cst_110 = arith.constant dense<0.000000e+00> : vector<128x32xf32>
    %195 = tpu.matmul %0, %194, %cst_110 {dimension_numbers = #tpu.dot_dimension_numbers<[1], [0], [0], [1], [0, 0, 1, 1], [], []>} : vector<128x64xbf16>, vector<64x32xbf16>, vector<128x32xf32> -> vector<128x32xf32>
    %196 = vector.extract_strided_slice %195 {offsets = [0, 0], sizes = [64, 32], strides = [1, 1]} : vector<128x32xf32> to vector<64x32xf32>
    %197 = vector.extract_strided_slice %195 {offsets = [64, 0], sizes = [64, 32], strides = [1, 1]} : vector<128x32xf32> to vector<64x32xf32>
    %198 = vector.shape_cast %21 : vector<1x32xi1> to vector<1x32xi1>
    %199 = vector.broadcast %198 : vector<1x32xi1> to vector<64x32xi1>
    %200 = arith.select %199, %196, %197 : vector<64x32xi1>, vector<64x32xf32>
    %201 = vector.broadcast %2 : vector<64x1xf32> to vector<64x32xf32>
    %202 = arith.addf %200, %201 : vector<64x32xf32>
    %203 = vector.extract_strided_slice %202 {offsets = [0, 0], sizes = [32, 32], strides = [1, 1]} : vector<64x32xf32> to vector<32x32xf32>
    %c0_111 = arith.constant 0 : index
    %c16 = arith.constant 16 : index
    %c0_112 = arith.constant 0 : index
    %c0_113 = arith.constant 0 : index
    %204 = vector.load %arg6[%c0_111, %c16, %c0_112, %c0_113] : memref<1x32x32x32xf32, #tpu.memory_space<vmem>>, vector<1x1x32x32xf32>
    %205 = vector.shape_cast %204 : vector<1x1x32x32xf32> to vector<32x32xf32>
    %206 = vector.shape_cast %203 : vector<32x32xf32> to vector<1x1x32x32xf32>
    tpu.vector_store %arg6[%c0_111, %c16, %c0_112, %c0_113], %206 {strides = array<i32>} : memref<1x32x32x32xf32, #tpu.memory_space<vmem>>, vector<1x1x32x32xf32>,
    %207 = vector.extract_strided_slice %202 {offsets = [32, 0], sizes = [32, 32], strides = [1, 1]} : vector<64x32xf32> to vector<32x32xf32>
    %c0_114 = arith.constant 0 : index
    %c17 = arith.constant 17 : index
    %c0_115 = arith.constant 0 : index
    %c0_116 = arith.constant 0 : index
    %208 = vector.load %arg6[%c0_114, %c17, %c0_115, %c0_116] : memref<1x32x32x32xf32, #tpu.memory_space<vmem>>, vector<1x1x32x32xf32>
    %209 = vector.shape_cast %208 : vector<1x1x32x32xf32> to vector<32x32xf32>
    %210 = vector.shape_cast %207 : vector<32x32xf32> to vector<1x1x32x32xf32>
    tpu.vector_store %arg6[%c0_114, %c17, %c0_115, %c0_116], %210 {strides = array<i32>} : memref<1x32x32x32xf32, #tpu.memory_space<vmem>>, vector<1x1x32x32xf32>,
    %c0_117 = arith.constant 0 : index
    %c0_118 = arith.constant 0 : index
    %c9_119 = arith.constant 9 : index
    %c0_120 = arith.constant 0 : index
    %211 = vector.load %arg2[%c0_117, %c0_118, %c9_119, %c0_120] : memref<1x64x16x16xf32, #tpu.memory_space<vmem>>, vector<1x64x1x16xf32>
    %212 = vector.shape_cast %211 : vector<1x64x1x16xf32> to vector<64x16xf32>
    %213 = arith.truncf %212 : vector<64x16xf32> to vector<64x16xbf16>
    %cst_121 = arith.constant dense<0.000000e+00> : vector<64x32xf32>
    %214 = tpu.matmul %213, %1, %cst_121 {dimension_numbers = #tpu.dot_dimension_numbers<[1], [0], [0], [1], [0, 0, 1, 1], [], []>} : vector<64x16xbf16>, vector<16x32xbf16>, vector<64x32xf32> -> vector<64x32xf32>
    %215 = arith.truncf %214 : vector<64x32xf32> to vector<64x32xbf16>
    %cst_122 = arith.constant dense<0.000000e+00> : vector<128x32xf32>
    %216 = tpu.matmul %0, %215, %cst_122 {dimension_numbers = #tpu.dot_dimension_numbers<[1], [0], [0], [1], [0, 0, 1, 1], [], []>} : vector<128x64xbf16>, vector<64x32xbf16>, vector<128x32xf32> -> vector<128x32xf32>
    %217 = vector.extract_strided_slice %216 {offsets = [0, 0], sizes = [64, 32], strides = [1, 1]} : vector<128x32xf32> to vector<64x32xf32>
    %218 = vector.extract_strided_slice %216 {offsets = [64, 0], sizes = [64, 32], strides = [1, 1]} : vector<128x32xf32> to vector<64x32xf32>
    %219 = vector.shape_cast %21 : vector<1x32xi1> to vector<1x32xi1>
    %220 = vector.broadcast %219 : vector<1x32xi1> to vector<64x32xi1>
    %221 = arith.select %220, %217, %218 : vector<64x32xi1>, vector<64x32xf32>
    %222 = vector.broadcast %2 : vector<64x1xf32> to vector<64x32xf32>
    %223 = arith.addf %221, %222 : vector<64x32xf32>
    %224 = vector.extract_strided_slice %223 {offsets = [0, 0], sizes = [32, 32], strides = [1, 1]} : vector<64x32xf32> to vector<32x32xf32>
    %c0_123 = arith.constant 0 : index
    %c18 = arith.constant 18 : index
    %c0_124 = arith.constant 0 : index
    %c0_125 = arith.constant 0 : index
    %225 = vector.load %arg6[%c0_123, %c18, %c0_124, %c0_125] : memref<1x32x32x32xf32, #tpu.memory_space<vmem>>, vector<1x1x32x32xf32>
    %226 = vector.shape_cast %225 : vector<1x1x32x32xf32> to vector<32x32xf32>
    %227 = vector.shape_cast %224 : vector<32x32xf32> to vector<1x1x32x32xf32>
    tpu.vector_store %arg6[%c0_123, %c18, %c0_124, %c0_125], %227 {strides = array<i32>} : memref<1x32x32x32xf32, #tpu.memory_space<vmem>>, vector<1x1x32x32xf32>,
    %228 = vector.extract_strided_slice %223 {offsets = [32, 0], sizes = [32, 32], strides = [1, 1]} : vector<64x32xf32> to vector<32x32xf32>
    %c0_126 = arith.constant 0 : index
    %c19 = arith.constant 19 : index
    %c0_127 = arith.constant 0 : index
    %c0_128 = arith.constant 0 : index
    %229 = vector.load %arg6[%c0_126, %c19, %c0_127, %c0_128] : memref<1x32x32x32xf32, #tpu.memory_space<vmem>>, vector<1x1x32x32xf32>
    %230 = vector.shape_cast %229 : vector<1x1x32x32xf32> to vector<32x32xf32>
    %231 = vector.shape_cast %228 : vector<32x32xf32> to vector<1x1x32x32xf32>
    tpu.vector_store %arg6[%c0_126, %c19, %c0_127, %c0_128], %231 {strides = array<i32>} : memref<1x32x32x32xf32, #tpu.memory_space<vmem>>, vector<1x1x32x32xf32>,
    %c0_129 = arith.constant 0 : index
    %c0_130 = arith.constant 0 : index
    %c10_131 = arith.constant 10 : index
    %c0_132 = arith.constant 0 : index
    %232 = vector.load %arg2[%c0_129, %c0_130, %c10_131, %c0_132] : memref<1x64x16x16xf32, #tpu.memory_space<vmem>>, vector<1x64x1x16xf32>
    %233 = vector.shape_cast %232 : vector<1x64x1x16xf32> to vector<64x16xf32>
    %234 = arith.truncf %233 : vector<64x16xf32> to vector<64x16xbf16>
    %cst_133 = arith.constant dense<0.000000e+00> : vector<64x32xf32>
    %235 = tpu.matmul %234, %1, %cst_133 {dimension_numbers = #tpu.dot_dimension_numbers<[1], [0], [0], [1], [0, 0, 1, 1], [], []>} : vector<64x16xbf16>, vector<16x32xbf16>, vector<64x32xf32> -> vector<64x32xf32>
    %236 = arith.truncf %235 : vector<64x32xf32> to vector<64x32xbf16>
    %cst_134 = arith.constant dense<0.000000e+00> : vector<128x32xf32>
    %237 = tpu.matmul %0, %236, %cst_134 {dimension_numbers = #tpu.dot_dimension_numbers<[1], [0], [0], [1], [0, 0, 1, 1], [], []>} : vector<128x64xbf16>, vector<64x32xbf16>, vector<128x32xf32> -> vector<128x32xf32>
    %238 = vector.extract_strided_slice %237 {offsets = [0, 0], sizes = [64, 32], strides = [1, 1]} : vector<128x32xf32> to vector<64x32xf32>
    %239 = vector.extract_strided_slice %237 {offsets = [64, 0], sizes = [64, 32], strides = [1, 1]} : vector<128x32xf32> to vector<64x32xf32>
    %240 = vector.shape_cast %21 : vector<1x32xi1> to vector<1x32xi1>
    %241 = vector.broadcast %240 : vector<1x32xi1> to vector<64x32xi1>
    %242 = arith.select %241, %238, %239 : vector<64x32xi1>, vector<64x32xf32>
    %243 = vector.broadcast %2 : vector<64x1xf32> to vector<64x32xf32>
    %244 = arith.addf %242, %243 : vector<64x32xf32>
    %245 = vector.extract_strided_slice %244 {offsets = [0, 0], sizes = [32, 32], strides = [1, 1]} : vector<64x32xf32> to vector<32x32xf32>
    %c0_135 = arith.constant 0 : index
    %c20 = arith.constant 20 : index
    %c0_136 = arith.constant 0 : index
    %c0_137 = arith.constant 0 : index
    %246 = vector.load %arg6[%c0_135, %c20, %c0_136, %c0_137] : memref<1x32x32x32xf32, #tpu.memory_space<vmem>>, vector<1x1x32x32xf32>
    %247 = vector.shape_cast %246 : vector<1x1x32x32xf32> to vector<32x32xf32>
    %248 = vector.shape_cast %245 : vector<32x32xf32> to vector<1x1x32x32xf32>
    tpu.vector_store %arg6[%c0_135, %c20, %c0_136, %c0_137], %248 {strides = array<i32>} : memref<1x32x32x32xf32, #tpu.memory_space<vmem>>, vector<1x1x32x32xf32>,
    %249 = vector.extract_strided_slice %244 {offsets = [32, 0], sizes = [32, 32], strides = [1, 1]} : vector<64x32xf32> to vector<32x32xf32>
    %c0_138 = arith.constant 0 : index
    %c21 = arith.constant 21 : index
    %c0_139 = arith.constant 0 : index
    %c0_140 = arith.constant 0 : index
    %250 = vector.load %arg6[%c0_138, %c21, %c0_139, %c0_140] : memref<1x32x32x32xf32, #tpu.memory_space<vmem>>, vector<1x1x32x32xf32>
    %251 = vector.shape_cast %250 : vector<1x1x32x32xf32> to vector<32x32xf32>
    %252 = vector.shape_cast %249 : vector<32x32xf32> to vector<1x1x32x32xf32>
    tpu.vector_store %arg6[%c0_138, %c21, %c0_139, %c0_140], %252 {strides = array<i32>} : memref<1x32x32x32xf32, #tpu.memory_space<vmem>>, vector<1x1x32x32xf32>,
    %c0_141 = arith.constant 0 : index
    %c0_142 = arith.constant 0 : index
    %c11_143 = arith.constant 11 : index
    %c0_144 = arith.constant 0 : index
    %253 = vector.load %arg2[%c0_141, %c0_142, %c11_143, %c0_144] : memref<1x64x16x16xf32, #tpu.memory_space<vmem>>, vector<1x64x1x16xf32>
    %254 = vector.shape_cast %253 : vector<1x64x1x16xf32> to vector<64x16xf32>
    %255 = arith.truncf %254 : vector<64x16xf32> to vector<64x16xbf16>
    %cst_145 = arith.constant dense<0.000000e+00> : vector<64x32xf32>
    %256 = tpu.matmul %255, %1, %cst_145 {dimension_numbers = #tpu.dot_dimension_numbers<[1], [0], [0], [1], [0, 0, 1, 1], [], []>} : vector<64x16xbf16>, vector<16x32xbf16>, vector<64x32xf32> -> vector<64x32xf32>
    %257 = arith.truncf %256 : vector<64x32xf32> to vector<64x32xbf16>
    %cst_146 = arith.constant dense<0.000000e+00> : vector<128x32xf32>
    %258 = tpu.matmul %0, %257, %cst_146 {dimension_numbers = #tpu.dot_dimension_numbers<[1], [0], [0], [1], [0, 0, 1, 1], [], []>} : vector<128x64xbf16>, vector<64x32xbf16>, vector<128x32xf32> -> vector<128x32xf32>
    %259 = vector.extract_strided_slice %258 {offsets = [0, 0], sizes = [64, 32], strides = [1, 1]} : vector<128x32xf32> to vector<64x32xf32>
    %260 = vector.extract_strided_slice %258 {offsets = [64, 0], sizes = [64, 32], strides = [1, 1]} : vector<128x32xf32> to vector<64x32xf32>
    %261 = vector.shape_cast %21 : vector<1x32xi1> to vector<1x32xi1>
    %262 = vector.broadcast %261 : vector<1x32xi1> to vector<64x32xi1>
    %263 = arith.select %262, %259, %260 : vector<64x32xi1>, vector<64x32xf32>
    %264 = vector.broadcast %2 : vector<64x1xf32> to vector<64x32xf32>
    %265 = arith.addf %263, %264 : vector<64x32xf32>
    %266 = vector.extract_strided_slice %265 {offsets = [0, 0], sizes = [32, 32], strides = [1, 1]} : vector<64x32xf32> to vector<32x32xf32>
    %c0_147 = arith.constant 0 : index
    %c22 = arith.constant 22 : index
    %c0_148 = arith.constant 0 : index
    %c0_149 = arith.constant 0 : index
    %267 = vector.load %arg6[%c0_147, %c22, %c0_148, %c0_149] : memref<1x32x32x32xf32, #tpu.memory_space<vmem>>, vector<1x1x32x32xf32>
    %268 = vector.shape_cast %267 : vector<1x1x32x32xf32> to vector<32x32xf32>
    %269 = vector.shape_cast %266 : vector<32x32xf32> to vector<1x1x32x32xf32>
    tpu.vector_store %arg6[%c0_147, %c22, %c0_148, %c0_149], %269 {strides = array<i32>} : memref<1x32x32x32xf32, #tpu.memory_space<vmem>>, vector<1x1x32x32xf32>,
    %270 = vector.extract_strided_slice %265 {offsets = [32, 0], sizes = [32, 32], strides = [1, 1]} : vector<64x32xf32> to vector<32x32xf32>
    %c0_150 = arith.constant 0 : index
    %c23 = arith.constant 23 : index
    %c0_151 = arith.constant 0 : index
    %c0_152 = arith.constant 0 : index
    %271 = vector.load %arg6[%c0_150, %c23, %c0_151, %c0_152] : memref<1x32x32x32xf32, #tpu.memory_space<vmem>>, vector<1x1x32x32xf32>
    %272 = vector.shape_cast %271 : vector<1x1x32x32xf32> to vector<32x32xf32>
    %273 = vector.shape_cast %270 : vector<32x32xf32> to vector<1x1x32x32xf32>
    tpu.vector_store %arg6[%c0_150, %c23, %c0_151, %c0_152], %273 {strides = array<i32>} : memref<1x32x32x32xf32, #tpu.memory_space<vmem>>, vector<1x1x32x32xf32>,
    %c0_153 = arith.constant 0 : index
    %c0_154 = arith.constant 0 : index
    %c12_155 = arith.constant 12 : index
    %c0_156 = arith.constant 0 : index
    %274 = vector.load %arg2[%c0_153, %c0_154, %c12_155, %c0_156] : memref<1x64x16x16xf32, #tpu.memory_space<vmem>>, vector<1x64x1x16xf32>
    %275 = vector.shape_cast %274 : vector<1x64x1x16xf32> to vector<64x16xf32>
    %276 = arith.truncf %275 : vector<64x16xf32> to vector<64x16xbf16>
    %cst_157 = arith.constant dense<0.000000e+00> : vector<64x32xf32>
    %277 = tpu.matmul %276, %1, %cst_157 {dimension_numbers = #tpu.dot_dimension_numbers<[1], [0], [0], [1], [0, 0, 1, 1], [], []>} : vector<64x16xbf16>, vector<16x32xbf16>, vector<64x32xf32> -> vector<64x32xf32>
    %278 = arith.truncf %277 : vector<64x32xf32> to vector<64x32xbf16>
    %cst_158 = arith.constant dense<0.000000e+00> : vector<128x32xf32>
    %279 = tpu.matmul %0, %278, %cst_158 {dimension_numbers = #tpu.dot_dimension_numbers<[1], [0], [0], [1], [0, 0, 1, 1], [], []>} : vector<128x64xbf16>, vector<64x32xbf16>, vector<128x32xf32> -> vector<128x32xf32>
    %280 = vector.extract_strided_slice %279 {offsets = [0, 0], sizes = [64, 32], strides = [1, 1]} : vector<128x32xf32> to vector<64x32xf32>
    %281 = vector.extract_strided_slice %279 {offsets = [64, 0], sizes = [64, 32], strides = [1, 1]} : vector<128x32xf32> to vector<64x32xf32>
    %282 = vector.shape_cast %21 : vector<1x32xi1> to vector<1x32xi1>
    %283 = vector.broadcast %282 : vector<1x32xi1> to vector<64x32xi1>
    %284 = arith.select %283, %280, %281 : vector<64x32xi1>, vector<64x32xf32>
    %285 = vector.broadcast %2 : vector<64x1xf32> to vector<64x32xf32>
    %286 = arith.addf %284, %285 : vector<64x32xf32>
    %287 = vector.extract_strided_slice %286 {offsets = [0, 0], sizes = [32, 32], strides = [1, 1]} : vector<64x32xf32> to vector<32x32xf32>
    %c0_159 = arith.constant 0 : index
    %c24 = arith.constant 24 : index
    %c0_160 = arith.constant 0 : index
    %c0_161 = arith.constant 0 : index
    %288 = vector.load %arg6[%c0_159, %c24, %c0_160, %c0_161] : memref<1x32x32x32xf32, #tpu.memory_space<vmem>>, vector<1x1x32x32xf32>
    %289 = vector.shape_cast %288 : vector<1x1x32x32xf32> to vector<32x32xf32>
    %290 = vector.shape_cast %287 : vector<32x32xf32> to vector<1x1x32x32xf32>
    tpu.vector_store %arg6[%c0_159, %c24, %c0_160, %c0_161], %290 {strides = array<i32>} : memref<1x32x32x32xf32, #tpu.memory_space<vmem>>, vector<1x1x32x32xf32>,
    %291 = vector.extract_strided_slice %286 {offsets = [32, 0], sizes = [32, 32], strides = [1, 1]} : vector<64x32xf32> to vector<32x32xf32>
    %c0_162 = arith.constant 0 : index
    %c25 = arith.constant 25 : index
    %c0_163 = arith.constant 0 : index
    %c0_164 = arith.constant 0 : index
    %292 = vector.load %arg6[%c0_162, %c25, %c0_163, %c0_164] : memref<1x32x32x32xf32, #tpu.memory_space<vmem>>, vector<1x1x32x32xf32>
    %293 = vector.shape_cast %292 : vector<1x1x32x32xf32> to vector<32x32xf32>
    %294 = vector.shape_cast %291 : vector<32x32xf32> to vector<1x1x32x32xf32>
    tpu.vector_store %arg6[%c0_162, %c25, %c0_163, %c0_164], %294 {strides = array<i32>} : memref<1x32x32x32xf32, #tpu.memory_space<vmem>>, vector<1x1x32x32xf32>,
    %c0_165 = arith.constant 0 : index
    %c0_166 = arith.constant 0 : index
    %c13_167 = arith.constant 13 : index
    %c0_168 = arith.constant 0 : index
    %295 = vector.load %arg2[%c0_165, %c0_166, %c13_167, %c0_168] : memref<1x64x16x16xf32, #tpu.memory_space<vmem>>, vector<1x64x1x16xf32>
    %296 = vector.shape_cast %295 : vector<1x64x1x16xf32> to vector<64x16xf32>
    %297 = arith.truncf %296 : vector<64x16xf32> to vector<64x16xbf16>
    %cst_169 = arith.constant dense<0.000000e+00> : vector<64x32xf32>
    %298 = tpu.matmul %297, %1, %cst_169 {dimension_numbers = #tpu.dot_dimension_numbers<[1], [0], [0], [1], [0, 0, 1, 1], [], []>} : vector<64x16xbf16>, vector<16x32xbf16>, vector<64x32xf32> -> vector<64x32xf32>
    %299 = arith.truncf %298 : vector<64x32xf32> to vector<64x32xbf16>
    %cst_170 = arith.constant dense<0.000000e+00> : vector<128x32xf32>
    %300 = tpu.matmul %0, %299, %cst_170 {dimension_numbers = #tpu.dot_dimension_numbers<[1], [0], [0], [1], [0, 0, 1, 1], [], []>} : vector<128x64xbf16>, vector<64x32xbf16>, vector<128x32xf32> -> vector<128x32xf32>
    %301 = vector.extract_strided_slice %300 {offsets = [0, 0], sizes = [64, 32], strides = [1, 1]} : vector<128x32xf32> to vector<64x32xf32>
    %302 = vector.extract_strided_slice %300 {offsets = [64, 0], sizes = [64, 32], strides = [1, 1]} : vector<128x32xf32> to vector<64x32xf32>
    %303 = vector.shape_cast %21 : vector<1x32xi1> to vector<1x32xi1>
    %304 = vector.broadcast %303 : vector<1x32xi1> to vector<64x32xi1>
    %305 = arith.select %304, %301, %302 : vector<64x32xi1>, vector<64x32xf32>
    %306 = vector.broadcast %2 : vector<64x1xf32> to vector<64x32xf32>
    %307 = arith.addf %305, %306 : vector<64x32xf32>
    %308 = vector.extract_strided_slice %307 {offsets = [0, 0], sizes = [32, 32], strides = [1, 1]} : vector<64x32xf32> to vector<32x32xf32>
    %c0_171 = arith.constant 0 : index
    %c26 = arith.constant 26 : index
    %c0_172 = arith.constant 0 : index
    %c0_173 = arith.constant 0 : index
    %309 = vector.load %arg6[%c0_171, %c26, %c0_172, %c0_173] : memref<1x32x32x32xf32, #tpu.memory_space<vmem>>, vector<1x1x32x32xf32>
    %310 = vector.shape_cast %309 : vector<1x1x32x32xf32> to vector<32x32xf32>
    %311 = vector.shape_cast %308 : vector<32x32xf32> to vector<1x1x32x32xf32>
    tpu.vector_store %arg6[%c0_171, %c26, %c0_172, %c0_173], %311 {strides = array<i32>} : memref<1x32x32x32xf32, #tpu.memory_space<vmem>>, vector<1x1x32x32xf32>,
    %312 = vector.extract_strided_slice %307 {offsets = [32, 0], sizes = [32, 32], strides = [1, 1]} : vector<64x32xf32> to vector<32x32xf32>
    %c0_174 = arith.constant 0 : index
    %c27 = arith.constant 27 : index
    %c0_175 = arith.constant 0 : index
    %c0_176 = arith.constant 0 : index
    %313 = vector.load %arg6[%c0_174, %c27, %c0_175, %c0_176] : memref<1x32x32x32xf32, #tpu.memory_space<vmem>>, vector<1x1x32x32xf32>
    %314 = vector.shape_cast %313 : vector<1x1x32x32xf32> to vector<32x32xf32>
    %315 = vector.shape_cast %312 : vector<32x32xf32> to vector<1x1x32x32xf32>
    tpu.vector_store %arg6[%c0_174, %c27, %c0_175, %c0_176], %315 {strides = array<i32>} : memref<1x32x32x32xf32, #tpu.memory_space<vmem>>, vector<1x1x32x32xf32>,
    %c0_177 = arith.constant 0 : index
    %c0_178 = arith.constant 0 : index
    %c14_179 = arith.constant 14 : index
    %c0_180 = arith.constant 0 : index
    %316 = vector.load %arg2[%c0_177, %c0_178, %c14_179, %c0_180] : memref<1x64x16x16xf32, #tpu.memory_space<vmem>>, vector<1x64x1x16xf32>
    %317 = vector.shape_cast %316 : vector<1x64x1x16xf32> to vector<64x16xf32>
    %318 = arith.truncf %317 : vector<64x16xf32> to vector<64x16xbf16>
    %cst_181 = arith.constant dense<0.000000e+00> : vector<64x32xf32>
    %319 = tpu.matmul %318, %1, %cst_181 {dimension_numbers = #tpu.dot_dimension_numbers<[1], [0], [0], [1], [0, 0, 1, 1], [], []>} : vector<64x16xbf16>, vector<16x32xbf16>, vector<64x32xf32> -> vector<64x32xf32>
    %320 = arith.truncf %319 : vector<64x32xf32> to vector<64x32xbf16>
    %cst_182 = arith.constant dense<0.000000e+00> : vector<128x32xf32>
    %321 = tpu.matmul %0, %320, %cst_182 {dimension_numbers = #tpu.dot_dimension_numbers<[1], [0], [0], [1], [0, 0, 1, 1], [], []>} : vector<128x64xbf16>, vector<64x32xbf16>, vector<128x32xf32> -> vector<128x32xf32>
    %322 = vector.extract_strided_slice %321 {offsets = [0, 0], sizes = [64, 32], strides = [1, 1]} : vector<128x32xf32> to vector<64x32xf32>
    %323 = vector.extract_strided_slice %321 {offsets = [64, 0], sizes = [64, 32], strides = [1, 1]} : vector<128x32xf32> to vector<64x32xf32>
    %324 = vector.shape_cast %21 : vector<1x32xi1> to vector<1x32xi1>
    %325 = vector.broadcast %324 : vector<1x32xi1> to vector<64x32xi1>
    %326 = arith.select %325, %322, %323 : vector<64x32xi1>, vector<64x32xf32>
    %327 = vector.broadcast %2 : vector<64x1xf32> to vector<64x32xf32>
    %328 = arith.addf %326, %327 : vector<64x32xf32>
    %329 = vector.extract_strided_slice %328 {offsets = [0, 0], sizes = [32, 32], strides = [1, 1]} : vector<64x32xf32> to vector<32x32xf32>
    %c0_183 = arith.constant 0 : index
    %c28 = arith.constant 28 : index
    %c0_184 = arith.constant 0 : index
    %c0_185 = arith.constant 0 : index
    %330 = vector.load %arg6[%c0_183, %c28, %c0_184, %c0_185] : memref<1x32x32x32xf32, #tpu.memory_space<vmem>>, vector<1x1x32x32xf32>
    %331 = vector.shape_cast %330 : vector<1x1x32x32xf32> to vector<32x32xf32>
    %332 = vector.shape_cast %329 : vector<32x32xf32> to vector<1x1x32x32xf32>
    tpu.vector_store %arg6[%c0_183, %c28, %c0_184, %c0_185], %332 {strides = array<i32>} : memref<1x32x32x32xf32, #tpu.memory_space<vmem>>, vector<1x1x32x32xf32>,
    %333 = vector.extract_strided_slice %328 {offsets = [32, 0], sizes = [32, 32], strides = [1, 1]} : vector<64x32xf32> to vector<32x32xf32>
    %c0_186 = arith.constant 0 : index
    %c29 = arith.constant 29 : index
    %c0_187 = arith.constant 0 : index
    %c0_188 = arith.constant 0 : index
    %334 = vector.load %arg6[%c0_186, %c29, %c0_187, %c0_188] : memref<1x32x32x32xf32, #tpu.memory_space<vmem>>, vector<1x1x32x32xf32>
    %335 = vector.shape_cast %334 : vector<1x1x32x32xf32> to vector<32x32xf32>
    %336 = vector.shape_cast %333 : vector<32x32xf32> to vector<1x1x32x32xf32>
    tpu.vector_store %arg6[%c0_186, %c29, %c0_187, %c0_188], %336 {strides = array<i32>} : memref<1x32x32x32xf32, #tpu.memory_space<vmem>>, vector<1x1x32x32xf32>,
    %c0_189 = arith.constant 0 : index
    %c0_190 = arith.constant 0 : index
    %c15_191 = arith.constant 15 : index
    %c0_192 = arith.constant 0 : index
    %337 = vector.load %arg2[%c0_189, %c0_190, %c15_191, %c0_192] : memref<1x64x16x16xf32, #tpu.memory_space<vmem>>, vector<1x64x1x16xf32>
    %338 = vector.shape_cast %337 : vector<1x64x1x16xf32> to vector<64x16xf32>
    %339 = arith.truncf %338 : vector<64x16xf32> to vector<64x16xbf16>
    %cst_193 = arith.constant dense<0.000000e+00> : vector<64x32xf32>
    %340 = tpu.matmul %339, %1, %cst_193 {dimension_numbers = #tpu.dot_dimension_numbers<[1], [0], [0], [1], [0, 0, 1, 1], [], []>} : vector<64x16xbf16>, vector<16x32xbf16>, vector<64x32xf32> -> vector<64x32xf32>
    %341 = arith.truncf %340 : vector<64x32xf32> to vector<64x32xbf16>
    %cst_194 = arith.constant dense<0.000000e+00> : vector<128x32xf32>
    %342 = tpu.matmul %0, %341, %cst_194 {dimension_numbers = #tpu.dot_dimension_numbers<[1], [0], [0], [1], [0, 0, 1, 1], [], []>} : vector<128x64xbf16>, vector<64x32xbf16>, vector<128x32xf32> -> vector<128x32xf32>
    %343 = vector.extract_strided_slice %342 {offsets = [0, 0], sizes = [64, 32], strides = [1, 1]} : vector<128x32xf32> to vector<64x32xf32>
    %344 = vector.extract_strided_slice %342 {offsets = [64, 0], sizes = [64, 32], strides = [1, 1]} : vector<128x32xf32> to vector<64x32xf32>
    %345 = vector.shape_cast %21 : vector<1x32xi1> to vector<1x32xi1>
    %346 = vector.broadcast %345 : vector<1x32xi1> to vector<64x32xi1>
    %347 = arith.select %346, %343, %344 : vector<64x32xi1>, vector<64x32xf32>
    %348 = vector.broadcast %2 : vector<64x1xf32> to vector<64x32xf32>
    %349 = arith.addf %347, %348 : vector<64x32xf32>
    %350 = vector.extract_strided_slice %349 {offsets = [0, 0], sizes = [32, 32], strides = [1, 1]} : vector<64x32xf32> to vector<32x32xf32>
    %c0_195 = arith.constant 0 : index
    %c30 = arith.constant 30 : index
    %c0_196 = arith.constant 0 : index
    %c0_197 = arith.constant 0 : index
    %351 = vector.load %arg6[%c0_195, %c30, %c0_196, %c0_197] : memref<1x32x32x32xf32, #tpu.memory_space<vmem>>, vector<1x1x32x32xf32>
    %352 = vector.shape_cast %351 : vector<1x1x32x32xf32> to vector<32x32xf32>
    %353 = vector.shape_cast %350 : vector<32x32xf32> to vector<1x1x32x32xf32>
    tpu.vector_store %arg6[%c0_195, %c30, %c0_196, %c0_197], %353 {strides = array<i32>} : memref<1x32x32x32xf32, #tpu.memory_space<vmem>>, vector<1x1x32x32xf32>,
    %354 = vector.extract_strided_slice %349 {offsets = [32, 0], sizes = [32, 32], strides = [1, 1]} : vector<64x32xf32> to vector<32x32xf32>
    %c0_198 = arith.constant 0 : index
    %c31 = arith.constant 31 : index
    %c0_199 = arith.constant 0 : index
    %c0_200 = arith.constant 0 : index
    %355 = vector.load %arg6[%c0_198, %c31, %c0_199, %c0_200] : memref<1x32x32x32xf32, #tpu.memory_space<vmem>>, vector<1x1x32x32xf32>
    %356 = vector.shape_cast %355 : vector<1x1x32x32xf32> to vector<32x32xf32>
    %357 = vector.shape_cast %354 : vector<32x32xf32> to vector<1x1x32x32xf32>
    tpu.vector_store %arg6[%c0_198, %c31, %c0_199, %c0_200], %357 {strides = array<i32>} : memref<1x32x32x32xf32, #tpu.memory_space<vmem>>, vector<1x1x32x32xf32>,
    return
  }
  func.func @transform_0(%arg0: i32, %arg1: i32) -> (i32, i32, i32, i32) {
    %c0_i32 = arith.constant 0 : i32
    %c0_i32_0 = arith.constant 0 : i32
    %c0_i32_1 = arith.constant 0 : i32
    return %arg0, %c0_i32, %arg1, %c0_i32_0 : i32, i32, i32, i32
  }
  func.func @transform_1(%arg0: i32, %arg1: i32) -> (i32, i32) {
    %c0_i32 = arith.constant 0 : i32
    %c0_i32_0 = arith.constant 0 : i32
    %c0_i32_1 = arith.constant 0 : i32
    return %c0_i32, %c0_i32_0 : i32, i32
  }
  func.func @transform_2(%arg0: i32, %arg1: i32) -> (i32, i32) {
    %c0_i32 = arith.constant 0 : i32
    %c0_i32_0 = arith.constant 0 : i32
    %c0_i32_1 = arith.constant 0 : i32
    return %c0_i32, %c0_i32_0 : i32, i32
  }
  func.func @transform_3(%arg0: i32, %arg1: i32) -> (i32, i32) {
    %c0_i32 = arith.constant 0 : i32
    %c0_i32_0 = arith.constant 0 : i32
    %c0_i32_1 = arith.constant 0 : i32
    return %c0_i32, %c0_i32_0 : i32, i32
  }
  func.func @transform_4(%arg0: i32, %arg1: i32) -> (i32, i32, i32, i32) {
    %c0_i32 = arith.constant 0 : i32
    %c0_i32_0 = arith.constant 0 : i32
    %c0_i32_1 = arith.constant 0 : i32
    return %arg0, %arg1, %c0_i32, %c0_i32_0 : i32, i32, i32, i32
  }
}

</mosaic_0001>

<llo_original>
// kernel: tile.8
$region0: #{tile.8}
  #allocation2 [shape = 's32[1]{0}', space=sflag, size = 0x4, scoped, tag = 'scoped memory for tile.8']
  %s0 = inlined_call_operand.hbm [shape: f32[32], index: 0, kind: input, shape index: {}]
  %s1 = inlined_call_operand.vmem [shape: f32[2,32], index: 1, kind: output, shape index: {}]
  $region1: #{tile.8} parent=0
    #allocation0 [shape = 'u8[512]{0}', space=vmem, size = 0x400, scoped, tag = 'operand span for operand 0']
    #allocation1 [shape = 's32[1]{0}', space=sflag, size = 0x4, scoped, tag = 'scoped memory for tile.8']
    %2 = vsyncpa [#allocation1], 0
    // Predicated region
    $region2: #{tile.8} parent=1 // pred_check
      _
    $region3: #{tile.8} parent=1 // pred_check_branch
      %4 = sbr.rel (0) target = $region5
    $region4: #{tile.8} parent=1 // pred_region
      %s6 = ssub.s32 16, 16
      %7 = vsyncadd [#allocation1], %s6
      %s9 = sshll.u32 [#allocation0], 4
      %s10 = int_to_ptr.vmem [resolvable:$true] %s9
      %12 = dma.hbm_to_vmem [thread:$0]  %s0, 16, %s10, [#allocation1]
    $region5: #{tile.8} parent=1 // pred_fallthru
      _
    // Predicated region
    $region6: #{tile.8} parent=1 // pred_check
      _
    $region7: #{tile.8} parent=1 // pred_check_branch
      %14 = sbr.rel (0) target = $region9
    $region8: #{tile.8} parent=1 // pred_region
      %15 = dma.done [#allocation1], 16
    $region9: #{tile.8} parent=1 // pred_fallthru
      _
    %v16 = vld [vmem:[#allocation0] ss:$0 sm:$0xff]
    %17 = vst [vmem:[%s1] sm:$0x3] %v16
    %18 = vsyncpa [#allocation1], 1

// kernel: tile.0
$region0: #{tile.0}
  %s0 = inlined_call_operand.vmem [shape: f32[2,32], index: 0, kind: input, shape index: {}]
  %s1 = inlined_call_operand.vmem [shape: f32[64,1], index: 1, kind: output, shape index: {}]
  $region1: #{tile.0} parent=0
    #allocation0 [shape = 'u8[4096]{0}', space=vmem, size = 0x1000, scoped, tag = 'scoped mem for input reshape']
    %s3 = sshllo.u32 0, 2
    %v4 = vld [vmem:[%s0] sm:%s3]
    %5 = vst [vmem:[#allocation0] sm:%s3] %v4
    %v6 = vld [vmem:[#allocation0] sm:$0x3]
    %vm7 = vcmask 7168
    %8 = vst.msk [vmem:[%s1] sm:$0x1] %vm7, %v6
    %s9 = scalar_lea.vmem %s1, 31
    %10 = vst.msk [vmem:[%s9] sm:$0x2] %vm7, %v6
    %v11 = vld [vmem:[#allocation0] sm:$0x3]
    %12 = vrot.lane.b32.xlu0 %v11, 127
    %v13 = vpop.permute.xlu0 %12
    %vm14 = vcmask 7168
    %s15 = scalar_lea.vmem %s1, 1
    %16 = vst.msk [vmem:[%s15] sm:$0x1] %vm14, %v13
    %s17 = scalar_lea.vmem %s1, 32
    %18 = vst.msk [vmem:[%s17] sm:$0x2] %vm14, %v13
    %v19 = vld [vmem:[#allocation0] sm:$0x3]
    %20 = vrot.lane.b32.xlu0 %v19, 126
    %v21 = vpop.permute.xlu0 %20
    %vm22 = vcmask 7168
    %s23 = scalar_lea.vmem %s1, 2
    %24 = vst.msk [vmem:[%s23] sm:$0x1] %vm22, %v21
    %s25 = scalar_lea.vmem %s1, 33
    %26 = vst.msk [vmem:[%s25] sm:$0x2] %vm22, %v21
    %v27 = vld [vmem:[#allocation0] sm:$0x3]
    %28 = vrot.lane.b32.xlu0 %v27, 125
    %v29 = vpop.permute.xlu0 %28
    %vm30 = vcmask 7168
    %s31 = scalar_lea.vmem %s1, 3
    %32 = vst.msk [vmem:[%s31] sm:$0x1] %vm30, %v29
    %s33 = scalar_lea.vmem %s1, 34
    %34 = vst.msk [vmem:[%s33] sm:$0x2] %vm30, %v29
    %v35 = vld [vmem:[#allocation0] sm:$0x3]
    %36 = vrot.lane.b32.xlu0 %v35, 124
    %v37 = vpop.permute.xlu0 %36
    %vm38 = vcmask 7168
    %s39 = scalar_lea.vmem %s1, 4
    %40 = vst.msk [vmem:[%s39] sm:$0x1] %vm38, %v37
    %s41 = scalar_lea.vmem %s1, 35
    %42 = vst.msk [vmem:[%s41] sm:$0x2] %vm38, %v37
    %v43 = vld [vmem:[#allocation0] sm:$0x3]
    %44 = vrot.lane.b32.xlu0 %v43, 123
    %v45 = vpop.permute.xlu0 %44
    %vm46 = vcmask 7168
    %s47 = scalar_lea.vmem %s1, 5
    %48 = vst.msk [vmem:[%s47] sm:$0x1] %vm46, %v45
    %s49 = scalar_lea.vmem %s1, 36
    %50 = vst.msk [vmem:[%s49] sm:$0x2] %vm46, %v45
    %v51 = vld [vmem:[#allocation0] sm:$0x3]
    %52 = vrot.lane.b32.xlu0 %v51, 122
    %v53 = vpop.permute.xlu0 %52
    %vm54 = vcmask 7168
    %s55 = scalar_lea.vmem %s1, 6
    %56 = vst.msk [vmem:[%s55] sm:$0x1] %vm54, %v53
    %s57 = scalar_lea.vmem %s1, 37
    %58 = vst.msk [vmem:[%s57] sm:$0x2] %vm54, %v53
    %v59 = vld [vmem:[#allocation0] sm:$0x3]
    %60 = vrot.lane.b32.xlu0 %v59, 121
    %v61 = vpop.permute.xlu0 %60
    %vm62 = vcmask 7168
    %s63 = scalar_lea.vmem %s1, 7
    %64 = vst.msk [vmem:[%s63] sm:$0x1] %vm62, %v61
    %s65 = scalar_lea.vmem %s1, 38
    %66 = vst.msk [vmem:[%s65] sm:$0x2] %vm62, %v61
    %v67 = vld [vmem:[#allocation0] sm:$0x3]
    %68 = vrot.lane.b32.xlu0 %v67, 120
    %v69 = vpop.permute.xlu0 %68
    %vm70 = vcmask 7168
    %s71 = scalar_lea.vmem %s1, 8
    %72 = vst.msk [vmem:[%s71] sm:$0x1] %vm70, %v69
    %s73 = scalar_lea.vmem %s1, 39
    %74 = vst.msk [vmem:[%s73] sm:$0x2] %vm70, %v69
    %v75 = vld [vmem:[#allocation0] sm:$0x3]
    %76 = vrot.lane.b32.xlu0 %v75, 119
    %v77 = vpop.permute.xlu0 %76
    %vm78 = vcmask 7168
    %s79 = scalar_lea.vmem %s1, 9
    %80 = vst.msk [vmem:[%s79] sm:$0x1] %vm78, %v77
    %s81 = scalar_lea.vmem %s1, 40
    %82 = vst.msk [vmem:[%s81] sm:$0x2] %vm78, %v77
    %v83 = vld [vmem:[#allocation0] sm:$0x3]
    %84 = vrot.lane.b32.xlu0 %v83, 118
    %v85 = vpop.permute.xlu0 %84
    %vm86 = vcmask 7168
    %s87 = scalar_lea.vmem %s1, 10
    %88 = vst.msk [vmem:[%s87] sm:$0x1] %vm86, %v85
    %s89 = scalar_lea.vmem %s1, 41
    %90 = vst.msk [vmem:[%s89] sm:$0x2] %vm86, %v85
    %v91 = vld [vmem:[#allocation0] sm:$0x3]
    %92 = vrot.lane.b32.xlu0 %v91, 117
    %v93 = vpop.permute.xlu0 %92
    %vm94 = vcmask 7168
    %s95 = scalar_lea.vmem %s1, 11
    %96 = vst.msk [vmem:[%s95] sm:$0x1] %vm94, %v93
    %s97 = scalar_lea.vmem %s1, 42
    %98 = vst.msk [vmem:[%s97] sm:$0x2] %vm94, %v93
    %v99 = vld [vmem:[#allocation0] sm:$0x3]
    %100 = vrot.lane.b32.xlu0 %v99, 116
    %v101 = vpop.permute.xlu0 %100
    %vm102 = vcmask 7168
    %s103 = scalar_lea.vmem %s1, 12
    %104 = vst.msk [vmem:[%s103] sm:$0x1] %vm102, %v101
    %s105 = scalar_lea.vmem %s1, 43
    %106 = vst.msk [vmem:[%s105] sm:$0x2] %vm102, %v101
    %v107 = vld [vmem:[#allocation0] sm:$0x3]
    %108 = vrot.lane.b32.xlu0 %v107, 115
    %v109 = vpop.permute.xlu0 %108
    %vm110 = vcmask 7168
    %s111 = scalar_lea.vmem %s1, 13
    %112 = vst.msk [vmem:[%s111] sm:$0x1] %vm110, %v109
    %s113 = scalar_lea.vmem %s1, 44
    %114 = vst.msk [vmem:[%s113] sm:$0x2] %vm110, %v109
    %v115 = vld [vmem:[#allocation0] sm:$0x3]
    %116 = vrot.lane.b32.xlu0 %v115, 114
    %v117 = vpop.permute.xlu0 %116
    %vm118 = vcmask 7168
    %s119 = scalar_lea.vmem %s1, 14
    %120 = vst.msk [vmem:[%s119] sm:$0x1] %vm118, %v117
    %s121 = scalar_lea.vmem %s1, 45
    %122 = vst.msk [vmem:[%s121] sm:$0x2] %vm118, %v117
    %v123 = vld [vmem:[#allocation0] sm:$0x3]
    %124 = vrot.lane.b32.xlu0 %v123, 113
    %v125 = vpop.permute.xlu0 %124
    %vm126 = vcmask 7168
    %s127 = scalar_lea.vmem %s1, 15
    %128 = vst.msk [vmem:[%s127] sm:$0x1] %vm126, %v125
    %s129 = scalar_lea.vmem %s1, 46
    %130 = vst.msk [vmem:[%s129] sm:$0x2] %vm126, %v125
    %v131 = vld [vmem:[#allocation0] sm:$0x3]
    %132 = vrot.lane.b32.xlu0 %v131, 112
    %v133 = vpop.permute.xlu0 %132
    %vm134 = vcmask 7168
    %s135 = scalar_lea.vmem %s1, 16
    %136 = vst.msk [vmem:[%s135] sm:$0x1] %vm134, %v133
    %s137 = scalar_lea.vmem %s1, 47
    %138 = vst.msk [vmem:[%s137] sm:$0x2] %vm134, %v133
    %v139 = vld [vmem:[#allocation0] sm:$0x3]
    %140 = vrot.lane.b32.xlu0 %v139, 111
    %v141 = vpop.permute.xlu0 %140
    %vm142 = vcmask 7168
    %s143 = scalar_lea.vmem %s1, 17
    %144 = vst.msk [vmem:[%s143] sm:$0x1] %vm142, %v141
    %s145 = scalar_lea.vmem %s1, 48
    %146 = vst.msk [vmem:[%s145] sm:$0x2] %vm142, %v141
    %v147 = vld [vmem:[#allocation0] sm:$0x3]
    %148 = vrot.lane.b32.xlu0 %v147, 110
    %v149 = vpop.permute.xlu0 %148
    %vm150 = vcmask 7168
    %s151 = scalar_lea.vmem %s1, 18
    %152 = vst.msk [vmem:[%s151] sm:$0x1] %vm150, %v149
    %s153 = scalar_lea.vmem %s1, 49
    %154 = vst.msk [vmem:[%s153] sm:$0x2] %vm150, %v149
    %v155 = vld [vmem:[#allocation0] sm:$0x3]
    %156 = vrot.lane.b32.xlu0 %v155, 109
    %v157 = vpop.permute.xlu0 %156
    %vm158 = vcmask 7168
    %s159 = scalar_lea.vmem %s1, 19
    %160 = vst.msk [vmem:[%s159] sm:$0x1] %vm158, %v157
    %s161 = scalar_lea.vmem %s1, 50
    %162 = vst.msk [vmem:[%s161] sm:$0x2] %vm158, %v157
    %v163 = vld [vmem:[#allocation0] sm:$0x3]
    %164 = vrot.lane.b32.xlu0 %v163, 108
    %v165 = vpop.permute.xlu0 %164
    %vm166 = vcmask 7168
    %s167 = scalar_lea.vmem %s1, 20
    %168 = vst.msk [vmem:[%s167] sm:$0x1] %vm166, %v165
    %s169 = scalar_lea.vmem %s1, 51
    %170 = vst.msk [vmem:[%s169] sm:$0x2] %vm166, %v165
    %v171 = vld [vmem:[#allocation0] sm:$0x3]
    %172 = vrot.lane.b32.xlu0 %v171, 107
    %v173 = vpop.permute.xlu0 %172
    %vm174 = vcmask 7168
    %s175 = scalar_lea.vmem %s1, 21
    %176 = vst.msk [vmem:[%s175] sm:$0x1] %vm174, %v173
    %s177 = scalar_lea.vmem %s1, 52
    %178 = vst.msk [vmem:[%s177] sm:$0x2] %vm174, %v173
    %v179 = vld [vmem:[#allocation0] sm:$0x3]
    %180 = vrot.lane.b32.xlu0 %v179, 106
    %v181 = vpop.permute.xlu0 %180
    %vm182 = vcmask 7168
    %s183 = scalar_lea.vmem %s1, 22
    %184 = vst.msk [vmem:[%s183] sm:$0x1] %vm182, %v181
    %s185 = scalar_lea.vmem %s1, 53
    %186 = vst.msk [vmem:[%s185] sm:$0x2] %vm182, %v181
    %v187 = vld [vmem:[#allocation0] sm:$0x3]
    %188 = vrot.lane.b32.xlu0 %v187, 105
    %v189 = vpop.permute.xlu0 %188
    %vm190 = vcmask 7168
    %s191 = scalar_lea.vmem %s1, 23
    %192 = vst.msk [vmem:[%s191] sm:$0x1] %vm190, %v189
    %s193 = scalar_lea.vmem %s1, 54
    %194 = vst.msk [vmem:[%s193] sm:$0x2] %vm190, %v189
    %v195 = vld [vmem:[#allocation0] sm:$0x3]
    %196 = vrot.lane.b32.xlu0 %v195, 104
    %v197 = vpop.permute.xlu0 %196
    %vm198 = vcmask 7168
    %s199 = scalar_lea.vmem %s1, 24
    %200 = vst.msk [vmem:[%s199] sm:$0x1] %vm198, %v197
    %s201 = scalar_lea.vmem %s1, 55
    %202 = vst.msk [vmem:[%s201] sm:$0x2] %vm198, %v197
    %v203 = vld [vmem:[#allocation0] sm:$0x3]
    %204 = vrot.lane.b32.xlu0 %v203, 103
    %v205 = vpop.permute.xlu0 %204
    %vm206 = vcmask 7168
    %s207 = scalar_lea.vmem %s1, 25
    %208 = vst.msk [vmem:[%s207] sm:$0x1] %vm206, %v205
    %s209 = scalar_lea.vmem %s1, 56
    %210 = vst.msk [vmem:[%s209] sm:$0x2] %vm206, %v205
    %v211 = vld [vmem:[#allocation0] sm:$0x3]
    %212 = vrot.lane.b32.xlu0 %v211, 102
    %v213 = vpop.permute.xlu0 %212
    %vm214 = vcmask 7168
    %s215 = scalar_lea.vmem %s1, 26
    %216 = vst.msk [vmem:[%s215] sm:$0x1] %vm214, %v213
    %s217 = scalar_lea.vmem %s1, 57
    %218 = vst.msk [vmem:[%s217] sm:$0x2] %vm214, %v213
    %v219 = vld [vmem:[#allocation0] sm:$0x3]
    %220 = vrot.lane.b32.xlu0 %v219, 101
    %v221 = vpop.permute.xlu0 %220
    %vm222 = vcmask 7168
    %s223 = scalar_lea.vmem %s1, 27
    %224 = vst.msk [vmem:[%s223] sm:$0x1] %vm222, %v221
    %s225 = scalar_lea.vmem %s1, 58
    %226 = vst.msk [vmem:[%s225] sm:$0x2] %vm222, %v221
    %v227 = vld [vmem:[#allocation0] sm:$0x3]
    %228 = vrot.lane.b32.xlu0 %v227, 100
    %v229 = vpop.permute.xlu0 %228
    %vm230 = vcmask 7168
    %s231 = scalar_lea.vmem %s1, 28
    %232 = vst.msk [vmem:[%s231] sm:$0x1] %vm230, %v229
    %s233 = scalar_lea.vmem %s1, 59
    %234 = vst.msk [vmem:[%s233] sm:$0x2] %vm230, %v229
    %v235 = vld [vmem:[#allocation0] sm:$0x3]
    %236 = vrot.lane.b32.xlu0 %v235, 99
    %v237 = vpop.permute.xlu0 %236
    %vm238 = vcmask 7168
    %s239 = scalar_lea.vmem %s1, 29
    %240 = vst.msk [vmem:[%s239] sm:$0x1] %vm238, %v237
    %s241 = scalar_lea.vmem %s1, 60
    %242 = vst.msk [vmem:[%s241] sm:$0x2] %vm238, %v237
    %v243 = vld [vmem:[#allocation0] sm:$0x3]
    %244 = vrot.lane.b32.xlu0 %v243, 98
    %v245 = vpop.permute.xlu0 %244
    %vm246 = vcmask 7168
    %s247 = scalar_lea.vmem %s1, 30
    %248 = vst.msk [vmem:[%s247] sm:$0x1] %vm246, %v245
    %s249 = scalar_lea.vmem %s1, 61
    %250 = vst.msk [vmem:[%s249] sm:$0x2] %vm246, %v245
    %v251 = vld [vmem:[#allocation0] sm:$0x3]
    %252 = vrot.lane.b32.xlu0 %v251, 97
    %v253 = vpop.permute.xlu0 %252
    %vm254 = vcmask 7168
    %s255 = scalar_lea.vmem %s1, 31
    %256 = vst.msk [vmem:[%s255] sm:$0x1] %vm254, %v253
    %s257 = scalar_lea.vmem %s1, 62
    %258 = vst.msk [vmem:[%s257] sm:$0x2] %vm254, %v253

// kernel: upsample_forward.1
$region0: #{upsample_forward.1}
  #allocation0 [shape = 'u32[]', space=smem, size = 0x4, offset = 0x4, fixed_abs, tag = 'smem constant byte address 0x4 - core index']
  #allocation1 [shape = 'u32[144,128]{1,0:T(1,128)}', space=vmem, size = 0x12000, scoped, tag = 'internal scratch']
  %s0 = inlined_call_operand.vmem [shape: f32[2,64,16,16], index: 0, kind: input, shape index: {}]
  %s1 = inlined_call_operand.vmem [shape: bf16[128,64], index: 1, kind: input, shape index: {}]
  %s2 = inlined_call_operand.vmem [shape: bf16[16,32], index: 2, kind: input, shape index: {}]
  %s3 = inlined_call_operand.vmem [shape: f32[64,1], index: 3, kind: input, shape index: {}]
  %s4 = inlined_call_operand.vmem [shape: f32[2,32,32,32], index: 4, kind: output, shape index: {}]
  %s5 = sld [smem:[#allocation0]]
  $region49: #{upsample_forward.1} parent=0
    _
  %s7 = ssub.s32 1, %s5
  %s8 = scalar_select 0, %s7, %s5
  loop: start=0, step=1, limit=4
  $region2: #{upsample_forward.1} parent=0 // loop_pre_header
    _
  $region3: #{upsample_forward.1} parent=0 // loop_header
    %s10 = sphi 0, %s14
    %p11 = scmp.ge.s32.totalorder %s10, 4
    %s17 = sphi 0, %s29
    %s18 = sphi 0, %s25
    %s19 = sphi 0, %s17
    %s20 = sphi 0, %s18
    %s21 = sphi 0, %s19
    %s22 = sphi 0, %s20
    %s34 = sphi 0, %s36
    %s37 = sphi 0, %s34
    %s38 = sphi 0, %s37
    %s54 = sphi 0, %s38
    %s58 = sphi 0, %s58
    %s60 = sphi 0, %s58
    %s61 = sphi 0, %s60
    %s75 = sphi 0, %s61
    %s79 = sphi 0, %s79
    %s81 = sphi 0, %s79
    %s82 = sphi 0, %s81
    %s96 = sphi 0, %s82
    %s100 = sphi 0, %s100
    %s102 = sphi 0, %s100
    %s103 = sphi 0, %s102
    %s117 = sphi 0, %s103
    %s125 = sphi 0, %s127
    %s128 = sphi 0, %s125
    %s129 = sphi 0, %s128
    %s145 = sphi 0, %s129
  $region4: #{upsample_forward.1} parent=0 // loop_header_branch
    %13 = sbr.rel (%p11) target = $region8
  $region5: #{upsample_forward.1} parent=0 // loop_body
    %s15 = ssub.s32 %s10, 1
    %s16 = ssub.s32 %s10, 2
    %s23 = sadd.s32 1, %s18
    %p24 = scmp.ge.s32.totalorder %s23, 1
    %s25 = scalar_select %p24, 0, %s23
    %s26 = sadd.s32 1, %s17
    %s27 = scalar_select %p24, %s26, %s17
    %p28 = scmp.ge.s32.totalorder %s27, 2
    %s29 = scalar_select %p28, 0, %s27
    %s30 = ssub.s32 %s17, %s29
    %s31 = ssub.s32 %s18, %s25
    %s32 = sor.u32 %s30, %s31
    %p33 = scmp.eq.s32.totalorder %s32, 0
    %s35 = sadd.s32 %s34, 1
    %s36 = scalar_select %p33, %s34, %s35
    %p39 = pneg %p33
    %p40 = scmp.eq.s32.totalorder %s10, 1
    %p41 = por %p39, %p40
    %p42 = scmp.ne.s32.totalorder %s34, %s37
    %p43 = scmp.eq.s32.totalorder %s10, 0
    %p44 = por %p42, %p43
    %p45 = scmp.ne.s32.totalorder %s34, %s37
    %p46 = scmp.eq.s32.totalorder %s15, 1
    %p47 = por %p45, %p46
    %p48 = scmp.ne.s32.totalorder %s37, %s38
    %p49 = scmp.eq.s32.totalorder %s15, 0
    %p50 = por %p48, %p49
    %p51 = scmp.ne.s32.totalorder %s37, %s38
    %p52 = scmp.eq.s32.totalorder %s16, 1
    %p53 = por %p51, %p52
    %p55 = scmp.ne.s32.totalorder %s38, %s54
    %p56 = scmp.eq.s32.totalorder %s16, 0
    %p57 = por %p55, %p56
    %s59 = sadd.s32 %s58, 1
    %p62 = scmp.eq.s32.totalorder %s10, 1
    %p63 = scmp.ne.s32.totalorder %s58, %s60
    %p64 = scmp.eq.s32.totalorder %s10, 0
    %p65 = por %p63, %p64
    %p66 = scmp.ne.s32.totalorder %s58, %s60
    %p67 = scmp.eq.s32.totalorder %s15, 1
    %p68 = por %p66, %p67
    %p69 = scmp.ne.s32.totalorder %s60, %s61
    %p70 = scmp.eq.s32.totalorder %s15, 0
    %p71 = por %p69, %p70
    %p72 = scmp.ne.s32.totalorder %s60, %s61
    %p73 = scmp.eq.s32.totalorder %s16, 1
    %p74 = por %p72, %p73
    %p76 = scmp.ne.s32.totalorder %s61, %s75
    %p77 = scmp.eq.s32.totalorder %s16, 0
    %p78 = por %p76, %p77
    %s80 = sadd.s32 %s79, 1
    %p83 = scmp.eq.s32.totalorder %s10, 1
    %p84 = scmp.ne.s32.totalorder %s79, %s81
    %p85 = scmp.eq.s32.totalorder %s10, 0
    %p86 = por %p84, %p85
    %p87 = scmp.ne.s32.totalorder %s79, %s81
    %p88 = scmp.eq.s32.totalorder %s15, 1
    %p89 = por %p87, %p88
    %p90 = scmp.ne.s32.totalorder %s81, %s82
    %p91 = scmp.eq.s32.totalorder %s15, 0
    %p92 = por %p90, %p91
    %p93 = scmp.ne.s32.totalorder %s81, %s82
    %p94 = scmp.eq.s32.totalorder %s16, 1
    %p95 = por %p93, %p94
    %p97 = scmp.ne.s32.totalorder %s82, %s96
    %p98 = scmp.eq.s32.totalorder %s16, 0
    %p99 = por %p97, %p98
    %s101 = sadd.s32 %s100, 1
    %p104 = scmp.eq.s32.totalorder %s10, 1
    %p105 = scmp.ne.s32.totalorder %s100, %s102
    %p106 = scmp.eq.s32.totalorder %s10, 0
    %p107 = por %p105, %p106
    %p108 = scmp.ne.s32.totalorder %s100, %s102
    %p109 = scmp.eq.s32.totalorder %s15, 1
    %p110 = por %p108, %p109
    %p111 = scmp.ne.s32.totalorder %s102, %s103
    %p112 = scmp.eq.s32.totalorder %s15, 0
    %p113 = por %p111, %p112
    %p114 = scmp.ne.s32.totalorder %s102, %s103
    %p115 = scmp.eq.s32.totalorder %s16, 1
    %p116 = por %p114, %p115
    %p118 = scmp.ne.s32.totalorder %s103, %s117
    %p119 = scmp.eq.s32.totalorder %s16, 0
    %p120 = por %p118, %p119
    %s121 = ssub.s32 %s17, %s29
    %s122 = ssub.s32 %s18, %s25
    %s123 = sor.u32 %s121, %s122
    %p124 = scmp.eq.s32.totalorder %s123, 0
    %s126 = sadd.s32 %s125, 1
    %s127 = scalar_select %p124, %s125, %s126
    %p130 = pneg %p124
    %p131 = scmp.eq.s32.totalorder %s10, 1
    %p132 = por %p130, %p131
    %p133 = scmp.ne.s32.totalorder %s125, %s128
    %p134 = scmp.eq.s32.totalorder %s10, 0
    %p135 = por %p133, %p134
    %p136 = scmp.ne.s32.totalorder %s125, %s128
    %p137 = scmp.eq.s32.totalorder %s15, 1
    %p138 = por %p136, %p137
    %p139 = scmp.ne.s32.totalorder %s128, %s129
    %p140 = scmp.eq.s32.totalorder %s15, 0
    %p141 = por %p139, %p140
    %p142 = scmp.ne.s32.totalorder %s128, %s129
    %p143 = scmp.eq.s32.totalorder %s16, 1
    %p144 = por %p142, %p143
    %p146 = scmp.ne.s32.totalorder %s129, %s145
    %p147 = scmp.eq.s32.totalorder %s16, 0
    %p148 = por %p146, %p147
    %p149 = scmp.le.s32.totalorder 1, %s10
    %p150 = scmp.lt.s32.totalorder %s10, 3
    %p151 = pnand %p149, %p150
    %p152 = pneg %p151
    // Predicated region
    $region9: #{upsample_forward.1} parent=5 // pred_check
      _
    $region10: #{upsample_forward.1} parent=5 // pred_check_branch
      %154 = sbr.rel (%p151) target = $region12
    $region11: #{upsample_forward.1} parent=5 // pred_region
      %s155 = ssub.s32 %s10, 1
      // Predicated region
      $region13: #{upsample_forward.1} parent=11 // pred_check
        %p156 = pneg %p71
      $region14: #{upsample_forward.1} parent=11 // pred_check_branch
        %158 = sbr.rel (%p156) target = $region16
      $region15: #{upsample_forward.1} parent=11 // pred_region
        _
      $region16: #{upsample_forward.1} parent=11 // pred_fallthru
        _
      // Predicated region
      $region17: #{upsample_forward.1} parent=11 // pred_check
        %p159 = pneg %p92
      $region18: #{upsample_forward.1} parent=11 // pred_check_branch
        %161 = sbr.rel (%p159) target = $region20
      $region19: #{upsample_forward.1} parent=11 // pred_region
        _
      $region20: #{upsample_forward.1} parent=11 // pred_fallthru
        _
      // Predicated region
      $region21: #{upsample_forward.1} parent=11 // pred_check
        %p162 = pneg %p113
      $region22: #{upsample_forward.1} parent=11 // pred_check_branch
        %164 = sbr.rel (%p162) target = $region24
      $region23: #{upsample_forward.1} parent=11 // pred_region
        _
      $region24: #{upsample_forward.1} parent=11 // pred_fallthru
        _
    $region12: #{upsample_forward.1} parent=5 // pred_fallthru
      _
    %p165 = scmp.lt.s32.totalorder %s10, 2
    // Predicated region
    $region25: #{upsample_forward.1} parent=5 // pred_check
      %p166 = pneg %p165
    $region26: #{upsample_forward.1} parent=5 // pred_check_branch
      %168 = sbr.rel (%p166) target = $region28
    $region27: #{upsample_forward.1} parent=5 // pred_region
      // Predicated region
      $region29: #{upsample_forward.1} parent=27 // pred_check
        %p169 = pneg %p44
      $region30: #{upsample_forward.1} parent=27 // pred_check_branch
        %171 = sbr.rel (%p169) target = $region32
      $region31: #{upsample_forward.1} parent=27 // pred_region
        %s172 = smul.u32 2, %s18
        %p173 = scmp.lt.s32.totalorder %s17, 1
        %s174 = scalar_select %p173, %s17, 1
        %p175 = scmp.lt.s32.totalorder %s172, 1
        %s176 = scalar_select %p175, %s172, 1
        %s177 = smul.addr %s174, 128
        %s178 = sadd.s32 %s176, %s177
        %s179 = smul.addr %s178, 8
        %s180 = scalar_lea.vmem %s0, %s179
        %s181 = smul.u32 2, %s18
      $region32: #{upsample_forward.1} parent=27 // pred_fallthru
        _
    $region28: #{upsample_forward.1} parent=5 // pred_fallthru
      _
    %p182 = scmp.le.s32.totalorder 1, %s10
    %p183 = scmp.lt.s32.totalorder %s10, 3
    %p184 = pnand %p182, %p183
    %p185 = pneg %p184
    // Predicated region
    $region33: #{upsample_forward.1} parent=5 // pred_check
      _
    $region34: #{upsample_forward.1} parent=5 // pred_check_branch
      %187 = sbr.rel (%p184) target = $region36
    $region35: #{upsample_forward.1} parent=5 // pred_region
      %s188 = ssub.s32 %s10, 1
      %s189 = smul.u32 2, %s20
      %p190 = scmp.lt.s32.totalorder %s19, 1
      %s191 = scalar_select %p190, %s19, 1
      %p192 = scmp.lt.s32.totalorder %s189, 1
      %s193 = scalar_select %p192, %s189, 1
      %s194 = smul.addr %s191, 128
      %s195 = sadd.s32 %s193, %s194
      %s196 = smul.addr %s195, 8
      %s197 = scalar_lea.vmem %s0, %s196
      %p198 = pneg %p50
      %p199 = pneg %p47
      %p200 = pneg %p71
      %p201 = pneg %p68
      %p202 = pneg %p92
      %p203 = pneg %p89
      %p204 = pneg %p113
      %p205 = pneg %p110
      %p206 = pneg %p141
      %p207 = pneg %p138
      %s208 = smul.u32 32, %s20
      %p209 = scmp.lt.s32.totalorder %s19, 1
      %s210 = scalar_select %p209, %s19, 1
      %p211 = scmp.lt.s32.totalorder %s208, 31
      %s212 = scalar_select %p211, %s208, 31
      %s213 = smul.addr %s212, 4
      %s214 = smul.addr %s210, 128
      %s215 = sadd.s32 %s213, %s214
      %s216 = smul.addr %s215, 8
      %s217 = scalar_lea.vmem %s4, %s216
      %s218 = smul.u32 2, %s20
      %p219 = scmp.lt.s32.totalorder %s19, 1
      %s220 = scalar_select %p219, %s19, 1
      %p221 = scmp.lt.s32.totalorder %s218, 1
      %s222 = scalar_select %p221, %s218, 1
      %s223 = smul.addr %s220, 128
      %s224 = sadd.s32 %s222, %s223
      %s225 = smul.addr %s224, 8
      %s226 = scalar_lea.vmem %s0, %s225
      %s227 = smul.u32 2, %s20
      %s228 = smul.u32 32, %s20
      %p229 = scmp.lt.s32.totalorder %s19, 1
      %s230 = scalar_select %p229, %s19, 1
      %p231 = scmp.lt.s32.totalorder %s228, 31
      %s232 = scalar_select %p231, %s228, 31
      %s233 = smul.addr %s232, 4
      %s234 = smul.addr %s230, 128
      %s235 = sadd.s32 %s233, %s234
      %s236 = smul.addr %s235, 8
      %s237 = scalar_lea.vmem %s4, %s236
      %s238 = smul.u32 32, %s20
      %v240 = vld [vmem:[%s1] sm:$0xf]
      %v241 = vld [vmem:[%s1 + $0x4] sm:$0xf]
      %v242 = vld [vmem:[%s1 + $0x8] sm:$0xf]
      %v243 = vld [vmem:[%s1 + $0xc] sm:$0xf]
      %v244 = vld [vmem:[%s1 + $0x10] sm:$0xf]
      %v245 = vld [vmem:[%s1 + $0x14] sm:$0xf]
      %v246 = vld [vmem:[%s1 + $0x18] sm:$0xf]
      %v247 = vld [vmem:[%s1 + $0x1c] sm:$0xf]
      %v248 = vld [vmem:[%s1 + $0x20] sm:$0xf]
      %v249 = vld [vmem:[%s1 + $0x24] sm:$0xf]
      %v250 = vld [vmem:[%s1 + $0x28] sm:$0xf]
      %v251 = vld [vmem:[%s1 + $0x2c] sm:$0xf]
      %v252 = vld [vmem:[%s1 + $0x30] sm:$0xf]
      %v253 = vld [vmem:[%s1 + $0x34] sm:$0xf]
      %v254 = vld [vmem:[%s1 + $0x38] sm:$0xf]
      %v255 = vld [vmem:[%s1 + $0x3c] sm:$0xf]
      %v256 = vld [vmem:[%s2] sm:$0xf]
      %v257 = vld [vmem:[%s2 + $0x4] sm:$0xf]
      %v258 = vld [vmem:[%s3] sm:$0xff]
      %v259 = vld [vmem:[%s3 + $0x8] sm:$0xff]
      %v260 = vld [vmem:[%s3 + $0x10] sm:$0xff]
      %v261 = vld [vmem:[%s3 + $0x18] sm:$0xff]
      %v262 = vld [vmem:[%s3 + $0x20] sm:$0xff]
      %v263 = vld [vmem:[%s3 + $0x28] sm:$0xff]
      %v264 = vld [vmem:[%s3 + $0x30] sm:$0xff]
      %v265 = vld [vmem:[%s3 + $0x38] sm:$0xff]
      %v266 = vlaneseq
      %v267 = vand.u32 %v266, 127
      %vm268 = vcmp.lt.s32.totalorder %v267, 0
      %v269 = vsub.s32 0, %v267
      %v270 = vsel %vm268, %v269, %v267
      %v271 = vshrl.u32 %v270, 1
      %v272 = vand.u32 %v270, 1
      %v273 = vsub.s32 0, %v272
      %v274 = vsel %vm268, %v273, %v272
      %vm275 = vcmp.ne.s32.totalorder %v274, 0
      %vm276 = vcmp.lt.s32.totalorder %v274, 0
      %vm277 = vmand %vm276, %vm275
      %v278 = vadd.s32 %v274, 2
      %v279 = vsel %vm277, %v278, %v274
      %vm280 = vcmp.eq.s32.totalorder %v279, 0
      %v281 = vld [vmem:[%s226] sm:$0x1]
      %v282 = vld [vmem:[%s226 + $0x10] sm:$0x1]
      %v283 = vld [vmem:[%s226 + $0x20] sm:$0x1]
      %v284 = vld [vmem:[%s226 + $0x30] sm:$0x1]
      %v285 = vld [vmem:[%s226 + $0x40] sm:$0x1]
      %v286 = vld [vmem:[%s226 + $0x50] sm:$0x1]
      %v287 = vld [vmem:[%s226 + $0x60] sm:$0x1]
      %v288 = vld [vmem:[%s226 + $0x70] sm:$0x1]
      %v289 = vld [vmem:[%s226 + $0x80] sm:$0x1]
      %v290 = vld [vmem:[%s226 + $0x90] sm:$0x1]
      %v291 = vld [vmem:[%s226 + $0xa0] sm:$0x1]
      %v292 = vld [vmem:[%s226 + $0xb0] sm:$0x1]
      %v293 = vld [vmem:[%s226 + $0xc0] sm:$0x1]
      %v294 = vld [vmem:[%s226 + $0xd0] sm:$0x1]
      %v295 = vld [vmem:[%s226 + $0xe0] sm:$0x1]
      %v296 = vld [vmem:[%s226 + $0xf0] sm:$0x1]
      %v297 = vld [vmem:[%s226 + $0x100] sm:$0x1]
      %v298 = vld [vmem:[%s226 + $0x110] sm:$0x1]
      %v299 = vld [vmem:[%s226 + $0x120] sm:$0x1]
      %v300 = vld [vmem:[%s226 + $0x130] sm:$0x1]
      %v301 = vld [vmem:[%s226 + $0x140] sm:$0x1]
      %v302 = vld [vmem:[%s226 + $0x150] sm:$0x1]
      %v303 = vld [vmem:[%s226 + $0x160] sm:$0x1]
      %v304 = vld [vmem:[%s226 + $0x170] sm:$0x1]
      %v305 = vld [vmem:[%s226 + $0x180] sm:$0x1]
      %v306 = vld [vmem:[%s226 + $0x190] sm:$0x1]
      %v307 = vld [vmem:[%s226 + $0x1a0] sm:$0x1]
      %v308 = vld [vmem:[%s226 + $0x1b0] sm:$0x1]
      %v309 = vld [vmem:[%s226 + $0x1c0] sm:$0x1]
      %v310 = vld [vmem:[%s226 + $0x1d0] sm:$0x1]
      %v311 = vld [vmem:[%s226 + $0x1e0] sm:$0x1]
      %v312 = vld [vmem:[%s226 + $0x1f0] sm:$0x1]
      %v313 = vld [vmem:[%s226 + $0x200] sm:$0x1]
      %v314 = vld [vmem:[%s226 + $0x210] sm:$0x1]
      %v315 = vld [vmem:[%s226 + $0x220] sm:$0x1]
      %v316 = vld [vmem:[%s226 + $0x230] sm:$0x1]
      %v317 = vld [vmem:[%s226 + $0x240] sm:$0x1]
      %v318 = vld [vmem:[%s226 + $0x250] sm:$0x1]
      %v319 = vld [vmem:[%s226 + $0x260] sm:$0x1]
      %v320 = vld [vmem:[%s226 + $0x270] sm:$0x1]
      %v321 = vld [vmem:[%s226 + $0x280] sm:$0x1]
      %v322 = vld [vmem:[%s226 + $0x290] sm:$0x1]
      %v323 = vld [vmem:[%s226 + $0x2a0] sm:$0x1]
      %v324 = vld [vmem:[%s226 + $0x2b0] sm:$0x1]
      %v325 = vld [vmem:[%s226 + $0x2c0] sm:$0x1]
      %v326 = vld [vmem:[%s226 + $0x2d0] sm:$0x1]
      %v327 = vld [vmem:[%s226 + $0x2e0] sm:$0x1]
      %v328 = vld [vmem:[%s226 + $0x2f0] sm:$0x1]
      %v329 = vld [vmem:[%s226 + $0x300] sm:$0x1]
      %v330 = vld [vmem:[%s226 + $0x310] sm:$0x1]
      %v331 = vld [vmem:[%s226 + $0x320] sm:$0x1]
      %v332 = vld [vmem:[%s226 + $0x330] sm:$0x1]
      %v333 = vld [vmem:[%s226 + $0x340] sm:$0x1]
      %v334 = vld [vmem:[%s226 + $0x350] sm:$0x1]
      %v335 = vld [vmem:[%s226 + $0x360] sm:$0x1]
      %v336 = vld [vmem:[%s226 + $0x370] sm:$0x1]
      %v337 = vld [vmem:[%s226 + $0x380] sm:$0x1]
      %v338 = vld [vmem:[%s226 + $0x390] sm:$0x1]
      %v339 = vld [vmem:[%s226 + $0x3a0] sm:$0x1]
      %v340 = vld [vmem:[%s226 + $0x3b0] sm:$0x1]
      %v341 = vld [vmem:[%s226 + $0x3c0] sm:$0x1]
      %v342 = vld [vmem:[%s226 + $0x3d0] sm:$0x1]
      %v343 = vld [vmem:[%s226 + $0x3e0] sm:$0x1]
      %v344 = vld [vmem:[%s226 + $0x3f0] sm:$0x1]
      %v345 = vpack.c.bf16 %v281, %v281
      %v346 = vpack.c.bf16 %v282, %v282
      %v347 = vpack.c.bf16 %v283, %v283
      %v348 = vpack.c.bf16 %v284, %v284
      %v349 = vpack.c.bf16 %v285, %v285
      %v350 = vpack.c.bf16 %v286, %v286
      %v351 = vpack.c.bf16 %v287, %v287
      %v352 = vpack.c.bf16 %v288, %v288
      %v353 = vpack.c.bf16 %v289, %v289
      %v354 = vpack.c.bf16 %v290, %v290
      %v355 = vpack.c.bf16 %v291, %v291
      %v356 = vpack.c.bf16 %v292, %v292
      %v357 = vpack.c.bf16 %v293, %v293
      %v358 = vpack.c.bf16 %v294, %v294
      %v359 = vpack.c.bf16 %v295, %v295
      %v360 = vpack.c.bf16 %v296, %v296
      %v361 = vpack.c.bf16 %v297, %v297
      %v362 = vpack.c.bf16 %v298, %v298
      %v363 = vpack.c.bf16 %v299, %v299
      %v364 = vpack.c.bf16 %v300, %v300
      %v365 = vpack.c.bf16 %v301, %v301
      %v366 = vpack.c.bf16 %v302, %v302
      %v367 = vpack.c.bf16 %v303, %v303
      %v368 = vpack.c.bf16 %v304, %v304
      %v369 = vpack.c.bf16 %v305, %v305
      %v370 = vpack.c.bf16 %v306, %v306
      %v371 = vpack.c.bf16 %v307, %v307
      %v372 = vpack.c.bf16 %v308, %v308
      %v373 = vpack.c.bf16 %v309, %v309
      %v374 = vpack.c.bf16 %v310, %v310
      %v375 = vpack.c.bf16 %v311, %v311
      %v376 = vpack.c.bf16 %v312, %v312
      %v377 = vpack.c.bf16 %v313, %v313
      %v378 = vpack.c.bf16 %v314, %v314
      %v379 = vpack.c.bf16 %v315, %v315
      %v380 = vpack.c.bf16 %v316, %v316
      %v381 = vpack.c.bf16 %v317, %v317
      %v382 = vpack.c.bf16 %v318, %v318
      %v383 = vpack.c.bf16 %v319, %v319
      %v384 = vpack.c.bf16 %v320, %v320
      %v385 = vpack.c.bf16 %v321, %v321
      %v386 = vpack.c.bf16 %v322, %v322
      %v387 = vpack.c.bf16 %v323, %v323
      %v388 = vpack.c.bf16 %v324, %v324
      %v389 = vpack.c.bf16 %v325, %v325
      %v390 = vpack.c.bf16 %v326, %v326
      %v391 = vpack.c.bf16 %v327, %v327
      %v392 = vpack.c.bf16 %v328, %v328
      %v393 = vpack.c.bf16 %v329, %v329
      %v394 = vpack.c.bf16 %v330, %v330
      %v395 = vpack.c.bf16 %v331, %v331
      %v396 = vpack.c.bf16 %v332, %v332
      %v397 = vpack.c.bf16 %v333, %v333
      %v398 = vpack.c.bf16 %v334, %v334
      %v399 = vpack.c.bf16 %v335, %v335
      %v400 = vpack.c.bf16 %v336, %v336
      %v401 = vpack.c.bf16 %v337, %v337
      %v402 = vpack.c.bf16 %v338, %v338
      %v403 = vpack.c.bf16 %v339, %v339
      %v404 = vpack.c.bf16 %v340, %v340
      %v405 = vpack.c.bf16 %v341, %v341
      %v406 = vpack.c.bf16 %v342, %v342
      %v407 = vpack.c.bf16 %v343, %v343
      %v408 = vpack.c.bf16 %v344, %v344
      %v473 = vunpack.c.l.b16 %v345
      %v474 = vunpack.c.l.b16 %v346
      %v475 = vunpack.c.l.b16 %v347
      %v476 = vunpack.c.l.b16 %v348
      %v477 = vunpack.c.l.b16 %v349
      %v478 = vunpack.c.l.b16 %v350
      %v479 = vunpack.c.l.b16 %v351
      %v480 = vunpack.c.l.b16 %v352
      %v481 = vunpack.c.l.b16 %v353
      %v482 = vunpack.c.l.b16 %v354
      %v483 = vunpack.c.l.b16 %v355
      %v484 = vunpack.c.l.b16 %v356
      %v485 = vunpack.c.l.b16 %v357
      %v486 = vunpack.c.l.b16 %v358
      %v487 = vunpack.c.l.b16 %v359
      %v488 = vunpack.c.l.b16 %v360
      %v489 = vunpack.c.l.b16 %v361
      %v490 = vunpack.c.l.b16 %v362
      %v491 = vunpack.c.l.b16 %v363
      %v492 = vunpack.c.l.b16 %v364
      %v493 = vunpack.c.l.b16 %v365
      %v494 = vunpack.c.l.b16 %v366
      %v495 = vunpack.c.l.b16 %v367
      %v496 = vunpack.c.l.b16 %v368
      %v497 = vunpack.c.l.b16 %v369
      %v498 = vunpack.c.l.b16 %v370
      %v499 = vunpack.c.l.b16 %v371
      %v500 = vunpack.c.l.b16 %v372
      %v501 = vunpack.c.l.b16 %v373
      %v502 = vunpack.c.l.b16 %v374
      %v503 = vunpack.c.l.b16 %v375
      %v504 = vunpack.c.l.b16 %v376
      %v505 = vunpack.c.l.b16 %v377
      %v506 = vunpack.c.l.b16 %v378
      %v507 = vunpack.c.l.b16 %v379
      %v508 = vunpack.c.l.b16 %v380
      %v509 = vunpack.c.l.b16 %v381
      %v510 = vunpack.c.l.b16 %v382
      %v511 = vunpack.c.l.b16 %v383
      %v512 = vunpack.c.l.b16 %v384
      %v513 = vunpack.c.l.b16 %v385
      %v514 = vunpack.c.l.b16 %v386
      %v515 = vunpack.c.l.b16 %v387
      %v516 = vunpack.c.l.b16 %v388
      %v517 = vunpack.c.l.b16 %v389
      %v518 = vunpack.c.l.b16 %v390
      %v519 = vunpack.c.l.b16 %v391
      %v520 = vunpack.c.l.b16 %v392
      %v521 = vunpack.c.l.b16 %v393
      %v522 = vunpack.c.l.b16 %v394
      %v523 = vunpack.c.l.b16 %v395
      %v524 = vunpack.c.l.b16 %v396
      %v525 = vunpack.c.l.b16 %v397
      %v526 = vunpack.c.l.b16 %v398
      %v527 = vunpack.c.l.b16 %v399
      %v528 = vunpack.c.l.b16 %v400
      %v529 = vunpack.c.l.b16 %v401
      %v530 = vunpack.c.l.b16 %v402
      %v531 = vunpack.c.l.b16 %v403
      %v532 = vunpack.c.l.b16 %v404
      %v533 = vunpack.c.l.b16 %v405
      %v534 = vunpack.c.l.b16 %v406
      %v535 = vunpack.c.l.b16 %v407
      %v536 = vunpack.c.l.b16 %v408
      %v537 = vrot.slane %v474, 7
      %vm538 = vcmask 1041409
      %v539 = vsel %vm538, %v537, %v473
      %v540 = vrot.slane %v475, 6
      %vm541 = vcmask 1042434
      %v542 = vsel %vm541, %v540, %v539
      %v543 = vrot.slane %v476, 5
      %vm544 = vcmask 1043459
      %v545 = vsel %vm544, %v543, %v542
      %v546 = vrot.slane %v477, 4
      %vm547 = vcmask 1044484
      %v548 = vsel %vm547, %v546, %v545
      %v549 = vrot.slane %v478, 3
      %vm550 = vcmask 1045509
      %v551 = vsel %vm550, %v549, %v548
      %v552 = vrot.slane %v479, 2
      %vm553 = vcmask 1046534
      %v554 = vsel %vm553, %v552, %v551
      %v555 = vrot.slane %v480, 1
      %vm556 = vcmask 1047559
      %v557 = vsel %vm556, %v555, %v554
      %v558 = vrot.slane %v482, 7
      %v559 = vsel %vm538, %v558, %v481
      %v560 = vrot.slane %v483, 6
      %v561 = vsel %vm541, %v560, %v559
      %v562 = vrot.slane %v484, 5
      %v563 = vsel %vm544, %v562, %v561
      %v564 = vrot.slane %v485, 4
      %v565 = vsel %vm547, %v564, %v563
      %v566 = vrot.slane %v486, 3
      %v567 = vsel %vm550, %v566, %v565
      %v568 = vrot.slane %v487, 2
      %v569 = vsel %vm553, %v568, %v567
      %v570 = vrot.slane %v488, 1
      %v571 = vsel %vm556, %v570, %v569
      %v572 = vrot.slane %v490, 7
      %v573 = vsel %vm538, %v572, %v489
      %v574 = vrot.slane %v491, 6
      %v575 = vsel %vm541, %v574, %v573
      %v576 = vrot.slane %v492, 5
      %v577 = vsel %vm544, %v576, %v575
      %v578 = vrot.slane %v493, 4
      %v579 = vsel %vm547, %v578, %v577
      %v580 = vrot.slane %v494, 3
      %v581 = vsel %vm550, %v580, %v579
      %v582 = vrot.slane %v495, 2
      %v583 = vsel %vm553, %v582, %v581
      %v584 = vrot.slane %v496, 1
      %v585 = vsel %vm556, %v584, %v583
      %v586 = vrot.slane %v498, 7
      %v587 = vsel %vm538, %v586, %v497
      %v588 = vrot.slane %v499, 6
      %v589 = vsel %vm541, %v588, %v587
      %v590 = vrot.slane %v500, 5
      %v591 = vsel %vm544, %v590, %v589
      %v592 = vrot.slane %v501, 4
      %v593 = vsel %vm547, %v592, %v591
      %v594 = vrot.slane %v502, 3
      %v595 = vsel %vm550, %v594, %v593
      %v596 = vrot.slane %v503, 2
      %v597 = vsel %vm553, %v596, %v595
      %v598 = vrot.slane %v504, 1
      %v599 = vsel %vm556, %v598, %v597
      %v600 = vrot.slane %v506, 7
      %v601 = vsel %vm538, %v600, %v505
      %v602 = vrot.slane %v507, 6
      %v603 = vsel %vm541, %v602, %v601
      %v604 = vrot.slane %v508, 5
      %v605 = vsel %vm544, %v604, %v603
      %v606 = vrot.slane %v509, 4
      %v607 = vsel %vm547, %v606, %v605
      %v608 = vrot.slane %v510, 3
      %v609 = vsel %vm550, %v608, %v607
      %v610 = vrot.slane %v511, 2
      %v611 = vsel %vm553, %v610, %v609
      %v612 = vrot.slane %v512, 1
      %v613 = vsel %vm556, %v612, %v611
      %v614 = vrot.slane %v514, 7
      %v615 = vsel %vm538, %v614, %v513
      %v616 = vrot.slane %v515, 6
      %v617 = vsel %vm541, %v616, %v615
      %v618 = vrot.slane %v516, 5
      %v619 = vsel %vm544, %v618, %v617
      %v620 = vrot.slane %v517, 4
      %v621 = vsel %vm547, %v620, %v619
      %v622 = vrot.slane %v518, 3
      %v623 = vsel %vm550, %v622, %v621
      %v624 = vrot.slane %v519, 2
      %v625 = vsel %vm553, %v624, %v623
      %v626 = vrot.slane %v520, 1
      %v627 = vsel %vm556, %v626, %v625
      %v628 = vrot.slane %v522, 7
      %v629 = vsel %vm538, %v628, %v521
      %v630 = vrot.slane %v523, 6
      %v631 = vsel %vm541, %v630, %v629
      %v632 = vrot.slane %v524, 5
      %v633 = vsel %vm544, %v632, %v631
      %v634 = vrot.slane %v525, 4
      %v635 = vsel %vm547, %v634, %v633
      %v636 = vrot.slane %v526, 3
      %v637 = vsel %vm550, %v636, %v635
      %v638 = vrot.slane %v527, 2
      %v639 = vsel %vm553, %v638, %v637
      %v640 = vrot.slane %v528, 1
      %v641 = vsel %vm556, %v640, %v639
      %v642 = vrot.slane %v530, 7
      %v643 = vsel %vm538, %v642, %v529
      %v644 = vrot.slane %v531, 6
      %v645 = vsel %vm541, %v644, %v643
      %v646 = vrot.slane %v532, 5
      %v647 = vsel %vm544, %v646, %v645
      %v648 = vrot.slane %v533, 4
      %v649 = vsel %vm547, %v648, %v647
      %v650 = vrot.slane %v534, 3
      %v651 = vsel %vm550, %v650, %v649
      %v652 = vrot.slane %v535, 2
      %v653 = vsel %vm553, %v652, %v651
      %v654 = vrot.slane %v536, 1
      %v655 = vsel %vm556, %v654, %v653
      %v656 = vpack.c.b16 %v571, %v557
      %v657 = vpack.c.b16 %v599, %v585
      %v658 = vpack.c.b16 %v627, %v613
      %v659 = vpack.c.b16 %v655, %v641
      %v662 = vunpack.c.l.b16 %v256
      %v663 = vunpack.c.l.b16 %v257
      %v664 = vpack.c.b16 %v663, %v662
      %vm666 = vcmask 130048
      %v668 = vsel %vm666, %v656, 0
      %v671 = vsel %vm666, %v657, 0
      %v674 = vsel %vm666, %v658, 0
      %v677 = vsel %vm666, %v659, 0
      %679 = vmatprep.subr.bf16.mxu0 0
      %680 = vmatpush1.bf16.msra.mxu0 %v664
      %681 = vmatprep.subr.bf16.mxu0 0
      %682 = vmatpush1.bf16.msra.mxu0 0
      %683 = vmatprep.subr.bf16.mxu0 0
      %684 = vmatpush1.bf16.msra.mxu0 0
      %685 = vmatprep.subr.bf16.mxu0 0
      %686 = vmatpush1.bf16.msra.mxu0 0
      %687 = vmatprep.subr.bf16.mxu0 0
      %688 = vmatpush1.bf16.msra.mxu0 0
      %689 = vmatprep.subr.bf16.mxu0 0
      %690 = vmatpush1.bf16.msra.mxu0 0
      %691 = vmatprep.subr.bf16.mxu0 0
      %692 = vmatpush1.bf16.msra.mxu0 0
      %693 = vmatprep.subr.bf16.mxu0 0
      %694 = vmatpush1.bf16.msra.mxu0 0
      %695 = vmatprep.subr.bf16.mxu0 0
      %696 = vmatpush1.bf16.msra.mxu0 0
      %697 = vmatprep.subr.bf16.mxu0 0
      %698 = vmatpush1.bf16.msra.mxu0 0
      %699 = vmatprep.subr.bf16.mxu0 0
      %700 = vmatpush1.bf16.msra.mxu0 0
      %701 = vmatprep.subr.bf16.mxu0 0
      %702 = vmatpush1.bf16.msra.mxu0 0
      %703 = vmatprep.subr.bf16.mxu0 0
      %704 = vmatpush1.bf16.msra.mxu0 0
      %705 = vmatprep.subr.bf16.mxu0 0
      %706 = vmatpush1.bf16.msra.mxu0 0
      %707 = vmatprep.subr.bf16.mxu0 0
      %708 = vmatpush1.bf16.msra.mxu0 0
      %709 = vmatprep.subr.bf16.mxu0 0
      %710 = vmatpush1.bf16.msra.mxu0 0
      %711 = vmatprep.mubr.bf16.mxu0 0
      %712 = vmatmul.mubr.bf16.gmra.mrb[0].mxu0 %v668
      %v713 = vpop.f32.mrb[0].mxu0
      %v714 = vadd.f32 0.0, %v713
      %v715 = vpop.f32.mrb[0].mxu0
      %v716 = vpop.f32.mrb[0].mxu0
      %v717 = vadd.f32 0.0, %v716
      %v718 = vpop.f32.mrb[0].mxu0
      %719 = vmatprep.mubr.bf16.mxu0 0
      %720 = vmatmul.mubr.bf16.gmra.mrb[0].mxu0 %v671
      %v721 = vpop.f32.mrb[0].mxu0
      %v722 = vadd.f32 0.0, %v721
      %v723 = vpop.f32.mrb[0].mxu0
      %v724 = vpop.f32.mrb[0].mxu0
      %v725 = vadd.f32 0.0, %v724
      %v726 = vpop.f32.mrb[0].mxu0
      %727 = vmatprep.mubr.bf16.mxu0 0
      %728 = vmatmul.mubr.bf16.gmra.mrb[0].mxu0 %v674
      %v729 = vpop.f32.mrb[0].mxu0
      %v730 = vadd.f32 0.0, %v729
      %v731 = vpop.f32.mrb[0].mxu0
      %v732 = vpop.f32.mrb[0].mxu0
      %v733 = vadd.f32 0.0, %v732
      %v734 = vpop.f32.mrb[0].mxu0
      %735 = vmatprep.mubr.bf16.mxu0 0
      %736 = vmatmul.mubr.bf16.gmra.mrb[0].mxu0 %v677
      %v737 = vpop.f32.mrb[0].mxu0
      %v738 = vadd.f32 0.0, %v737
      %v739 = vpop.f32.mrb[0].mxu0
      %v740 = vpop.f32.mrb[0].mxu0
      %v741 = vadd.f32 0.0, %v740
      %v742 = vpop.f32.mrb[0].mxu0
      %743 = vdwg.mxu0
      %v744 = vpack.c.bf16 %v717, %v714
      %v745 = vpack.c.bf16 %v725, %v722
      %v746 = vpack.c.bf16 %v733, %v730
      %v747 = vpack.c.bf16 %v741, %v738
      %v764 = vunpack.c.l.b16 %v240
      %v765 = vunpack.c.l.b16 %v241
      %v766 = vunpack.c.l.b16 %v242
      %v767 = vunpack.c.l.b16 %v243
      %v768 = vunpack.c.l.b16 %v244
      %v769 = vunpack.c.l.b16 %v245
      %v770 = vunpack.c.l.b16 %v246
      %v771 = vunpack.c.l.b16 %v247
      %v772 = vunpack.c.l.b16 %v248
      %v773 = vunpack.c.l.b16 %v249
      %v774 = vunpack.c.l.b16 %v250
      %v775 = vunpack.c.l.b16 %v251
      %v776 = vunpack.c.l.b16 %v252
      %v777 = vunpack.c.l.b16 %v253
      %v778 = vunpack.c.l.b16 %v254
      %v779 = vunpack.c.l.b16 %v255
      %v780 = vpack.c.b16 %v765, %v764
      %v781 = vpack.c.b16 %v767, %v766
      %v782 = vpack.c.b16 %v769, %v768
      %v783 = vpack.c.b16 %v771, %v770
      %v784 = vpack.c.b16 %v773, %v772
      %v785 = vpack.c.b16 %v775, %v774
      %v786 = vpack.c.b16 %v777, %v776
      %v787 = vpack.c.b16 %v779, %v778
      %vm788 = vcmask 523264
      %v790 = vsel %vm788, %v780, 0
      %v793 = vsel %vm788, %v781, 0
      %v796 = vsel %vm788, %v782, 0
      %v799 = vsel %vm788, %v783, 0
      %v802 = vsel %vm788, %v784, 0
      %v805 = vsel %vm788, %v785, 0
      %v808 = vsel %vm788, %v786, 0
      %v811 = vsel %vm788, %v787, 0
      %813 = vmatprep.subr.bf16.mxu0 0
      %814 = vmatpush1.bf16.msra.mxu0 %v744
      %815 = vmatprep.subr.bf16.mxu0 0
      %816 = vmatpush1.bf16.msra.mxu0 %v745
      %817 = vmatprep.subr.bf16.mxu0 0
      %818 = vmatpush1.bf16.msra.mxu0 %v746
      %819 = vmatprep.subr.bf16.mxu0 0
      %820 = vmatpush1.bf16.msra.mxu0 %v747
      %821 = vmatprep.subr.bf16.mxu0 0
      %822 = vmatpush1.bf16.msra.mxu0 0
      %823 = vmatprep.subr.bf16.mxu0 0
      %824 = vmatpush1.bf16.msra.mxu0 0
      %825 = vmatprep.subr.bf16.mxu0 0
      %826 = vmatpush1.bf16.msra.mxu0 0
      %827 = vmatprep.subr.bf16.mxu0 0
      %828 = vmatpush1.bf16.msra.mxu0 0
      %829 = vmatprep.subr.bf16.mxu0 0
      %830 = vmatpush1.bf16.msra.mxu0 0
      %831 = vmatprep.subr.bf16.mxu0 0
      %832 = vmatpush1.bf16.msra.mxu0 0
      %833 = vmatprep.subr.bf16.mxu0 0
      %834 = vmatpush1.bf16.msra.mxu0 0
      %835 = vmatprep.subr.bf16.mxu0 0
      %836 = vmatpush1.bf16.msra.mxu0 0
      %837 = vmatprep.subr.bf16.mxu0 0
      %838 = vmatpush1.bf16.msra.mxu0 0
      %839 = vmatprep.subr.bf16.mxu0 0
      %840 = vmatpush1.bf16.msra.mxu0 0
      %841 = vmatprep.subr.bf16.mxu0 0
      %842 = vmatpush1.bf16.msra.mxu0 0
      %843 = vmatprep.subr.bf16.mxu0 0
      %844 = vmatpush1.bf16.msra.mxu0 0
      %845 = vmatprep.mubr.bf16.mxu0 0
      %846 = vmatmul.mubr.bf16.gmra.mrb[0].mxu0 %v790
      %v847 = vpop.f32.mrb[0].mxu0
      %v848 = vadd.f32 0.0, %v847
      %v849 = vpop.f32.mrb[0].mxu0
      %v850 = vpop.f32.mrb[0].mxu0
      %v851 = vadd.f32 0.0, %v850
      %v852 = vpop.f32.mrb[0].mxu0
      %853 = vmatprep.mubr.bf16.mxu0 0
      %854 = vmatmul.mubr.bf16.gmra.mrb[0].mxu0 %v793
      %v855 = vpop.f32.mrb[0].mxu0
      %v856 = vadd.f32 0.0, %v855
      %v857 = vpop.f32.mrb[0].mxu0
      %v858 = vpop.f32.mrb[0].mxu0
      %v859 = vadd.f32 0.0, %v858
      %v860 = vpop.f32.mrb[0].mxu0
      %861 = vmatprep.mubr.bf16.mxu0 0
      %862 = vmatmul.mubr.bf16.gmra.mrb[0].mxu0 %v796
      %v863 = vpop.f32.mrb[0].mxu0
      %v864 = vadd.f32 0.0, %v863
      %v865 = vpop.f32.mrb[0].mxu0
      %v866 = vpop.f32.mrb[0].mxu0
      %v867 = vadd.f32 0.0, %v866
      %v868 = vpop.f32.mrb[0].mxu0
      %869 = vmatprep.mubr.bf16.mxu0 0
      %870 = vmatmul.mubr.bf16.gmra.mrb[0].mxu0 %v799
      %v871 = vpop.f32.mrb[0].mxu0
      %v872 = vadd.f32 0.0, %v871
      %v873 = vpop.f32.mrb[0].mxu0
      %v874 = vpop.f32.mrb[0].mxu0
      %v875 = vadd.f32 0.0, %v874
      %v876 = vpop.f32.mrb[0].mxu0
      %877 = vmatprep.mubr.bf16.mxu0 0
      %878 = vmatmul.mubr.bf16.gmra.mrb[0].mxu0 %v802
      %v879 = vpop.f32.mrb[0].mxu0
      %v880 = vadd.f32 0.0, %v879
      %v881 = vpop.f32.mrb[0].mxu0
      %v882 = vpop.f32.mrb[0].mxu0
      %v883 = vadd.f32 0.0, %v882
      %v884 = vpop.f32.mrb[0].mxu0
      %885 = vmatprep.mubr.bf16.mxu0 0
      %886 = vmatmul.mubr.bf16.gmra.mrb[0].mxu0 %v805
      %v887 = vpop.f32.mrb[0].mxu0
      %v888 = vadd.f32 0.0, %v887
      %v889 = vpop.f32.mrb[0].mxu0
      %v890 = vpop.f32.mrb[0].mxu0
      %v891 = vadd.f32 0.0, %v890
      %v892 = vpop.f32.mrb[0].mxu0
      %893 = vmatprep.mubr.bf16.mxu0 0
      %894 = vmatmul.mubr.bf16.gmra.mrb[0].mxu0 %v808
      %v895 = vpop.f32.mrb[0].mxu0
      %v896 = vadd.f32 0.0, %v895
      %v897 = vpop.f32.mrb[0].mxu0
      %v898 = vpop.f32.mrb[0].mxu0
      %v899 = vadd.f32 0.0, %v898
      %v900 = vpop.f32.mrb[0].mxu0
      %901 = vmatprep.mubr.bf16.mxu0 0
      %902 = vmatmul.mubr.bf16.gmra.mrb[0].mxu0 %v811
      %v903 = vpop.f32.mrb[0].mxu0
      %v904 = vadd.f32 0.0, %v903
      %v905 = vpop.f32.mrb[0].mxu0
      %v906 = vpop.f32.mrb[0].mxu0
      %v907 = vadd.f32 0.0, %v906
      %v908 = vpop.f32.mrb[0].mxu0
      %909 = vdwg.mxu0
      %v910 = vsel %vm280, 1, 0
      %vm911 = vcmp.eq.s32.totalorder %v910, 1
      %v912 = vsel %vm911, %v848, %v880
      %v913 = vsel %vm911, %v851, %v883
      %v914 = vsel %vm911, %v856, %v888
      %v915 = vsel %vm911, %v859, %v891
      %v916 = vsel %vm911, %v864, %v896
      %v917 = vsel %vm911, %v867, %v899
      %v918 = vsel %vm911, %v872, %v904
      %v919 = vsel %vm911, %v875, %v907
      %921 = vset.pattern.permute.xlu0 0
      %922 = vperm.xlu0 %921, %v258
      %v923 = vpop.permute.xlu0 %922
      %926 = vset.pattern.permute.xlu0 0
      %927 = vperm.xlu0 %926, %v259
      %v928 = vpop.permute.xlu0 %927
      %931 = vset.pattern.permute.xlu0 0
      %932 = vperm.xlu0 %931, %v260
      %v933 = vpop.permute.xlu0 %932
      %936 = vset.pattern.permute.xlu0 0
      %937 = vperm.xlu0 %936, %v261
      %v938 = vpop.permute.xlu0 %937
      %941 = vset.pattern.permute.xlu0 0
      %942 = vperm.xlu0 %941, %v262
      %v943 = vpop.permute.xlu0 %942
      %946 = vset.pattern.permute.xlu0 0
      %947 = vperm.xlu0 %946, %v263
      %v948 = vpop.permute.xlu0 %947
      %951 = vset.pattern.permute.xlu0 0
      %952 = vperm.xlu0 %951, %v264
      %v953 = vpop.permute.xlu0 %952
      %956 = vset.pattern.permute.xlu0 0
      %957 = vperm.xlu0 %956, %v265
      %v958 = vpop.permute.xlu0 %957
      %v960 = vadd.f32 %v912, %v923
      %v961 = vadd.f32 %v913, %v928
      %v962 = vadd.f32 %v914, %v933
      %v963 = vadd.f32 %v915, %v938
      %v964 = vadd.f32 %v916, %v943
      %v965 = vadd.f32 %v917, %v948
      %v966 = vadd.f32 %v918, %v953
      %v967 = vadd.f32 %v919, %v958
      %vm968 = vcmask 261120
      %969 = vst.msk [vmem:[%s237] sm:$0xff] %vm968, %v960
      %970 = vst.msk [vmem:[%s237 + $0x8] sm:$0xff] %vm968, %v961
      %971 = vst.msk [vmem:[%s237 + $0x10] sm:$0xff] %vm968, %v962
      %972 = vst.msk [vmem:[%s237 + $0x18] sm:$0xff] %vm968, %v963
      %s973 = scalar_lea.vmem %s237, 32
      %974 = vst.msk [vmem:[%s973] sm:$0xff] %vm968, %v964
      %975 = vst.msk [vmem:[%s973 + $0x8] sm:$0xff] %vm968, %v965
      %976 = vst.msk [vmem:[%s973 + $0x10] sm:$0xff] %vm968, %v966
      %977 = vst.msk [vmem:[%s973 + $0x18] sm:$0xff] %vm968, %v967
      %v978 = vld [vmem:[%s226 + $0x1] sm:$0x1]
      %v979 = vld [vmem:[%s226 + $0x11] sm:$0x1]
      %v980 = vld [vmem:[%s226 + $0x21] sm:$0x1]
      %v981 = vld [vmem:[%s226 + $0x31] sm:$0x1]
      %v982 = vld [vmem:[%s226 + $0x41] sm:$0x1]
      %v983 = vld [vmem:[%s226 + $0x51] sm:$0x1]
      %v984 = vld [vmem:[%s226 + $0x61] sm:$0x1]
      %v985 = vld [vmem:[%s226 + $0x71] sm:$0x1]
      %v986 = vld [vmem:[%s226 + $0x81] sm:$0x1]
      %v987 = vld [vmem:[%s226 + $0x91] sm:$0x1]
      %v988 = vld [vmem:[%s226 + $0xa1] sm:$0x1]
      %v989 = vld [vmem:[%s226 + $0xb1] sm:$0x1]
      %v990 = vld [vmem:[%s226 + $0xc1] sm:$0x1]
      %v991 = vld [vmem:[%s226 + $0xd1] sm:$0x1]
      %v992 = vld [vmem:[%s226 + $0xe1] sm:$0x1]
      %v993 = vld [vmem:[%s226 + $0xf1] sm:$0x1]
      %v994 = vld [vmem:[%s226 + $0x101] sm:$0x1]
      %v995 = vld [vmem:[%s226 + $0x111] sm:$0x1]
      %v996 = vld [vmem:[%s226 + $0x121] sm:$0x1]
      %v997 = vld [vmem:[%s226 + $0x131] sm:$0x1]
      %v998 = vld [vmem:[%s226 + $0x141] sm:$0x1]
      %v999 = vld [vmem:[%s226 + $0x151] sm:$0x1]
      %v1000 = vld [vmem:[%s226 + $0x161] sm:$0x1]
      %v1001 = vld [vmem:[%s226 + $0x171] sm:$0x1]
      %v1002 = vld [vmem:[%s226 + $0x181] sm:$0x1]
      %v1003 = vld [vmem:[%s226 + $0x191] sm:$0x1]
      %v1004 = vld [vmem:[%s226 + $0x1a1] sm:$0x1]
      %v1005 = vld [vmem:[%s226 + $0x1b1] sm:$0x1]
      %v1006 = vld [vmem:[%s226 + $0x1c1] sm:$0x1]
      %v1007 = vld [vmem:[%s226 + $0x1d1] sm:$0x1]
      %v1008 = vld [vmem:[%s226 + $0x1e1] sm:$0x1]
      %v1009 = vld [vmem:[%s226 + $0x1f1] sm:$0x1]
      %v1010 = vld [vmem:[%s226 + $0x201] sm:$0x1]
      %v1011 = vld [vmem:[%s226 + $0x211] sm:$0x1]
      %v1012 = vld [vmem:[%s226 + $0x221] sm:$0x1]
      %v1013 = vld [vmem:[%s226 + $0x231] sm:$0x1]
      %v1014 = vld [vmem:[%s226 + $0x241] sm:$0x1]
      %v1015 = vld [vmem:[%s226 + $0x251] sm:$0x1]
      %v1016 = vld [vmem:[%s226 + $0x261] sm:$0x1]
      %v1017 = vld [vmem:[%s226 + $0x271] sm:$0x1]
      %v1018 = vld [vmem:[%s226 + $0x281] sm:$0x1]
      %v1019 = vld [vmem:[%s226 + $0x291] sm:$0x1]
      %v1020 = vld [vmem:[%s226 + $0x2a1] sm:$0x1]
      %v1021 = vld [vmem:[%s226 + $0x2b1] sm:$0x1]
      %v1022 = vld [vmem:[%s226 + $0x2c1] sm:$0x1]
      %v1023 = vld [vmem:[%s226 + $0x2d1] sm:$0x1]
      %v1024 = vld [vmem:[%s226 + $0x2e1] sm:$0x1]
      %v1025 = vld [vmem:[%s226 + $0x2f1] sm:$0x1]
      %v1026 = vld [vmem:[%s226 + $0x301] sm:$0x1]
      %v1027 = vld [vmem:[%s226 + $0x311] sm:$0x1]
      %v1028 = vld [vmem:[%s226 + $0x321] sm:$0x1]
      %v1029 = vld [vmem:[%s226 + $0x331] sm:$0x1]
      %v1030 = vld [vmem:[%s226 + $0x341] sm:$0x1]
      %v1031 = vld [vmem:[%s226 + $0x351] sm:$0x1]
      %v1032 = vld [vmem:[%s226 + $0x361] sm:$0x1]
      %v1033 = vld [vmem:[%s226 + $0x371] sm:$0x1]
      %v1034 = vld [vmem:[%s226 + $0x381] sm:$0x1]
      %v1035 = vld [vmem:[%s226 + $0x391] sm:$0x1]
      %v1036 = vld [vmem:[%s226 + $0x3a1] sm:$0x1]
      %v1037 = vld [vmem:[%s226 + $0x3b1] sm:$0x1]
      %v1038 = vld [vmem:[%s226 + $0x3c1] sm:$0x1]
      %v1039 = vld [vmem:[%s226 + $0x3d1] sm:$0x1]
      %v1040 = vld [vmem:[%s226 + $0x3e1] sm:$0x1]
      %v1041 = vld [vmem:[%s226 + $0x3f1] sm:$0x1]
      %v1042 = vpack.c.bf16 %v978, %v978
      %v1043 = vpack.c.bf16 %v979, %v979
      %v1044 = vpack.c.bf16 %v980, %v980
      %v1045 = vpack.c.bf16 %v981, %v981
      %v1046 = vpack.c.bf16 %v982, %v982
      %v1047 = vpack.c.bf16 %v983, %v983
      %v1048 = vpack.c.bf16 %v984, %v984
      %v1049 = vpack.c.bf16 %v985, %v985
      %v1050 = vpack.c.bf16 %v986, %v986
      %v1051 = vpack.c.bf16 %v987, %v987
      %v1052 = vpack.c.bf16 %v988, %v988
      %v1053 = vpack.c.bf16 %v989, %v989
      %v1054 = vpack.c.bf16 %v990, %v990
      %v1055 = vpack.c.bf16 %v991, %v991
      %v1056 = vpack.c.bf16 %v992, %v992
      %v1057 = vpack.c.bf16 %v993, %v993
      %v1058 = vpack.c.bf16 %v994, %v994
      %v1059 = vpack.c.bf16 %v995, %v995
      %v1060 = vpack.c.bf16 %v996, %v996
      %v1061 = vpack.c.bf16 %v997, %v997
      %v1062 = vpack.c.bf16 %v998, %v998
      %v1063 = vpack.c.bf16 %v999, %v999
      %v1064 = vpack.c.bf16 %v1000, %v1000
      %v1065 = vpack.c.bf16 %v1001, %v1001
      %v1066 = vpack.c.bf16 %v1002, %v1002
      %v1067 = vpack.c.bf16 %v1003, %v1003
      %v1068 = vpack.c.bf16 %v1004, %v1004
      %v1069 = vpack.c.bf16 %v1005, %v1005
      %v1070 = vpack.c.bf16 %v1006, %v1006
      %v1071 = vpack.c.bf16 %v1007, %v1007
      %v1072 = vpack.c.bf16 %v1008, %v1008
      %v1073 = vpack.c.bf16 %v1009, %v1009
      %v1074 = vpack.c.bf16 %v1010, %v1010
      %v1075 = vpack.c.bf16 %v1011, %v1011
      %v1076 = vpack.c.bf16 %v1012, %v1012
      %v1077 = vpack.c.bf16 %v1013, %v1013
      %v1078 = vpack.c.bf16 %v1014, %v1014
      %v1079 = vpack.c.bf16 %v1015, %v1015
      %v1080 = vpack.c.bf16 %v1016, %v1016
      %v1081 = vpack.c.bf16 %v1017, %v1017
      %v1082 = vpack.c.bf16 %v1018, %v1018
      %v1083 = vpack.c.bf16 %v1019, %v1019
      %v1084 = vpack.c.bf16 %v1020, %v1020
      %v1085 = vpack.c.bf16 %v1021, %v1021
      %v1086 = vpack.c.bf16 %v1022, %v1022
      %v1087 = vpack.c.bf16 %v1023, %v1023
      %v1088 = vpack.c.bf16 %v1024, %v1024
      %v1089 = vpack.c.bf16 %v1025, %v1025
      %v1090 = vpack.c.bf16 %v1026, %v1026
      %v1091 = vpack.c.bf16 %v1027, %v1027
      %v1092 = vpack.c.bf16 %v1028, %v1028
      %v1093 = vpack.c.bf16 %v1029, %v1029
      %v1094 = vpack.c.bf16 %v1030, %v1030
      %v1095 = vpack.c.bf16 %v1031, %v1031
      %v1096 = vpack.c.bf16 %v1032, %v1032
      %v1097 = vpack.c.bf16 %v1033, %v1033
      %v1098 = vpack.c.bf16 %v1034, %v1034
      %v1099 = vpack.c.bf16 %v1035, %v1035
      %v1100 = vpack.c.bf16 %v1036, %v1036
      %v1101 = vpack.c.bf16 %v1037, %v1037
      %v1102 = vpack.c.bf16 %v1038, %v1038
      %v1103 = vpack.c.bf16 %v1039, %v1039
      %v1104 = vpack.c.bf16 %v1040, %v1040
      %v1105 = vpack.c.bf16 %v1041, %v1041
      %v1170 = vunpack.c.l.b16 %v1042
      %v1171 = vunpack.c.l.b16 %v1043
      %v1172 = vunpack.c.l.b16 %v1044
      %v1173 = vunpack.c.l.b16 %v1045
      %v1174 = vunpack.c.l.b16 %v1046
      %v1175 = vunpack.c.l.b16 %v1047
      %v1176 = vunpack.c.l.b16 %v1048
      %v1177 = vunpack.c.l.b16 %v1049
      %v1178 = vunpack.c.l.b16 %v1050
      %v1179 = vunpack.c.l.b16 %v1051
      %v1180 = vunpack.c.l.b16 %v1052
      %v1181 = vunpack.c.l.b16 %v1053
      %v1182 = vunpack.c.l.b16 %v1054
      %v1183 = vunpack.c.l.b16 %v1055
      %v1184 = vunpack.c.l.b16 %v1056
      %v1185 = vunpack.c.l.b16 %v1057
      %v1186 = vunpack.c.l.b16 %v1058
      %v1187 = vunpack.c.l.b16 %v1059
      %v1188 = vunpack.c.l.b16 %v1060
      %v1189 = vunpack.c.l.b16 %v1061
      %v1190 = vunpack.c.l.b16 %v1062
      %v1191 = vunpack.c.l.b16 %v1063
      %v1192 = vunpack.c.l.b16 %v1064
      %v1193 = vunpack.c.l.b16 %v1065
      %v1194 = vunpack.c.l.b16 %v1066
      %v1195 = vunpack.c.l.b16 %v1067
      %v1196 = vunpack.c.l.b16 %v1068
      %v1197 = vunpack.c.l.b16 %v1069
      %v1198 = vunpack.c.l.b16 %v1070
      %v1199 = vunpack.c.l.b16 %v1071
      %v1200 = vunpack.c.l.b16 %v1072
      %v1201 = vunpack.c.l.b16 %v1073
      %v1202 = vunpack.c.l.b16 %v1074
      %v1203 = vunpack.c.l.b16 %v1075
      %v1204 = vunpack.c.l.b16 %v1076
      %v1205 = vunpack.c.l.b16 %v1077
      %v1206 = vunpack.c.l.b16 %v1078
      %v1207 = vunpack.c.l.b16 %v1079
      %v1208 = vunpack.c.l.b16 %v1080
      %v1209 = vunpack.c.l.b16 %v1081
      %v1210 = vunpack.c.l.b16 %v1082
      %v1211 = vunpack.c.l.b16 %v1083
      %v1212 = vunpack.c.l.b16 %v1084
      %v1213 = vunpack.c.l.b16 %v1085
      %v1214 = vunpack.c.l.b16 %v1086
      %v1215 = vunpack.c.l.b16 %v1087
      %v1216 = vunpack.c.l.b16 %v1088
      %v1217 = vunpack.c.l.b16 %v1089
      %v1218 = vunpack.c.l.b16 %v1090
      %v1219 = vunpack.c.l.b16 %v1091
      %v1220 = vunpack.c.l.b16 %v1092
      %v1221 = vunpack.c.l.b16 %v1093
      %v1222 = vunpack.c.l.b16 %v1094
      %v1223 = vunpack.c.l.b16 %v1095
      %v1224 = vunpack.c.l.b16 %v1096
      %v1225 = vunpack.c.l.b16 %v1097
      %v1226 = vunpack.c.l.b16 %v1098
      %v1227 = vunpack.c.l.b16 %v1099
      %v1228 = vunpack.c.l.b16 %v1100
      %v1229 = vunpack.c.l.b16 %v1101
      %v1230 = vunpack.c.l.b16 %v1102
      %v1231 = vunpack.c.l.b16 %v1103
      %v1232 = vunpack.c.l.b16 %v1104
      %v1233 = vunpack.c.l.b16 %v1105
      %v1234 = vrot.slane %v1171, 7
      %v1235 = vsel %vm538, %v1234, %v1170
      %v1236 = vrot.slane %v1172, 6
      %v1237 = vsel %vm541, %v1236, %v1235
      %v1238 = vrot.slane %v1173, 5
      %v1239 = vsel %vm544, %v1238, %v1237
      %v1240 = vrot.slane %v1174, 4
      %v1241 = vsel %vm547, %v1240, %v1239
      %v1242 = vrot.slane %v1175, 3
      %v1243 = vsel %vm550, %v1242, %v1241
      %v1244 = vrot.slane %v1176, 2
      %v1245 = vsel %vm553, %v1244, %v1243
      %v1246 = vrot.slane %v1177, 1
      %v1247 = vsel %vm556, %v1246, %v1245
      %v1248 = vrot.slane %v1179, 7
      %v1249 = vsel %vm538, %v1248, %v1178
      %v1250 = vrot.slane %v1180, 6
      %v1251 = vsel %vm541, %v1250, %v1249
      %v1252 = vrot.slane %v1181, 5
      %v1253 = vsel %vm544, %v1252, %v1251
      %v1254 = vrot.slane %v1182, 4
      %v1255 = vsel %vm547, %v1254, %v1253
      %v1256 = vrot.slane %v1183, 3
      %v1257 = vsel %vm550, %v1256, %v1255
      %v1258 = vrot.slane %v1184, 2
      %v1259 = vsel %vm553, %v1258, %v1257
      %v1260 = vrot.slane %v1185, 1
      %v1261 = vsel %vm556, %v1260, %v1259
      %v1262 = vrot.slane %v1187, 7
      %v1263 = vsel %vm538, %v1262, %v1186
      %v1264 = vrot.slane %v1188, 6
      %v1265 = vsel %vm541, %v1264, %v1263
      %v1266 = vrot.slane %v1189, 5
      %v1267 = vsel %vm544, %v1266, %v1265
      %v1268 = vrot.slane %v1190, 4
      %v1269 = vsel %vm547, %v1268, %v1267
      %v1270 = vrot.slane %v1191, 3
      %v1271 = vsel %vm550, %v1270, %v1269
      %v1272 = vrot.slane %v1192, 2
      %v1273 = vsel %vm553, %v1272, %v1271
      %v1274 = vrot.slane %v1193, 1
      %v1275 = vsel %vm556, %v1274, %v1273
      %v1276 = vrot.slane %v1195, 7
      %v1277 = vsel %vm538, %v1276, %v1194
      %v1278 = vrot.slane %v1196, 6
      %v1279 = vsel %vm541, %v1278, %v1277
      %v1280 = vrot.slane %v1197, 5
      %v1281 = vsel %vm544, %v1280, %v1279
      %v1282 = vrot.slane %v1198, 4
      %v1283 = vsel %vm547, %v1282, %v1281
      %v1284 = vrot.slane %v1199, 3
      %v1285 = vsel %vm550, %v1284, %v1283
      %v1286 = vrot.slane %v1200, 2
      %v1287 = vsel %vm553, %v1286, %v1285
      %v1288 = vrot.slane %v1201, 1
      %v1289 = vsel %vm556, %v1288, %v1287
      %v1290 = vrot.slane %v1203, 7
      %v1291 = vsel %vm538, %v1290, %v1202
      %v1292 = vrot.slane %v1204, 6
      %v1293 = vsel %vm541, %v1292, %v1291
      %v1294 = vrot.slane %v1205, 5
      %v1295 = vsel %vm544, %v1294, %v1293
      %v1296 = vrot.slane %v1206, 4
      %v1297 = vsel %vm547, %v1296, %v1295
      %v1298 = vrot.slane %v1207, 3
      %v1299 = vsel %vm550, %v1298, %v1297
      %v1300 = vrot.slane %v1208, 2
      %v1301 = vsel %vm553, %v1300, %v1299
      %v1302 = vrot.slane %v1209, 1
      %v1303 = vsel %vm556, %v1302, %v1301
      %v1304 = vrot.slane %v1211, 7
      %v1305 = vsel %vm538, %v1304, %v1210
      %v1306 = vrot.slane %v1212, 6
      %v1307 = vsel %vm541, %v1306, %v1305
      %v1308 = vrot.slane %v1213, 5
      %v1309 = vsel %vm544, %v1308, %v1307
      %v1310 = vrot.slane %v1214, 4
      %v1311 = vsel %vm547, %v1310, %v1309
      %v1312 = vrot.slane %v1215, 3
      %v1313 = vsel %vm550, %v1312, %v1311
      %v1314 = vrot.slane %v1216, 2
      %v1315 = vsel %vm553, %v1314, %v1313
      %v1316 = vrot.slane %v1217, 1
      %v1317 = vsel %vm556, %v1316, %v1315
      %v1318 = vrot.slane %v1219, 7
      %v1319 = vsel %vm538, %v1318, %v1218
      %v1320 = vrot.slane %v1220, 6
      %v1321 = vsel %vm541, %v1320, %v1319
      %v1322 = vrot.slane %v1221, 5
      %v1323 = vsel %vm544, %v1322, %v1321
      %v1324 = vrot.slane %v1222, 4
      %v1325 = vsel %vm547, %v1324, %v1323
      %v1326 = vrot.slane %v1223, 3
      %v1327 = vsel %vm550, %v1326, %v1325
      %v1328 = vrot.slane %v1224, 2
      %v1329 = vsel %vm553, %v1328, %v1327
      %v1330 = vrot.slane %v1225, 1
      %v1331 = vsel %vm556, %v1330, %v1329
      %v1332 = vrot.slane %v1227, 7
      %v1333 = vsel %vm538, %v1332, %v1226
      %v1334 = vrot.slane %v1228, 6
      %v1335 = vsel %vm541, %v1334, %v1333
      %v1336 = vrot.slane %v1229, 5
      %v1337 = vsel %vm544, %v1336, %v1335
      %v1338 = vrot.slane %v1230, 4
      %v1339 = vsel %vm547, %v1338, %v1337
      %v1340 = vrot.slane %v1231, 3
      %v1341 = vsel %vm550, %v1340, %v1339
      %v1342 = vrot.slane %v1232, 2
      %v1343 = vsel %vm553, %v1342, %v1341
      %v1344 = vrot.slane %v1233, 1
      %v1345 = vsel %vm556, %v1344, %v1343
      %v1346 = vpack.c.b16 %v1261, %v1247
      %v1347 = vpack.c.b16 %v1289, %v1275
      %v1348 = vpack.c.b16 %v1317, %v1303
      %v1349 = vpack.c.b16 %v1345, %v1331
      %v1351 = vsel %vm666, %v1346, 0
      %v1354 = vsel %vm666, %v1347, 0
      %v1357 = vsel %vm666, %v1348, 0
      %v1360 = vsel %vm666, %v1349, 0
      %1362 = vmatprep.subr.bf16.mxu0 0
      %1363 = vmatpush1.bf16.msra.mxu0 %v664
      %1364 = vmatprep.subr.bf16.mxu0 0
      %1365 = vmatpush1.bf16.msra.mxu0 0
      %1366 = vmatprep.subr.bf16.mxu0 0
      %1367 = vmatpush1.bf16.msra.mxu0 0
      %1368 = vmatprep.subr.bf16.mxu0 0
      %1369 = vmatpush1.bf16.msra.mxu0 0
      %1370 = vmatprep.subr.bf16.mxu0 0
      %1371 = vmatpush1.bf16.msra.mxu0 0
      %1372 = vmatprep.subr.bf16.mxu0 0
      %1373 = vmatpush1.bf16.msra.mxu0 0
      %1374 = vmatprep.subr.bf16.mxu0 0
      %1375 = vmatpush1.bf16.msra.mxu0 0
      %1376 = vmatprep.subr.bf16.mxu0 0
      %1377 = vmatpush1.bf16.msra.mxu0 0
      %1378 = vmatprep.subr.bf16.mxu0 0
      %1379 = vmatpush1.bf16.msra.mxu0 0
      %1380 = vmatprep.subr.bf16.mxu0 0
      %1381 = vmatpush1.bf16.msra.mxu0 0
      %1382 = vmatprep.subr.bf16.mxu0 0
      %1383 = vmatpush1.bf16.msra.mxu0 0
      %1384 = vmatprep.subr.bf16.mxu0 0
      %1385 = vmatpush1.bf16.msra.mxu0 0
      %1386 = vmatprep.subr.bf16.mxu0 0
      %1387 = vmatpush1.bf16.msra.mxu0 0
      %1388 = vmatprep.subr.bf16.mxu0 0
      %1389 = vmatpush1.bf16.msra.mxu0 0
      %1390 = vmatprep.subr.bf16.mxu0 0
      %1391 = vmatpush1.bf16.msra.mxu0 0
      %1392 = vmatprep.subr.bf16.mxu0 0
      %1393 = vmatpush1.bf16.msra.mxu0 0
      %1394 = vmatprep.mubr.bf16.mxu0 0
      %1395 = vmatmul.mubr.bf16.gmra.mrb[0].mxu0 %v1351
      %v1396 = vpop.f32.mrb[0].mxu0
      %v1397 = vadd.f32 0.0, %v1396
      %v1398 = vpop.f32.mrb[0].mxu0
      %v1399 = vpop.f32.mrb[0].mxu0
      %v1400 = vadd.f32 0.0, %v1399
      %v1401 = vpop.f32.mrb[0].mxu0
      %1402 = vmatprep.mubr.bf16.mxu0 0
      %1403 = vmatmul.mubr.bf16.gmra.mrb[0].mxu0 %v1354
      %v1404 = vpop.f32.mrb[0].mxu0
      %v1405 = vadd.f32 0.0, %v1404
      %v1406 = vpop.f32.mrb[0].mxu0
      %v1407 = vpop.f32.mrb[0].mxu0
      %v1408 = vadd.f32 0.0, %v1407
      %v1409 = vpop.f32.mrb[0].mxu0
      %1410 = vmatprep.mubr.bf16.mxu0 0
      %1411 = vmatmul.mubr.bf16.gmra.mrb[0].mxu0 %v1357
      %v1412 = vpop.f32.mrb[0].mxu0
      %v1413 = vadd.f32 0.0, %v1412
      %v1414 = vpop.f32.mrb[0].mxu0
      %v1415 = vpop.f32.mrb[0].mxu0
      %v1416 = vadd.f32 0.0, %v1415
      %v1417 = vpop.f32.mrb[0].mxu0
      %1418 = vmatprep.mubr.bf16.mxu0 0
      %1419 = vmatmul.mubr.bf16.gmra.mrb[0].mxu0 %v1360
      %v1420 = vpop.f32.mrb[0].mxu0
      %v1421 = vadd.f32 0.0, %v1420
      %v1422 = vpop.f32.mrb[0].mxu0
      %v1423 = vpop.f32.mrb[0].mxu0
      %v1424 = vadd.f32 0.0, %v1423
      %v1425 = vpop.f32.mrb[0].mxu0
      %1426 = vdwg.mxu0
      %v1427 = vpack.c.bf16 %v1400, %v1397
      %v1428 = vpack.c.bf16 %v1408, %v1405
      %v1429 = vpack.c.bf16 %v1416, %v1413
      %v1430 = vpack.c.bf16 %v1424, %v1421
      %1431 = vmatprep.subr.bf16.mxu0 0
      %1432 = vmatpush1.bf16.msra.mxu0 %v1427
      %1433 = vmatprep.subr.bf16.mxu0 0
      %1434 = vmatpush1.bf16.msra.mxu0 %v1428
      %1435 = vmatprep.subr.bf16.mxu0 0
      %1436 = vmatpush1.bf16.msra.mxu0 %v1429
      %1437 = vmatprep.subr.bf16.mxu0 0
      %1438 = vmatpush1.bf16.msra.mxu0 %v1430
      %1439 = vmatprep.subr.bf16.mxu0 0
      %1440 = vmatpush1.bf16.msra.mxu0 0
      %1441 = vmatprep.subr.bf16.mxu0 0
      %1442 = vmatpush1.bf16.msra.mxu0 0
      %1443 = vmatprep.subr.bf16.mxu0 0
      %1444 = vmatpush1.bf16.msra.mxu0 0
      %1445 = vmatprep.subr.bf16.mxu0 0
      %1446 = vmatpush1.bf16.msra.mxu0 0
      %1447 = vmatprep.subr.bf16.mxu0 0
      %1448 = vmatpush1.bf16.msra.mxu0 0
      %1449 = vmatprep.subr.bf16.mxu0 0
      %1450 = vmatpush1.bf16.msra.mxu0 0
      %1451 = vmatprep.subr.bf16.mxu0 0
      %1452 = vmatpush1.bf16.msra.mxu0 0
      %1453 = vmatprep.subr.bf16.mxu0 0
      %1454 = vmatpush1.bf16.msra.mxu0 0
      %1455 = vmatprep.subr.bf16.mxu0 0
      %1456 = vmatpush1.bf16.msra.mxu0 0
      %1457 = vmatprep.subr.bf16.mxu0 0
      %1458 = vmatpush1.bf16.msra.mxu0 0
      %1459 = vmatprep.subr.bf16.mxu0 0
      %1460 = vmatpush1.bf16.msra.mxu0 0
      %1461 = vmatprep.subr.bf16.mxu0 0
      %1462 = vmatpush1.bf16.msra.mxu0 0
      %1463 = vmatprep.mubr.bf16.mxu0 0
      %1464 = vmatmul.mubr.bf16.gmra.mrb[0].mxu0 %v790
      %v1465 = vpop.f32.mrb[0].mxu0
      %v1466 = vadd.f32 0.0, %v1465
      %v1467 = vpop.f32.mrb[0].mxu0
      %v1468 = vpop.f32.mrb[0].mxu0
      %v1469 = vadd.f32 0.0, %v1468
      %v1470 = vpop.f32.mrb[0].mxu0
      %1471 = vmatprep.mubr.bf16.mxu0 0
      %1472 = vmatmul.mubr.bf16.gmra.mrb[0].mxu0 %v793
      %v1473 = vpop.f32.mrb[0].mxu0
      %v1474 = vadd.f32 0.0, %v1473
      %v1475 = vpop.f32.mrb[0].mxu0
      %v1476 = vpop.f32.mrb[0].mxu0
      %v1477 = vadd.f32 0.0, %v1476
      %v1478 = vpop.f32.mrb[0].mxu0
      %1479 = vmatprep.mubr.bf16.mxu0 0
      %1480 = vmatmul.mubr.bf16.gmra.mrb[0].mxu0 %v796
      %v1481 = vpop.f32.mrb[0].mxu0
      %v1482 = vadd.f32 0.0, %v1481
      %v1483 = vpop.f32.mrb[0].mxu0
      %v1484 = vpop.f32.mrb[0].mxu0
      %v1485 = vadd.f32 0.0, %v1484
      %v1486 = vpop.f32.mrb[0].mxu0
      %1487 = vmatprep.mubr.bf16.mxu0 0
      %1488 = vmatmul.mubr.bf16.gmra.mrb[0].mxu0 %v799
      %v1489 = vpop.f32.mrb[0].mxu0
      %v1490 = vadd.f32 0.0, %v1489
      %v1491 = vpop.f32.mrb[0].mxu0
      %v1492 = vpop.f32.mrb[0].mxu0
      %v1493 = vadd.f32 0.0, %v1492
      %v1494 = vpop.f32.mrb[0].mxu0
      %1495 = vmatprep.mubr.bf16.mxu0 0
      %1496 = vmatmul.mubr.bf16.gmra.mrb[0].mxu0 %v802
      %v1497 = vpop.f32.mrb[0].mxu0
      %v1498 = vadd.f32 0.0, %v1497
      %v1499 = vpop.f32.mrb[0].mxu0
      %v1500 = vpop.f32.mrb[0].mxu0
      %v1501 = vadd.f32 0.0, %v1500
      %v1502 = vpop.f32.mrb[0].mxu0
      %1503 = vmatprep.mubr.bf16.mxu0 0
      %1504 = vmatmul.mubr.bf16.gmra.mrb[0].mxu0 %v805
      %v1505 = vpop.f32.mrb[0].mxu0
      %v1506 = vadd.f32 0.0, %v1505
      %v1507 = vpop.f32.mrb[0].mxu0
      %v1508 = vpop.f32.mrb[0].mxu0
      %v1509 = vadd.f32 0.0, %v1508
      %v1510 = vpop.f32.mrb[0].mxu0
      %1511 = vmatprep.mubr.bf16.mxu0 0
      %1512 = vmatmul.mubr.bf16.gmra.mrb[0].mxu0 %v808
      %v1513 = vpop.f32.mrb[0].mxu0
      %v1514 = vadd.f32 0.0, %v1513
      %v1515 = vpop.f32.mrb[0].mxu0
      %v1516 = vpop.f32.mrb[0].mxu0
      %v1517 = vadd.f32 0.0, %v1516
      %v1518 = vpop.f32.mrb[0].mxu0
      %1519 = vmatprep.mubr.bf16.mxu0 0
      %1520 = vmatmul.mubr.bf16.gmra.mrb[0].mxu0 %v811
      %v1521 = vpop.f32.mrb[0].mxu0
      %v1522 = vadd.f32 0.0, %v1521
      %v1523 = vpop.f32.mrb[0].mxu0
      %v1524 = vpop.f32.mrb[0].mxu0
      %v1525 = vadd.f32 0.0, %v1524
      %v1526 = vpop.f32.mrb[0].mxu0
      %1527 = vdwg.mxu0
      %v1528 = vsel %vm911, %v1466, %v1498
      %v1529 = vsel %vm911, %v1469, %v1501
      %v1530 = vsel %vm911, %v1474, %v1506
      %v1531 = vsel %vm911, %v1477, %v1509
      %v1532 = vsel %vm911, %v1482, %v1514
      %v1533 = vsel %vm911, %v1485, %v1517
      %v1534 = vsel %vm911, %v1490, %v1522
      %v1535 = vsel %vm911, %v1493, %v1525
      %v1536 = vadd.f32 %v1528, %v923
      %v1537 = vadd.f32 %v1529, %v928
      %v1538 = vadd.f32 %v1530, %v933
      %v1539 = vadd.f32 %v1531, %v938
      %v1540 = vadd.f32 %v1532, %v943
      %v1541 = vadd.f32 %v1533, %v948
      %v1542 = vadd.f32 %v1534, %v953
      %v1543 = vadd.f32 %v1535, %v958
      %s1544 = scalar_lea.vmem %s237, 64
      %1545 = vst.msk [vmem:[%s1544] sm:$0xff] %vm968, %v1536
      %1546 = vst.msk [vmem:[%s1544 + $0x8] sm:$0xff] %vm968, %v1537
      %1547 = vst.msk [vmem:[%s1544 + $0x10] sm:$0xff] %vm968, %v1538
      %1548 = vst.msk [vmem:[%s1544 + $0x18] sm:$0xff] %vm968, %v1539
      %s1549 = scalar_lea.vmem %s237, 96
      %1550 = vst.msk [vmem:[%s1549] sm:$0xff] %vm968, %v1540
      %1551 = vst.msk [vmem:[%s1549 + $0x8] sm:$0xff] %vm968, %v1541
      %1552 = vst.msk [vmem:[%s1549 + $0x10] sm:$0xff] %vm968, %v1542
      %1553 = vst.msk [vmem:[%s1549 + $0x18] sm:$0xff] %vm968, %v1543
      %v1554 = vld [vmem:[%s226 + $0x2] sm:$0x1]
      %v1555 = vld [vmem:[%s226 + $0x12] sm:$0x1]
      %v1556 = vld [vmem:[%s226 + $0x22] sm:$0x1]
      %v1557 = vld [vmem:[%s226 + $0x32] sm:$0x1]
      %v1558 = vld [vmem:[%s226 + $0x42] sm:$0x1]
      %v1559 = vld [vmem:[%s226 + $0x52] sm:$0x1]
      %v1560 = vld [vmem:[%s226 + $0x62] sm:$0x1]
      %v1561 = vld [vmem:[%s226 + $0x72] sm:$0x1]
      %v1562 = vld [vmem:[%s226 + $0x82] sm:$0x1]
      %v1563 = vld [vmem:[%s226 + $0x92] sm:$0x1]
      %v1564 = vld [vmem:[%s226 + $0xa2] sm:$0x1]
      %v1565 = vld [vmem:[%s226 + $0xb2] sm:$0x1]
      %v1566 = vld [vmem:[%s226 + $0xc2] sm:$0x1]
      %v1567 = vld [vmem:[%s226 + $0xd2] sm:$0x1]
      %v1568 = vld [vmem:[%s226 + $0xe2] sm:$0x1]
      %v1569 = vld [vmem:[%s226 + $0xf2] sm:$0x1]
      %v1570 = vld [vmem:[%s226 + $0x102] sm:$0x1]
      %v1571 = vld [vmem:[%s226 + $0x112] sm:$0x1]
      %v1572 = vld [vmem:[%s226 + $0x122] sm:$0x1]
      %v1573 = vld [vmem:[%s226 + $0x132] sm:$0x1]
      %v1574 = vld [vmem:[%s226 + $0x142] sm:$0x1]
      %v1575 = vld [vmem:[%s226 + $0x152] sm:$0x1]
      %v1576 = vld [vmem:[%s226 + $0x162] sm:$0x1]
      %v1577 = vld [vmem:[%s226 + $0x172] sm:$0x1]
      %v1578 = vld [vmem:[%s226 + $0x182] sm:$0x1]
      %v1579 = vld [vmem:[%s226 + $0x192] sm:$0x1]
      %v1580 = vld [vmem:[%s226 + $0x1a2] sm:$0x1]
      %v1581 = vld [vmem:[%s226 + $0x1b2] sm:$0x1]
      %v1582 = vld [vmem:[%s226 + $0x1c2] sm:$0x1]
      %v1583 = vld [vmem:[%s226 + $0x1d2] sm:$0x1]
      %v1584 = vld [vmem:[%s226 + $0x1e2] sm:$0x1]
      %v1585 = vld [vmem:[%s226 + $0x1f2] sm:$0x1]
      %v1586 = vld [vmem:[%s226 + $0x202] sm:$0x1]
      %v1587 = vld [vmem:[%s226 + $0x212] sm:$0x1]
      %v1588 = vld [vmem:[%s226 + $0x222] sm:$0x1]
      %v1589 = vld [vmem:[%s226 + $0x232] sm:$0x1]
      %v1590 = vld [vmem:[%s226 + $0x242] sm:$0x1]
      %v1591 = vld [vmem:[%s226 + $0x252] sm:$0x1]
      %v1592 = vld [vmem:[%s226 + $0x262] sm:$0x1]
      %v1593 = vld [vmem:[%s226 + $0x272] sm:$0x1]
      %v1594 = vld [vmem:[%s226 + $0x282] sm:$0x1]
      %v1595 = vld [vmem:[%s226 + $0x292] sm:$0x1]
      %v1596 = vld [vmem:[%s226 + $0x2a2] sm:$0x1]
      %v1597 = vld [vmem:[%s226 + $0x2b2] sm:$0x1]
      %v1598 = vld [vmem:[%s226 + $0x2c2] sm:$0x1]
      %v1599 = vld [vmem:[%s226 + $0x2d2] sm:$0x1]
      %v1600 = vld [vmem:[%s226 + $0x2e2] sm:$0x1]
      %v1601 = vld [vmem:[%s226 + $0x2f2] sm:$0x1]
      %v1602 = vld [vmem:[%s226 + $0x302] sm:$0x1]
      %v1603 = vld [vmem:[%s226 + $0x312] sm:$0x1]
      %v1604 = vld [vmem:[%s226 + $0x322] sm:$0x1]
      %v1605 = vld [vmem:[%s226 + $0x332] sm:$0x1]
      %v1606 = vld [vmem:[%s226 + $0x342] sm:$0x1]
      %v1607 = vld [vmem:[%s226 + $0x352] sm:$0x1]
      %v1608 = vld [vmem:[%s226 + $0x362] sm:$0x1]
      %v1609 = vld [vmem:[%s226 + $0x372] sm:$0x1]
      %v1610 = vld [vmem:[%s226 + $0x382] sm:$0x1]
      %v1611 = vld [vmem:[%s226 + $0x392] sm:$0x1]
      %v1612 = vld [vmem:[%s226 + $0x3a2] sm:$0x1]
      %v1613 = vld [vmem:[%s226 + $0x3b2] sm:$0x1]
      %v1614 = vld [vmem:[%s226 + $0x3c2] sm:$0x1]
      %v1615 = vld [vmem:[%s226 + $0x3d2] sm:$0x1]
      %v1616 = vld [vmem:[%s226 + $0x3e2] sm:$0x1]
      %v1617 = vld [vmem:[%s226 + $0x3f2] sm:$0x1]
      %v1618 = vpack.c.bf16 %v1554, %v1554
      %v1619 = vpack.c.bf16 %v1555, %v1555
      %v1620 = vpack.c.bf16 %v1556, %v1556
      %v1621 = vpack.c.bf16 %v1557, %v1557
      %v1622 = vpack.c.bf16 %v1558, %v1558
      %v1623 = vpack.c.bf16 %v1559, %v1559
      %v1624 = vpack.c.bf16 %v1560, %v1560
      %v1625 = vpack.c.bf16 %v1561, %v1561
      %v1626 = vpack.c.bf16 %v1562, %v1562
      %v1627 = vpack.c.bf16 %v1563, %v1563
      %v1628 = vpack.c.bf16 %v1564, %v1564
      %v1629 = vpack.c.bf16 %v1565, %v1565
      %v1630 = vpack.c.bf16 %v1566, %v1566
      %v1631 = vpack.c.bf16 %v1567, %v1567
      %v1632 = vpack.c.bf16 %v1568, %v1568
      %v1633 = vpack.c.bf16 %v1569, %v1569
      %v1634 = vpack.c.bf16 %v1570, %v1570
      %v1635 = vpack.c.bf16 %v1571, %v1571
      %v1636 = vpack.c.bf16 %v1572, %v1572
      %v1637 = vpack.c.bf16 %v1573, %v1573
      %v1638 = vpack.c.bf16 %v1574, %v1574
      %v1639 = vpack.c.bf16 %v1575, %v1575
      %v1640 = vpack.c.bf16 %v1576, %v1576
      %v1641 = vpack.c.bf16 %v1577, %v1577
      %v1642 = vpack.c.bf16 %v1578, %v1578
      %v1643 = vpack.c.bf16 %v1579, %v1579
      %v1644 = vpack.c.bf16 %v1580, %v1580
      %v1645 = vpack.c.bf16 %v1581, %v1581
      %v1646 = vpack.c.bf16 %v1582, %v1582
      %v1647 = vpack.c.bf16 %v1583, %v1583
      %v1648 = vpack.c.bf16 %v1584, %v1584
      %v1649 = vpack.c.bf16 %v1585, %v1585
      %v1650 = vpack.c.bf16 %v1586, %v1586
      %v1651 = vpack.c.bf16 %v1587, %v1587
      %v1652 = vpack.c.bf16 %v1588, %v1588
      %v1653 = vpack.c.bf16 %v1589, %v1589
      %v1654 = vpack.c.bf16 %v1590, %v1590
      %v1655 = vpack.c.bf16 %v1591, %v1591
      %v1656 = vpack.c.bf16 %v1592, %v1592
      %v1657 = vpack.c.bf16 %v1593, %v1593
      %v1658 = vpack.c.bf16 %v1594, %v1594
      %v1659 = vpack.c.bf16 %v1595, %v1595
      %v1660 = vpack.c.bf16 %v1596, %v1596
      %v1661 = vpack.c.bf16 %v1597, %v1597
      %v1662 = vpack.c.bf16 %v1598, %v1598
      %v1663 = vpack.c.bf16 %v1599, %v1599
      %v1664 = vpack.c.bf16 %v1600, %v1600
      %v1665 = vpack.c.bf16 %v1601, %v1601
      %v1666 = vpack.c.bf16 %v1602, %v1602
      %v1667 = vpack.c.bf16 %v1603, %v1603
      %v1668 = vpack.c.bf16 %v1604, %v1604
      %v1669 = vpack.c.bf16 %v1605, %v1605
      %v1670 = vpack.c.bf16 %v1606, %v1606
      %v1671 = vpack.c.bf16 %v1607, %v1607
      %v1672 = vpack.c.bf16 %v1608, %v1608
      %v1673 = vpack.c.bf16 %v1609, %v1609
      %v1674 = vpack.c.bf16 %v1610, %v1610
      %v1675 = vpack.c.bf16 %v1611, %v1611
      %v1676 = vpack.c.bf16 %v1612, %v1612
      %v1677 = vpack.c.bf16 %v1613, %v1613
      %v1678 = vpack.c.bf16 %v1614, %v1614
      %v1679 = vpack.c.bf16 %v1615, %v1615
      %v1680 = vpack.c.bf16 %v1616, %v1616
      %v1681 = vpack.c.bf16 %v1617, %v1617
      %v1746 = vunpack.c.l.b16 %v1618
      %v1747 = vunpack.c.l.b16 %v1619
      %v1748 = vunpack.c.l.b16 %v1620
      %v1749 = vunpack.c.l.b16 %v1621
      %v1750 = vunpack.c.l.b16 %v1622
      %v1751 = vunpack.c.l.b16 %v1623
      %v1752 = vunpack.c.l.b16 %v1624
      %v1753 = vunpack.c.l.b16 %v1625
      %v1754 = vunpack.c.l.b16 %v1626
      %v1755 = vunpack.c.l.b16 %v1627
      %v1756 = vunpack.c.l.b16 %v1628
      %v1757 = vunpack.c.l.b16 %v1629
      %v1758 = vunpack.c.l.b16 %v1630
      %v1759 = vunpack.c.l.b16 %v1631
      %v1760 = vunpack.c.l.b16 %v1632
      %v1761 = vunpack.c.l.b16 %v1633
      %v1762 = vunpack.c.l.b16 %v1634
      %v1763 = vunpack.c.l.b16 %v1635
      %v1764 = vunpack.c.l.b16 %v1636
      %v1765 = vunpack.c.l.b16 %v1637
      %v1766 = vunpack.c.l.b16 %v1638
      %v1767 = vunpack.c.l.b16 %v1639
      %v1768 = vunpack.c.l.b16 %v1640
      %v1769 = vunpack.c.l.b16 %v1641
      %v1770 = vunpack.c.l.b16 %v1642
      %v1771 = vunpack.c.l.b16 %v1643
      %v1772 = vunpack.c.l.b16 %v1644
      %v1773 = vunpack.c.l.b16 %v1645
      %v1774 = vunpack.c.l.b16 %v1646
      %v1775 = vunpack.c.l.b16 %v1647
      %v1776 = vunpack.c.l.b16 %v1648
      %v1777 = vunpack.c.l.b16 %v1649
      %v1778 = vunpack.c.l.b16 %v1650
      %v1779 = vunpack.c.l.b16 %v1651
      %v1780 = vunpack.c.l.b16 %v1652
      %v1781 = vunpack.c.l.b16 %v1653
      %v1782 = vunpack.c.l.b16 %v1654
      %v1783 = vunpack.c.l.b16 %v1655
      %v1784 = vunpack.c.l.b16 %v1656
      %v1785 = vunpack.c.l.b16 %v1657
      %v1786 = vunpack.c.l.b16 %v1658
      %v1787 = vunpack.c.l.b16 %v1659
      %v1788 = vunpack.c.l.b16 %v1660
      %v1789 = vunpack.c.l.b16 %v1661
      %v1790 = vunpack.c.l.b16 %v1662
      %v1791 = vunpack.c.l.b16 %v1663
      %v1792 = vunpack.c.l.b16 %v1664
      %v1793 = vunpack.c.l.b16 %v1665
      %v1794 = vunpack.c.l.b16 %v1666
      %v1795 = vunpack.c.l.b16 %v1667
      %v1796 = vunpack.c.l.b16 %v1668
      %v1797 = vunpack.c.l.b16 %v1669
      %v1798 = vunpack.c.l.b16 %v1670
      %v1799 = vunpack.c.l.b16 %v1671
      %v1800 = vunpack.c.l.b16 %v1672
      %v1801 = vunpack.c.l.b16 %v1673
      %v1802 = vunpack.c.l.b16 %v1674
      %v1803 = vunpack.c.l.b16 %v1675
      %v1804 = vunpack.c.l.b16 %v1676
      %v1805 = vunpack.c.l.b16 %v1677
      %v1806 = vunpack.c.l.b16 %v1678
      %v1807 = vunpack.c.l.b16 %v1679
      %v1808 = vunpack.c.l.b16 %v1680
      %v1809 = vunpack.c.l.b16 %v1681
      %v1810 = vrot.slane %v1747, 7
      %v1811 = vsel %vm538, %v1810, %v1746
      %v1812 = vrot.slane %v1748, 6
      %v1813 = vsel %vm541, %v1812, %v1811
      %v1814 = vrot.slane %v1749, 5
      %v1815 = vsel %vm544, %v1814, %v1813
      %v1816 = vrot.slane %v1750, 4
      %v1817 = vsel %vm547, %v1816, %v1815
      %v1818 = vrot.slane %v1751, 3
      %v1819 = vsel %vm550, %v1818, %v1817
      %v1820 = vrot.slane %v1752, 2
      %v1821 = vsel %vm553, %v1820, %v1819
      %v1822 = vrot.slane %v1753, 1
      %v1823 = vsel %vm556, %v1822, %v1821
      %v1824 = vrot.slane %v1755, 7
      %v1825 = vsel %vm538, %v1824, %v1754
      %v1826 = vrot.slane %v1756, 6
      %v1827 = vsel %vm541, %v1826, %v1825
      %v1828 = vrot.slane %v1757, 5
      %v1829 = vsel %vm544, %v1828, %v1827
      %v1830 = vrot.slane %v1758, 4
      %v1831 = vsel %vm547, %v1830, %v1829
      %v1832 = vrot.slane %v1759, 3
      %v1833 = vsel %vm550, %v1832, %v1831
      %v1834 = vrot.slane %v1760, 2
      %v1835 = vsel %vm553, %v1834, %v1833
      %v1836 = vrot.slane %v1761, 1
      %v1837 = vsel %vm556, %v1836, %v1835
      %v1838 = vrot.slane %v1763, 7
      %v1839 = vsel %vm538, %v1838, %v1762
      %v1840 = vrot.slane %v1764, 6
      %v1841 = vsel %vm541, %v1840, %v1839
      %v1842 = vrot.slane %v1765, 5
      %v1843 = vsel %vm544, %v1842, %v1841
      %v1844 = vrot.slane %v1766, 4
      %v1845 = vsel %vm547, %v1844, %v1843
      %v1846 = vrot.slane %v1767, 3
      %v1847 = vsel %vm550, %v1846, %v1845
      %v1848 = vrot.slane %v1768, 2
      %v1849 = vsel %vm553, %v1848, %v1847
      %v1850 = vrot.slane %v1769, 1
      %v1851 = vsel %vm556, %v1850, %v1849
      %v1852 = vrot.slane %v1771, 7
      %v1853 = vsel %vm538, %v1852, %v1770
      %v1854 = vrot.slane %v1772, 6
      %v1855 = vsel %vm541, %v1854, %v1853
      %v1856 = vrot.slane %v1773, 5
      %v1857 = vsel %vm544, %v1856, %v1855
      %v1858 = vrot.slane %v1774, 4
      %v1859 = vsel %vm547, %v1858, %v1857
      %v1860 = vrot.slane %v1775, 3
      %v1861 = vsel %vm550, %v1860, %v1859
      %v1862 = vrot.slane %v1776, 2
      %v1863 = vsel %vm553, %v1862, %v1861
      %v1864 = vrot.slane %v1777, 1
      %v1865 = vsel %vm556, %v1864, %v1863
      %v1866 = vrot.slane %v1779, 7
      %v1867 = vsel %vm538, %v1866, %v1778
      %v1868 = vrot.slane %v1780, 6
      %v1869 = vsel %vm541, %v1868, %v1867
      %v1870 = vrot.slane %v1781, 5
      %v1871 = vsel %vm544, %v1870, %v1869
      %v1872 = vrot.slane %v1782, 4
      %v1873 = vsel %vm547, %v1872, %v1871
      %v1874 = vrot.slane %v1783, 3
      %v1875 = vsel %vm550, %v1874, %v1873
      %v1876 = vrot.slane %v1784, 2
      %v1877 = vsel %vm553, %v1876, %v1875
      %v1878 = vrot.slane %v1785, 1
      %v1879 = vsel %vm556, %v1878, %v1877
      %v1880 = vrot.slane %v1787, 7
      %v1881 = vsel %vm538, %v1880, %v1786
      %v1882 = vrot.slane %v1788, 6
      %v1883 = vsel %vm541, %v1882, %v1881
      %v1884 = vrot.slane %v1789, 5
      %v1885 = vsel %vm544, %v1884, %v1883
      %v1886 = vrot.slane %v1790, 4
      %v1887 = vsel %vm547, %v1886, %v1885
      %v1888 = vrot.slane %v1791, 3
      %v1889 = vsel %vm550, %v1888, %v1887
      %v1890 = vrot.slane %v1792, 2
      %v1891 = vsel %vm553, %v1890, %v1889
      %v1892 = vrot.slane %v1793, 1
      %v1893 = vsel %vm556, %v1892, %v1891
      %v1894 = vrot.slane %v1795, 7
      %v1895 = vsel %vm538, %v1894, %v1794
      %v1896 = vrot.slane %v1796, 6
      %v1897 = vsel %vm541, %v1896, %v1895
      %v1898 = vrot.slane %v1797, 5
      %v1899 = vsel %vm544, %v1898, %v1897
      %v1900 = vrot.slane %v1798, 4
      %v1901 = vsel %vm547, %v1900, %v1899
      %v1902 = vrot.slane %v1799, 3
      %v1903 = vsel %vm550, %v1902, %v1901
      %v1904 = vrot.slane %v1800, 2
      %v1905 = vsel %vm553, %v1904, %v1903
      %v1906 = vrot.slane %v1801, 1
      %v1907 = vsel %vm556, %v1906, %v1905
      %v1908 = vrot.slane %v1803, 7
      %v1909 = vsel %vm538, %v1908, %v1802
      %v1910 = vrot.slane %v1804, 6
      %v1911 = vsel %vm541, %v1910, %v1909
      %v1912 = vrot.slane %v1805, 5
      %v1913 = vsel %vm544, %v1912, %v1911
      %v1914 = vrot.slane %v1806, 4
      %v1915 = vsel %vm547, %v1914, %v1913
      %v1916 = vrot.slane %v1807, 3
      %v1917 = vsel %vm550, %v1916, %v1915
      %v1918 = vrot.slane %v1808, 2
      %v1919 = vsel %vm553, %v1918, %v1917
      %v1920 = vrot.slane %v1809, 1
      %v1921 = vsel %vm556, %v1920, %v1919
      %v1922 = vpack.c.b16 %v1837, %v1823
      %v1923 = vpack.c.b16 %v1865, %v1851
      %v1924 = vpack.c.b16 %v1893, %v1879
      %v1925 = vpack.c.b16 %v1921, %v1907
      %v1927 = vsel %vm666, %v1922, 0
      %v1930 = vsel %vm666, %v1923, 0
      %v1933 = vsel %vm666, %v1924, 0
      %v1936 = vsel %vm666, %v1925, 0
      %1938 = vmatprep.subr.bf16.mxu0 0
      %1939 = vmatpush1.bf16.msra.mxu0 %v664
      %1940 = vmatprep.subr.bf16.mxu0 0
      %1941 = vmatpush1.bf16.msra.mxu0 0
      %1942 = vmatprep.subr.bf16.mxu0 0
      %1943 = vmatpush1.bf16.msra.mxu0 0
      %1944 = vmatprep.subr.bf16.mxu0 0
      %1945 = vmatpush1.bf16.msra.mxu0 0
      %1946 = vmatprep.subr.bf16.mxu0 0
      %1947 = vmatpush1.bf16.msra.mxu0 0
      %1948 = vmatprep.subr.bf16.mxu0 0
      %1949 = vmatpush1.bf16.msra.mxu0 0
      %1950 = vmatprep.subr.bf16.mxu0 0
      %1951 = vmatpush1.bf16.msra.mxu0 0
      %1952 = vmatprep.subr.bf16.mxu0 0
      %1953 = vmatpush1.bf16.msra.mxu0 0
      %1954 = vmatprep.subr.bf16.mxu0 0
      %1955 = vmatpush1.bf16.msra.mxu0 0
      %1956 = vmatprep.subr.bf16.mxu0 0
      %1957 = vmatpush1.bf16.msra.mxu0 0
      %1958 = vmatprep.subr.bf16.mxu0 0
      %1959 = vmatpush1.bf16.msra.mxu0 0
      %1960 = vmatprep.subr.bf16.mxu0 0
      %1961 = vmatpush1.bf16.msra.mxu0 0
      %1962 = vmatprep.subr.bf16.mxu0 0
      %1963 = vmatpush1.bf16.msra.mxu0 0
      %1964 = vmatprep.subr.bf16.mxu0 0
      %1965 = vmatpush1.bf16.msra.mxu0 0
      %1966 = vmatprep.subr.bf16.mxu0 0
      %1967 = vmatpush1.bf16.msra.mxu0 0
      %1968 = vmatprep.subr.bf16.mxu0 0
      %1969 = vmatpush1.bf16.msra.mxu0 0
      %1970 = vmatprep.mubr.bf16.mxu0 0
      %1971 = vmatmul.mubr.bf16.gmra.mrb[0].mxu0 %v1927
      %v1972 = vpop.f32.mrb[0].mxu0
      %v1973 = vadd.f32 0.0, %v1972
      %v1974 = vpop.f32.mrb[0].mxu0
      %v1975 = vpop.f32.mrb[0].mxu0
      %v1976 = vadd.f32 0.0, %v1975
      %v1977 = vpop.f32.mrb[0].mxu0
      %1978 = vmatprep.mubr.bf16.mxu0 0
      %1979 = vmatmul.mubr.bf16.gmra.mrb[0].mxu0 %v1930
      %v1980 = vpop.f32.mrb[0].mxu0
      %v1981 = vadd.f32 0.0, %v1980
      %v1982 = vpop.f32.mrb[0].mxu0
      %v1983 = vpop.f32.mrb[0].mxu0
      %v1984 = vadd.f32 0.0, %v1983
      %v1985 = vpop.f32.mrb[0].mxu0
      %1986 = vmatprep.mubr.bf16.mxu0 0
      %1987 = vmatmul.mubr.bf16.gmra.mrb[0].mxu0 %v1933
      %v1988 = vpop.f32.mrb[0].mxu0
      %v1989 = vadd.f32 0.0, %v1988
      %v1990 = vpop.f32.mrb[0].mxu0
      %v1991 = vpop.f32.mrb[0].mxu0
      %v1992 = vadd.f32 0.0, %v1991
      %v1993 = vpop.f32.mrb[0].mxu0
      %1994 = vmatprep.mubr.bf16.mxu0 0
      %1995 = vmatmul.mubr.bf16.gmra.mrb[0].mxu0 %v1936
      %v1996 = vpop.f32.mrb[0].mxu0
      %v1997 = vadd.f32 0.0, %v1996
      %v1998 = vpop.f32.mrb[0].mxu0
      %v1999 = vpop.f32.mrb[0].mxu0
      %v2000 = vadd.f32 0.0, %v1999
      %v2001 = vpop.f32.mrb[0].mxu0
      %2002 = vdwg.mxu0
      %v2003 = vpack.c.bf16 %v1976, %v1973
      %v2004 = vpack.c.bf16 %v1984, %v1981
      %v2005 = vpack.c.bf16 %v1992, %v1989
      %v2006 = vpack.c.bf16 %v2000, %v1997
      %2007 = vmatprep.subr.bf16.mxu0 0
      %2008 = vmatpush1.bf16.msra.mxu0 %v2003
      %2009 = vmatprep.subr.bf16.mxu0 0
      %2010 = vmatpush1.bf16.msra.mxu0 %v2004
      %2011 = vmatprep.subr.bf16.mxu0 0
      %2012 = vmatpush1.bf16.msra.mxu0 %v2005
      %2013 = vmatprep.subr.bf16.mxu0 0
      %2014 = vmatpush1.bf16.msra.mxu0 %v2006
      %2015 = vmatprep.subr.bf16.mxu0 0
      %2016 = vmatpush1.bf16.msra.mxu0 0
      %2017 = vmatprep.subr.bf16.mxu0 0
      %2018 = vmatpush1.bf16.msra.mxu0 0
      %2019 = vmatprep.subr.bf16.mxu0 0
      %2020 = vmatpush1.bf16.msra.mxu0 0
      %2021 = vmatprep.subr.bf16.mxu0 0
      %2022 = vmatpush1.bf16.msra.mxu0 0
      %2023 = vmatprep.subr.bf16.mxu0 0
      %2024 = vmatpush1.bf16.msra.mxu0 0
      %2025 = vmatprep.subr.bf16.mxu0 0
      %2026 = vmatpush1.bf16.msra.mxu0 0
      %2027 = vmatprep.subr.bf16.mxu0 0
      %2028 = vmatpush1.bf16.msra.mxu0 0
      %2029 = vmatprep.subr.bf16.mxu0 0
      %2030 = vmatpush1.bf16.msra.mxu0 0
      %2031 = vmatprep.subr.bf16.mxu0 0
      %2032 = vmatpush1.bf16.msra.mxu0 0
      %2033 = vmatprep.subr.bf16.mxu0 0
      %2034 = vmatpush1.bf16.msra.mxu0 0
      %2035 = vmatprep.subr.bf16.mxu0 0
      %2036 = vmatpush1.bf16.msra.mxu0 0
      %2037 = vmatprep.subr.bf16.mxu0 0
      %2038 = vmatpush1.bf16.msra.mxu0 0
      %2039 = vmatprep.mubr.bf16.mxu0 0
      %2040 = vmatmul.mubr.bf16.gmra.mrb[0].mxu0 %v790
      %v2041 = vpop.f32.mrb[0].mxu0
      %v2042 = vadd.f32 0.0, %v2041
      %v2043 = vpop.f32.mrb[0].mxu0
      %v2044 = vpop.f32.mrb[0].mxu0
      %v2045 = vadd.f32 0.0, %v2044
      %v2046 = vpop.f32.mrb[0].mxu0
      %2047 = vmatprep.mubr.bf16.mxu0 0
      %2048 = vmatmul.mubr.bf16.gmra.mrb[0].mxu0 %v793
      %v2049 = vpop.f32.mrb[0].mxu0
      %v2050 = vadd.f32 0.0, %v2049
      %v2051 = vpop.f32.mrb[0].mxu0
      %v2052 = vpop.f32.mrb[0].mxu0
      %v2053 = vadd.f32 0.0, %v2052
      %v2054 = vpop.f32.mrb[0].mxu0
      %2055 = vmatprep.mubr.bf16.mxu0 0
      %2056 = vmatmul.mubr.bf16.gmra.mrb[0].mxu0 %v796
      %v2057 = vpop.f32.mrb[0].mxu0
      %v2058 = vadd.f32 0.0, %v2057
      %v2059 = vpop.f32.mrb[0].mxu0
      %v2060 = vpop.f32.mrb[0].mxu0
      %v2061 = vadd.f32 0.0, %v2060
      %v2062 = vpop.f32.mrb[0].mxu0
      %2063 = vmatprep.mubr.bf16.mxu0 0
      %2064 = vmatmul.mubr.bf16.gmra.mrb[0].mxu0 %v799
      %v2065 = vpop.f32.mrb[0].mxu0
      %v2066 = vadd.f32 0.0, %v2065
      %v2067 = vpop.f32.mrb[0].mxu0
      %v2068 = vpop.f32.mrb[0].mxu0
      %v2069 = vadd.f32 0.0, %v2068
      %v2070 = vpop.f32.mrb[0].mxu0
      %2071 = vmatprep.mubr.bf16.mxu0 0
      %2072 = vmatmul.mubr.bf16.gmra.mrb[0].mxu0 %v802
      %v2073 = vpop.f32.mrb[0].mxu0
      %v2074 = vadd.f32 0.0, %v2073
      %v2075 = vpop.f32.mrb[0].mxu0
      %v2076 = vpop.f32.mrb[0].mxu0
      %v2077 = vadd.f32 0.0, %v2076
      %v2078 = vpop.f32.mrb[0].mxu0
      %2079 = vmatprep.mubr.bf16.mxu0 0
      %2080 = vmatmul.mubr.bf16.gmra.mrb[0].mxu0 %v805
      %v2081 = vpop.f32.mrb[0].mxu0
      %v2082 = vadd.f32 0.0, %v2081
      %v2083 = vpop.f32.mrb[0].mxu0
      %v2084 = vpop.f32.mrb[0].mxu0
      %v2085 = vadd.f32 0.0, %v2084
      %v2086 = vpop.f32.mrb[0].mxu0
      %2087 = vmatprep.mubr.bf16.mxu0 0
      %2088 = vmatmul.mubr.bf16.gmra.mrb[0].mxu0 %v808
      %v2089 = vpop.f32.mrb[0].mxu0
      %v2090 = vadd.f32 0.0, %v2089
      %v2091 = vpop.f32.mrb[0].mxu0
      %v2092 = vpop.f32.mrb[0].mxu0
      %v2093 = vadd.f32 0.0, %v2092
      %v2094 = vpop.f32.mrb[0].mxu0
      %2095 = vmatprep.mubr.bf16.mxu0 0
      %2096 = vmatmul.mubr.bf16.gmra.mrb[0].mxu0 %v811
      %v2097 = vpop.f32.mrb[0].mxu0
      %v2098 = vadd.f32 0.0, %v2097
      %v2099 = vpop.f32.mrb[0].mxu0
      %v2100 = vpop.f32.mrb[0].mxu0
      %v2101 = vadd.f32 0.0, %v2100
      %v2102 = vpop.f32.mrb[0].mxu0
      %2103 = vdwg.mxu0
      %v2104 = vsel %vm911, %v2042, %v2074
      %v2105 = vsel %vm911, %v2045, %v2077
      %v2106 = vsel %vm911, %v2050, %v2082
      %v2107 = vsel %vm911, %v2053, %v2085
      %v2108 = vsel %vm911, %v2058, %v2090
      %v2109 = vsel %vm911, %v2061, %v2093
      %v2110 = vsel %vm911, %v2066, %v2098
      %v2111 = vsel %vm911, %v2069, %v2101
      %v2112 = vadd.f32 %v2104, %v923
      %v2113 = vadd.f32 %v2105, %v928
      %v2114 = vadd.f32 %v2106, %v933
      %v2115 = vadd.f32 %v2107, %v938
      %v2116 = vadd.f32 %v2108, %v943
      %v2117 = vadd.f32 %v2109, %v948
      %v2118 = vadd.f32 %v2110, %v953
      %v2119 = vadd.f32 %v2111, %v958
      %s2120 = scalar_lea.vmem %s237, 128
      %2121 = vst.msk [vmem:[%s2120] sm:$0xff] %vm968, %v2112
      %2122 = vst.msk [vmem:[%s2120 + $0x8] sm:$0xff] %vm968, %v2113
      %2123 = vst.msk [vmem:[%s2120 + $0x10] sm:$0xff] %vm968, %v2114
      %2124 = vst.msk [vmem:[%s2120 + $0x18] sm:$0xff] %vm968, %v2115
      %s2125 = scalar_lea.vmem %s237, 160
      %2126 = vst.msk [vmem:[%s2125] sm:$0xff] %vm968, %v2116
      %2127 = vst.msk [vmem:[%s2125 + $0x8] sm:$0xff] %vm968, %v2117
      %2128 = vst.msk [vmem:[%s2125 + $0x10] sm:$0xff] %vm968, %v2118
      %2129 = vst.msk [vmem:[%s2125 + $0x18] sm:$0xff] %vm968, %v2119
      %v2130 = vld [vmem:[%s226 + $0x3] sm:$0x1]
      %v2131 = vld [vmem:[%s226 + $0x13] sm:$0x1]
      %v2132 = vld [vmem:[%s226 + $0x23] sm:$0x1]
      %v2133 = vld [vmem:[%s226 + $0x33] sm:$0x1]
      %v2134 = vld [vmem:[%s226 + $0x43] sm:$0x1]
      %v2135 = vld [vmem:[%s226 + $0x53] sm:$0x1]
      %v2136 = vld [vmem:[%s226 + $0x63] sm:$0x1]
      %v2137 = vld [vmem:[%s226 + $0x73] sm:$0x1]
      %v2138 = vld [vmem:[%s226 + $0x83] sm:$0x1]
      %v2139 = vld [vmem:[%s226 + $0x93] sm:$0x1]
      %v2140 = vld [vmem:[%s226 + $0xa3] sm:$0x1]
      %v2141 = vld [vmem:[%s226 + $0xb3] sm:$0x1]
      %v2142 = vld [vmem:[%s226 + $0xc3] sm:$0x1]
      %v2143 = vld [vmem:[%s226 + $0xd3] sm:$0x1]
      %v2144 = vld [vmem:[%s226 + $0xe3] sm:$0x1]
      %v2145 = vld [vmem:[%s226 + $0xf3] sm:$0x1]
      %v2146 = vld [vmem:[%s226 + $0x103] sm:$0x1]
      %v2147 = vld [vmem:[%s226 + $0x113] sm:$0x1]
      %v2148 = vld [vmem:[%s226 + $0x123] sm:$0x1]
      %v2149 = vld [vmem:[%s226 + $0x133] sm:$0x1]
      %v2150 = vld [vmem:[%s226 + $0x143] sm:$0x1]
      %v2151 = vld [vmem:[%s226 + $0x153] sm:$0x1]
      %v2152 = vld [vmem:[%s226 + $0x163] sm:$0x1]
      %v2153 = vld [vmem:[%s226 + $0x173] sm:$0x1]
      %v2154 = vld [vmem:[%s226 + $0x183] sm:$0x1]
      %v2155 = vld [vmem:[%s226 + $0x193] sm:$0x1]
      %v2156 = vld [vmem:[%s226 + $0x1a3] sm:$0x1]
      %v2157 = vld [vmem:[%s226 + $0x1b3] sm:$0x1]
      %v2158 = vld [vmem:[%s226 + $0x1c3] sm:$0x1]
      %v2159 = vld [vmem:[%s226 + $0x1d3] sm:$0x1]
      %v2160 = vld [vmem:[%s226 + $0x1e3] sm:$0x1]
      %v2161 = vld [vmem:[%s226 + $0x1f3] sm:$0x1]
      %v2162 = vld [vmem:[%s226 + $0x203] sm:$0x1]
      %v2163 = vld [vmem:[%s226 + $0x213] sm:$0x1]
      %v2164 = vld [vmem:[%s226 + $0x223] sm:$0x1]
      %v2165 = vld [vmem:[%s226 + $0x233] sm:$0x1]
      %v2166 = vld [vmem:[%s226 + $0x243] sm:$0x1]
      %v2167 = vld [vmem:[%s226 + $0x253] sm:$0x1]
      %v2168 = vld [vmem:[%s226 + $0x263] sm:$0x1]
      %v2169 = vld [vmem:[%s226 + $0x273] sm:$0x1]
      %v2170 = vld [vmem:[%s226 + $0x283] sm:$0x1]
      %v2171 = vld [vmem:[%s226 + $0x293] sm:$0x1]
      %v2172 = vld [vmem:[%s226 + $0x2a3] sm:$0x1]
      %v2173 = vld [vmem:[%s226 + $0x2b3] sm:$0x1]
      %v2174 = vld [vmem:[%s226 + $0x2c3] sm:$0x1]
      %v2175 = vld [vmem:[%s226 + $0x2d3] sm:$0x1]
      %v2176 = vld [vmem:[%s226 + $0x2e3] sm:$0x1]
      %v2177 = vld [vmem:[%s226 + $0x2f3] sm:$0x1]
      %v2178 = vld [vmem:[%s226 + $0x303] sm:$0x1]
      %v2179 = vld [vmem:[%s226 + $0x313] sm:$0x1]
      %v2180 = vld [vmem:[%s226 + $0x323] sm:$0x1]
      %v2181 = vld [vmem:[%s226 + $0x333] sm:$0x1]
      %v2182 = vld [vmem:[%s226 + $0x343] sm:$0x1]
      %v2183 = vld [vmem:[%s226 + $0x353] sm:$0x1]
      %v2184 = vld [vmem:[%s226 + $0x363] sm:$0x1]
      %v2185 = vld [vmem:[%s226 + $0x373] sm:$0x1]
      %v2186 = vld [vmem:[%s226 + $0x383] sm:$0x1]
      %v2187 = vld [vmem:[%s226 + $0x393] sm:$0x1]
      %v2188 = vld [vmem:[%s226 + $0x3a3] sm:$0x1]
      %v2189 = vld [vmem:[%s226 + $0x3b3] sm:$0x1]
      %v2190 = vld [vmem:[%s226 + $0x3c3] sm:$0x1]
      %v2191 = vld [vmem:[%s226 + $0x3d3] sm:$0x1]
      %v2192 = vld [vmem:[%s226 + $0x3e3] sm:$0x1]
      %v2193 = vld [vmem:[%s226 + $0x3f3] sm:$0x1]
      %v2194 = vpack.c.bf16 %v2130, %v2130
      %v2195 = vpack.c.bf16 %v2131, %v2131
      %v2196 = vpack.c.bf16 %v2132, %v2132
      %v2197 = vpack.c.bf16 %v2133, %v2133
      %v2198 = vpack.c.bf16 %v2134, %v2134
      %v2199 = vpack.c.bf16 %v2135, %v2135
      %v2200 = vpack.c.bf16 %v2136, %v2136
      %v2201 = vpack.c.bf16 %v2137, %v2137
      %v2202 = vpack.c.bf16 %v2138, %v2138
      %v2203 = vpack.c.bf16 %v2139, %v2139
      %v2204 = vpack.c.bf16 %v2140, %v2140
      %v2205 = vpack.c.bf16 %v2141, %v2141
      %v2206 = vpack.c.bf16 %v2142, %v2142
      %v2207 = vpack.c.bf16 %v2143, %v2143
      %v2208 = vpack.c.bf16 %v2144, %v2144
      %v2209 = vpack.c.bf16 %v2145, %v2145
      %v2210 = vpack.c.bf16 %v2146, %v2146
      %v2211 = vpack.c.bf16 %v2147, %v2147
      %v2212 = vpack.c.bf16 %v2148, %v2148
      %v2213 = vpack.c.bf16 %v2149, %v2149
      %v2214 = vpack.c.bf16 %v2150, %v2150
      %v2215 = vpack.c.bf16 %v2151, %v2151
      %v2216 = vpack.c.bf16 %v2152, %v2152
      %v2217 = vpack.c.bf16 %v2153, %v2153
      %v2218 = vpack.c.bf16 %v2154, %v2154
      %v2219 = vpack.c.bf16 %v2155, %v2155
      %v2220 = vpack.c.bf16 %v2156, %v2156
      %v2221 = vpack.c.bf16 %v2157, %v2157
      %v2222 = vpack.c.bf16 %v2158, %v2158
      %v2223 = vpack.c.bf16 %v2159, %v2159
      %v2224 = vpack.c.bf16 %v2160, %v2160
      %v2225 = vpack.c.bf16 %v2161, %v2161
      %v2226 = vpack.c.bf16 %v2162, %v2162
      %v2227 = vpack.c.bf16 %v2163, %v2163
      %v2228 = vpack.c.bf16 %v2164, %v2164
      %v2229 = vpack.c.bf16 %v2165, %v2165
      %v2230 = vpack.c.bf16 %v2166, %v2166
      %v2231 = vpack.c.bf16 %v2167, %v2167
      %v2232 = vpack.c.bf16 %v2168, %v2168
      %v2233 = vpack.c.bf16 %v2169, %v2169
      %v2234 = vpack.c.bf16 %v2170, %v2170
      %v2235 = vpack.c.bf16 %v2171, %v2171
      %v2236 = vpack.c.bf16 %v2172, %v2172
      %v2237 = vpack.c.bf16 %v2173, %v2173
      %v2238 = vpack.c.bf16 %v2174, %v2174
      %v2239 = vpack.c.bf16 %v2175, %v2175
      %v2240 = vpack.c.bf16 %v2176, %v2176
      %v2241 = vpack.c.bf16 %v2177, %v2177
      %v2242 = vpack.c.bf16 %v2178, %v2178
      %v2243 = vpack.c.bf16 %v2179, %v2179
      %v2244 = vpack.c.bf16 %v2180, %v2180
      %v2245 = vpack.c.bf16 %v2181, %v2181
      %v2246 = vpack.c.bf16 %v2182, %v2182
      %v2247 = vpack.c.bf16 %v2183, %v2183
      %v2248 = vpack.c.bf16 %v2184, %v2184
      %v2249 = vpack.c.bf16 %v2185, %v2185
      %v2250 = vpack.c.bf16 %v2186, %v2186
      %v2251 = vpack.c.bf16 %v2187, %v2187
      %v2252 = vpack.c.bf16 %v2188, %v2188
      %v2253 = vpack.c.bf16 %v2189, %v2189
      %v2254 = vpack.c.bf16 %v2190, %v2190
      %v2255 = vpack.c.bf16 %v2191, %v2191
      %v2256 = vpack.c.bf16 %v2192, %v2192
      %v2257 = vpack.c.bf16 %v2193, %v2193
      %v2322 = vunpack.c.l.b16 %v2194
      %v2323 = vunpack.c.l.b16 %v2195
      %v2324 = vunpack.c.l.b16 %v2196
      %v2325 = vunpack.c.l.b16 %v2197
      %v2326 = vunpack.c.l.b16 %v2198
      %v2327 = vunpack.c.l.b16 %v2199
      %v2328 = vunpack.c.l.b16 %v2200
      %v2329 = vunpack.c.l.b16 %v2201
      %v2330 = vunpack.c.l.b16 %v2202
      %v2331 = vunpack.c.l.b16 %v2203
      %v2332 = vunpack.c.l.b16 %v2204
      %v2333 = vunpack.c.l.b16 %v2205
      %v2334 = vunpack.c.l.b16 %v2206
      %v2335 = vunpack.c.l.b16 %v2207
      %v2336 = vunpack.c.l.b16 %v2208
      %v2337 = vunpack.c.l.b16 %v2209
      %v2338 = vunpack.c.l.b16 %v2210
      %v2339 = vunpack.c.l.b16 %v2211
      %v2340 = vunpack.c.l.b16 %v2212
      %v2341 = vunpack.c.l.b16 %v2213
      %v2342 = vunpack.c.l.b16 %v2214
      %v2343 = vunpack.c.l.b16 %v2215
      %v2344 = vunpack.c.l.b16 %v2216
      %v2345 = vunpack.c.l.b16 %v2217
      %v2346 = vunpack.c.l.b16 %v2218
      %v2347 = vunpack.c.l.b16 %v2219
      %v2348 = vunpack.c.l.b16 %v2220
      %v2349 = vunpack.c.l.b16 %v2221
      %v2350 = vunpack.c.l.b16 %v2222
      %v2351 = vunpack.c.l.b16 %v2223
      %v2352 = vunpack.c.l.b16 %v2224
      %v2353 = vunpack.c.l.b16 %v2225
      %v2354 = vunpack.c.l.b16 %v2226
      %v2355 = vunpack.c.l.b16 %v2227
      %v2356 = vunpack.c.l.b16 %v2228
      %v2357 = vunpack.c.l.b16 %v2229
      %v2358 = vunpack.c.l.b16 %v2230
      %v2359 = vunpack.c.l.b16 %v2231
      %v2360 = vunpack.c.l.b16 %v2232
      %v2361 = vunpack.c.l.b16 %v2233
      %v2362 = vunpack.c.l.b16 %v2234
      %v2363 = vunpack.c.l.b16 %v2235
      %v2364 = vunpack.c.l.b16 %v2236
      %v2365 = vunpack.c.l.b16 %v2237
      %v2366 = vunpack.c.l.b16 %v2238
      %v2367 = vunpack.c.l.b16 %v2239
      %v2368 = vunpack.c.l.b16 %v2240
      %v2369 = vunpack.c.l.b16 %v2241
      %v2370 = vunpack.c.l.b16 %v2242
      %v2371 = vunpack.c.l.b16 %v2243
      %v2372 = vunpack.c.l.b16 %v2244
      %v2373 = vunpack.c.l.b16 %v2245
      %v2374 = vunpack.c.l.b16 %v2246
      %v2375 = vunpack.c.l.b16 %v2247
      %v2376 = vunpack.c.l.b16 %v2248
      %v2377 = vunpack.c.l.b16 %v2249
      %v2378 = vunpack.c.l.b16 %v2250
      %v2379 = vunpack.c.l.b16 %v2251
      %v2380 = vunpack.c.l.b16 %v2252
      %v2381 = vunpack.c.l.b16 %v2253
      %v2382 = vunpack.c.l.b16 %v2254
      %v2383 = vunpack.c.l.b16 %v2255
      %v2384 = vunpack.c.l.b16 %v2256
      %v2385 = vunpack.c.l.b16 %v2257
      %v2386 = vrot.slane %v2323, 7
      %v2387 = vsel %vm538, %v2386, %v2322
      %v2388 = vrot.slane %v2324, 6
      %v2389 = vsel %vm541, %v2388, %v2387
      %v2390 = vrot.slane %v2325, 5
      %v2391 = vsel %vm544, %v2390, %v2389
      %v2392 = vrot.slane %v2326, 4
      %v2393 = vsel %vm547, %v2392, %v2391
      %v2394 = vrot.slane %v2327, 3
      %v2395 = vsel %vm550, %v2394, %v2393
      %v2396 = vrot.slane %v2328, 2
      %v2397 = vsel %vm553, %v2396, %v2395
      %v2398 = vrot.slane %v2329, 1
      %v2399 = vsel %vm556, %v2398, %v2397
      %v2400 = vrot.slane %v2331, 7
      %v2401 = vsel %vm538, %v2400, %v2330
      %v2402 = vrot.slane %v2332, 6
      %v2403 = vsel %vm541, %v2402, %v2401
      %v2404 = vrot.slane %v2333, 5
      %v2405 = vsel %vm544, %v2404, %v2403
      %v2406 = vrot.slane %v2334, 4
      %v2407 = vsel %vm547, %v2406, %v2405
      %v2408 = vrot.slane %v2335, 3
      %v2409 = vsel %vm550, %v2408, %v2407
      %v2410 = vrot.slane %v2336, 2
      %v2411 = vsel %vm553, %v2410, %v2409
      %v2412 = vrot.slane %v2337, 1
      %v2413 = vsel %vm556, %v2412, %v2411
      %v2414 = vrot.slane %v2339, 7
      %v2415 = vsel %vm538, %v2414, %v2338
      %v2416 = vrot.slane %v2340, 6
      %v2417 = vsel %vm541, %v2416, %v2415
      %v2418 = vrot.slane %v2341, 5
      %v2419 = vsel %vm544, %v2418, %v2417
      %v2420 = vrot.slane %v2342, 4
      %v2421 = vsel %vm547, %v2420, %v2419
      %v2422 = vrot.slane %v2343, 3
      %v2423 = vsel %vm550, %v2422, %v2421
      %v2424 = vrot.slane %v2344, 2
      %v2425 = vsel %vm553, %v2424, %v2423
      %v2426 = vrot.slane %v2345, 1
      %v2427 = vsel %vm556, %v2426, %v2425
      %v2428 = vrot.slane %v2347, 7
      %v2429 = vsel %vm538, %v2428, %v2346
      %v2430 = vrot.slane %v2348, 6
      %v2431 = vsel %vm541, %v2430, %v2429
      %v2432 = vrot.slane %v2349, 5
      %v2433 = vsel %vm544, %v2432, %v2431
      %v2434 = vrot.slane %v2350, 4
      %v2435 = vsel %vm547, %v2434, %v2433
      %v2436 = vrot.slane %v2351, 3
      %v2437 = vsel %vm550, %v2436, %v2435
      %v2438 = vrot.slane %v2352, 2
      %v2439 = vsel %vm553, %v2438, %v2437
      %v2440 = vrot.slane %v2353, 1
      %v2441 = vsel %vm556, %v2440, %v2439
      %v2442 = vrot.slane %v2355, 7
      %v2443 = vsel %vm538, %v2442, %v2354
      %v2444 = vrot.slane %v2356, 6
      %v2445 = vsel %vm541, %v2444, %v2443
      %v2446 = vrot.slane %v2357, 5
      %v2447 = vsel %vm544, %v2446, %v2445
      %v2448 = vrot.slane %v2358, 4
      %v2449 = vsel %vm547, %v2448, %v2447
      %v2450 = vrot.slane %v2359, 3
      %v2451 = vsel %vm550, %v2450, %v2449
      %v2452 = vrot.slane %v2360, 2
      %v2453 = vsel %vm553, %v2452, %v2451
      %v2454 = vrot.slane %v2361, 1
      %v2455 = vsel %vm556, %v2454, %v2453
      %v2456 = vrot.slane %v2363, 7
      %v2457 = vsel %vm538, %v2456, %v2362
      %v2458 = vrot.slane %v2364, 6
      %v2459 = vsel %vm541, %v2458, %v2457
      %v2460 = vrot.slane %v2365, 5
      %v2461 = vsel %vm544, %v2460, %v2459
      %v2462 = vrot.slane %v2366, 4
      %v2463 = vsel %vm547, %v2462, %v2461
      %v2464 = vrot.slane %v2367, 3
      %v2465 = vsel %vm550, %v2464, %v2463
      %v2466 = vrot.slane %v2368, 2
      %v2467 = vsel %vm553, %v2466, %v2465
      %v2468 = vrot.slane %v2369, 1
      %v2469 = vsel %vm556, %v2468, %v2467
      %v2470 = vrot.slane %v2371, 7
      %v2471 = vsel %vm538, %v2470, %v2370
      %v2472 = vrot.slane %v2372, 6
      %v2473 = vsel %vm541, %v2472, %v2471
      %v2474 = vrot.slane %v2373, 5
      %v2475 = vsel %vm544, %v2474, %v2473
      %v2476 = vrot.slane %v2374, 4
      %v2477 = vsel %vm547, %v2476, %v2475
      %v2478 = vrot.slane %v2375, 3
      %v2479 = vsel %vm550, %v2478, %v2477
      %v2480 = vrot.slane %v2376, 2
      %v2481 = vsel %vm553, %v2480, %v2479
      %v2482 = vrot.slane %v2377, 1
      %v2483 = vsel %vm556, %v2482, %v2481
      %v2484 = vrot.slane %v2379, 7
      %v2485 = vsel %vm538, %v2484, %v2378
      %v2486 = vrot.slane %v2380, 6
      %v2487 = vsel %vm541, %v2486, %v2485
      %v2488 = vrot.slane %v2381, 5
      %v2489 = vsel %vm544, %v2488, %v2487
      %v2490 = vrot.slane %v2382, 4
      %v2491 = vsel %vm547, %v2490, %v2489
      %v2492 = vrot.slane %v2383, 3
      %v2493 = vsel %vm550, %v2492, %v2491
      %v2494 = vrot.slane %v2384, 2
      %v2495 = vsel %vm553, %v2494, %v2493
      %v2496 = vrot.slane %v2385, 1
      %v2497 = vsel %vm556, %v2496, %v2495
      %v2498 = vpack.c.b16 %v2413, %v2399
      %v2499 = vpack.c.b16 %v2441, %v2427
      %v2500 = vpack.c.b16 %v2469, %v2455
      %v2501 = vpack.c.b16 %v2497, %v2483
      %v2503 = vsel %vm666, %v2498, 0
      %v2506 = vsel %vm666, %v2499, 0
      %v2509 = vsel %vm666, %v2500, 0
      %v2512 = vsel %vm666, %v2501, 0
      %2514 = vmatprep.subr.bf16.mxu0 0
      %2515 = vmatpush1.bf16.msra.mxu0 %v664
      %2516 = vmatprep.subr.bf16.mxu0 0
      %2517 = vmatpush1.bf16.msra.mxu0 0
      %2518 = vmatprep.subr.bf16.mxu0 0
      %2519 = vmatpush1.bf16.msra.mxu0 0
      %2520 = vmatprep.subr.bf16.mxu0 0
      %2521 = vmatpush1.bf16.msra.mxu0 0
      %2522 = vmatprep.subr.bf16.mxu0 0
      %2523 = vmatpush1.bf16.msra.mxu0 0
      %2524 = vmatprep.subr.bf16.mxu0 0
      %2525 = vmatpush1.bf16.msra.mxu0 0
      %2526 = vmatprep.subr.bf16.mxu0 0
      %2527 = vmatpush1.bf16.msra.mxu0 0
      %2528 = vmatprep.subr.bf16.mxu0 0
      %2529 = vmatpush1.bf16.msra.mxu0 0
      %2530 = vmatprep.subr.bf16.mxu0 0
      %2531 = vmatpush1.bf16.msra.mxu0 0
      %2532 = vmatprep.subr.bf16.mxu0 0
      %2533 = vmatpush1.bf16.msra.mxu0 0
      %2534 = vmatprep.subr.bf16.mxu0 0
      %2535 = vmatpush1.bf16.msra.mxu0 0
      %2536 = vmatprep.subr.bf16.mxu0 0
      %2537 = vmatpush1.bf16.msra.mxu0 0
      %2538 = vmatprep.subr.bf16.mxu0 0
      %2539 = vmatpush1.bf16.msra.mxu0 0
      %2540 = vmatprep.subr.bf16.mxu0 0
      %2541 = vmatpush1.bf16.msra.mxu0 0
      %2542 = vmatprep.subr.bf16.mxu0 0
      %2543 = vmatpush1.bf16.msra.mxu0 0
      %2544 = vmatprep.subr.bf16.mxu0 0
      %2545 = vmatpush1.bf16.msra.mxu0 0
      %2546 = vmatprep.mubr.bf16.mxu0 0
      %2547 = vmatmul.mubr.bf16.gmra.mrb[0].mxu0 %v2503
      %v2548 = vpop.f32.mrb[0].mxu0
      %v2549 = vadd.f32 0.0, %v2548
      %v2550 = vpop.f32.mrb[0].mxu0
      %v2551 = vpop.f32.mrb[0].mxu0
      %v2552 = vadd.f32 0.0, %v2551
      %v2553 = vpop.f32.mrb[0].mxu0
      %2554 = vmatprep.mubr.bf16.mxu0 0
      %2555 = vmatmul.mubr.bf16.gmra.mrb[0].mxu0 %v2506
      %v2556 = vpop.f32.mrb[0].mxu0
      %v2557 = vadd.f32 0.0, %v2556
      %v2558 = vpop.f32.mrb[0].mxu0
      %v2559 = vpop.f32.mrb[0].mxu0
      %v2560 = vadd.f32 0.0, %v2559
      %v2561 = vpop.f32.mrb[0].mxu0
      %2562 = vmatprep.mubr.bf16.mxu0 0
      %2563 = vmatmul.mubr.bf16.gmra.mrb[0].mxu0 %v2509
      %v2564 = vpop.f32.mrb[0].mxu0
      %v2565 = vadd.f32 0.0, %v2564
      %v2566 = vpop.f32.mrb[0].mxu0
      %v2567 = vpop.f32.mrb[0].mxu0
      %v2568 = vadd.f32 0.0, %v2567
      %v2569 = vpop.f32.mrb[0].mxu0
      %2570 = vmatprep.mubr.bf16.mxu0 0
      %2571 = vmatmul.mubr.bf16.gmra.mrb[0].mxu0 %v2512
      %v2572 = vpop.f32.mrb[0].mxu0
      %v2573 = vadd.f32 0.0, %v2572
      %v2574 = vpop.f32.mrb[0].mxu0
      %v2575 = vpop.f32.mrb[0].mxu0
      %v2576 = vadd.f32 0.0, %v2575
      %v2577 = vpop.f32.mrb[0].mxu0
      %2578 = vdwg.mxu0
      %v2579 = vpack.c.bf16 %v2552, %v2549
      %v2580 = vpack.c.bf16 %v2560, %v2557
      %v2581 = vpack.c.bf16 %v2568, %v2565
      %v2582 = vpack.c.bf16 %v2576, %v2573
      %2583 = vmatprep.subr.bf16.mxu0 0
      %2584 = vmatpush1.bf16.msra.mxu0 %v2579
      %2585 = vmatprep.subr.bf16.mxu0 0
      %2586 = vmatpush1.bf16.msra.mxu0 %v2580
      %2587 = vmatprep.subr.bf16.mxu0 0
      %2588 = vmatpush1.bf16.msra.mxu0 %v2581
      %2589 = vmatprep.subr.bf16.mxu0 0
      %2590 = vmatpush1.bf16.msra.mxu0 %v2582
      %2591 = vmatprep.subr.bf16.mxu0 0
      %2592 = vmatpush1.bf16.msra.mxu0 0
      %2593 = vmatprep.subr.bf16.mxu0 0
      %2594 = vmatpush1.bf16.msra.mxu0 0
      %2595 = vmatprep.subr.bf16.mxu0 0
      %2596 = vmatpush1.bf16.msra.mxu0 0
      %2597 = vmatprep.subr.bf16.mxu0 0
      %2598 = vmatpush1.bf16.msra.mxu0 0
      %2599 = vmatprep.subr.bf16.mxu0 0
      %2600 = vmatpush1.bf16.msra.mxu0 0
      %2601 = vmatprep.subr.bf16.mxu0 0
      %2602 = vmatpush1.bf16.msra.mxu0 0
      %2603 = vmatprep.subr.bf16.mxu0 0
      %2604 = vmatpush1.bf16.msra.mxu0 0
      %2605 = vmatprep.subr.bf16.mxu0 0
      %2606 = vmatpush1.bf16.msra.mxu0 0
      %2607 = vmatprep.subr.bf16.mxu0 0
      %2608 = vmatpush1.bf16.msra.mxu0 0
      %2609 = vmatprep.subr.bf16.mxu0 0
      %2610 = vmatpush1.bf16.msra.mxu0 0
      %2611 = vmatprep.subr.bf16.mxu0 0
      %2612 = vmatpush1.bf16.msra.mxu0 0
      %2613 = vmatprep.subr.bf16.mxu0 0
      %2614 = vmatpush1.bf16.msra.mxu0 0
      %2615 = vmatprep.mubr.bf16.mxu0 0
      %2616 = vmatmul.mubr.bf16.gmra.mrb[0].mxu0 %v790
      %v2617 = vpop.f32.mrb[0].mxu0
      %v2618 = vadd.f32 0.0, %v2617
      %v2619 = vpop.f32.mrb[0].mxu0
      %v2620 = vpop.f32.mrb[0].mxu0
      %v2621 = vadd.f32 0.0, %v2620
      %v2622 = vpop.f32.mrb[0].mxu0
      %2623 = vmatprep.mubr.bf16.mxu0 0
      %2624 = vmatmul.mubr.bf16.gmra.mrb[0].mxu0 %v793
      %v2625 = vpop.f32.mrb[0].mxu0
      %v2626 = vadd.f32 0.0, %v2625
      %v2627 = vpop.f32.mrb[0].mxu0
      %v2628 = vpop.f32.mrb[0].mxu0
      %v2629 = vadd.f32 0.0, %v2628
      %v2630 = vpop.f32.mrb[0].mxu0
      %2631 = vmatprep.mubr.bf16.mxu0 0
      %2632 = vmatmul.mubr.bf16.gmra.mrb[0].mxu0 %v796
      %v2633 = vpop.f32.mrb[0].mxu0
      %v2634 = vadd.f32 0.0, %v2633
      %v2635 = vpop.f32.mrb[0].mxu0
      %v2636 = vpop.f32.mrb[0].mxu0
      %v2637 = vadd.f32 0.0, %v2636
      %v2638 = vpop.f32.mrb[0].mxu0
      %2639 = vmatprep.mubr.bf16.mxu0 0
      %2640 = vmatmul.mubr.bf16.gmra.mrb[0].mxu0 %v799
      %v2641 = vpop.f32.mrb[0].mxu0
      %v2642 = vadd.f32 0.0, %v2641
      %v2643 = vpop.f32.mrb[0].mxu0
      %v2644 = vpop.f32.mrb[0].mxu0
      %v2645 = vadd.f32 0.0, %v2644
      %v2646 = vpop.f32.mrb[0].mxu0
      %2647 = vmatprep.mubr.bf16.mxu0 0
      %2648 = vmatmul.mubr.bf16.gmra.mrb[0].mxu0 %v802
      %v2649 = vpop.f32.mrb[0].mxu0
      %v2650 = vadd.f32 0.0, %v2649
      %v2651 = vpop.f32.mrb[0].mxu0
      %v2652 = vpop.f32.mrb[0].mxu0
      %v2653 = vadd.f32 0.0, %v2652
      %v2654 = vpop.f32.mrb[0].mxu0
      %2655 = vmatprep.mubr.bf16.mxu0 0
      %2656 = vmatmul.mubr.bf16.gmra.mrb[0].mxu0 %v805
      %v2657 = vpop.f32.mrb[0].mxu0
      %v2658 = vadd.f32 0.0, %v2657
      %v2659 = vpop.f32.mrb[0].mxu0
      %v2660 = vpop.f32.mrb[0].mxu0
      %v2661 = vadd.f32 0.0, %v2660
      %v2662 = vpop.f32.mrb[0].mxu0
      %2663 = vmatprep.mubr.bf16.mxu0 0
      %2664 = vmatmul.mubr.bf16.gmra.mrb[0].mxu0 %v808
      %v2665 = vpop.f32.mrb[0].mxu0
      %v2666 = vadd.f32 0.0, %v2665
      %v2667 = vpop.f32.mrb[0].mxu0
      %v2668 = vpop.f32.mrb[0].mxu0
      %v2669 = vadd.f32 0.0, %v2668
      %v2670 = vpop.f32.mrb[0].mxu0
      %2671 = vmatprep.mubr.bf16.mxu0 0
      %2672 = vmatmul.mubr.bf16.gmra.mrb[0].mxu0 %v811
      %v2673 = vpop.f32.mrb[0].mxu0
      %v2674 = vadd.f32 0.0, %v2673
      %v2675 = vpop.f32.mrb[0].mxu0
      %v2676 = vpop.f32.mrb[0].mxu0
      %v2677 = vadd.f32 0.0, %v2676
      %v2678 = vpop.f32.mrb[0].mxu0
      %2679 = vdwg.mxu0
      %v2680 = vsel %vm911, %v2618, %v2650
      %v2681 = vsel %vm911, %v2621, %v2653
      %v2682 = vsel %vm911, %v2626, %v2658
      %v2683 = vsel %vm911, %v2629, %v2661
      %v2684 = vsel %vm911, %v2634, %v2666
      %v2685 = vsel %vm911, %v2637, %v2669
      %v2686 = vsel %vm911, %v2642, %v2674
      %v2687 = vsel %vm911, %v2645, %v2677
      %v2688 = vadd.f32 %v2680, %v923
      %v2689 = vadd.f32 %v2681, %v928
      %v2690 = vadd.f32 %v2682, %v933
      %v2691 = vadd.f32 %v2683, %v938
      %v2692 = vadd.f32 %v2684, %v943
      %v2693 = vadd.f32 %v2685, %v948
      %v2694 = vadd.f32 %v2686, %v953
      %v2695 = vadd.f32 %v2687, %v958
      %s2696 = scalar_lea.vmem %s237, 192
      %2697 = vst.msk [vmem:[%s2696] sm:$0xff] %vm968, %v2688
      %2698 = vst.msk [vmem:[%s2696 + $0x8] sm:$0xff] %vm968, %v2689
      %2699 = vst.msk [vmem:[%s2696 + $0x10] sm:$0xff] %vm968, %v2690
      %2700 = vst.msk [vmem:[%s2696 + $0x18] sm:$0xff] %vm968, %v2691
      %s2701 = scalar_lea.vmem %s237, 224
      %2702 = vst.msk [vmem:[%s2701] sm:$0xff] %vm968, %v2692
      %2703 = vst.msk [vmem:[%s2701 + $0x8] sm:$0xff] %vm968, %v2693
      %2704 = vst.msk [vmem:[%s2701 + $0x10] sm:$0xff] %vm968, %v2694
      %2705 = vst.msk [vmem:[%s2701 + $0x18] sm:$0xff] %vm968, %v2695
      %v2706 = vld [vmem:[%s226 + $0x4] sm:$0x1]
      %v2707 = vld [vmem:[%s226 + $0x14] sm:$0x1]
      %v2708 = vld [vmem:[%s226 + $0x24] sm:$0x1]
      %v2709 = vld [vmem:[%s226 + $0x34] sm:$0x1]
      %v2710 = vld [vmem:[%s226 + $0x44] sm:$0x1]
      %v2711 = vld [vmem:[%s226 + $0x54] sm:$0x1]
      %v2712 = vld [vmem:[%s226 + $0x64] sm:$0x1]
      %v2713 = vld [vmem:[%s226 + $0x74] sm:$0x1]
      %v2714 = vld [vmem:[%s226 + $0x84] sm:$0x1]
      %v2715 = vld [vmem:[%s226 + $0x94] sm:$0x1]
      %v2716 = vld [vmem:[%s226 + $0xa4] sm:$0x1]
      %v2717 = vld [vmem:[%s226 + $0xb4] sm:$0x1]
      %v2718 = vld [vmem:[%s226 + $0xc4] sm:$0x1]
      %v2719 = vld [vmem:[%s226 + $0xd4] sm:$0x1]
      %v2720 = vld [vmem:[%s226 + $0xe4] sm:$0x1]
      %v2721 = vld [vmem:[%s226 + $0xf4] sm:$0x1]
      %v2722 = vld [vmem:[%s226 + $0x104] sm:$0x1]
      %v2723 = vld [vmem:[%s226 + $0x114] sm:$0x1]
      %v2724 = vld [vmem:[%s226 + $0x124] sm:$0x1]
      %v2725 = vld [vmem:[%s226 + $0x134] sm:$0x1]
      %v2726 = vld [vmem:[%s226 + $0x144] sm:$0x1]
      %v2727 = vld [vmem:[%s226 + $0x154] sm:$0x1]
      %v2728 = vld [vmem:[%s226 + $0x164] sm:$0x1]
      %v2729 = vld [vmem:[%s226 + $0x174] sm:$0x1]
      %v2730 = vld [vmem:[%s226 + $0x184] sm:$0x1]
      %v2731 = vld [vmem:[%s226 + $0x194] sm:$0x1]
      %v2732 = vld [vmem:[%s226 + $0x1a4] sm:$0x1]
      %v2733 = vld [vmem:[%s226 + $0x1b4] sm:$0x1]
      %v2734 = vld [vmem:[%s226 + $0x1c4] sm:$0x1]
      %v2735 = vld [vmem:[%s226 + $0x1d4] sm:$0x1]
      %v2736 = vld [vmem:[%s226 + $0x1e4] sm:$0x1]
      %v2737 = vld [vmem:[%s226 + $0x1f4] sm:$0x1]
      %v2738 = vld [vmem:[%s226 + $0x204] sm:$0x1]
      %v2739 = vld [vmem:[%s226 + $0x214] sm:$0x1]
      %v2740 = vld [vmem:[%s226 + $0x224] sm:$0x1]
      %v2741 = vld [vmem:[%s226 + $0x234] sm:$0x1]
      %v2742 = vld [vmem:[%s226 + $0x244] sm:$0x1]
      %v2743 = vld [vmem:[%s226 + $0x254] sm:$0x1]
      %v2744 = vld [vmem:[%s226 + $0x264] sm:$0x1]
      %v2745 = vld [vmem:[%s226 + $0x274] sm:$0x1]
      %v2746 = vld [vmem:[%s226 + $0x284] sm:$0x1]
      %v2747 = vld [vmem:[%s226 + $0x294] sm:$0x1]
      %v2748 = vld [vmem:[%s226 + $0x2a4] sm:$0x1]
      %v2749 = vld [vmem:[%s226 + $0x2b4] sm:$0x1]
      %v2750 = vld [vmem:[%s226 + $0x2c4] sm:$0x1]
      %v2751 = vld [vmem:[%s226 + $0x2d4] sm:$0x1]
      %v2752 = vld [vmem:[%s226 + $0x2e4] sm:$0x1]
      %v2753 = vld [vmem:[%s226 + $0x2f4] sm:$0x1]
      %v2754 = vld [vmem:[%s226 + $0x304] sm:$0x1]
      %v2755 = vld [vmem:[%s226 + $0x314] sm:$0x1]
      %v2756 = vld [vmem:[%s226 + $0x324] sm:$0x1]
      %v2757 = vld [vmem:[%s226 + $0x334] sm:$0x1]
      %v2758 = vld [vmem:[%s226 + $0x344] sm:$0x1]
      %v2759 = vld [vmem:[%s226 + $0x354] sm:$0x1]
      %v2760 = vld [vmem:[%s226 + $0x364] sm:$0x1]
      %v2761 = vld [vmem:[%s226 + $0x374] sm:$0x1]
      %v2762 = vld [vmem:[%s226 + $0x384] sm:$0x1]
      %v2763 = vld [vmem:[%s226 + $0x394] sm:$0x1]
      %v2764 = vld [vmem:[%s226 + $0x3a4] sm:$0x1]
      %v2765 = vld [vmem:[%s226 + $0x3b4] sm:$0x1]
      %v2766 = vld [vmem:[%s226 + $0x3c4] sm:$0x1]
      %v2767 = vld [vmem:[%s226 + $0x3d4] sm:$0x1]
      %v2768 = vld [vmem:[%s226 + $0x3e4] sm:$0x1]
      %v2769 = vld [vmem:[%s226 + $0x3f4] sm:$0x1]
      %v2770 = vpack.c.bf16 %v2706, %v2706
      %v2771 = vpack.c.bf16 %v2707, %v2707
      %v2772 = vpack.c.bf16 %v2708, %v2708
      %v2773 = vpack.c.bf16 %v2709, %v2709
      %v2774 = vpack.c.bf16 %v2710, %v2710
      %v2775 = vpack.c.bf16 %v2711, %v2711
      %v2776 = vpack.c.bf16 %v2712, %v2712
      %v2777 = vpack.c.bf16 %v2713, %v2713
      %v2778 = vpack.c.bf16 %v2714, %v2714
      %v2779 = vpack.c.bf16 %v2715, %v2715
      %v2780 = vpack.c.bf16 %v2716, %v2716
      %v2781 = vpack.c.bf16 %v2717, %v2717
      %v2782 = vpack.c.bf16 %v2718, %v2718
      %v2783 = vpack.c.bf16 %v2719, %v2719
      %v2784 = vpack.c.bf16 %v2720, %v2720
      %v2785 = vpack.c.bf16 %v2721, %v2721
      %v2786 = vpack.c.bf16 %v2722, %v2722
      %v2787 = vpack.c.bf16 %v2723, %v2723
      %v2788 = vpack.c.bf16 %v2724, %v2724
      %v2789 = vpack.c.bf16 %v2725, %v2725
      %v2790 = vpack.c.bf16 %v2726, %v2726
      %v2791 = vpack.c.bf16 %v2727, %v2727
      %v2792 = vpack.c.bf16 %v2728, %v2728
      %v2793 = vpack.c.bf16 %v2729, %v2729
      %v2794 = vpack.c.bf16 %v2730, %v2730
      %v2795 = vpack.c.bf16 %v2731, %v2731
      %v2796 = vpack.c.bf16 %v2732, %v2732
      %v2797 = vpack.c.bf16 %v2733, %v2733
      %v2798 = vpack.c.bf16 %v2734, %v2734
      %v2799 = vpack.c.bf16 %v2735, %v2735
      %v2800 = vpack.c.bf16 %v2736, %v2736
      %v2801 = vpack.c.bf16 %v2737, %v2737
      %v2802 = vpack.c.bf16 %v2738, %v2738
      %v2803 = vpack.c.bf16 %v2739, %v2739
      %v2804 = vpack.c.bf16 %v2740, %v2740
      %v2805 = vpack.c.bf16 %v2741, %v2741
      %v2806 = vpack.c.bf16 %v2742, %v2742
      %v2807 = vpack.c.bf16 %v2743, %v2743
      %v2808 = vpack.c.bf16 %v2744, %v2744
      %v2809 = vpack.c.bf16 %v2745, %v2745
      %v2810 = vpack.c.bf16 %v2746, %v2746
      %v2811 = vpack.c.bf16 %v2747, %v2747
      %v2812 = vpack.c.bf16 %v2748, %v2748
      %v2813 = vpack.c.bf16 %v2749, %v2749
      %v2814 = vpack.c.bf16 %v2750, %v2750
      %v2815 = vpack.c.bf16 %v2751, %v2751
      %v2816 = vpack.c.bf16 %v2752, %v2752
      %v2817 = vpack.c.bf16 %v2753, %v2753
      %v2818 = vpack.c.bf16 %v2754, %v2754
      %v2819 = vpack.c.bf16 %v2755, %v2755
      %v2820 = vpack.c.bf16 %v2756, %v2756
      %v2821 = vpack.c.bf16 %v2757, %v2757
      %v2822 = vpack.c.bf16 %v2758, %v2758
      %v2823 = vpack.c.bf16 %v2759, %v2759
      %v2824 = vpack.c.bf16 %v2760, %v2760
      %v2825 = vpack.c.bf16 %v2761, %v2761
      %v2826 = vpack.c.bf16 %v2762, %v2762
      %v2827 = vpack.c.bf16 %v2763, %v2763
      %v2828 = vpack.c.bf16 %v2764, %v2764
      %v2829 = vpack.c.bf16 %v2765, %v2765
      %v2830 = vpack.c.bf16 %v2766, %v2766
      %v2831 = vpack.c.bf16 %v2767, %v2767
      %v2832 = vpack.c.bf16 %v2768, %v2768
      %v2833 = vpack.c.bf16 %v2769, %v2769
      %v2898 = vunpack.c.l.b16 %v2770
      %v2899 = vunpack.c.l.b16 %v2771
      %v2900 = vunpack.c.l.b16 %v2772
      %v2901 = vunpack.c.l.b16 %v2773
      %v2902 = vunpack.c.l.b16 %v2774
      %v2903 = vunpack.c.l.b16 %v2775
      %v2904 = vunpack.c.l.b16 %v2776
      %v2905 = vunpack.c.l.b16 %v2777
      %v2906 = vunpack.c.l.b16 %v2778
      %v2907 = vunpack.c.l.b16 %v2779
      %v2908 = vunpack.c.l.b16 %v2780
      %v2909 = vunpack.c.l.b16 %v2781
      %v2910 = vunpack.c.l.b16 %v2782
      %v2911 = vunpack.c.l.b16 %v2783
      %v2912 = vunpack.c.l.b16 %v2784
      %v2913 = vunpack.c.l.b16 %v2785
      %v2914 = vunpack.c.l.b16 %v2786
      %v2915 = vunpack.c.l.b16 %v2787
      %v2916 = vunpack.c.l.b16 %v2788
      %v2917 = vunpack.c.l.b16 %v2789
      %v2918 = vunpack.c.l.b16 %v2790
      %v2919 = vunpack.c.l.b16 %v2791
      %v2920 = vunpack.c.l.b16 %v2792
      %v2921 = vunpack.c.l.b16 %v2793
      %v2922 = vunpack.c.l.b16 %v2794
      %v2923 = vunpack.c.l.b16 %v2795
      %v2924 = vunpack.c.l.b16 %v2796
      %v2925 = vunpack.c.l.b16 %v2797
      %v2926 = vunpack.c.l.b16 %v2798
      %v2927 = vunpack.c.l.b16 %v2799
      %v2928 = vunpack.c.l.b16 %v2800
      %v2929 = vunpack.c.l.b16 %v2801
      %v2930 = vunpack.c.l.b16 %v2802
      %v2931 = vunpack.c.l.b16 %v2803
      %v2932 = vunpack.c.l.b16 %v2804
      %v2933 = vunpack.c.l.b16 %v2805
      %v2934 = vunpack.c.l.b16 %v2806
      %v2935 = vunpack.c.l.b16 %v2807
      %v2936 = vunpack.c.l.b16 %v2808
      %v2937 = vunpack.c.l.b16 %v2809
      %v2938 = vunpack.c.l.b16 %v2810
      %v2939 = vunpack.c.l.b16 %v2811
      %v2940 = vunpack.c.l.b16 %v2812
      %v2941 = vunpack.c.l.b16 %v2813
      %v2942 = vunpack.c.l.b16 %v2814
      %v2943 = vunpack.c.l.b16 %v2815
      %v2944 = vunpack.c.l.b16 %v2816
      %v2945 = vunpack.c.l.b16 %v2817
      %v2946 = vunpack.c.l.b16 %v2818
      %v2947 = vunpack.c.l.b16 %v2819
      %v2948 = vunpack.c.l.b16 %v2820
      %v2949 = vunpack.c.l.b16 %v2821
      %v2950 = vunpack.c.l.b16 %v2822
      %v2951 = vunpack.c.l.b16 %v2823
      %v2952 = vunpack.c.l.b16 %v2824
      %v2953 = vunpack.c.l.b16 %v2825
      %v2954 = vunpack.c.l.b16 %v2826
      %v2955 = vunpack.c.l.b16 %v2827
      %v2956 = vunpack.c.l.b16 %v2828
      %v2957 = vunpack.c.l.b16 %v2829
      %v2958 = vunpack.c.l.b16 %v2830
      %v2959 = vunpack.c.l.b16 %v2831
      %v2960 = vunpack.c.l.b16 %v2832
      %v2961 = vunpack.c.l.b16 %v2833
      %v2962 = vrot.slane %v2899, 7
      %v2963 = vsel %vm538, %v2962, %v2898
      %v2964 = vrot.slane %v2900, 6
      %v2965 = vsel %vm541, %v2964, %v2963
      %v2966 = vrot.slane %v2901, 5
      %v2967 = vsel %vm544, %v2966, %v2965
      %v2968 = vrot.slane %v2902, 4
      %v2969 = vsel %vm547, %v2968, %v2967
      %v2970 = vrot.slane %v2903, 3
      %v2971 = vsel %vm550, %v2970, %v2969
      %v2972 = vrot.slane %v2904, 2
      %v2973 = vsel %vm553, %v2972, %v2971
      %v2974 = vrot.slane %v2905, 1
      %v2975 = vsel %vm556, %v2974, %v2973
      %v2976 = vrot.slane %v2907, 7
      %v2977 = vsel %vm538, %v2976, %v2906
      %v2978 = vrot.slane %v2908, 6
      %v2979 = vsel %vm541, %v2978, %v2977
      %v2980 = vrot.slane %v2909, 5
      %v2981 = vsel %vm544, %v2980, %v2979
      %v2982 = vrot.slane %v2910, 4
      %v2983 = vsel %vm547, %v2982, %v2981
      %v2984 = vrot.slane %v2911, 3
      %v2985 = vsel %vm550, %v2984, %v2983
      %v2986 = vrot.slane %v2912, 2
      %v2987 = vsel %vm553, %v2986, %v2985
      %v2988 = vrot.slane %v2913, 1
      %v2989 = vsel %vm556, %v2988, %v2987
      %v2990 = vrot.slane %v2915, 7
      %v2991 = vsel %vm538, %v2990, %v2914
      %v2992 = vrot.slane %v2916, 6
      %v2993 = vsel %vm541, %v2992, %v2991
      %v2994 = vrot.slane %v2917, 5
      %v2995 = vsel %vm544, %v2994, %v2993
      %v2996 = vrot.slane %v2918, 4
      %v2997 = vsel %vm547, %v2996, %v2995
      %v2998 = vrot.slane %v2919, 3
      %v2999 = vsel %vm550, %v2998, %v2997
      %v3000 = vrot.slane %v2920, 2
      %v3001 = vsel %vm553, %v3000, %v2999
      %v3002 = vrot.slane %v2921, 1
      %v3003 = vsel %vm556, %v3002, %v3001
      %v3004 = vrot.slane %v2923, 7
      %v3005 = vsel %vm538, %v3004, %v2922
      %v3006 = vrot.slane %v2924, 6
      %v3007 = vsel %vm541, %v3006, %v3005
      %v3008 = vrot.slane %v2925, 5
      %v3009 = vsel %vm544, %v3008, %v3007
      %v3010 = vrot.slane %v2926, 4
      %v3011 = vsel %vm547, %v3010, %v3009
      %v3012 = vrot.slane %v2927, 3
      %v3013 = vsel %vm550, %v3012, %v3011
      %v3014 = vrot.slane %v2928, 2
      %v3015 = vsel %vm553, %v3014, %v3013
      %v3016 = vrot.slane %v2929, 1
      %v3017 = vsel %vm556, %v3016, %v3015
      %v3018 = vrot.slane %v2931, 7
      %v3019 = vsel %vm538, %v3018, %v2930
      %v3020 = vrot.slane %v2932, 6
      %v3021 = vsel %vm541, %v3020, %v3019
      %v3022 = vrot.slane %v2933, 5
      %v3023 = vsel %vm544, %v3022, %v3021
      %v3024 = vrot.slane %v2934, 4
      %v3025 = vsel %vm547, %v3024, %v3023
      %v3026 = vrot.slane %v2935, 3
      %v3027 = vsel %vm550, %v3026, %v3025
      %v3028 = vrot.slane %v2936, 2
      %v3029 = vsel %vm553, %v3028, %v3027
      %v3030 = vrot.slane %v2937, 1
      %v3031 = vsel %vm556, %v3030, %v3029
      %v3032 = vrot.slane %v2939, 7
      %v3033 = vsel %vm538, %v3032, %v2938
      %v3034 = vrot.slane %v2940, 6
      %v3035 = vsel %vm541, %v3034, %v3033
      %v3036 = vrot.slane %v2941, 5
      %v3037 = vsel %vm544, %v3036, %v3035
      %v3038 = vrot.slane %v2942, 4
      %v3039 = vsel %vm547, %v3038, %v3037
      %v3040 = vrot.slane %v2943, 3
      %v3041 = vsel %vm550, %v3040, %v3039
      %v3042 = vrot.slane %v2944, 2
      %v3043 = vsel %vm553, %v3042, %v3041
      %v3044 = vrot.slane %v2945, 1
      %v3045 = vsel %vm556, %v3044, %v3043
      %v3046 = vrot.slane %v2947, 7
      %v3047 = vsel %vm538, %v3046, %v2946
      %v3048 = vrot.slane %v2948, 6
      %v3049 = vsel %vm541, %v3048, %v3047
      %v3050 = vrot.slane %v2949, 5
      %v3051 = vsel %vm544, %v3050, %v3049
      %v3052 = vrot.slane %v2950, 4
      %v3053 = vsel %vm547, %v3052, %v3051
      %v3054 = vrot.slane %v2951, 3
      %v3055 = vsel %vm550, %v3054, %v3053
      %v3056 = vrot.slane %v2952, 2
      %v3057 = vsel %vm553, %v3056, %v3055
      %v3058 = vrot.slane %v2953, 1
      %v3059 = vsel %vm556, %v3058, %v3057
      %v3060 = vrot.slane %v2955, 7
      %v3061 = vsel %vm538, %v3060, %v2954
      %v3062 = vrot.slane %v2956, 6
      %v3063 = vsel %vm541, %v3062, %v3061
      %v3064 = vrot.slane %v2957, 5
      %v3065 = vsel %vm544, %v3064, %v3063
      %v3066 = vrot.slane %v2958, 4
      %v3067 = vsel %vm547, %v3066, %v3065
      %v3068 = vrot.slane %v2959, 3
      %v3069 = vsel %vm550, %v3068, %v3067
      %v3070 = vrot.slane %v2960, 2
      %v3071 = vsel %vm553, %v3070, %v3069
      %v3072 = vrot.slane %v2961, 1
      %v3073 = vsel %vm556, %v3072, %v3071
      %v3074 = vpack.c.b16 %v2989, %v2975
      %v3075 = vpack.c.b16 %v3017, %v3003
      %v3076 = vpack.c.b16 %v3045, %v3031
      %v3077 = vpack.c.b16 %v3073, %v3059
      %v3079 = vsel %vm666, %v3074, 0
      %v3082 = vsel %vm666, %v3075, 0
      %v3085 = vsel %vm666, %v3076, 0
      %v3088 = vsel %vm666, %v3077, 0
      %3090 = vmatprep.subr.bf16.mxu0 0
      %3091 = vmatpush1.bf16.msra.mxu0 %v664
      %3092 = vmatprep.subr.bf16.mxu0 0
      %3093 = vmatpush1.bf16.msra.mxu0 0
      %3094 = vmatprep.subr.bf16.mxu0 0
      %3095 = vmatpush1.bf16.msra.mxu0 0
      %3096 = vmatprep.subr.bf16.mxu0 0
      %3097 = vmatpush1.bf16.msra.mxu0 0
      %3098 = vmatprep.subr.bf16.mxu0 0
      %3099 = vmatpush1.bf16.msra.mxu0 0
      %3100 = vmatprep.subr.bf16.mxu0 0
      %3101 = vmatpush1.bf16.msra.mxu0 0
      %3102 = vmatprep.subr.bf16.mxu0 0
      %3103 = vmatpush1.bf16.msra.mxu0 0
      %3104 = vmatprep.subr.bf16.mxu0 0
      %3105 = vmatpush1.bf16.msra.mxu0 0
      %3106 = vmatprep.subr.bf16.mxu0 0
      %3107 = vmatpush1.bf16.msra.mxu0 0
      %3108 = vmatprep.subr.bf16.mxu0 0
      %3109 = vmatpush1.bf16.msra.mxu0 0
      %3110 = vmatprep.subr.bf16.mxu0 0
      %3111 = vmatpush1.bf16.msra.mxu0 0
      %3112 = vmatprep.subr.bf16.mxu0 0
      %3113 = vmatpush1.bf16.msra.mxu0 0
      %3114 = vmatprep.subr.bf16.mxu0 0
      %3115 = vmatpush1.bf16.msra.mxu0 0
      %3116 = vmatprep.subr.bf16.mxu0 0
      %3117 = vmatpush1.bf16.msra.mxu0 0
      %3118 = vmatprep.subr.bf16.mxu0 0
      %3119 = vmatpush1.bf16.msra.mxu0 0
      %3120 = vmatprep.subr.bf16.mxu0 0
      %3121 = vmatpush1.bf16.msra.mxu0 0
      %3122 = vmatprep.mubr.bf16.mxu0 0
      %3123 = vmatmul.mubr.bf16.gmra.mrb[0].mxu0 %v3079
      %v3124 = vpop.f32.mrb[0].mxu0
      %v3125 = vadd.f32 0.0, %v3124
      %v3126 = vpop.f32.mrb[0].mxu0
      %v3127 = vpop.f32.mrb[0].mxu0
      %v3128 = vadd.f32 0.0, %v3127
      %v3129 = vpop.f32.mrb[0].mxu0
      %3130 = vmatprep.mubr.bf16.mxu0 0
      %3131 = vmatmul.mubr.bf16.gmra.mrb[0].mxu0 %v3082
      %v3132 = vpop.f32.mrb[0].mxu0
      %v3133 = vadd.f32 0.0, %v3132
      %v3134 = vpop.f32.mrb[0].mxu0
      %v3135 = vpop.f32.mrb[0].mxu0
      %v3136 = vadd.f32 0.0, %v3135
      %v3137 = vpop.f32.mrb[0].mxu0
      %3138 = vmatprep.mubr.bf16.mxu0 0
      %3139 = vmatmul.mubr.bf16.gmra.mrb[0].mxu0 %v3085
      %v3140 = vpop.f32.mrb[0].mxu0
      %v3141 = vadd.f32 0.0, %v3140
      %v3142 = vpop.f32.mrb[0].mxu0
      %v3143 = vpop.f32.mrb[0].mxu0
      %v3144 = vadd.f32 0.0, %v3143
      %v3145 = vpop.f32.mrb[0].mxu0
      %3146 = vmatprep.mubr.bf16.mxu0 0
      %3147 = vmatmul.mubr.bf16.gmra.mrb[0].mxu0 %v3088
      %v3148 = vpop.f32.mrb[0].mxu0
      %v3149 = vadd.f32 0.0, %v3148
      %v3150 = vpop.f32.mrb[0].mxu0
      %v3151 = vpop.f32.mrb[0].mxu0
      %v3152 = vadd.f32 0.0, %v3151
      %v3153 = vpop.f32.mrb[0].mxu0
      %3154 = vdwg.mxu0
      %v3155 = vpack.c.bf16 %v3128, %v3125
      %v3156 = vpack.c.bf16 %v3136, %v3133
      %v3157 = vpack.c.bf16 %v3144, %v3141
      %v3158 = vpack.c.bf16 %v3152, %v3149
      %3159 = vmatprep.subr.bf16.mxu0 0
      %3160 = vmatpush1.bf16.msra.mxu0 %v3155
      %3161 = vmatprep.subr.bf16.mxu0 0
      %3162 = vmatpush1.bf16.msra.mxu0 %v3156
      %3163 = vmatprep.subr.bf16.mxu0 0
      %3164 = vmatpush1.bf16.msra.mxu0 %v3157
      %3165 = vmatprep.subr.bf16.mxu0 0
      %3166 = vmatpush1.bf16.msra.mxu0 %v3158
      %3167 = vmatprep.subr.bf16.mxu0 0
      %3168 = vmatpush1.bf16.msra.mxu0 0
      %3169 = vmatprep.subr.bf16.mxu0 0
      %3170 = vmatpush1.bf16.msra.mxu0 0
      %3171 = vmatprep.subr.bf16.mxu0 0
      %3172 = vmatpush1.bf16.msra.mxu0 0
      %3173 = vmatprep.subr.bf16.mxu0 0
      %3174 = vmatpush1.bf16.msra.mxu0 0
      %3175 = vmatprep.subr.bf16.mxu0 0
      %3176 = vmatpush1.bf16.msra.mxu0 0
      %3177 = vmatprep.subr.bf16.mxu0 0
      %3178 = vmatpush1.bf16.msra.mxu0 0
      %3179 = vmatprep.subr.bf16.mxu0 0
      %3180 = vmatpush1.bf16.msra.mxu0 0
      %3181 = vmatprep.subr.bf16.mxu0 0
      %3182 = vmatpush1.bf16.msra.mxu0 0
      %3183 = vmatprep.subr.bf16.mxu0 0
      %3184 = vmatpush1.bf16.msra.mxu0 0
      %3185 = vmatprep.subr.bf16.mxu0 0
      %3186 = vmatpush1.bf16.msra.mxu0 0
      %3187 = vmatprep.subr.bf16.mxu0 0
      %3188 = vmatpush1.bf16.msra.mxu0 0
      %3189 = vmatprep.subr.bf16.mxu0 0
      %3190 = vmatpush1.bf16.msra.mxu0 0
      %3191 = vmatprep.mubr.bf16.mxu0 0
      %3192 = vmatmul.mubr.bf16.gmra.mrb[0].mxu0 %v790
      %v3193 = vpop.f32.mrb[0].mxu0
      %v3194 = vadd.f32 0.0, %v3193
      %v3195 = vpop.f32.mrb[0].mxu0
      %v3196 = vpop.f32.mrb[0].mxu0
      %v3197 = vadd.f32 0.0, %v3196
      %v3198 = vpop.f32.mrb[0].mxu0
      %3199 = vmatprep.mubr.bf16.mxu0 0
      %3200 = vmatmul.mubr.bf16.gmra.mrb[0].mxu0 %v793
      %v3201 = vpop.f32.mrb[0].mxu0
      %v3202 = vadd.f32 0.0, %v3201
      %v3203 = vpop.f32.mrb[0].mxu0
      %v3204 = vpop.f32.mrb[0].mxu0
      %v3205 = vadd.f32 0.0, %v3204
      %v3206 = vpop.f32.mrb[0].mxu0
      %3207 = vmatprep.mubr.bf16.mxu0 0
      %3208 = vmatmul.mubr.bf16.gmra.mrb[0].mxu0 %v796
      %v3209 = vpop.f32.mrb[0].mxu0
      %v3210 = vadd.f32 0.0, %v3209
      %v3211 = vpop.f32.mrb[0].mxu0
      %v3212 = vpop.f32.mrb[0].mxu0
      %v3213 = vadd.f32 0.0, %v3212
      %v3214 = vpop.f32.mrb[0].mxu0
      %3215 = vmatprep.mubr.bf16.mxu0 0
      %3216 = vmatmul.mubr.bf16.gmra.mrb[0].mxu0 %v799
      %v3217 = vpop.f32.mrb[0].mxu0
      %v3218 = vadd.f32 0.0, %v3217
      %v3219 = vpop.f32.mrb[0].mxu0
      %v3220 = vpop.f32.mrb[0].mxu0
      %v3221 = vadd.f32 0.0, %v3220
      %v3222 = vpop.f32.mrb[0].mxu0
      %3223 = vmatprep.mubr.bf16.mxu0 0
      %3224 = vmatmul.mubr.bf16.gmra.mrb[0].mxu0 %v802
      %v3225 = vpop.f32.mrb[0].mxu0
      %v3226 = vadd.f32 0.0, %v3225
      %v3227 = vpop.f32.mrb[0].mxu0
      %v3228 = vpop.f32.mrb[0].mxu0
      %v3229 = vadd.f32 0.0, %v3228
      %v3230 = vpop.f32.mrb[0].mxu0
      %3231 = vmatprep.mubr.bf16.mxu0 0
      %3232 = vmatmul.mubr.bf16.gmra.mrb[0].mxu0 %v805
      %v3233 = vpop.f32.mrb[0].mxu0
      %v3234 = vadd.f32 0.0, %v3233
      %v3235 = vpop.f32.mrb[0].mxu0
      %v3236 = vpop.f32.mrb[0].mxu0
      %v3237 = vadd.f32 0.0, %v3236
      %v3238 = vpop.f32.mrb[0].mxu0
      %3239 = vmatprep.mubr.bf16.mxu0 0
      %3240 = vmatmul.mubr.bf16.gmra.mrb[0].mxu0 %v808
      %v3241 = vpop.f32.mrb[0].mxu0
      %v3242 = vadd.f32 0.0, %v3241
      %v3243 = vpop.f32.mrb[0].mxu0
      %v3244 = vpop.f32.mrb[0].mxu0
      %v3245 = vadd.f32 0.0, %v3244
      %v3246 = vpop.f32.mrb[0].mxu0
      %3247 = vmatprep.mubr.bf16.mxu0 0
      %3248 = vmatmul.mubr.bf16.gmra.mrb[0].mxu0 %v811
      %v3249 = vpop.f32.mrb[0].mxu0
      %v3250 = vadd.f32 0.0, %v3249
      %v3251 = vpop.f32.mrb[0].mxu0
      %v3252 = vpop.f32.mrb[0].mxu0
      %v3253 = vadd.f32 0.0, %v3252
      %v3254 = vpop.f32.mrb[0].mxu0
      %3255 = vdwg.mxu0
      %v3256 = vsel %vm911, %v3194, %v3226
      %v3257 = vsel %vm911, %v3197, %v3229
      %v3258 = vsel %vm911, %v3202, %v3234
      %v3259 = vsel %vm911, %v3205, %v3237
      %v3260 = vsel %vm911, %v3210, %v3242
      %v3261 = vsel %vm911, %v3213, %v3245
      %v3262 = vsel %vm911, %v3218, %v3250
      %v3263 = vsel %vm911, %v3221, %v3253
      %v3264 = vadd.f32 %v3256, %v923
      %v3265 = vadd.f32 %v3257, %v928
      %v3266 = vadd.f32 %v3258, %v933
      %v3267 = vadd.f32 %v3259, %v938
      %v3268 = vadd.f32 %v3260, %v943
      %v3269 = vadd.f32 %v3261, %v948
      %v3270 = vadd.f32 %v3262, %v953
      %v3271 = vadd.f32 %v3263, %v958
      %s3272 = scalar_lea.vmem %s237, 256
      %3273 = vst.msk [vmem:[%s3272] sm:$0xff] %vm968, %v3264
      %3274 = vst.msk [vmem:[%s3272 + $0x8] sm:$0xff] %vm968, %v3265
      %3275 = vst.msk [vmem:[%s3272 + $0x10] sm:$0xff] %vm968, %v3266
      %3276 = vst.msk [vmem:[%s3272 + $0x18] sm:$0xff] %vm968, %v3267
      %s3277 = scalar_lea.vmem %s237, 288
      %3278 = vst.msk [vmem:[%s3277] sm:$0xff] %vm968, %v3268
      %3279 = vst.msk [vmem:[%s3277 + $0x8] sm:$0xff] %vm968, %v3269
      %3280 = vst.msk [vmem:[%s3277 + $0x10] sm:$0xff] %vm968, %v3270
      %3281 = vst.msk [vmem:[%s3277 + $0x18] sm:$0xff] %vm968, %v3271
      %v3282 = vld [vmem:[%s226 + $0x5] sm:$0x1]
      %v3283 = vld [vmem:[%s226 + $0x15] sm:$0x1]
      %v3284 = vld [vmem:[%s226 + $0x25] sm:$0x1]
      %v3285 = vld [vmem:[%s226 + $0x35] sm:$0x1]
      %v3286 = vld [vmem:[%s226 + $0x45] sm:$0x1]
      %v3287 = vld [vmem:[%s226 + $0x55] sm:$0x1]
      %v3288 = vld [vmem:[%s226 + $0x65] sm:$0x1]
      %v3289 = vld [vmem:[%s226 + $0x75] sm:$0x1]
      %v3290 = vld [vmem:[%s226 + $0x85] sm:$0x1]
      %v3291 = vld [vmem:[%s226 + $0x95] sm:$0x1]
      %v3292 = vld [vmem:[%s226 + $0xa5] sm:$0x1]
      %v3293 = vld [vmem:[%s226 + $0xb5] sm:$0x1]
      %v3294 = vld [vmem:[%s226 + $0xc5] sm:$0x1]
      %v3295 = vld [vmem:[%s226 + $0xd5] sm:$0x1]
      %v3296 = vld [vmem:[%s226 + $0xe5] sm:$0x1]
      %v3297 = vld [vmem:[%s226 + $0xf5] sm:$0x1]
      %v3298 = vld [vmem:[%s226 + $0x105] sm:$0x1]
      %v3299 = vld [vmem:[%s226 + $0x115] sm:$0x1]
      %v3300 = vld [vmem:[%s226 + $0x125] sm:$0x1]
      %v3301 = vld [vmem:[%s226 + $0x135] sm:$0x1]
      %v3302 = vld [vmem:[%s226 + $0x145] sm:$0x1]
      %v3303 = vld [vmem:[%s226 + $0x155] sm:$0x1]
      %v3304 = vld [vmem:[%s226 + $0x165] sm:$0x1]
      %v3305 = vld [vmem:[%s226 + $0x175] sm:$0x1]
      %v3306 = vld [vmem:[%s226 + $0x185] sm:$0x1]
      %v3307 = vld [vmem:[%s226 + $0x195] sm:$0x1]
      %v3308 = vld [vmem:[%s226 + $0x1a5] sm:$0x1]
      %v3309 = vld [vmem:[%s226 + $0x1b5] sm:$0x1]
      %v3310 = vld [vmem:[%s226 + $0x1c5] sm:$0x1]
      %v3311 = vld [vmem:[%s226 + $0x1d5] sm:$0x1]
      %v3312 = vld [vmem:[%s226 + $0x1e5] sm:$0x1]
      %v3313 = vld [vmem:[%s226 + $0x1f5] sm:$0x1]
      %v3314 = vld [vmem:[%s226 + $0x205] sm:$0x1]
      %v3315 = vld [vmem:[%s226 + $0x215] sm:$0x1]
      %v3316 = vld [vmem:[%s226 + $0x225] sm:$0x1]
      %v3317 = vld [vmem:[%s226 + $0x235] sm:$0x1]
      %v3318 = vld [vmem:[%s226 + $0x245] sm:$0x1]
      %v3319 = vld [vmem:[%s226 + $0x255] sm:$0x1]
      %v3320 = vld [vmem:[%s226 + $0x265] sm:$0x1]
      %v3321 = vld [vmem:[%s226 + $0x275] sm:$0x1]
      %v3322 = vld [vmem:[%s226 + $0x285] sm:$0x1]
      %v3323 = vld [vmem:[%s226 + $0x295] sm:$0x1]
      %v3324 = vld [vmem:[%s226 + $0x2a5] sm:$0x1]
      %v3325 = vld [vmem:[%s226 + $0x2b5] sm:$0x1]
      %v3326 = vld [vmem:[%s226 + $0x2c5] sm:$0x1]
      %v3327 = vld [vmem:[%s226 + $0x2d5] sm:$0x1]
      %v3328 = vld [vmem:[%s226 + $0x2e5] sm:$0x1]
      %v3329 = vld [vmem:[%s226 + $0x2f5] sm:$0x1]
      %v3330 = vld [vmem:[%s226 + $0x305] sm:$0x1]
      %v3331 = vld [vmem:[%s226 + $0x315] sm:$0x1]
      %v3332 = vld [vmem:[%s226 + $0x325] sm:$0x1]
      %v3333 = vld [vmem:[%s226 + $0x335] sm:$0x1]
      %v3334 = vld [vmem:[%s226 + $0x345] sm:$0x1]
      %v3335 = vld [vmem:[%s226 + $0x355] sm:$0x1]
      %v3336 = vld [vmem:[%s226 + $0x365] sm:$0x1]
      %v3337 = vld [vmem:[%s226 + $0x375] sm:$0x1]
      %v3338 = vld [vmem:[%s226 + $0x385] sm:$0x1]
      %v3339 = vld [vmem:[%s226 + $0x395] sm:$0x1]
      %v3340 = vld [vmem:[%s226 + $0x3a5] sm:$0x1]
      %v3341 = vld [vmem:[%s226 + $0x3b5] sm:$0x1]
      %v3342 = vld [vmem:[%s226 + $0x3c5] sm:$0x1]
      %v3343 = vld [vmem:[%s226 + $0x3d5] sm:$0x1]
      %v3344 = vld [vmem:[%s226 + $0x3e5] sm:$0x1]
      %v3345 = vld [vmem:[%s226 + $0x3f5] sm:$0x1]
      %v3346 = vpack.c.bf16 %v3282, %v3282
      %v3347 = vpack.c.bf16 %v3283, %v3283
      %v3348 = vpack.c.bf16 %v3284, %v3284
      %v3349 = vpack.c.bf16 %v3285, %v3285
      %v3350 = vpack.c.bf16 %v3286, %v3286
      %v3351 = vpack.c.bf16 %v3287, %v3287
      %v3352 = vpack.c.bf16 %v3288, %v3288
      %v3353 = vpack.c.bf16 %v3289, %v3289
      %v3354 = vpack.c.bf16 %v3290, %v3290
      %v3355 = vpack.c.bf16 %v3291, %v3291
      %v3356 = vpack.c.bf16 %v3292, %v3292
      %v3357 = vpack.c.bf16 %v3293, %v3293
      %v3358 = vpack.c.bf16 %v3294, %v3294
      %v3359 = vpack.c.bf16 %v3295, %v3295
      %v3360 = vpack.c.bf16 %v3296, %v3296
      %v3361 = vpack.c.bf16 %v3297, %v3297
      %v3362 = vpack.c.bf16 %v3298, %v3298
      %v3363 = vpack.c.bf16 %v3299, %v3299
      %v3364 = vpack.c.bf16 %v3300, %v3300
      %v3365 = vpack.c.bf16 %v3301, %v3301
      %v3366 = vpack.c.bf16 %v3302, %v3302
      %v3367 = vpack.c.bf16 %v3303, %v3303
      %v3368 = vpack.c.bf16 %v3304, %v3304
      %v3369 = vpack.c.bf16 %v3305, %v3305
      %v3370 = vpack.c.bf16 %v3306, %v3306
      %v3371 = vpack.c.bf16 %v3307, %v3307
      %v3372 = vpack.c.bf16 %v3308, %v3308
      %v3373 = vpack.c.bf16 %v3309, %v3309
      %v3374 = vpack.c.bf16 %v3310, %v3310
      %v3375 = vpack.c.bf16 %v3311, %v3311
      %v3376 = vpack.c.bf16 %v3312, %v3312
      %v3377 = vpack.c.bf16 %v3313, %v3313
      %v3378 = vpack.c.bf16 %v3314, %v3314
      %v3379 = vpack.c.bf16 %v3315, %v3315
      %v3380 = vpack.c.bf16 %v3316, %v3316
      %v3381 = vpack.c.bf16 %v3317, %v3317
      %v3382 = vpack.c.bf16 %v3318, %v3318
      %v3383 = vpack.c.bf16 %v3319, %v3319
      %v3384 = vpack.c.bf16 %v3320, %v3320
      %v3385 = vpack.c.bf16 %v3321, %v3321
      %v3386 = vpack.c.bf16 %v3322, %v3322
      %v3387 = vpack.c.bf16 %v3323, %v3323
      %v3388 = vpack.c.bf16 %v3324, %v3324
      %v3389 = vpack.c.bf16 %v3325, %v3325
      %v3390 = vpack.c.bf16 %v3326, %v3326
      %v3391 = vpack.c.bf16 %v3327, %v3327
      %v3392 = vpack.c.bf16 %v3328, %v3328
      %v3393 = vpack.c.bf16 %v3329, %v3329
      %v3394 = vpack.c.bf16 %v3330, %v3330
      %v3395 = vpack.c.bf16 %v3331, %v3331
      %v3396 = vpack.c.bf16 %v3332, %v3332
      %v3397 = vpack.c.bf16 %v3333, %v3333
      %v3398 = vpack.c.bf16 %v3334, %v3334
      %v3399 = vpack.c.bf16 %v3335, %v3335
      %v3400 = vpack.c.bf16 %v3336, %v3336
      %v3401 = vpack.c.bf16 %v3337, %v3337
      %v3402 = vpack.c.bf16 %v3338, %v3338
      %v3403 = vpack.c.bf16 %v3339, %v3339
      %v3404 = vpack.c.bf16 %v3340, %v3340
      %v3405 = vpack.c.bf16 %v3341, %v3341
      %v3406 = vpack.c.bf16 %v3342, %v3342
      %v3407 = vpack.c.bf16 %v3343, %v3343
      %v3408 = vpack.c.bf16 %v3344, %v3344
      %v3409 = vpack.c.bf16 %v3345, %v3345
      %v3474 = vunpack.c.l.b16 %v3346
      %v3475 = vunpack.c.l.b16 %v3347
      %v3476 = vunpack.c.l.b16 %v3348
      %v3477 = vunpack.c.l.b16 %v3349
      %v3478 = vunpack.c.l.b16 %v3350
      %v3479 = vunpack.c.l.b16 %v3351
      %v3480 = vunpack.c.l.b16 %v3352
      %v3481 = vunpack.c.l.b16 %v3353
      %v3482 = vunpack.c.l.b16 %v3354
      %v3483 = vunpack.c.l.b16 %v3355
      %v3484 = vunpack.c.l.b16 %v3356
      %v3485 = vunpack.c.l.b16 %v3357
      %v3486 = vunpack.c.l.b16 %v3358
      %v3487 = vunpack.c.l.b16 %v3359
      %v3488 = vunpack.c.l.b16 %v3360
      %v3489 = vunpack.c.l.b16 %v3361
      %v3490 = vunpack.c.l.b16 %v3362
      %v3491 = vunpack.c.l.b16 %v3363
      %v3492 = vunpack.c.l.b16 %v3364
      %v3493 = vunpack.c.l.b16 %v3365
      %v3494 = vunpack.c.l.b16 %v3366
      %v3495 = vunpack.c.l.b16 %v3367
      %v3496 = vunpack.c.l.b16 %v3368
      %v3497 = vunpack.c.l.b16 %v3369
      %v3498 = vunpack.c.l.b16 %v3370
      %v3499 = vunpack.c.l.b16 %v3371
      %v3500 = vunpack.c.l.b16 %v3372
      %v3501 = vunpack.c.l.b16 %v3373
      %v3502 = vunpack.c.l.b16 %v3374
      %v3503 = vunpack.c.l.b16 %v3375
      %v3504 = vunpack.c.l.b16 %v3376
      %v3505 = vunpack.c.l.b16 %v3377
      %v3506 = vunpack.c.l.b16 %v3378
      %v3507 = vunpack.c.l.b16 %v3379
      %v3508 = vunpack.c.l.b16 %v3380
      %v3509 = vunpack.c.l.b16 %v3381
      %v3510 = vunpack.c.l.b16 %v3382
      %v3511 = vunpack.c.l.b16 %v3383
      %v3512 = vunpack.c.l.b16 %v3384
      %v3513 = vunpack.c.l.b16 %v3385
      %v3514 = vunpack.c.l.b16 %v3386
      %v3515 = vunpack.c.l.b16 %v3387
      %v3516 = vunpack.c.l.b16 %v3388
      %v3517 = vunpack.c.l.b16 %v3389
      %v3518 = vunpack.c.l.b16 %v3390
      %v3519 = vunpack.c.l.b16 %v3391
      %v3520 = vunpack.c.l.b16 %v3392
      %v3521 = vunpack.c.l.b16 %v3393
      %v3522 = vunpack.c.l.b16 %v3394
      %v3523 = vunpack.c.l.b16 %v3395
      %v3524 = vunpack.c.l.b16 %v3396
      %v3525 = vunpack.c.l.b16 %v3397
      %v3526 = vunpack.c.l.b16 %v3398
      %v3527 = vunpack.c.l.b16 %v3399
      %v3528 = vunpack.c.l.b16 %v3400
      %v3529 = vunpack.c.l.b16 %v3401
      %v3530 = vunpack.c.l.b16 %v3402
      %v3531 = vunpack.c.l.b16 %v3403
      %v3532 = vunpack.c.l.b16 %v3404
      %v3533 = vunpack.c.l.b16 %v3405
      %v3534 = vunpack.c.l.b16 %v3406
      %v3535 = vunpack.c.l.b16 %v3407
      %v3536 = vunpack.c.l.b16 %v3408
      %v3537 = vunpack.c.l.b16 %v3409
      %v3538 = vrot.slane %v3475, 7
      %v3539 = vsel %vm538, %v3538, %v3474
      %v3540 = vrot.slane %v3476, 6
      %v3541 = vsel %vm541, %v3540, %v3539
      %v3542 = vrot.slane %v3477, 5
      %v3543 = vsel %vm544, %v3542, %v3541
      %v3544 = vrot.slane %v3478, 4
      %v3545 = vsel %vm547, %v3544, %v3543
      %v3546 = vrot.slane %v3479, 3
      %v3547 = vsel %vm550, %v3546, %v3545
      %v3548 = vrot.slane %v3480, 2
      %v3549 = vsel %vm553, %v3548, %v3547
      %v3550 = vrot.slane %v3481, 1
      %v3551 = vsel %vm556, %v3550, %v3549
      %v3552 = vrot.slane %v3483, 7
      %v3553 = vsel %vm538, %v3552, %v3482
      %v3554 = vrot.slane %v3484, 6
      %v3555 = vsel %vm541, %v3554, %v3553
      %v3556 = vrot.slane %v3485, 5
      %v3557 = vsel %vm544, %v3556, %v3555
      %v3558 = vrot.slane %v3486, 4
      %v3559 = vsel %vm547, %v3558, %v3557
      %v3560 = vrot.slane %v3487, 3
      %v3561 = vsel %vm550, %v3560, %v3559
      %v3562 = vrot.slane %v3488, 2
      %v3563 = vsel %vm553, %v3562, %v3561
      %v3564 = vrot.slane %v3489, 1
      %v3565 = vsel %vm556, %v3564, %v3563
      %v3566 = vrot.slane %v3491, 7
      %v3567 = vsel %vm538, %v3566, %v3490
      %v3568 = vrot.slane %v3492, 6
      %v3569 = vsel %vm541, %v3568, %v3567
      %v3570 = vrot.slane %v3493, 5
      %v3571 = vsel %vm544, %v3570, %v3569
      %v3572 = vrot.slane %v3494, 4
      %v3573 = vsel %vm547, %v3572, %v3571
      %v3574 = vrot.slane %v3495, 3
      %v3575 = vsel %vm550, %v3574, %v3573
      %v3576 = vrot.slane %v3496, 2
      %v3577 = vsel %vm553, %v3576, %v3575
      %v3578 = vrot.slane %v3497, 1
      %v3579 = vsel %vm556, %v3578, %v3577
      %v3580 = vrot.slane %v3499, 7
      %v3581 = vsel %vm538, %v3580, %v3498
      %v3582 = vrot.slane %v3500, 6
      %v3583 = vsel %vm541, %v3582, %v3581
      %v3584 = vrot.slane %v3501, 5
      %v3585 = vsel %vm544, %v3584, %v3583
      %v3586 = vrot.slane %v3502, 4
      %v3587 = vsel %vm547, %v3586, %v3585
      %v3588 = vrot.slane %v3503, 3
      %v3589 = vsel %vm550, %v3588, %v3587
      %v3590 = vrot.slane %v3504, 2
      %v3591 = vsel %vm553, %v3590, %v3589
      %v3592 = vrot.slane %v3505, 1
      %v3593 = vsel %vm556, %v3592, %v3591
      %v3594 = vrot.slane %v3507, 7
      %v3595 = vsel %vm538, %v3594, %v3506
      %v3596 = vrot.slane %v3508, 6
      %v3597 = vsel %vm541, %v3596, %v3595
      %v3598 = vrot.slane %v3509, 5
      %v3599 = vsel %vm544, %v3598, %v3597
      %v3600 = vrot.slane %v3510, 4
      %v3601 = vsel %vm547, %v3600, %v3599
      %v3602 = vrot.slane %v3511, 3
      %v3603 = vsel %vm550, %v3602, %v3601
      %v3604 = vrot.slane %v3512, 2
      %v3605 = vsel %vm553, %v3604, %v3603
      %v3606 = vrot.slane %v3513, 1
      %v3607 = vsel %vm556, %v3606, %v3605
      %v3608 = vrot.slane %v3515, 7
      %v3609 = vsel %vm538, %v3608, %v3514
      %v3610 = vrot.slane %v3516, 6
      %v3611 = vsel %vm541, %v3610, %v3609
      %v3612 = vrot.slane %v3517, 5
      %v3613 = vsel %vm544, %v3612, %v3611
      %v3614 = vrot.slane %v3518, 4
      %v3615 = vsel %vm547, %v3614, %v3613
      %v3616 = vrot.slane %v3519, 3
      %v3617 = vsel %vm550, %v3616, %v3615
      %v3618 = vrot.slane %v3520, 2
      %v3619 = vsel %vm553, %v3618, %v3617
      %v3620 = vrot.slane %v3521, 1
      %v3621 = vsel %vm556, %v3620, %v3619
      %v3622 = vrot.slane %v3523, 7
      %v3623 = vsel %vm538, %v3622, %v3522
      %v3624 = vrot.slane %v3524, 6
      %v3625 = vsel %vm541, %v3624, %v3623
      %v3626 = vrot.slane %v3525, 5
      %v3627 = vsel %vm544, %v3626, %v3625
      %v3628 = vrot.slane %v3526, 4
      %v3629 = vsel %vm547, %v3628, %v3627
      %v3630 = vrot.slane %v3527, 3
      %v3631 = vsel %vm550, %v3630, %v3629
      %v3632 = vrot.slane %v3528, 2
      %v3633 = vsel %vm553, %v3632, %v3631
      %v3634 = vrot.slane %v3529, 1
      %v3635 = vsel %vm556, %v3634, %v3633
      %v3636 = vrot.slane %v3531, 7
      %v3637 = vsel %vm538, %v3636, %v3530
      %v3638 = vrot.slane %v3532, 6
      %v3639 = vsel %vm541, %v3638, %v3637
      %v3640 = vrot.slane %v3533, 5
      %v3641 = vsel %vm544, %v3640, %v3639
      %v3642 = vrot.slane %v3534, 4
      %v3643 = vsel %vm547, %v3642, %v3641
      %v3644 = vrot.slane %v3535, 3
      %v3645 = vsel %vm550, %v3644, %v3643
      %v3646 = vrot.slane %v3536, 2
      %v3647 = vsel %vm553, %v3646, %v3645
      %v3648 = vrot.slane %v3537, 1
      %v3649 = vsel %vm556, %v3648, %v3647
      %v3650 = vpack.c.b16 %v3565, %v3551
      %v3651 = vpack.c.b16 %v3593, %v3579
      %v3652 = vpack.c.b16 %v3621, %v3607
      %v3653 = vpack.c.b16 %v3649, %v3635
      %v3655 = vsel %vm666, %v3650, 0
      %v3658 = vsel %vm666, %v3651, 0
      %v3661 = vsel %vm666, %v3652, 0
      %v3664 = vsel %vm666, %v3653, 0
      %3666 = vmatprep.subr.bf16.mxu0 0
      %3667 = vmatpush1.bf16.msra.mxu0 %v664
      %3668 = vmatprep.subr.bf16.mxu0 0
      %3669 = vmatpush1.bf16.msra.mxu0 0
      %3670 = vmatprep.subr.bf16.mxu0 0
      %3671 = vmatpush1.bf16.msra.mxu0 0
      %3672 = vmatprep.subr.bf16.mxu0 0
      %3673 = vmatpush1.bf16.msra.mxu0 0
      %3674 = vmatprep.subr.bf16.mxu0 0
      %3675 = vmatpush1.bf16.msra.mxu0 0
      %3676 = vmatprep.subr.bf16.mxu0 0
      %3677 = vmatpush1.bf16.msra.mxu0 0
      %3678 = vmatprep.subr.bf16.mxu0 0
      %3679 = vmatpush1.bf16.msra.mxu0 0
      %3680 = vmatprep.subr.bf16.mxu0 0
      %3681 = vmatpush1.bf16.msra.mxu0 0
      %3682 = vmatprep.subr.bf16.mxu0 0
      %3683 = vmatpush1.bf16.msra.mxu0 0
      %3684 = vmatprep.subr.bf16.mxu0 0
      %3685 = vmatpush1.bf16.msra.mxu0 0
      %3686 = vmatprep.subr.bf16.mxu0 0
      %3687 = vmatpush1.bf16.msra.mxu0 0
      %3688 = vmatprep.subr.bf16.mxu0 0
      %3689 = vmatpush1.bf16.msra.mxu0 0
      %3690 = vmatprep.subr.bf16.mxu0 0
      %3691 = vmatpush1.bf16.msra.mxu0 0
      %3692 = vmatprep.subr.bf16.mxu0 0
      %3693 = vmatpush1.bf16.msra.mxu0 0
      %3694 = vmatprep.subr.bf16.mxu0 0
      %3695 = vmatpush1.bf16.msra.mxu0 0
      %3696 = vmatprep.subr.bf16.mxu0 0
      %3697 = vmatpush1.bf16.msra.mxu0 0
      %3698 = vmatprep.mubr.bf16.mxu0 0
      %3699 = vmatmul.mubr.bf16.gmra.mrb[0].mxu0 %v3655
      %v3700 = vpop.f32.mrb[0].mxu0
      %v3701 = vadd.f32 0.0, %v3700
      %v3702 = vpop.f32.mrb[0].mxu0
      %v3703 = vpop.f32.mrb[0].mxu0
      %v3704 = vadd.f32 0.0, %v3703
      %v3705 = vpop.f32.mrb[0].mxu0
      %3706 = vmatprep.mubr.bf16.mxu0 0
      %3707 = vmatmul.mubr.bf16.gmra.mrb[0].mxu0 %v3658
      %v3708 = vpop.f32.mrb[0].mxu0
      %v3709 = vadd.f32 0.0, %v3708
      %v3710 = vpop.f32.mrb[0].mxu0
      %v3711 = vpop.f32.mrb[0].mxu0
      %v3712 = vadd.f32 0.0, %v3711
      %v3713 = vpop.f32.mrb[0].mxu0
      %3714 = vmatprep.mubr.bf16.mxu0 0
      %3715 = vmatmul.mubr.bf16.gmra.mrb[0].mxu0 %v3661
      %v3716 = vpop.f32.mrb[0].mxu0
      %v3717 = vadd.f32 0.0, %v3716
      %v3718 = vpop.f32.mrb[0].mxu0
      %v3719 = vpop.f32.mrb[0].mxu0
      %v3720 = vadd.f32 0.0, %v3719
      %v3721 = vpop.f32.mrb[0].mxu0
      %3722 = vmatprep.mubr.bf16.mxu0 0
      %3723 = vmatmul.mubr.bf16.gmra.mrb[0].mxu0 %v3664
      %v3724 = vpop.f32.mrb[0].mxu0
      %v3725 = vadd.f32 0.0, %v3724
      %v3726 = vpop.f32.mrb[0].mxu0
      %v3727 = vpop.f32.mrb[0].mxu0
      %v3728 = vadd.f32 0.0, %v3727
      %v3729 = vpop.f32.mrb[0].mxu0
      %3730 = vdwg.mxu0
      %v3731 = vpack.c.bf16 %v3704, %v3701
      %v3732 = vpack.c.bf16 %v3712, %v3709
      %v3733 = vpack.c.bf16 %v3720, %v3717
      %v3734 = vpack.c.bf16 %v3728, %v3725
      %3735 = vmatprep.subr.bf16.mxu0 0
      %3736 = vmatpush1.bf16.msra.mxu0 %v3731
      %3737 = vmatprep.subr.bf16.mxu0 0
      %3738 = vmatpush1.bf16.msra.mxu0 %v3732
      %3739 = vmatprep.subr.bf16.mxu0 0
      %3740 = vmatpush1.bf16.msra.mxu0 %v3733
      %3741 = vmatprep.subr.bf16.mxu0 0
      %3742 = vmatpush1.bf16.msra.mxu0 %v3734
      %3743 = vmatprep.subr.bf16.mxu0 0
      %3744 = vmatpush1.bf16.msra.mxu0 0
      %3745 = vmatprep.subr.bf16.mxu0 0
      %3746 = vmatpush1.bf16.msra.mxu0 0
      %3747 = vmatprep.subr.bf16.mxu0 0
      %3748 = vmatpush1.bf16.msra.mxu0 0
      %3749 = vmatprep.subr.bf16.mxu0 0
      %3750 = vmatpush1.bf16.msra.mxu0 0
      %3751 = vmatprep.subr.bf16.mxu0 0
      %3752 = vmatpush1.bf16.msra.mxu0 0
      %3753 = vmatprep.subr.bf16.mxu0 0
      %3754 = vmatpush1.bf16.msra.mxu0 0
      %3755 = vmatprep.subr.bf16.mxu0 0
      %3756 = vmatpush1.bf16.msra.mxu0 0
      %3757 = vmatprep.subr.bf16.mxu0 0
      %3758 = vmatpush1.bf16.msra.mxu0 0
      %3759 = vmatprep.subr.bf16.mxu0 0
      %3760 = vmatpush1.bf16.msra.mxu0 0
      %3761 = vmatprep.subr.bf16.mxu0 0
      %3762 = vmatpush1.bf16.msra.mxu0 0
      %3763 = vmatprep.subr.bf16.mxu0 0
      %3764 = vmatpush1.bf16.msra.mxu0 0
      %3765 = vmatprep.subr.bf16.mxu0 0
      %3766 = vmatpush1.bf16.msra.mxu0 0
      %3767 = vmatprep.mubr.bf16.mxu0 0
      %3768 = vmatmul.mubr.bf16.gmra.mrb[0].mxu0 %v790
      %v3769 = vpop.f32.mrb[0].mxu0
      %v3770 = vadd.f32 0.0, %v3769
      %v3771 = vpop.f32.mrb[0].mxu0
      %v3772 = vpop.f32.mrb[0].mxu0
      %v3773 = vadd.f32 0.0, %v3772
      %v3774 = vpop.f32.mrb[0].mxu0
      %3775 = vmatprep.mubr.bf16.mxu0 0
      %3776 = vmatmul.mubr.bf16.gmra.mrb[0].mxu0 %v793
      %v3777 = vpop.f32.mrb[0].mxu0
      %v3778 = vadd.f32 0.0, %v3777
      %v3779 = vpop.f32.mrb[0].mxu0
      %v3780 = vpop.f32.mrb[0].mxu0
      %v3781 = vadd.f32 0.0, %v3780
      %v3782 = vpop.f32.mrb[0].mxu0
      %3783 = vmatprep.mubr.bf16.mxu0 0
      %3784 = vmatmul.mubr.bf16.gmra.mrb[0].mxu0 %v796
      %v3785 = vpop.f32.mrb[0].mxu0
      %v3786 = vadd.f32 0.0, %v3785
      %v3787 = vpop.f32.mrb[0].mxu0
      %v3788 = vpop.f32.mrb[0].mxu0
      %v3789 = vadd.f32 0.0, %v3788
      %v3790 = vpop.f32.mrb[0].mxu0
      %3791 = vmatprep.mubr.bf16.mxu0 0
      %3792 = vmatmul.mubr.bf16.gmra.mrb[0].mxu0 %v799
      %v3793 = vpop.f32.mrb[0].mxu0
      %v3794 = vadd.f32 0.0, %v3793
      %v3795 = vpop.f32.mrb[0].mxu0
      %v3796 = vpop.f32.mrb[0].mxu0
      %v3797 = vadd.f32 0.0, %v3796
      %v3798 = vpop.f32.mrb[0].mxu0
      %3799 = vmatprep.mubr.bf16.mxu0 0
      %3800 = vmatmul.mubr.bf16.gmra.mrb[0].mxu0 %v802
      %v3801 = vpop.f32.mrb[0].mxu0
      %v3802 = vadd.f32 0.0, %v3801
      %v3803 = vpop.f32.mrb[0].mxu0
      %v3804 = vpop.f32.mrb[0].mxu0
      %v3805 = vadd.f32 0.0, %v3804
      %v3806 = vpop.f32.mrb[0].mxu0
      %3807 = vmatprep.mubr.bf16.mxu0 0
      %3808 = vmatmul.mubr.bf16.gmra.mrb[0].mxu0 %v805
      %v3809 = vpop.f32.mrb[0].mxu0
      %v3810 = vadd.f32 0.0, %v3809
      %v3811 = vpop.f32.mrb[0].mxu0
      %v3812 = vpop.f32.mrb[0].mxu0
      %v3813 = vadd.f32 0.0, %v3812
      %v3814 = vpop.f32.mrb[0].mxu0
      %3815 = vmatprep.mubr.bf16.mxu0 0
      %3816 = vmatmul.mubr.bf16.gmra.mrb[0].mxu0 %v808
      %v3817 = vpop.f32.mrb[0].mxu0
      %v3818 = vadd.f32 0.0, %v3817
      %v3819 = vpop.f32.mrb[0].mxu0
      %v3820 = vpop.f32.mrb[0].mxu0
      %v3821 = vadd.f32 0.0, %v3820
      %v3822 = vpop.f32.mrb[0].mxu0
      %3823 = vmatprep.mubr.bf16.mxu0 0
      %3824 = vmatmul.mubr.bf16.gmra.mrb[0].mxu0 %v811
      %v3825 = vpop.f32.mrb[0].mxu0
      %v3826 = vadd.f32 0.0, %v3825
      %v3827 = vpop.f32.mrb[0].mxu0
      %v3828 = vpop.f32.mrb[0].mxu0
      %v3829 = vadd.f32 0.0, %v3828
      %v3830 = vpop.f32.mrb[0].mxu0
      %3831 = vdwg.mxu0
      %v3832 = vsel %vm911, %v3770, %v3802
      %v3833 = vsel %vm911, %v3773, %v3805
      %v3834 = vsel %vm911, %v3778, %v3810
      %v3835 = vsel %vm911, %v3781, %v3813
      %v3836 = vsel %vm911, %v3786, %v3818
      %v3837 = vsel %vm911, %v3789, %v3821
      %v3838 = vsel %vm911, %v3794, %v3826
      %v3839 = vsel %vm911, %v3797, %v3829
      %v3840 = vadd.f32 %v3832, %v923
      %v3841 = vadd.f32 %v3833, %v928
      %v3842 = vadd.f32 %v3834, %v933
      %v3843 = vadd.f32 %v3835, %v938
      %v3844 = vadd.f32 %v3836, %v943
      %v3845 = vadd.f32 %v3837, %v948
      %v3846 = vadd.f32 %v3838, %v953
      %v3847 = vadd.f32 %v3839, %v958
      %s3848 = scalar_lea.vmem %s237, 320
      %3849 = vst.msk [vmem:[%s3848] sm:$0xff] %vm968, %v3840
      %3850 = vst.msk [vmem:[%s3848 + $0x8] sm:$0xff] %vm968, %v3841
      %3851 = vst.msk [vmem:[%s3848 + $0x10] sm:$0xff] %vm968, %v3842
      %3852 = vst.msk [vmem:[%s3848 + $0x18] sm:$0xff] %vm968, %v3843
      %s3853 = scalar_lea.vmem %s237, 352
      %3854 = vst.msk [vmem:[%s3853] sm:$0xff] %vm968, %v3844
      %3855 = vst.msk [vmem:[%s3853 + $0x8] sm:$0xff] %vm968, %v3845
      %3856 = vst.msk [vmem:[%s3853 + $0x10] sm:$0xff] %vm968, %v3846
      %3857 = vst.msk [vmem:[%s3853 + $0x18] sm:$0xff] %vm968, %v3847
      %v3858 = vld [vmem:[%s226 + $0x6] sm:$0x1]
      %v3859 = vld [vmem:[%s226 + $0x16] sm:$0x1]
      %v3860 = vld [vmem:[%s226 + $0x26] sm:$0x1]
      %v3861 = vld [vmem:[%s226 + $0x36] sm:$0x1]
      %v3862 = vld [vmem:[%s226 + $0x46] sm:$0x1]
      %v3863 = vld [vmem:[%s226 + $0x56] sm:$0x1]
      %v3864 = vld [vmem:[%s226 + $0x66] sm:$0x1]
      %v3865 = vld [vmem:[%s226 + $0x76] sm:$0x1]
      %v3866 = vld [vmem:[%s226 + $0x86] sm:$0x1]
      %v3867 = vld [vmem:[%s226 + $0x96] sm:$0x1]
      %v3868 = vld [vmem:[%s226 + $0xa6] sm:$0x1]
      %v3869 = vld [vmem:[%s226 + $0xb6] sm:$0x1]
      %v3870 = vld [vmem:[%s226 + $0xc6] sm:$0x1]
      %v3871 = vld [vmem:[%s226 + $0xd6] sm:$0x1]
      %v3872 = vld [vmem:[%s226 + $0xe6] sm:$0x1]
      %v3873 = vld [vmem:[%s226 + $0xf6] sm:$0x1]
      %v3874 = vld [vmem:[%s226 + $0x106] sm:$0x1]
      %v3875 = vld [vmem:[%s226 + $0x116] sm:$0x1]
      %v3876 = vld [vmem:[%s226 + $0x126] sm:$0x1]
      %v3877 = vld [vmem:[%s226 + $0x136] sm:$0x1]
      %v3878 = vld [vmem:[%s226 + $0x146] sm:$0x1]
      %v3879 = vld [vmem:[%s226 + $0x156] sm:$0x1]
      %v3880 = vld [vmem:[%s226 + $0x166] sm:$0x1]
      %v3881 = vld [vmem:[%s226 + $0x176] sm:$0x1]
      %v3882 = vld [vmem:[%s226 + $0x186] sm:$0x1]
      %v3883 = vld [vmem:[%s226 + $0x196] sm:$0x1]
      %v3884 = vld [vmem:[%s226 + $0x1a6] sm:$0x1]
      %v3885 = vld [vmem:[%s226 + $0x1b6] sm:$0x1]
      %v3886 = vld [vmem:[%s226 + $0x1c6] sm:$0x1]
      %v3887 = vld [vmem:[%s226 + $0x1d6] sm:$0x1]
      %v3888 = vld [vmem:[%s226 + $0x1e6] sm:$0x1]
      %v3889 = vld [vmem:[%s226 + $0x1f6] sm:$0x1]
      %v3890 = vld [vmem:[%s226 + $0x206] sm:$0x1]
      %v3891 = vld [vmem:[%s226 + $0x216] sm:$0x1]
      %v3892 = vld [vmem:[%s226 + $0x226] sm:$0x1]
      %v3893 = vld [vmem:[%s226 + $0x236] sm:$0x1]
      %v3894 = vld [vmem:[%s226 + $0x246] sm:$0x1]
      %v3895 = vld [vmem:[%s226 + $0x256] sm:$0x1]
      %v3896 = vld [vmem:[%s226 + $0x266] sm:$0x1]
      %v3897 = vld [vmem:[%s226 + $0x276] sm:$0x1]
      %v3898 = vld [vmem:[%s226 + $0x286] sm:$0x1]
      %v3899 = vld [vmem:[%s226 + $0x296] sm:$0x1]
      %v3900 = vld [vmem:[%s226 + $0x2a6] sm:$0x1]
      %v3901 = vld [vmem:[%s226 + $0x2b6] sm:$0x1]
      %v3902 = vld [vmem:[%s226 + $0x2c6] sm:$0x1]
      %v3903 = vld [vmem:[%s226 + $0x2d6] sm:$0x1]
      %v3904 = vld [vmem:[%s226 + $0x2e6] sm:$0x1]
      %v3905 = vld [vmem:[%s226 + $0x2f6] sm:$0x1]
      %v3906 = vld [vmem:[%s226 + $0x306] sm:$0x1]
      %v3907 = vld [vmem:[%s226 + $0x316] sm:$0x1]
      %v3908 = vld [vmem:[%s226 + $0x326] sm:$0x1]
      %v3909 = vld [vmem:[%s226 + $0x336] sm:$0x1]
      %v3910 = vld [vmem:[%s226 + $0x346] sm:$0x1]
      %v3911 = vld [vmem:[%s226 + $0x356] sm:$0x1]
      %v3912 = vld [vmem:[%s226 + $0x366] sm:$0x1]
      %v3913 = vld [vmem:[%s226 + $0x376] sm:$0x1]
      %v3914 = vld [vmem:[%s226 + $0x386] sm:$0x1]
      %v3915 = vld [vmem:[%s226 + $0x396] sm:$0x1]
      %v3916 = vld [vmem:[%s226 + $0x3a6] sm:$0x1]
      %v3917 = vld [vmem:[%s226 + $0x3b6] sm:$0x1]
      %v3918 = vld [vmem:[%s226 + $0x3c6] sm:$0x1]
      %v3919 = vld [vmem:[%s226 + $0x3d6] sm:$0x1]
      %v3920 = vld [vmem:[%s226 + $0x3e6] sm:$0x1]
      %v3921 = vld [vmem:[%s226 + $0x3f6] sm:$0x1]
      %v3922 = vpack.c.bf16 %v3858, %v3858
      %v3923 = vpack.c.bf16 %v3859, %v3859
      %v3924 = vpack.c.bf16 %v3860, %v3860
      %v3925 = vpack.c.bf16 %v3861, %v3861
      %v3926 = vpack.c.bf16 %v3862, %v3862
      %v3927 = vpack.c.bf16 %v3863, %v3863
      %v3928 = vpack.c.bf16 %v3864, %v3864
      %v3929 = vpack.c.bf16 %v3865, %v3865
      %v3930 = vpack.c.bf16 %v3866, %v3866
      %v3931 = vpack.c.bf16 %v3867, %v3867
      %v3932 = vpack.c.bf16 %v3868, %v3868
      %v3933 = vpack.c.bf16 %v3869, %v3869
      %v3934 = vpack.c.bf16 %v3870, %v3870
      %v3935 = vpack.c.bf16 %v3871, %v3871
      %v3936 = vpack.c.bf16 %v3872, %v3872
      %v3937 = vpack.c.bf16 %v3873, %v3873
      %v3938 = vpack.c.bf16 %v3874, %v3874
      %v3939 = vpack.c.bf16 %v3875, %v3875
      %v3940 = vpack.c.bf16 %v3876, %v3876
      %v3941 = vpack.c.bf16 %v3877, %v3877
      %v3942 = vpack.c.bf16 %v3878, %v3878
      %v3943 = vpack.c.bf16 %v3879, %v3879
      %v3944 = vpack.c.bf16 %v3880, %v3880
      %v3945 = vpack.c.bf16 %v3881, %v3881
      %v3946 = vpack.c.bf16 %v3882, %v3882
      %v3947 = vpack.c.bf16 %v3883, %v3883
      %v3948 = vpack.c.bf16 %v3884, %v3884
      %v3949 = vpack.c.bf16 %v3885, %v3885
      %v3950 = vpack.c.bf16 %v3886, %v3886
      %v3951 = vpack.c.bf16 %v3887, %v3887
      %v3952 = vpack.c.bf16 %v3888, %v3888
      %v3953 = vpack.c.bf16 %v3889, %v3889
      %v3954 = vpack.c.bf16 %v3890, %v3890
      %v3955 = vpack.c.bf16 %v3891, %v3891
      %v3956 = vpack.c.bf16 %v3892, %v3892
      %v3957 = vpack.c.bf16 %v3893, %v3893
      %v3958 = vpack.c.bf16 %v3894, %v3894
      %v3959 = vpack.c.bf16 %v3895, %v3895
      %v3960 = vpack.c.bf16 %v3896, %v3896
      %v3961 = vpack.c.bf16 %v3897, %v3897
      %v3962 = vpack.c.bf16 %v3898, %v3898
      %v3963 = vpack.c.bf16 %v3899, %v3899
      %v3964 = vpack.c.bf16 %v3900, %v3900
      %v3965 = vpack.c.bf16 %v3901, %v3901
      %v3966 = vpack.c.bf16 %v3902, %v3902
      %v3967 = vpack.c.bf16 %v3903, %v3903
      %v3968 = vpack.c.bf16 %v3904, %v3904
      %v3969 = vpack.c.bf16 %v3905, %v3905
      %v3970 = vpack.c.bf16 %v3906, %v3906
      %v3971 = vpack.c.bf16 %v3907, %v3907
      %v3972 = vpack.c.bf16 %v3908, %v3908
      %v3973 = vpack.c.bf16 %v3909, %v3909
      %v3974 = vpack.c.bf16 %v3910, %v3910
      %v3975 = vpack.c.bf16 %v3911, %v3911
      %v3976 = vpack.c.bf16 %v3912, %v3912
      %v3977 = vpack.c.bf16 %v3913, %v3913
      %v3978 = vpack.c.bf16 %v3914, %v3914
      %v3979 = vpack.c.bf16 %v3915, %v3915
      %v3980 = vpack.c.bf16 %v3916, %v3916
      %v3981 = vpack.c.bf16 %v3917, %v3917
      %v3982 = vpack.c.bf16 %v3918, %v3918
      %v3983 = vpack.c.bf16 %v3919, %v3919
      %v3984 = vpack.c.bf16 %v3920, %v3920
      %v3985 = vpack.c.bf16 %v3921, %v3921
      %v4050 = vunpack.c.l.b16 %v3922
      %v4051 = vunpack.c.l.b16 %v3923
      %v4052 = vunpack.c.l.b16 %v3924
      %v4053 = vunpack.c.l.b16 %v3925
      %v4054 = vunpack.c.l.b16 %v3926
      %v4055 = vunpack.c.l.b16 %v3927
      %v4056 = vunpack.c.l.b16 %v3928
      %v4057 = vunpack.c.l.b16 %v3929
      %v4058 = vunpack.c.l.b16 %v3930
      %v4059 = vunpack.c.l.b16 %v3931
      %v4060 = vunpack.c.l.b16 %v3932
      %v4061 = vunpack.c.l.b16 %v3933
      %v4062 = vunpack.c.l.b16 %v3934
      %v4063 = vunpack.c.l.b16 %v3935
      %v4064 = vunpack.c.l.b16 %v3936
      %v4065 = vunpack.c.l.b16 %v3937
      %v4066 = vunpack.c.l.b16 %v3938
      %v4067 = vunpack.c.l.b16 %v3939
      %v4068 = vunpack.c.l.b16 %v3940
      %v4069 = vunpack.c.l.b16 %v3941
      %v4070 = vunpack.c.l.b16 %v3942
      %v4071 = vunpack.c.l.b16 %v3943
      %v4072 = vunpack.c.l.b16 %v3944
      %v4073 = vunpack.c.l.b16 %v3945
      %v4074 = vunpack.c.l.b16 %v3946
      %v4075 = vunpack.c.l.b16 %v3947
      %v4076 = vunpack.c.l.b16 %v3948
      %v4077 = vunpack.c.l.b16 %v3949
      %v4078 = vunpack.c.l.b16 %v3950
      %v4079 = vunpack.c.l.b16 %v3951
      %v4080 = vunpack.c.l.b16 %v3952
      %v4081 = vunpack.c.l.b16 %v3953
      %v4082 = vunpack.c.l.b16 %v3954
      %v4083 = vunpack.c.l.b16 %v3955
      %v4084 = vunpack.c.l.b16 %v3956
      %v4085 = vunpack.c.l.b16 %v3957
      %v4086 = vunpack.c.l.b16 %v3958
      %v4087 = vunpack.c.l.b16 %v3959
      %v4088 = vunpack.c.l.b16 %v3960
      %v4089 = vunpack.c.l.b16 %v3961
      %v4090 = vunpack.c.l.b16 %v3962
      %v4091 = vunpack.c.l.b16 %v3963
      %v4092 = vunpack.c.l.b16 %v3964
      %v4093 = vunpack.c.l.b16 %v3965
      %v4094 = vunpack.c.l.b16 %v3966
      %v4095 = vunpack.c.l.b16 %v3967
      %v4096 = vunpack.c.l.b16 %v3968
      %v4097 = vunpack.c.l.b16 %v3969
      %v4098 = vunpack.c.l.b16 %v3970
      %v4099 = vunpack.c.l.b16 %v3971
      %v4100 = vunpack.c.l.b16 %v3972
      %v4101 = vunpack.c.l.b16 %v3973
      %v4102 = vunpack.c.l.b16 %v3974
      %v4103 = vunpack.c.l.b16 %v3975
      %v4104 = vunpack.c.l.b16 %v3976
      %v4105 = vunpack.c.l.b16 %v3977
      %v4106 = vunpack.c.l.b16 %v3978
      %v4107 = vunpack.c.l.b16 %v3979
      %v4108 = vunpack.c.l.b16 %v3980
      %v4109 = vunpack.c.l.b16 %v3981
      %v4110 = vunpack.c.l.b16 %v3982
      %v4111 = vunpack.c.l.b16 %v3983
      %v4112 = vunpack.c.l.b16 %v3984
      %v4113 = vunpack.c.l.b16 %v3985
      %v4114 = vrot.slane %v4051, 7
      %v4115 = vsel %vm538, %v4114, %v4050
      %v4116 = vrot.slane %v4052, 6
      %v4117 = vsel %vm541, %v4116, %v4115
      %v4118 = vrot.slane %v4053, 5
      %v4119 = vsel %vm544, %v4118, %v4117
      %v4120 = vrot.slane %v4054, 4
      %v4121 = vsel %vm547, %v4120, %v4119
      %v4122 = vrot.slane %v4055, 3
      %v4123 = vsel %vm550, %v4122, %v4121
      %v4124 = vrot.slane %v4056, 2
      %v4125 = vsel %vm553, %v4124, %v4123
      %v4126 = vrot.slane %v4057, 1
      %v4127 = vsel %vm556, %v4126, %v4125
      %v4128 = vrot.slane %v4059, 7
      %v4129 = vsel %vm538, %v4128, %v4058
      %v4130 = vrot.slane %v4060, 6
      %v4131 = vsel %vm541, %v4130, %v4129
      %v4132 = vrot.slane %v4061, 5
      %v4133 = vsel %vm544, %v4132, %v4131
      %v4134 = vrot.slane %v4062, 4
      %v4135 = vsel %vm547, %v4134, %v4133
      %v4136 = vrot.slane %v4063, 3
      %v4137 = vsel %vm550, %v4136, %v4135
      %v4138 = vrot.slane %v4064, 2
      %v4139 = vsel %vm553, %v4138, %v4137
      %v4140 = vrot.slane %v4065, 1
      %v4141 = vsel %vm556, %v4140, %v4139
      %v4142 = vrot.slane %v4067, 7
      %v4143 = vsel %vm538, %v4142, %v4066
      %v4144 = vrot.slane %v4068, 6
      %v4145 = vsel %vm541, %v4144, %v4143
      %v4146 = vrot.slane %v4069, 5
      %v4147 = vsel %vm544, %v4146, %v4145
      %v4148 = vrot.slane %v4070, 4
      %v4149 = vsel %vm547, %v4148, %v4147
      %v4150 = vrot.slane %v4071, 3
      %v4151 = vsel %vm550, %v4150, %v4149
      %v4152 = vrot.slane %v4072, 2
      %v4153 = vsel %vm553, %v4152, %v4151
      %v4154 = vrot.slane %v4073, 1
      %v4155 = vsel %vm556, %v4154, %v4153
      %v4156 = vrot.slane %v4075, 7
      %v4157 = vsel %vm538, %v4156, %v4074
      %v4158 = vrot.slane %v4076, 6
      %v4159 = vsel %vm541, %v4158, %v4157
      %v4160 = vrot.slane %v4077, 5
      %v4161 = vsel %vm544, %v4160, %v4159
      %v4162 = vrot.slane %v4078, 4
      %v4163 = vsel %vm547, %v4162, %v4161
      %v4164 = vrot.slane %v4079, 3
      %v4165 = vsel %vm550, %v4164, %v4163
      %v4166 = vrot.slane %v4080, 2
      %v4167 = vsel %vm553, %v4166, %v4165
      %v4168 = vrot.slane %v4081, 1
      %v4169 = vsel %vm556, %v4168, %v4167
      %v4170 = vrot.slane %v4083, 7
      %v4171 = vsel %vm538, %v4170, %v4082
      %v4172 = vrot.slane %v4084, 6
      %v4173 = vsel %vm541, %v4172, %v4171
      %v4174 = vrot.slane %v4085, 5
      %v4175 = vsel %vm544, %v4174, %v4173
      %v4176 = vrot.slane %v4086, 4
      %v4177 = vsel %vm547, %v4176, %v4175
      %v4178 = vrot.slane %v4087, 3
      %v4179 = vsel %vm550, %v4178, %v4177
      %v4180 = vrot.slane %v4088, 2
      %v4181 = vsel %vm553, %v4180, %v4179
      %v4182 = vrot.slane %v4089, 1
      %v4183 = vsel %vm556, %v4182, %v4181
      %v4184 = vrot.slane %v4091, 7
      %v4185 = vsel %vm538, %v4184, %v4090
      %v4186 = vrot.slane %v4092, 6
      %v4187 = vsel %vm541, %v4186, %v4185
      %v4188 = vrot.slane %v4093, 5
      %v4189 = vsel %vm544, %v4188, %v4187
      %v4190 = vrot.slane %v4094, 4
      %v4191 = vsel %vm547, %v4190, %v4189
      %v4192 = vrot.slane %v4095, 3
      %v4193 = vsel %vm550, %v4192, %v4191
      %v4194 = vrot.slane %v4096, 2
      %v4195 = vsel %vm553, %v4194, %v4193
      %v4196 = vrot.slane %v4097, 1
      %v4197 = vsel %vm556, %v4196, %v4195
      %v4198 = vrot.slane %v4099, 7
      %v4199 = vsel %vm538, %v4198, %v4098
      %v4200 = vrot.slane %v4100, 6
      %v4201 = vsel %vm541, %v4200, %v4199
      %v4202 = vrot.slane %v4101, 5
      %v4203 = vsel %vm544, %v4202, %v4201
      %v4204 = vrot.slane %v4102, 4
      %v4205 = vsel %vm547, %v4204, %v4203
      %v4206 = vrot.slane %v4103, 3
      %v4207 = vsel %vm550, %v4206, %v4205
      %v4208 = vrot.slane %v4104, 2
      %v4209 = vsel %vm553, %v4208, %v4207
      %v4210 = vrot.slane %v4105, 1
      %v4211 = vsel %vm556, %v4210, %v4209
      %v4212 = vrot.slane %v4107, 7
      %v4213 = vsel %vm538, %v4212, %v4106
      %v4214 = vrot.slane %v4108, 6
      %v4215 = vsel %vm541, %v4214, %v4213
      %v4216 = vrot.slane %v4109, 5
      %v4217 = vsel %vm544, %v4216, %v4215
      %v4218 = vrot.slane %v4110, 4
      %v4219 = vsel %vm547, %v4218, %v4217
      %v4220 = vrot.slane %v4111, 3
      %v4221 = vsel %vm550, %v4220, %v4219
      %v4222 = vrot.slane %v4112, 2
      %v4223 = vsel %vm553, %v4222, %v4221
      %v4224 = vrot.slane %v4113, 1
      %v4225 = vsel %vm556, %v4224, %v4223
      %v4226 = vpack.c.b16 %v4141, %v4127
      %v4227 = vpack.c.b16 %v4169, %v4155
      %v4228 = vpack.c.b16 %v4197, %v4183
      %v4229 = vpack.c.b16 %v4225, %v4211
      %v4231 = vsel %vm666, %v4226, 0
      %v4234 = vsel %vm666, %v4227, 0
      %v4237 = vsel %vm666, %v4228, 0
      %v4240 = vsel %vm666, %v4229, 0
      %4242 = vmatprep.subr.bf16.mxu0 0
      %4243 = vmatpush1.bf16.msra.mxu0 %v664
      %4244 = vmatprep.subr.bf16.mxu0 0
      %4245 = vmatpush1.bf16.msra.mxu0 0
      %4246 = vmatprep.subr.bf16.mxu0 0
      %4247 = vmatpush1.bf16.msra.mxu0 0
      %4248 = vmatprep.subr.bf16.mxu0 0
      %4249 = vmatpush1.bf16.msra.mxu0 0
      %4250 = vmatprep.subr.bf16.mxu0 0
      %4251 = vmatpush1.bf16.msra.mxu0 0
      %4252 = vmatprep.subr.bf16.mxu0 0
      %4253 = vmatpush1.bf16.msra.mxu0 0
      %4254 = vmatprep.subr.bf16.mxu0 0
      %4255 = vmatpush1.bf16.msra.mxu0 0
      %4256 = vmatprep.subr.bf16.mxu0 0
      %4257 = vmatpush1.bf16.msra.mxu0 0
      %4258 = vmatprep.subr.bf16.mxu0 0
      %4259 = vmatpush1.bf16.msra.mxu0 0
      %4260 = vmatprep.subr.bf16.mxu0 0
      %4261 = vmatpush1.bf16.msra.mxu0 0
      %4262 = vmatprep.subr.bf16.mxu0 0
      %4263 = vmatpush1.bf16.msra.mxu0 0
      %4264 = vmatprep.subr.bf16.mxu0 0
      %4265 = vmatpush1.bf16.msra.mxu0 0
      %4266 = vmatprep.subr.bf16.mxu0 0
      %4267 = vmatpush1.bf16.msra.mxu0 0
      %4268 = vmatprep.subr.bf16.mxu0 0
      %4269 = vmatpush1.bf16.msra.mxu0 0
      %4270 = vmatprep.subr.bf16.mxu0 0
      %4271 = vmatpush1.bf16.msra.mxu0 0
      %4272 = vmatprep.subr.bf16.mxu0 0
      %4273 = vmatpush1.bf16.msra.mxu0 0
      %4274 = vmatprep.mubr.bf16.mxu0 0
      %4275 = vmatmul.mubr.bf16.gmra.mrb[0].mxu0 %v4231
      %v4276 = vpop.f32.mrb[0].mxu0
      %v4277 = vadd.f32 0.0, %v4276
      %v4278 = vpop.f32.mrb[0].mxu0
      %v4279 = vpop.f32.mrb[0].mxu0
      %v4280 = vadd.f32 0.0, %v4279
      %v4281 = vpop.f32.mrb[0].mxu0
      %4282 = vmatprep.mubr.bf16.mxu0 0
      %4283 = vmatmul.mubr.bf16.gmra.mrb[0].mxu0 %v4234
      %v4284 = vpop.f32.mrb[0].mxu0
      %v4285 = vadd.f32 0.0, %v4284
      %v4286 = vpop.f32.mrb[0].mxu0
      %v4287 = vpop.f32.mrb[0].mxu0
      %v4288 = vadd.f32 0.0, %v4287
      %v4289 = vpop.f32.mrb[0].mxu0
      %4290 = vmatprep.mubr.bf16.mxu0 0
      %4291 = vmatmul.mubr.bf16.gmra.mrb[0].mxu0 %v4237
      %v4292 = vpop.f32.mrb[0].mxu0
      %v4293 = vadd.f32 0.0, %v4292
      %v4294 = vpop.f32.mrb[0].mxu0
      %v4295 = vpop.f32.mrb[0].mxu0
      %v4296 = vadd.f32 0.0, %v4295
      %v4297 = vpop.f32.mrb[0].mxu0
      %4298 = vmatprep.mubr.bf16.mxu0 0
      %4299 = vmatmul.mubr.bf16.gmra.mrb[0].mxu0 %v4240
      %v4300 = vpop.f32.mrb[0].mxu0
      %v4301 = vadd.f32 0.0, %v4300
      %v4302 = vpop.f32.mrb[0].mxu0
      %v4303 = vpop.f32.mrb[0].mxu0
      %v4304 = vadd.f32 0.0, %v4303
      %v4305 = vpop.f32.mrb[0].mxu0
      %4306 = vdwg.mxu0
      %v4307 = vpack.c.bf16 %v4280, %v4277
      %v4308 = vpack.c.bf16 %v4288, %v4285
      %v4309 = vpack.c.bf16 %v4296, %v4293
      %v4310 = vpack.c.bf16 %v4304, %v4301
      %4311 = vmatprep.subr.bf16.mxu0 0
      %4312 = vmatpush1.bf16.msra.mxu0 %v4307
      %4313 = vmatprep.subr.bf16.mxu0 0
      %4314 = vmatpush1.bf16.msra.mxu0 %v4308
      %4315 = vmatprep.subr.bf16.mxu0 0
      %4316 = vmatpush1.bf16.msra.mxu0 %v4309
      %4317 = vmatprep.subr.bf16.mxu0 0
      %4318 = vmatpush1.bf16.msra.mxu0 %v4310
      %4319 = vmatprep.subr.bf16.mxu0 0
      %4320 = vmatpush1.bf16.msra.mxu0 0
      %4321 = vmatprep.subr.bf16.mxu0 0
      %4322 = vmatpush1.bf16.msra.mxu0 0
      %4323 = vmatprep.subr.bf16.mxu0 0
      %4324 = vmatpush1.bf16.msra.mxu0 0
      %4325 = vmatprep.subr.bf16.mxu0 0
      %4326 = vmatpush1.bf16.msra.mxu0 0
      %4327 = vmatprep.subr.bf16.mxu0 0
      %4328 = vmatpush1.bf16.msra.mxu0 0
      %4329 = vmatprep.subr.bf16.mxu0 0
      %4330 = vmatpush1.bf16.msra.mxu0 0
      %4331 = vmatprep.subr.bf16.mxu0 0
      %4332 = vmatpush1.bf16.msra.mxu0 0
      %4333 = vmatprep.subr.bf16.mxu0 0
      %4334 = vmatpush1.bf16.msra.mxu0 0
      %4335 = vmatprep.subr.bf16.mxu0 0
      %4336 = vmatpush1.bf16.msra.mxu0 0
      %4337 = vmatprep.subr.bf16.mxu0 0
      %4338 = vmatpush1.bf16.msra.mxu0 0
      %4339 = vmatprep.subr.bf16.mxu0 0
      %4340 = vmatpush1.bf16.msra.mxu0 0
      %4341 = vmatprep.subr.bf16.mxu0 0
      %4342 = vmatpush1.bf16.msra.mxu0 0
      %4343 = vmatprep.mubr.bf16.mxu0 0
      %4344 = vmatmul.mubr.bf16.gmra.mrb[0].mxu0 %v790
      %v4345 = vpop.f32.mrb[0].mxu0
      %v4346 = vadd.f32 0.0, %v4345
      %v4347 = vpop.f32.mrb[0].mxu0
      %v4348 = vpop.f32.mrb[0].mxu0
      %v4349 = vadd.f32 0.0, %v4348
      %v4350 = vpop.f32.mrb[0].mxu0
      %4351 = vmatprep.mubr.bf16.mxu0 0
      %4352 = vmatmul.mubr.bf16.gmra.mrb[0].mxu0 %v793
      %v4353 = vpop.f32.mrb[0].mxu0
      %v4354 = vadd.f32 0.0, %v4353
      %v4355 = vpop.f32.mrb[0].mxu0
      %v4356 = vpop.f32.mrb[0].mxu0
      %v4357 = vadd.f32 0.0, %v4356
      %v4358 = vpop.f32.mrb[0].mxu0
      %4359 = vmatprep.mubr.bf16.mxu0 0
      %4360 = vmatmul.mubr.bf16.gmra.mrb[0].mxu0 %v796
      %v4361 = vpop.f32.mrb[0].mxu0
      %v4362 = vadd.f32 0.0, %v4361
      %v4363 = vpop.f32.mrb[0].mxu0
      %v4364 = vpop.f32.mrb[0].mxu0
      %v4365 = vadd.f32 0.0, %v4364
      %v4366 = vpop.f32.mrb[0].mxu0
      %4367 = vmatprep.mubr.bf16.mxu0 0
      %4368 = vmatmul.mubr.bf16.gmra.mrb[0].mxu0 %v799
      %v4369 = vpop.f32.mrb[0].mxu0
      %v4370 = vadd.f32 0.0, %v4369
      %v4371 = vpop.f32.mrb[0].mxu0
      %v4372 = vpop.f32.mrb[0].mxu0
      %v4373 = vadd.f32 0.0, %v4372
      %v4374 = vpop.f32.mrb[0].mxu0
      %4375 = vmatprep.mubr.bf16.mxu0 0
      %4376 = vmatmul.mubr.bf16.gmra.mrb[0].mxu0 %v802
      %v4377 = vpop.f32.mrb[0].mxu0
      %v4378 = vadd.f32 0.0, %v4377
      %v4379 = vpop.f32.mrb[0].mxu0
      %v4380 = vpop.f32.mrb[0].mxu0
      %v4381 = vadd.f32 0.0, %v4380
      %v4382 = vpop.f32.mrb[0].mxu0
      %4383 = vmatprep.mubr.bf16.mxu0 0
      %4384 = vmatmul.mubr.bf16.gmra.mrb[0].mxu0 %v805
      %v4385 = vpop.f32.mrb[0].mxu0
      %v4386 = vadd.f32 0.0, %v4385
      %v4387 = vpop.f32.mrb[0].mxu0
      %v4388 = vpop.f32.mrb[0].mxu0
      %v4389 = vadd.f32 0.0, %v4388
      %v4390 = vpop.f32.mrb[0].mxu0
      %4391 = vmatprep.mubr.bf16.mxu0 0
      %4392 = vmatmul.mubr.bf16.gmra.mrb[0].mxu0 %v808
      %v4393 = vpop.f32.mrb[0].mxu0
      %v4394 = vadd.f32 0.0, %v4393
      %v4395 = vpop.f32.mrb[0].mxu0
      %v4396 = vpop.f32.mrb[0].mxu0
      %v4397 = vadd.f32 0.0, %v4396
      %v4398 = vpop.f32.mrb[0].mxu0
      %4399 = vmatprep.mubr.bf16.mxu0 0
      %4400 = vmatmul.mubr.bf16.gmra.mrb[0].mxu0 %v811
      %v4401 = vpop.f32.mrb[0].mxu0
      %v4402 = vadd.f32 0.0, %v4401
      %v4403 = vpop.f32.mrb[0].mxu0
      %v4404 = vpop.f32.mrb[0].mxu0
      %v4405 = vadd.f32 0.0, %v4404
      %v4406 = vpop.f32.mrb[0].mxu0
      %4407 = vdwg.mxu0
      %v4408 = vsel %vm911, %v4346, %v4378
      %v4409 = vsel %vm911, %v4349, %v4381
      %v4410 = vsel %vm911, %v4354, %v4386
      %v4411 = vsel %vm911, %v4357, %v4389
      %v4412 = vsel %vm911, %v4362, %v4394
      %v4413 = vsel %vm911, %v4365, %v4397
      %v4414 = vsel %vm911, %v4370, %v4402
      %v4415 = vsel %vm911, %v4373, %v4405
      %v4416 = vadd.f32 %v4408, %v923
      %v4417 = vadd.f32 %v4409, %v928
      %v4418 = vadd.f32 %v4410, %v933
      %v4419 = vadd.f32 %v4411, %v938
      %v4420 = vadd.f32 %v4412, %v943
      %v4421 = vadd.f32 %v4413, %v948
      %v4422 = vadd.f32 %v4414, %v953
      %v4423 = vadd.f32 %v4415, %v958
      %s4424 = scalar_lea.vmem %s237, 384
      %4425 = vst.msk [vmem:[%s4424] sm:$0xff] %vm968, %v4416
      %4426 = vst.msk [vmem:[%s4424 + $0x8] sm:$0xff] %vm968, %v4417
      %4427 = vst.msk [vmem:[%s4424 + $0x10] sm:$0xff] %vm968, %v4418
      %4428 = vst.msk [vmem:[%s4424 + $0x18] sm:$0xff] %vm968, %v4419
      %s4429 = scalar_lea.vmem %s237, 416
      %4430 = vst.msk [vmem:[%s4429] sm:$0xff] %vm968, %v4420
      %4431 = vst.msk [vmem:[%s4429 + $0x8] sm:$0xff] %vm968, %v4421
      %4432 = vst.msk [vmem:[%s4429 + $0x10] sm:$0xff] %vm968, %v4422
      %4433 = vst.msk [vmem:[%s4429 + $0x18] sm:$0xff] %vm968, %v4423
      %v4434 = vld [vmem:[%s226 + $0x7] sm:$0x1]
      %v4435 = vld [vmem:[%s226 + $0x17] sm:$0x1]
      %v4436 = vld [vmem:[%s226 + $0x27] sm:$0x1]
      %v4437 = vld [vmem:[%s226 + $0x37] sm:$0x1]
      %v4438 = vld [vmem:[%s226 + $0x47] sm:$0x1]
      %v4439 = vld [vmem:[%s226 + $0x57] sm:$0x1]
      %v4440 = vld [vmem:[%s226 + $0x67] sm:$0x1]
      %v4441 = vld [vmem:[%s226 + $0x77] sm:$0x1]
      %v4442 = vld [vmem:[%s226 + $0x87] sm:$0x1]
      %v4443 = vld [vmem:[%s226 + $0x97] sm:$0x1]
      %v4444 = vld [vmem:[%s226 + $0xa7] sm:$0x1]
      %v4445 = vld [vmem:[%s226 + $0xb7] sm:$0x1]
      %v4446 = vld [vmem:[%s226 + $0xc7] sm:$0x1]
      %v4447 = vld [vmem:[%s226 + $0xd7] sm:$0x1]
      %v4448 = vld [vmem:[%s226 + $0xe7] sm:$0x1]
      %v4449 = vld [vmem:[%s226 + $0xf7] sm:$0x1]
      %v4450 = vld [vmem:[%s226 + $0x107] sm:$0x1]
      %v4451 = vld [vmem:[%s226 + $0x117] sm:$0x1]
      %v4452 = vld [vmem:[%s226 + $0x127] sm:$0x1]
      %v4453 = vld [vmem:[%s226 + $0x137] sm:$0x1]
      %v4454 = vld [vmem:[%s226 + $0x147] sm:$0x1]
      %v4455 = vld [vmem:[%s226 + $0x157] sm:$0x1]
      %v4456 = vld [vmem:[%s226 + $0x167] sm:$0x1]
      %v4457 = vld [vmem:[%s226 + $0x177] sm:$0x1]
      %v4458 = vld [vmem:[%s226 + $0x187] sm:$0x1]
      %v4459 = vld [vmem:[%s226 + $0x197] sm:$0x1]
      %v4460 = vld [vmem:[%s226 + $0x1a7] sm:$0x1]
      %v4461 = vld [vmem:[%s226 + $0x1b7] sm:$0x1]
      %v4462 = vld [vmem:[%s226 + $0x1c7] sm:$0x1]
      %v4463 = vld [vmem:[%s226 + $0x1d7] sm:$0x1]
      %v4464 = vld [vmem:[%s226 + $0x1e7] sm:$0x1]
      %v4465 = vld [vmem:[%s226 + $0x1f7] sm:$0x1]
      %v4466 = vld [vmem:[%s226 + $0x207] sm:$0x1]
      %v4467 = vld [vmem:[%s226 + $0x217] sm:$0x1]
      %v4468 = vld [vmem:[%s226 + $0x227] sm:$0x1]
      %v4469 = vld [vmem:[%s226 + $0x237] sm:$0x1]
      %v4470 = vld [vmem:[%s226 + $0x247] sm:$0x1]
      %v4471 = vld [vmem:[%s226 + $0x257] sm:$0x1]
      %v4472 = vld [vmem:[%s226 + $0x267] sm:$0x1]
      %v4473 = vld [vmem:[%s226 + $0x277] sm:$0x1]
      %v4474 = vld [vmem:[%s226 + $0x287] sm:$0x1]
      %v4475 = vld [vmem:[%s226 + $0x297] sm:$0x1]
      %v4476 = vld [vmem:[%s226 + $0x2a7] sm:$0x1]
      %v4477 = vld [vmem:[%s226 + $0x2b7] sm:$0x1]
      %v4478 = vld [vmem:[%s226 + $0x2c7] sm:$0x1]
      %v4479 = vld [vmem:[%s226 + $0x2d7] sm:$0x1]
      %v4480 = vld [vmem:[%s226 + $0x2e7] sm:$0x1]
      %v4481 = vld [vmem:[%s226 + $0x2f7] sm:$0x1]
      %v4482 = vld [vmem:[%s226 + $0x307] sm:$0x1]
      %v4483 = vld [vmem:[%s226 + $0x317] sm:$0x1]
      %v4484 = vld [vmem:[%s226 + $0x327] sm:$0x1]
      %v4485 = vld [vmem:[%s226 + $0x337] sm:$0x1]
      %v4486 = vld [vmem:[%s226 + $0x347] sm:$0x1]
      %v4487 = vld [vmem:[%s226 + $0x357] sm:$0x1]
      %v4488 = vld [vmem:[%s226 + $0x367] sm:$0x1]
      %v4489 = vld [vmem:[%s226 + $0x377] sm:$0x1]
      %v4490 = vld [vmem:[%s226 + $0x387] sm:$0x1]
      %v4491 = vld [vmem:[%s226 + $0x397] sm:$0x1]
      %v4492 = vld [vmem:[%s226 + $0x3a7] sm:$0x1]
      %v4493 = vld [vmem:[%s226 + $0x3b7] sm:$0x1]
      %v4494 = vld [vmem:[%s226 + $0x3c7] sm:$0x1]
      %v4495 = vld [vmem:[%s226 + $0x3d7] sm:$0x1]
      %v4496 = vld [vmem:[%s226 + $0x3e7] sm:$0x1]
      %v4497 = vld [vmem:[%s226 + $0x3f7] sm:$0x1]
      %v4498 = vpack.c.bf16 %v4434, %v4434
      %v4499 = vpack.c.bf16 %v4435, %v4435
      %v4500 = vpack.c.bf16 %v4436, %v4436
      %v4501 = vpack.c.bf16 %v4437, %v4437
      %v4502 = vpack.c.bf16 %v4438, %v4438
      %v4503 = vpack.c.bf16 %v4439, %v4439
      %v4504 = vpack.c.bf16 %v4440, %v4440
      %v4505 = vpack.c.bf16 %v4441, %v4441
      %v4506 = vpack.c.bf16 %v4442, %v4442
      %v4507 = vpack.c.bf16 %v4443, %v4443
      %v4508 = vpack.c.bf16 %v4444, %v4444
      %v4509 = vpack.c.bf16 %v4445, %v4445
      %v4510 = vpack.c.bf16 %v4446, %v4446
      %v4511 = vpack.c.bf16 %v4447, %v4447
      %v4512 = vpack.c.bf16 %v4448, %v4448
      %v4513 = vpack.c.bf16 %v4449, %v4449
      %v4514 = vpack.c.bf16 %v4450, %v4450
      %v4515 = vpack.c.bf16 %v4451, %v4451
      %v4516 = vpack.c.bf16 %v4452, %v4452
      %v4517 = vpack.c.bf16 %v4453, %v4453
      %v4518 = vpack.c.bf16 %v4454, %v4454
      %v4519 = vpack.c.bf16 %v4455, %v4455
      %v4520 = vpack.c.bf16 %v4456, %v4456
      %v4521 = vpack.c.bf16 %v4457, %v4457
      %v4522 = vpack.c.bf16 %v4458, %v4458
      %v4523 = vpack.c.bf16 %v4459, %v4459
      %v4524 = vpack.c.bf16 %v4460, %v4460
      %v4525 = vpack.c.bf16 %v4461, %v4461
      %v4526 = vpack.c.bf16 %v4462, %v4462
      %v4527 = vpack.c.bf16 %v4463, %v4463
      %v4528 = vpack.c.bf16 %v4464, %v4464
      %v4529 = vpack.c.bf16 %v4465, %v4465
      %v4530 = vpack.c.bf16 %v4466, %v4466
      %v4531 = vpack.c.bf16 %v4467, %v4467
      %v4532 = vpack.c.bf16 %v4468, %v4468
      %v4533 = vpack.c.bf16 %v4469, %v4469
      %v4534 = vpack.c.bf16 %v4470, %v4470
      %v4535 = vpack.c.bf16 %v4471, %v4471
      %v4536 = vpack.c.bf16 %v4472, %v4472
      %v4537 = vpack.c.bf16 %v4473, %v4473
      %v4538 = vpack.c.bf16 %v4474, %v4474
      %v4539 = vpack.c.bf16 %v4475, %v4475
      %v4540 = vpack.c.bf16 %v4476, %v4476
      %v4541 = vpack.c.bf16 %v4477, %v4477
      %v4542 = vpack.c.bf16 %v4478, %v4478
      %v4543 = vpack.c.bf16 %v4479, %v4479
      %v4544 = vpack.c.bf16 %v4480, %v4480
      %v4545 = vpack.c.bf16 %v4481, %v4481
      %v4546 = vpack.c.bf16 %v4482, %v4482
      %v4547 = vpack.c.bf16 %v4483, %v4483
      %v4548 = vpack.c.bf16 %v4484, %v4484
      %v4549 = vpack.c.bf16 %v4485, %v4485
      %v4550 = vpack.c.bf16 %v4486, %v4486
      %v4551 = vpack.c.bf16 %v4487, %v4487
      %v4552 = vpack.c.bf16 %v4488, %v4488
      %v4553 = vpack.c.bf16 %v4489, %v4489
      %v4554 = vpack.c.bf16 %v4490, %v4490
      %v4555 = vpack.c.bf16 %v4491, %v4491
      %v4556 = vpack.c.bf16 %v4492, %v4492
      %v4557 = vpack.c.bf16 %v4493, %v4493
      %v4558 = vpack.c.bf16 %v4494, %v4494
      %v4559 = vpack.c.bf16 %v4495, %v4495
      %v4560 = vpack.c.bf16 %v4496, %v4496
      %v4561 = vpack.c.bf16 %v4497, %v4497
      %v4626 = vunpack.c.l.b16 %v4498
      %v4627 = vunpack.c.l.b16 %v4499
      %v4628 = vunpack.c.l.b16 %v4500
      %v4629 = vunpack.c.l.b16 %v4501
      %v4630 = vunpack.c.l.b16 %v4502
      %v4631 = vunpack.c.l.b16 %v4503
      %v4632 = vunpack.c.l.b16 %v4504
      %v4633 = vunpack.c.l.b16 %v4505
      %v4634 = vunpack.c.l.b16 %v4506
      %v4635 = vunpack.c.l.b16 %v4507
      %v4636 = vunpack.c.l.b16 %v4508
      %v4637 = vunpack.c.l.b16 %v4509
      %v4638 = vunpack.c.l.b16 %v4510
      %v4639 = vunpack.c.l.b16 %v4511
      %v4640 = vunpack.c.l.b16 %v4512
      %v4641 = vunpack.c.l.b16 %v4513
      %v4642 = vunpack.c.l.b16 %v4514
      %v4643 = vunpack.c.l.b16 %v4515
      %v4644 = vunpack.c.l.b16 %v4516
      %v4645 = vunpack.c.l.b16 %v4517
      %v4646 = vunpack.c.l.b16 %v4518
      %v4647 = vunpack.c.l.b16 %v4519
      %v4648 = vunpack.c.l.b16 %v4520
      %v4649 = vunpack.c.l.b16 %v4521
      %v4650 = vunpack.c.l.b16 %v4522
      %v4651 = vunpack.c.l.b16 %v4523
      %v4652 = vunpack.c.l.b16 %v4524
      %v4653 = vunpack.c.l.b16 %v4525
      %v4654 = vunpack.c.l.b16 %v4526
      %v4655 = vunpack.c.l.b16 %v4527
      %v4656 = vunpack.c.l.b16 %v4528
      %v4657 = vunpack.c.l.b16 %v4529
      %v4658 = vunpack.c.l.b16 %v4530
      %v4659 = vunpack.c.l.b16 %v4531
      %v4660 = vunpack.c.l.b16 %v4532
      %v4661 = vunpack.c.l.b16 %v4533
      %v4662 = vunpack.c.l.b16 %v4534
      %v4663 = vunpack.c.l.b16 %v4535
      %v4664 = vunpack.c.l.b16 %v4536
      %v4665 = vunpack.c.l.b16 %v4537
      %v4666 = vunpack.c.l.b16 %v4538
      %v4667 = vunpack.c.l.b16 %v4539
      %v4668 = vunpack.c.l.b16 %v4540
      %v4669 = vunpack.c.l.b16 %v4541
      %v4670 = vunpack.c.l.b16 %v4542
      %v4671 = vunpack.c.l.b16 %v4543
      %v4672 = vunpack.c.l.b16 %v4544
      %v4673 = vunpack.c.l.b16 %v4545
      %v4674 = vunpack.c.l.b16 %v4546
      %v4675 = vunpack.c.l.b16 %v4547
      %v4676 = vunpack.c.l.b16 %v4548
      %v4677 = vunpack.c.l.b16 %v4549
      %v4678 = vunpack.c.l.b16 %v4550
      %v4679 = vunpack.c.l.b16 %v4551
      %v4680 = vunpack.c.l.b16 %v4552
      %v4681 = vunpack.c.l.b16 %v4553
      %v4682 = vunpack.c.l.b16 %v4554
      %v4683 = vunpack.c.l.b16 %v4555
      %v4684 = vunpack.c.l.b16 %v4556
      %v4685 = vunpack.c.l.b16 %v4557
      %v4686 = vunpack.c.l.b16 %v4558
      %v4687 = vunpack.c.l.b16 %v4559
      %v4688 = vunpack.c.l.b16 %v4560
      %v4689 = vunpack.c.l.b16 %v4561
      %v4690 = vrot.slane %v4627, 7
      %v4691 = vsel %vm538, %v4690, %v4626
      %v4692 = vrot.slane %v4628, 6
      %v4693 = vsel %vm541, %v4692, %v4691
      %v4694 = vrot.slane %v4629, 5
      %v4695 = vsel %vm544, %v4694, %v4693
      %v4696 = vrot.slane %v4630, 4
      %v4697 = vsel %vm547, %v4696, %v4695
      %v4698 = vrot.slane %v4631, 3
      %v4699 = vsel %vm550, %v4698, %v4697
      %v4700 = vrot.slane %v4632, 2
      %v4701 = vsel %vm553, %v4700, %v4699
      %v4702 = vrot.slane %v4633, 1
      %v4703 = vsel %vm556, %v4702, %v4701
      %v4704 = vrot.slane %v4635, 7
      %v4705 = vsel %vm538, %v4704, %v4634
      %v4706 = vrot.slane %v4636, 6
      %v4707 = vsel %vm541, %v4706, %v4705
      %v4708 = vrot.slane %v4637, 5
      %v4709 = vsel %vm544, %v4708, %v4707
      %v4710 = vrot.slane %v4638, 4
      %v4711 = vsel %vm547, %v4710, %v4709
      %v4712 = vrot.slane %v4639, 3
      %v4713 = vsel %vm550, %v4712, %v4711
      %v4714 = vrot.slane %v4640, 2
      %v4715 = vsel %vm553, %v4714, %v4713
      %v4716 = vrot.slane %v4641, 1
      %v4717 = vsel %vm556, %v4716, %v4715
      %v4718 = vrot.slane %v4643, 7
      %v4719 = vsel %vm538, %v4718, %v4642
      %v4720 = vrot.slane %v4644, 6
      %v4721 = vsel %vm541, %v4720, %v4719
      %v4722 = vrot.slane %v4645, 5
      %v4723 = vsel %vm544, %v4722, %v4721
      %v4724 = vrot.slane %v4646, 4
      %v4725 = vsel %vm547, %v4724, %v4723
      %v4726 = vrot.slane %v4647, 3
      %v4727 = vsel %vm550, %v4726, %v4725
      %v4728 = vrot.slane %v4648, 2
      %v4729 = vsel %vm553, %v4728, %v4727
      %v4730 = vrot.slane %v4649, 1
      %v4731 = vsel %vm556, %v4730, %v4729
      %v4732 = vrot.slane %v4651, 7
      %v4733 = vsel %vm538, %v4732, %v4650
      %v4734 = vrot.slane %v4652, 6
      %v4735 = vsel %vm541, %v4734, %v4733
      %v4736 = vrot.slane %v4653, 5
      %v4737 = vsel %vm544, %v4736, %v4735
      %v4738 = vrot.slane %v4654, 4
      %v4739 = vsel %vm547, %v4738, %v4737
      %v4740 = vrot.slane %v4655, 3
      %v4741 = vsel %vm550, %v4740, %v4739
      %v4742 = vrot.slane %v4656, 2
      %v4743 = vsel %vm553, %v4742, %v4741
      %v4744 = vrot.slane %v4657, 1
      %v4745 = vsel %vm556, %v4744, %v4743
      %v4746 = vrot.slane %v4659, 7
      %v4747 = vsel %vm538, %v4746, %v4658
      %v4748 = vrot.slane %v4660, 6
      %v4749 = vsel %vm541, %v4748, %v4747
      %v4750 = vrot.slane %v4661, 5
      %v4751 = vsel %vm544, %v4750, %v4749
      %v4752 = vrot.slane %v4662, 4
      %v4753 = vsel %vm547, %v4752, %v4751
      %v4754 = vrot.slane %v4663, 3
      %v4755 = vsel %vm550, %v4754, %v4753
      %v4756 = vrot.slane %v4664, 2
      %v4757 = vsel %vm553, %v4756, %v4755
      %v4758 = vrot.slane %v4665, 1
      %v4759 = vsel %vm556, %v4758, %v4757
      %v4760 = vrot.slane %v4667, 7
      %v4761 = vsel %vm538, %v4760, %v4666
      %v4762 = vrot.slane %v4668, 6
      %v4763 = vsel %vm541, %v4762, %v4761
      %v4764 = vrot.slane %v4669, 5
      %v4765 = vsel %vm544, %v4764, %v4763
      %v4766 = vrot.slane %v4670, 4
      %v4767 = vsel %vm547, %v4766, %v4765
      %v4768 = vrot.slane %v4671, 3
      %v4769 = vsel %vm550, %v4768, %v4767
      %v4770 = vrot.slane %v4672, 2
      %v4771 = vsel %vm553, %v4770, %v4769
      %v4772 = vrot.slane %v4673, 1
      %v4773 = vsel %vm556, %v4772, %v4771
      %v4774 = vrot.slane %v4675, 7
      %v4775 = vsel %vm538, %v4774, %v4674
      %v4776 = vrot.slane %v4676, 6
      %v4777 = vsel %vm541, %v4776, %v4775
      %v4778 = vrot.slane %v4677, 5
      %v4779 = vsel %vm544, %v4778, %v4777
      %v4780 = vrot.slane %v4678, 4
      %v4781 = vsel %vm547, %v4780, %v4779
      %v4782 = vrot.slane %v4679, 3
      %v4783 = vsel %vm550, %v4782, %v4781
      %v4784 = vrot.slane %v4680, 2
      %v4785 = vsel %vm553, %v4784, %v4783
      %v4786 = vrot.slane %v4681, 1
      %v4787 = vsel %vm556, %v4786, %v4785
      %v4788 = vrot.slane %v4683, 7
      %v4789 = vsel %vm538, %v4788, %v4682
      %v4790 = vrot.slane %v4684, 6
      %v4791 = vsel %vm541, %v4790, %v4789
      %v4792 = vrot.slane %v4685, 5
      %v4793 = vsel %vm544, %v4792, %v4791
      %v4794 = vrot.slane %v4686, 4
      %v4795 = vsel %vm547, %v4794, %v4793
      %v4796 = vrot.slane %v4687, 3
      %v4797 = vsel %vm550, %v4796, %v4795
      %v4798 = vrot.slane %v4688, 2
      %v4799 = vsel %vm553, %v4798, %v4797
      %v4800 = vrot.slane %v4689, 1
      %v4801 = vsel %vm556, %v4800, %v4799
      %v4802 = vpack.c.b16 %v4717, %v4703
      %v4803 = vpack.c.b16 %v4745, %v4731
      %v4804 = vpack.c.b16 %v4773, %v4759
      %v4805 = vpack.c.b16 %v4801, %v4787
      %v4807 = vsel %vm666, %v4802, 0
      %v4810 = vsel %vm666, %v4803, 0
      %v4813 = vsel %vm666, %v4804, 0
      %v4816 = vsel %vm666, %v4805, 0
      %4818 = vmatprep.subr.bf16.mxu0 0
      %4819 = vmatpush1.bf16.msra.mxu0 %v664
      %4820 = vmatprep.subr.bf16.mxu0 0
      %4821 = vmatpush1.bf16.msra.mxu0 0
      %4822 = vmatprep.subr.bf16.mxu0 0
      %4823 = vmatpush1.bf16.msra.mxu0 0
      %4824 = vmatprep.subr.bf16.mxu0 0
      %4825 = vmatpush1.bf16.msra.mxu0 0
      %4826 = vmatprep.subr.bf16.mxu0 0
      %4827 = vmatpush1.bf16.msra.mxu0 0
      %4828 = vmatprep.subr.bf16.mxu0 0
      %4829 = vmatpush1.bf16.msra.mxu0 0
      %4830 = vmatprep.subr.bf16.mxu0 0
      %4831 = vmatpush1.bf16.msra.mxu0 0
      %4832 = vmatprep.subr.bf16.mxu0 0
      %4833 = vmatpush1.bf16.msra.mxu0 0
      %4834 = vmatprep.subr.bf16.mxu0 0
      %4835 = vmatpush1.bf16.msra.mxu0 0
      %4836 = vmatprep.subr.bf16.mxu0 0
      %4837 = vmatpush1.bf16.msra.mxu0 0
      %4838 = vmatprep.subr.bf16.mxu0 0
      %4839 = vmatpush1.bf16.msra.mxu0 0
      %4840 = vmatprep.subr.bf16.mxu0 0
      %4841 = vmatpush1.bf16.msra.mxu0 0
      %4842 = vmatprep.subr.bf16.mxu0 0
      %4843 = vmatpush1.bf16.msra.mxu0 0
      %4844 = vmatprep.subr.bf16.mxu0 0
      %4845 = vmatpush1.bf16.msra.mxu0 0
      %4846 = vmatprep.subr.bf16.mxu0 0
      %4847 = vmatpush1.bf16.msra.mxu0 0
      %4848 = vmatprep.subr.bf16.mxu0 0
      %4849 = vmatpush1.bf16.msra.mxu0 0
      %4850 = vmatprep.mubr.bf16.mxu0 0
      %4851 = vmatmul.mubr.bf16.gmra.mrb[0].mxu0 %v4807
      %v4852 = vpop.f32.mrb[0].mxu0
      %v4853 = vadd.f32 0.0, %v4852
      %v4854 = vpop.f32.mrb[0].mxu0
      %v4855 = vpop.f32.mrb[0].mxu0
      %v4856 = vadd.f32 0.0, %v4855
      %v4857 = vpop.f32.mrb[0].mxu0
      %4858 = vmatprep.mubr.bf16.mxu0 0
      %4859 = vmatmul.mubr.bf16.gmra.mrb[0].mxu0 %v4810
      %v4860 = vpop.f32.mrb[0].mxu0
      %v4861 = vadd.f32 0.0, %v4860
      %v4862 = vpop.f32.mrb[0].mxu0
      %v4863 = vpop.f32.mrb[0].mxu0
      %v4864 = vadd.f32 0.0, %v4863
      %v4865 = vpop.f32.mrb[0].mxu0
      %4866 = vmatprep.mubr.bf16.mxu0 0
      %4867 = vmatmul.mubr.bf16.gmra.mrb[0].mxu0 %v4813
      %v4868 = vpop.f32.mrb[0].mxu0
      %v4869 = vadd.f32 0.0, %v4868
      %v4870 = vpop.f32.mrb[0].mxu0
      %v4871 = vpop.f32.mrb[0].mxu0
      %v4872 = vadd.f32 0.0, %v4871
      %v4873 = vpop.f32.mrb[0].mxu0
      %4874 = vmatprep.mubr.bf16.mxu0 0
      %4875 = vmatmul.mubr.bf16.gmra.mrb[0].mxu0 %v4816
      %v4876 = vpop.f32.mrb[0].mxu0
      %v4877 = vadd.f32 0.0, %v4876
      %v4878 = vpop.f32.mrb[0].mxu0
      %v4879 = vpop.f32.mrb[0].mxu0
      %v4880 = vadd.f32 0.0, %v4879
      %v4881 = vpop.f32.mrb[0].mxu0
      %4882 = vdwg.mxu0
      %v4883 = vpack.c.bf16 %v4856, %v4853
      %v4884 = vpack.c.bf16 %v4864, %v4861
      %v4885 = vpack.c.bf16 %v4872, %v4869
      %v4886 = vpack.c.bf16 %v4880, %v4877
      %4887 = vmatprep.subr.bf16.mxu0 0
      %4888 = vmatpush1.bf16.msra.mxu0 %v4883
      %4889 = vmatprep.subr.bf16.mxu0 0
      %4890 = vmatpush1.bf16.msra.mxu0 %v4884
      %4891 = vmatprep.subr.bf16.mxu0 0
      %4892 = vmatpush1.bf16.msra.mxu0 %v4885
      %4893 = vmatprep.subr.bf16.mxu0 0
      %4894 = vmatpush1.bf16.msra.mxu0 %v4886
      %4895 = vmatprep.subr.bf16.mxu0 0
      %4896 = vmatpush1.bf16.msra.mxu0 0
      %4897 = vmatprep.subr.bf16.mxu0 0
      %4898 = vmatpush1.bf16.msra.mxu0 0
      %4899 = vmatprep.subr.bf16.mxu0 0
      %4900 = vmatpush1.bf16.msra.mxu0 0
      %4901 = vmatprep.subr.bf16.mxu0 0
      %4902 = vmatpush1.bf16.msra.mxu0 0
      %4903 = vmatprep.subr.bf16.mxu0 0
      %4904 = vmatpush1.bf16.msra.mxu0 0
      %4905 = vmatprep.subr.bf16.mxu0 0
      %4906 = vmatpush1.bf16.msra.mxu0 0
      %4907 = vmatprep.subr.bf16.mxu0 0
      %4908 = vmatpush1.bf16.msra.mxu0 0
      %4909 = vmatprep.subr.bf16.mxu0 0
      %4910 = vmatpush1.bf16.msra.mxu0 0
      %4911 = vmatprep.subr.bf16.mxu0 0
      %4912 = vmatpush1.bf16.msra.mxu0 0
      %4913 = vmatprep.subr.bf16.mxu0 0
      %4914 = vmatpush1.bf16.msra.mxu0 0
      %4915 = vmatprep.subr.bf16.mxu0 0
      %4916 = vmatpush1.bf16.msra.mxu0 0
      %4917 = vmatprep.subr.bf16.mxu0 0
      %4918 = vmatpush1.bf16.msra.mxu0 0
      %4919 = vmatprep.mubr.bf16.mxu0 0
      %4920 = vmatmul.mubr.bf16.gmra.mrb[0].mxu0 %v790
      %v4921 = vpop.f32.mrb[0].mxu0
      %v4922 = vadd.f32 0.0, %v4921
      %v4923 = vpop.f32.mrb[0].mxu0
      %v4924 = vpop.f32.mrb[0].mxu0
      %v4925 = vadd.f32 0.0, %v4924
      %v4926 = vpop.f32.mrb[0].mxu0
      %4927 = vmatprep.mubr.bf16.mxu0 0
      %4928 = vmatmul.mubr.bf16.gmra.mrb[0].mxu0 %v793
      %v4929 = vpop.f32.mrb[0].mxu0
      %v4930 = vadd.f32 0.0, %v4929
      %v4931 = vpop.f32.mrb[0].mxu0
      %v4932 = vpop.f32.mrb[0].mxu0
      %v4933 = vadd.f32 0.0, %v4932
      %v4934 = vpop.f32.mrb[0].mxu0
      %4935 = vmatprep.mubr.bf16.mxu0 0
      %4936 = vmatmul.mubr.bf16.gmra.mrb[0].mxu0 %v796
      %v4937 = vpop.f32.mrb[0].mxu0
      %v4938 = vadd.f32 0.0, %v4937
      %v4939 = vpop.f32.mrb[0].mxu0
      %v4940 = vpop.f32.mrb[0].mxu0
      %v4941 = vadd.f32 0.0, %v4940
      %v4942 = vpop.f32.mrb[0].mxu0
      %4943 = vmatprep.mubr.bf16.mxu0 0
      %4944 = vmatmul.mubr.bf16.gmra.mrb[0].mxu0 %v799
      %v4945 = vpop.f32.mrb[0].mxu0
      %v4946 = vadd.f32 0.0, %v4945
      %v4947 = vpop.f32.mrb[0].mxu0
      %v4948 = vpop.f32.mrb[0].mxu0
      %v4949 = vadd.f32 0.0, %v4948
      %v4950 = vpop.f32.mrb[0].mxu0
      %4951 = vmatprep.mubr.bf16.mxu0 0
      %4952 = vmatmul.mubr.bf16.gmra.mrb[0].mxu0 %v802
      %v4953 = vpop.f32.mrb[0].mxu0
      %v4954 = vadd.f32 0.0, %v4953
      %v4955 = vpop.f32.mrb[0].mxu0
      %v4956 = vpop.f32.mrb[0].mxu0
      %v4957 = vadd.f32 0.0, %v4956
      %v4958 = vpop.f32.mrb[0].mxu0
      %4959 = vmatprep.mubr.bf16.mxu0 0
      %4960 = vmatmul.mubr.bf16.gmra.mrb[0].mxu0 %v805
      %v4961 = vpop.f32.mrb[0].mxu0
      %v4962 = vadd.f32 0.0, %v4961
      %v4963 = vpop.f32.mrb[0].mxu0
      %v4964 = vpop.f32.mrb[0].mxu0
      %v4965 = vadd.f32 0.0, %v4964
      %v4966 = vpop.f32.mrb[0].mxu0
      %4967 = vmatprep.mubr.bf16.mxu0 0
      %4968 = vmatmul.mubr.bf16.gmra.mrb[0].mxu0 %v808
      %v4969 = vpop.f32.mrb[0].mxu0
      %v4970 = vadd.f32 0.0, %v4969
      %v4971 = vpop.f32.mrb[0].mxu0
      %v4972 = vpop.f32.mrb[0].mxu0
      %v4973 = vadd.f32 0.0, %v4972
      %v4974 = vpop.f32.mrb[0].mxu0
      %4975 = vmatprep.mubr.bf16.mxu0 0
      %4976 = vmatmul.mubr.bf16.gmra.mrb[0].mxu0 %v811
      %v4977 = vpop.f32.mrb[0].mxu0
      %v4978 = vadd.f32 0.0, %v4977
      %v4979 = vpop.f32.mrb[0].mxu0
      %v4980 = vpop.f32.mrb[0].mxu0
      %v4981 = vadd.f32 0.0, %v4980
      %v4982 = vpop.f32.mrb[0].mxu0
      %4983 = vdwg.mxu0
      %v4984 = vsel %vm911, %v4922, %v4954
      %v4985 = vsel %vm911, %v4925, %v4957
      %v4986 = vsel %vm911, %v4930, %v4962
      %v4987 = vsel %vm911, %v4933, %v4965
      %v4988 = vsel %vm911, %v4938, %v4970
      %v4989 = vsel %vm911, %v4941, %v4973
      %v4990 = vsel %vm911, %v4946, %v4978
      %v4991 = vsel %vm911, %v4949, %v4981
      %v4992 = vadd.f32 %v4984, %v923
      %v4993 = vadd.f32 %v4985, %v928
      %v4994 = vadd.f32 %v4986, %v933
      %v4995 = vadd.f32 %v4987, %v938
      %v4996 = vadd.f32 %v4988, %v943
      %v4997 = vadd.f32 %v4989, %v948
      %v4998 = vadd.f32 %v4990, %v953
      %v4999 = vadd.f32 %v4991, %v958
      %s5000 = scalar_lea.vmem %s237, 448
      %5001 = vst.msk [vmem:[%s5000] sm:$0xff] %vm968, %v4992
      %5002 = vst.msk [vmem:[%s5000 + $0x8] sm:$0xff] %vm968, %v4993
      %5003 = vst.msk [vmem:[%s5000 + $0x10] sm:$0xff] %vm968, %v4994
      %5004 = vst.msk [vmem:[%s5000 + $0x18] sm:$0xff] %vm968, %v4995
      %s5005 = scalar_lea.vmem %s237, 480
      %5006 = vst.msk [vmem:[%s5005] sm:$0xff] %vm968, %v4996
      %5007 = vst.msk [vmem:[%s5005 + $0x8] sm:$0xff] %vm968, %v4997
      %5008 = vst.msk [vmem:[%s5005 + $0x10] sm:$0xff] %vm968, %v4998
      %5009 = vst.msk [vmem:[%s5005 + $0x18] sm:$0xff] %vm968, %v4999
      %v5010 = vld [vmem:[%s226 + $0x8] sm:$0x1]
      %v5011 = vld [vmem:[%s226 + $0x18] sm:$0x1]
      %v5012 = vld [vmem:[%s226 + $0x28] sm:$0x1]
      %v5013 = vld [vmem:[%s226 + $0x38] sm:$0x1]
      %v5014 = vld [vmem:[%s226 + $0x48] sm:$0x1]
      %v5015 = vld [vmem:[%s226 + $0x58] sm:$0x1]
      %v5016 = vld [vmem:[%s226 + $0x68] sm:$0x1]
      %v5017 = vld [vmem:[%s226 + $0x78] sm:$0x1]
      %v5018 = vld [vmem:[%s226 + $0x88] sm:$0x1]
      %v5019 = vld [vmem:[%s226 + $0x98] sm:$0x1]
      %v5020 = vld [vmem:[%s226 + $0xa8] sm:$0x1]
      %v5021 = vld [vmem:[%s226 + $0xb8] sm:$0x1]
      %v5022 = vld [vmem:[%s226 + $0xc8] sm:$0x1]
      %v5023 = vld [vmem:[%s226 + $0xd8] sm:$0x1]
      %v5024 = vld [vmem:[%s226 + $0xe8] sm:$0x1]
      %v5025 = vld [vmem:[%s226 + $0xf8] sm:$0x1]
      %v5026 = vld [vmem:[%s226 + $0x108] sm:$0x1]
      %v5027 = vld [vmem:[%s226 + $0x118] sm:$0x1]
      %v5028 = vld [vmem:[%s226 + $0x128] sm:$0x1]
      %v5029 = vld [vmem:[%s226 + $0x138] sm:$0x1]
      %v5030 = vld [vmem:[%s226 + $0x148] sm:$0x1]
      %v5031 = vld [vmem:[%s226 + $0x158] sm:$0x1]
      %v5032 = vld [vmem:[%s226 + $0x168] sm:$0x1]
      %v5033 = vld [vmem:[%s226 + $0x178] sm:$0x1]
      %v5034 = vld [vmem:[%s226 + $0x188] sm:$0x1]
      %v5035 = vld [vmem:[%s226 + $0x198] sm:$0x1]
      %v5036 = vld [vmem:[%s226 + $0x1a8] sm:$0x1]
      %v5037 = vld [vmem:[%s226 + $0x1b8] sm:$0x1]
      %v5038 = vld [vmem:[%s226 + $0x1c8] sm:$0x1]
      %v5039 = vld [vmem:[%s226 + $0x1d8] sm:$0x1]
      %v5040 = vld [vmem:[%s226 + $0x1e8] sm:$0x1]
      %v5041 = vld [vmem:[%s226 + $0x1f8] sm:$0x1]
      %v5042 = vld [vmem:[%s226 + $0x208] sm:$0x1]
      %v5043 = vld [vmem:[%s226 + $0x218] sm:$0x1]
      %v5044 = vld [vmem:[%s226 + $0x228] sm:$0x1]
      %v5045 = vld [vmem:[%s226 + $0x238] sm:$0x1]
      %v5046 = vld [vmem:[%s226 + $0x248] sm:$0x1]
      %v5047 = vld [vmem:[%s226 + $0x258] sm:$0x1]
      %v5048 = vld [vmem:[%s226 + $0x268] sm:$0x1]
      %v5049 = vld [vmem:[%s226 + $0x278] sm:$0x1]
      %v5050 = vld [vmem:[%s226 + $0x288] sm:$0x1]
      %v5051 = vld [vmem:[%s226 + $0x298] sm:$0x1]
      %v5052 = vld [vmem:[%s226 + $0x2a8] sm:$0x1]
      %v5053 = vld [vmem:[%s226 + $0x2b8] sm:$0x1]
      %v5054 = vld [vmem:[%s226 + $0x2c8] sm:$0x1]
      %v5055 = vld [vmem:[%s226 + $0x2d8] sm:$0x1]
      %v5056 = vld [vmem:[%s226 + $0x2e8] sm:$0x1]
      %v5057 = vld [vmem:[%s226 + $0x2f8] sm:$0x1]
      %v5058 = vld [vmem:[%s226 + $0x308] sm:$0x1]
      %v5059 = vld [vmem:[%s226 + $0x318] sm:$0x1]
      %v5060 = vld [vmem:[%s226 + $0x328] sm:$0x1]
      %v5061 = vld [vmem:[%s226 + $0x338] sm:$0x1]
      %v5062 = vld [vmem:[%s226 + $0x348] sm:$0x1]
      %v5063 = vld [vmem:[%s226 + $0x358] sm:$0x1]
      %v5064 = vld [vmem:[%s226 + $0x368] sm:$0x1]
      %v5065 = vld [vmem:[%s226 + $0x378] sm:$0x1]
      %v5066 = vld [vmem:[%s226 + $0x388] sm:$0x1]
      %v5067 = vld [vmem:[%s226 + $0x398] sm:$0x1]
      %v5068 = vld [vmem:[%s226 + $0x3a8] sm:$0x1]
      %v5069 = vld [vmem:[%s226 + $0x3b8] sm:$0x1]
      %v5070 = vld [vmem:[%s226 + $0x3c8] sm:$0x1]
      %v5071 = vld [vmem:[%s226 + $0x3d8] sm:$0x1]
      %v5072 = vld [vmem:[%s226 + $0x3e8] sm:$0x1]
      %v5073 = vld [vmem:[%s226 + $0x3f8] sm:$0x1]
      %v5074 = vpack.c.bf16 %v5010, %v5010
      %v5075 = vpack.c.bf16 %v5011, %v5011
      %v5076 = vpack.c.bf16 %v5012, %v5012
      %v5077 = vpack.c.bf16 %v5013, %v5013
      %v5078 = vpack.c.bf16 %v5014, %v5014
      %v5079 = vpack.c.bf16 %v5015, %v5015
      %v5080 = vpack.c.bf16 %v5016, %v5016
      %v5081 = vpack.c.bf16 %v5017, %v5017
      %v5082 = vpack.c.bf16 %v5018, %v5018
      %v5083 = vpack.c.bf16 %v5019, %v5019
      %v5084 = vpack.c.bf16 %v5020, %v5020
      %v5085 = vpack.c.bf16 %v5021, %v5021
      %v5086 = vpack.c.bf16 %v5022, %v5022
      %v5087 = vpack.c.bf16 %v5023, %v5023
      %v5088 = vpack.c.bf16 %v5024, %v5024
      %v5089 = vpack.c.bf16 %v5025, %v5025
      %v5090 = vpack.c.bf16 %v5026, %v5026
      %v5091 = vpack.c.bf16 %v5027, %v5027
      %v5092 = vpack.c.bf16 %v5028, %v5028
      %v5093 = vpack.c.bf16 %v5029, %v5029
      %v5094 = vpack.c.bf16 %v5030, %v5030
      %v5095 = vpack.c.bf16 %v5031, %v5031
      %v5096 = vpack.c.bf16 %v5032, %v5032
      %v5097 = vpack.c.bf16 %v5033, %v5033
      %v5098 = vpack.c.bf16 %v5034, %v5034
      %v5099 = vpack.c.bf16 %v5035, %v5035
      %v5100 = vpack.c.bf16 %v5036, %v5036
      %v5101 = vpack.c.bf16 %v5037, %v5037
      %v5102 = vpack.c.bf16 %v5038, %v5038
      %v5103 = vpack.c.bf16 %v5039, %v5039
      %v5104 = vpack.c.bf16 %v5040, %v5040
      %v5105 = vpack.c.bf16 %v5041, %v5041
      %v5106 = vpack.c.bf16 %v5042, %v5042
      %v5107 = vpack.c.bf16 %v5043, %v5043
      %v5108 = vpack.c.bf16 %v5044, %v5044
      %v5109 = vpack.c.bf16 %v5045, %v5045
      %v5110 = vpack.c.bf16 %v5046, %v5046
      %v5111 = vpack.c.bf16 %v5047, %v5047
      %v5112 = vpack.c.bf16 %v5048, %v5048
      %v5113 = vpack.c.bf16 %v5049, %v5049
      %v5114 = vpack.c.bf16 %v5050, %v5050
      %v5115 = vpack.c.bf16 %v5051, %v5051
      %v5116 = vpack.c.bf16 %v5052, %v5052
      %v5117 = vpack.c.bf16 %v5053, %v5053
      %v5118 = vpack.c.bf16 %v5054, %v5054
      %v5119 = vpack.c.bf16 %v5055, %v5055
      %v5120 = vpack.c.bf16 %v5056, %v5056
      %v5121 = vpack.c.bf16 %v5057, %v5057
      %v5122 = vpack.c.bf16 %v5058, %v5058
      %v5123 = vpack.c.bf16 %v5059, %v5059
      %v5124 = vpack.c.bf16 %v5060, %v5060
      %v5125 = vpack.c.bf16 %v5061, %v5061
      %v5126 = vpack.c.bf16 %v5062, %v5062
      %v5127 = vpack.c.bf16 %v5063, %v5063
      %v5128 = vpack.c.bf16 %v5064, %v5064
      %v5129 = vpack.c.bf16 %v5065, %v5065
      %v5130 = vpack.c.bf16 %v5066, %v5066
      %v5131 = vpack.c.bf16 %v5067, %v5067
      %v5132 = vpack.c.bf16 %v5068, %v5068
      %v5133 = vpack.c.bf16 %v5069, %v5069
      %v5134 = vpack.c.bf16 %v5070, %v5070
      %v5135 = vpack.c.bf16 %v5071, %v5071
      %v5136 = vpack.c.bf16 %v5072, %v5072
      %v5137 = vpack.c.bf16 %v5073, %v5073
      %v5202 = vunpack.c.l.b16 %v5074
      %v5203 = vunpack.c.l.b16 %v5075
      %v5204 = vunpack.c.l.b16 %v5076
      %v5205 = vunpack.c.l.b16 %v5077
      %v5206 = vunpack.c.l.b16 %v5078
      %v5207 = vunpack.c.l.b16 %v5079
      %v5208 = vunpack.c.l.b16 %v5080
      %v5209 = vunpack.c.l.b16 %v5081
      %v5210 = vunpack.c.l.b16 %v5082
      %v5211 = vunpack.c.l.b16 %v5083
      %v5212 = vunpack.c.l.b16 %v5084
      %v5213 = vunpack.c.l.b16 %v5085
      %v5214 = vunpack.c.l.b16 %v5086
      %v5215 = vunpack.c.l.b16 %v5087
      %v5216 = vunpack.c.l.b16 %v5088
      %v5217 = vunpack.c.l.b16 %v5089
      %v5218 = vunpack.c.l.b16 %v5090
      %v5219 = vunpack.c.l.b16 %v5091
      %v5220 = vunpack.c.l.b16 %v5092
      %v5221 = vunpack.c.l.b16 %v5093
      %v5222 = vunpack.c.l.b16 %v5094
      %v5223 = vunpack.c.l.b16 %v5095
      %v5224 = vunpack.c.l.b16 %v5096
      %v5225 = vunpack.c.l.b16 %v5097
      %v5226 = vunpack.c.l.b16 %v5098
      %v5227 = vunpack.c.l.b16 %v5099
      %v5228 = vunpack.c.l.b16 %v5100
      %v5229 = vunpack.c.l.b16 %v5101
      %v5230 = vunpack.c.l.b16 %v5102
      %v5231 = vunpack.c.l.b16 %v5103
      %v5232 = vunpack.c.l.b16 %v5104
      %v5233 = vunpack.c.l.b16 %v5105
      %v5234 = vunpack.c.l.b16 %v5106
      %v5235 = vunpack.c.l.b16 %v5107
      %v5236 = vunpack.c.l.b16 %v5108
      %v5237 = vunpack.c.l.b16 %v5109
      %v5238 = vunpack.c.l.b16 %v5110
      %v5239 = vunpack.c.l.b16 %v5111
      %v5240 = vunpack.c.l.b16 %v5112
      %v5241 = vunpack.c.l.b16 %v5113
      %v5242 = vunpack.c.l.b16 %v5114
      %v5243 = vunpack.c.l.b16 %v5115
      %v5244 = vunpack.c.l.b16 %v5116
      %v5245 = vunpack.c.l.b16 %v5117
      %v5246 = vunpack.c.l.b16 %v5118
      %v5247 = vunpack.c.l.b16 %v5119
      %v5248 = vunpack.c.l.b16 %v5120
      %v5249 = vunpack.c.l.b16 %v5121
      %v5250 = vunpack.c.l.b16 %v5122
      %v5251 = vunpack.c.l.b16 %v5123
      %v5252 = vunpack.c.l.b16 %v5124
      %v5253 = vunpack.c.l.b16 %v5125
      %v5254 = vunpack.c.l.b16 %v5126
      %v5255 = vunpack.c.l.b16 %v5127
      %v5256 = vunpack.c.l.b16 %v5128
      %v5257 = vunpack.c.l.b16 %v5129
      %v5258 = vunpack.c.l.b16 %v5130
      %v5259 = vunpack.c.l.b16 %v5131
      %v5260 = vunpack.c.l.b16 %v5132
      %v5261 = vunpack.c.l.b16 %v5133
      %v5262 = vunpack.c.l.b16 %v5134
      %v5263 = vunpack.c.l.b16 %v5135
      %v5264 = vunpack.c.l.b16 %v5136
      %v5265 = vunpack.c.l.b16 %v5137
      %v5266 = vrot.slane %v5203, 7
      %v5267 = vsel %vm538, %v5266, %v5202
      %v5268 = vrot.slane %v5204, 6
      %v5269 = vsel %vm541, %v5268, %v5267
      %v5270 = vrot.slane %v5205, 5
      %v5271 = vsel %vm544, %v5270, %v5269
      %v5272 = vrot.slane %v5206, 4
      %v5273 = vsel %vm547, %v5272, %v5271
      %v5274 = vrot.slane %v5207, 3
      %v5275 = vsel %vm550, %v5274, %v5273
      %v5276 = vrot.slane %v5208, 2
      %v5277 = vsel %vm553, %v5276, %v5275
      %v5278 = vrot.slane %v5209, 1
      %v5279 = vsel %vm556, %v5278, %v5277
      %v5280 = vrot.slane %v5211, 7
      %v5281 = vsel %vm538, %v5280, %v5210
      %v5282 = vrot.slane %v5212, 6
      %v5283 = vsel %vm541, %v5282, %v5281
      %v5284 = vrot.slane %v5213, 5
      %v5285 = vsel %vm544, %v5284, %v5283
      %v5286 = vrot.slane %v5214, 4
      %v5287 = vsel %vm547, %v5286, %v5285
      %v5288 = vrot.slane %v5215, 3
      %v5289 = vsel %vm550, %v5288, %v5287
      %v5290 = vrot.slane %v5216, 2
      %v5291 = vsel %vm553, %v5290, %v5289
      %v5292 = vrot.slane %v5217, 1
      %v5293 = vsel %vm556, %v5292, %v5291
      %v5294 = vrot.slane %v5219, 7
      %v5295 = vsel %vm538, %v5294, %v5218
      %v5296 = vrot.slane %v5220, 6
      %v5297 = vsel %vm541, %v5296, %v5295
      %v5298 = vrot.slane %v5221, 5
      %v5299 = vsel %vm544, %v5298, %v5297
      %v5300 = vrot.slane %v5222, 4
      %v5301 = vsel %vm547, %v5300, %v5299
      %v5302 = vrot.slane %v5223, 3
      %v5303 = vsel %vm550, %v5302, %v5301
      %v5304 = vrot.slane %v5224, 2
      %v5305 = vsel %vm553, %v5304, %v5303
      %v5306 = vrot.slane %v5225, 1
      %v5307 = vsel %vm556, %v5306, %v5305
      %v5308 = vrot.slane %v5227, 7
      %v5309 = vsel %vm538, %v5308, %v5226
      %v5310 = vrot.slane %v5228, 6
      %v5311 = vsel %vm541, %v5310, %v5309
      %v5312 = vrot.slane %v5229, 5
      %v5313 = vsel %vm544, %v5312, %v5311
      %v5314 = vrot.slane %v5230, 4
      %v5315 = vsel %vm547, %v5314, %v5313
      %v5316 = vrot.slane %v5231, 3
      %v5317 = vsel %vm550, %v5316, %v5315
      %v5318 = vrot.slane %v5232, 2
      %v5319 = vsel %vm553, %v5318, %v5317
      %v5320 = vrot.slane %v5233, 1
      %v5321 = vsel %vm556, %v5320, %v5319
      %v5322 = vrot.slane %v5235, 7
      %v5323 = vsel %vm538, %v5322, %v5234
      %v5324 = vrot.slane %v5236, 6
      %v5325 = vsel %vm541, %v5324, %v5323
      %v5326 = vrot.slane %v5237, 5
      %v5327 = vsel %vm544, %v5326, %v5325
      %v5328 = vrot.slane %v5238, 4
      %v5329 = vsel %vm547, %v5328, %v5327
      %v5330 = vrot.slane %v5239, 3
      %v5331 = vsel %vm550, %v5330, %v5329
      %v5332 = vrot.slane %v5240, 2
      %v5333 = vsel %vm553, %v5332, %v5331
      %v5334 = vrot.slane %v5241, 1
      %v5335 = vsel %vm556, %v5334, %v5333
      %v5336 = vrot.slane %v5243, 7
      %v5337 = vsel %vm538, %v5336, %v5242
      %v5338 = vrot.slane %v5244, 6
      %v5339 = vsel %vm541, %v5338, %v5337
      %v5340 = vrot.slane %v5245, 5
      %v5341 = vsel %vm544, %v5340, %v5339
      %v5342 = vrot.slane %v5246, 4
      %v5343 = vsel %vm547, %v5342, %v5341
      %v5344 = vrot.slane %v5247, 3
      %v5345 = vsel %vm550, %v5344, %v5343
      %v5346 = vrot.slane %v5248, 2
      %v5347 = vsel %vm553, %v5346, %v5345
      %v5348 = vrot.slane %v5249, 1
      %v5349 = vsel %vm556, %v5348, %v5347
      %v5350 = vrot.slane %v5251, 7
      %v5351 = vsel %vm538, %v5350, %v5250
      %v5352 = vrot.slane %v5252, 6
      %v5353 = vsel %vm541, %v5352, %v5351
      %v5354 = vrot.slane %v5253, 5
      %v5355 = vsel %vm544, %v5354, %v5353
      %v5356 = vrot.slane %v5254, 4
      %v5357 = vsel %vm547, %v5356, %v5355
      %v5358 = vrot.slane %v5255, 3
      %v5359 = vsel %vm550, %v5358, %v5357
      %v5360 = vrot.slane %v5256, 2
      %v5361 = vsel %vm553, %v5360, %v5359
      %v5362 = vrot.slane %v5257, 1
      %v5363 = vsel %vm556, %v5362, %v5361
      %v5364 = vrot.slane %v5259, 7
      %v5365 = vsel %vm538, %v5364, %v5258
      %v5366 = vrot.slane %v5260, 6
      %v5367 = vsel %vm541, %v5366, %v5365
      %v5368 = vrot.slane %v5261, 5
      %v5369 = vsel %vm544, %v5368, %v5367
      %v5370 = vrot.slane %v5262, 4
      %v5371 = vsel %vm547, %v5370, %v5369
      %v5372 = vrot.slane %v5263, 3
      %v5373 = vsel %vm550, %v5372, %v5371
      %v5374 = vrot.slane %v5264, 2
      %v5375 = vsel %vm553, %v5374, %v5373
      %v5376 = vrot.slane %v5265, 1
      %v5377 = vsel %vm556, %v5376, %v5375
      %v5378 = vpack.c.b16 %v5293, %v5279
      %v5379 = vpack.c.b16 %v5321, %v5307
      %v5380 = vpack.c.b16 %v5349, %v5335
      %v5381 = vpack.c.b16 %v5377, %v5363
      %v5383 = vsel %vm666, %v5378, 0
      %v5386 = vsel %vm666, %v5379, 0
      %v5389 = vsel %vm666, %v5380, 0
      %v5392 = vsel %vm666, %v5381, 0
      %5394 = vmatprep.subr.bf16.mxu0 0
      %5395 = vmatpush1.bf16.msra.mxu0 %v664
      %5396 = vmatprep.subr.bf16.mxu0 0
      %5397 = vmatpush1.bf16.msra.mxu0 0
      %5398 = vmatprep.subr.bf16.mxu0 0
      %5399 = vmatpush1.bf16.msra.mxu0 0
      %5400 = vmatprep.subr.bf16.mxu0 0
      %5401 = vmatpush1.bf16.msra.mxu0 0
      %5402 = vmatprep.subr.bf16.mxu0 0
      %5403 = vmatpush1.bf16.msra.mxu0 0
      %5404 = vmatprep.subr.bf16.mxu0 0
      %5405 = vmatpush1.bf16.msra.mxu0 0
      %5406 = vmatprep.subr.bf16.mxu0 0
      %5407 = vmatpush1.bf16.msra.mxu0 0
      %5408 = vmatprep.subr.bf16.mxu0 0
      %5409 = vmatpush1.bf16.msra.mxu0 0
      %5410 = vmatprep.subr.bf16.mxu0 0
      %5411 = vmatpush1.bf16.msra.mxu0 0
      %5412 = vmatprep.subr.bf16.mxu0 0
      %5413 = vmatpush1.bf16.msra.mxu0 0
      %5414 = vmatprep.subr.bf16.mxu0 0
      %5415 = vmatpush1.bf16.msra.mxu0 0
      %5416 = vmatprep.subr.bf16.mxu0 0
      %5417 = vmatpush1.bf16.msra.mxu0 0
      %5418 = vmatprep.subr.bf16.mxu0 0
      %5419 = vmatpush1.bf16.msra.mxu0 0
      %5420 = vmatprep.subr.bf16.mxu0 0
      %5421 = vmatpush1.bf16.msra.mxu0 0
      %5422 = vmatprep.subr.bf16.mxu0 0
      %5423 = vmatpush1.bf16.msra.mxu0 0
      %5424 = vmatprep.subr.bf16.mxu0 0
      %5425 = vmatpush1.bf16.msra.mxu0 0
      %5426 = vmatprep.mubr.bf16.mxu0 0
      %5427 = vmatmul.mubr.bf16.gmra.mrb[0].mxu0 %v5383
      %v5428 = vpop.f32.mrb[0].mxu0
      %v5429 = vadd.f32 0.0, %v5428
      %v5430 = vpop.f32.mrb[0].mxu0
      %v5431 = vpop.f32.mrb[0].mxu0
      %v5432 = vadd.f32 0.0, %v5431
      %v5433 = vpop.f32.mrb[0].mxu0
      %5434 = vmatprep.mubr.bf16.mxu0 0
      %5435 = vmatmul.mubr.bf16.gmra.mrb[0].mxu0 %v5386
      %v5436 = vpop.f32.mrb[0].mxu0
      %v5437 = vadd.f32 0.0, %v5436
      %v5438 = vpop.f32.mrb[0].mxu0
      %v5439 = vpop.f32.mrb[0].mxu0
      %v5440 = vadd.f32 0.0, %v5439
      %v5441 = vpop.f32.mrb[0].mxu0
      %5442 = vmatprep.mubr.bf16.mxu0 0
      %5443 = vmatmul.mubr.bf16.gmra.mrb[0].mxu0 %v5389
      %v5444 = vpop.f32.mrb[0].mxu0
      %v5445 = vadd.f32 0.0, %v5444
      %v5446 = vpop.f32.mrb[0].mxu0
      %v5447 = vpop.f32.mrb[0].mxu0
      %v5448 = vadd.f32 0.0, %v5447
      %v5449 = vpop.f32.mrb[0].mxu0
      %5450 = vmatprep.mubr.bf16.mxu0 0
      %5451 = vmatmul.mubr.bf16.gmra.mrb[0].mxu0 %v5392
      %v5452 = vpop.f32.mrb[0].mxu0
      %v5453 = vadd.f32 0.0, %v5452
      %v5454 = vpop.f32.mrb[0].mxu0
      %v5455 = vpop.f32.mrb[0].mxu0
      %v5456 = vadd.f32 0.0, %v5455
      %v5457 = vpop.f32.mrb[0].mxu0
      %5458 = vdwg.mxu0
      %v5459 = vpack.c.bf16 %v5432, %v5429
      %v5460 = vpack.c.bf16 %v5440, %v5437
      %v5461 = vpack.c.bf16 %v5448, %v5445
      %v5462 = vpack.c.bf16 %v5456, %v5453
      %5463 = vmatprep.subr.bf16.mxu0 0
      %5464 = vmatpush1.bf16.msra.mxu0 %v5459
      %5465 = vmatprep.subr.bf16.mxu0 0
      %5466 = vmatpush1.bf16.msra.mxu0 %v5460
      %5467 = vmatprep.subr.bf16.mxu0 0
      %5468 = vmatpush1.bf16.msra.mxu0 %v5461
      %5469 = vmatprep.subr.bf16.mxu0 0
      %5470 = vmatpush1.bf16.msra.mxu0 %v5462
      %5471 = vmatprep.subr.bf16.mxu0 0
      %5472 = vmatpush1.bf16.msra.mxu0 0
      %5473 = vmatprep.subr.bf16.mxu0 0
      %5474 = vmatpush1.bf16.msra.mxu0 0
      %5475 = vmatprep.subr.bf16.mxu0 0
      %5476 = vmatpush1.bf16.msra.mxu0 0
      %5477 = vmatprep.subr.bf16.mxu0 0
      %5478 = vmatpush1.bf16.msra.mxu0 0
      %5479 = vmatprep.subr.bf16.mxu0 0
      %5480 = vmatpush1.bf16.msra.mxu0 0
      %5481 = vmatprep.subr.bf16.mxu0 0
      %5482 = vmatpush1.bf16.msra.mxu0 0
      %5483 = vmatprep.subr.bf16.mxu0 0
      %5484 = vmatpush1.bf16.msra.mxu0 0
      %5485 = vmatprep.subr.bf16.mxu0 0
      %5486 = vmatpush1.bf16.msra.mxu0 0
      %5487 = vmatprep.subr.bf16.mxu0 0
      %5488 = vmatpush1.bf16.msra.mxu0 0
      %5489 = vmatprep.subr.bf16.mxu0 0
      %5490 = vmatpush1.bf16.msra.mxu0 0
      %5491 = vmatprep.subr.bf16.mxu0 0
      %5492 = vmatpush1.bf16.msra.mxu0 0
      %5493 = vmatprep.subr.bf16.mxu0 0
      %5494 = vmatpush1.bf16.msra.mxu0 0
      %5495 = vmatprep.mubr.bf16.mxu0 0
      %5496 = vmatmul.mubr.bf16.gmra.mrb[0].mxu0 %v790
      %v5497 = vpop.f32.mrb[0].mxu0
      %v5498 = vadd.f32 0.0, %v5497
      %v5499 = vpop.f32.mrb[0].mxu0
      %v5500 = vpop.f32.mrb[0].mxu0
      %v5501 = vadd.f32 0.0, %v5500
      %v5502 = vpop.f32.mrb[0].mxu0
      %5503 = vmatprep.mubr.bf16.mxu0 0
      %5504 = vmatmul.mubr.bf16.gmra.mrb[0].mxu0 %v793
      %v5505 = vpop.f32.mrb[0].mxu0
      %v5506 = vadd.f32 0.0, %v5505
      %v5507 = vpop.f32.mrb[0].mxu0
      %v5508 = vpop.f32.mrb[0].mxu0
      %v5509 = vadd.f32 0.0, %v5508
      %v5510 = vpop.f32.mrb[0].mxu0
      %5511 = vmatprep.mubr.bf16.mxu0 0
      %5512 = vmatmul.mubr.bf16.gmra.mrb[0].mxu0 %v796
      %v5513 = vpop.f32.mrb[0].mxu0
      %v5514 = vadd.f32 0.0, %v5513
      %v5515 = vpop.f32.mrb[0].mxu0
      %v5516 = vpop.f32.mrb[0].mxu0
      %v5517 = vadd.f32 0.0, %v5516
      %v5518 = vpop.f32.mrb[0].mxu0
      %5519 = vmatprep.mubr.bf16.mxu0 0
      %5520 = vmatmul.mubr.bf16.gmra.mrb[0].mxu0 %v799
      %v5521 = vpop.f32.mrb[0].mxu0
      %v5522 = vadd.f32 0.0, %v5521
      %v5523 = vpop.f32.mrb[0].mxu0
      %v5524 = vpop.f32.mrb[0].mxu0
      %v5525 = vadd.f32 0.0, %v5524
      %v5526 = vpop.f32.mrb[0].mxu0
      %5527 = vmatprep.mubr.bf16.mxu0 0
      %5528 = vmatmul.mubr.bf16.gmra.mrb[0].mxu0 %v802
      %v5529 = vpop.f32.mrb[0].mxu0
      %v5530 = vadd.f32 0.0, %v5529
      %v5531 = vpop.f32.mrb[0].mxu0
      %v5532 = vpop.f32.mrb[0].mxu0
      %v5533 = vadd.f32 0.0, %v5532
      %v5534 = vpop.f32.mrb[0].mxu0
      %5535 = vmatprep.mubr.bf16.mxu0 0
      %5536 = vmatmul.mubr.bf16.gmra.mrb[0].mxu0 %v805
      %v5537 = vpop.f32.mrb[0].mxu0
      %v5538 = vadd.f32 0.0, %v5537
      %v5539 = vpop.f32.mrb[0].mxu0
      %v5540 = vpop.f32.mrb[0].mxu0
      %v5541 = vadd.f32 0.0, %v5540
      %v5542 = vpop.f32.mrb[0].mxu0
      %5543 = vmatprep.mubr.bf16.mxu0 0
      %5544 = vmatmul.mubr.bf16.gmra.mrb[0].mxu0 %v808
      %v5545 = vpop.f32.mrb[0].mxu0
      %v5546 = vadd.f32 0.0, %v5545
      %v5547 = vpop.f32.mrb[0].mxu0
      %v5548 = vpop.f32.mrb[0].mxu0
      %v5549 = vadd.f32 0.0, %v5548
      %v5550 = vpop.f32.mrb[0].mxu0
      %5551 = vmatprep.mubr.bf16.mxu0 0
      %5552 = vmatmul.mubr.bf16.gmra.mrb[0].mxu0 %v811
      %v5553 = vpop.f32.mrb[0].mxu0
      %v5554 = vadd.f32 0.0, %v5553
      %v5555 = vpop.f32.mrb[0].mxu0
      %v5556 = vpop.f32.mrb[0].mxu0
      %v5557 = vadd.f32 0.0, %v5556
      %v5558 = vpop.f32.mrb[0].mxu0
      %5559 = vdwg.mxu0
      %v5560 = vsel %vm911, %v5498, %v5530
      %v5561 = vsel %vm911, %v5501, %v5533
      %v5562 = vsel %vm911, %v5506, %v5538
      %v5563 = vsel %vm911, %v5509, %v5541
      %v5564 = vsel %vm911, %v5514, %v5546
      %v5565 = vsel %vm911, %v5517, %v5549
      %v5566 = vsel %vm911, %v5522, %v5554
      %v5567 = vsel %vm911, %v5525, %v5557
      %v5568 = vadd.f32 %v5560, %v923
      %v5569 = vadd.f32 %v5561, %v928
      %v5570 = vadd.f32 %v5562, %v933
      %v5571 = vadd.f32 %v5563, %v938
      %v5572 = vadd.f32 %v5564, %v943
      %v5573 = vadd.f32 %v5565, %v948
      %v5574 = vadd.f32 %v5566, %v953
      %v5575 = vadd.f32 %v5567, %v958
      %s5576 = scalar_lea.vmem %s237, 512
      %5577 = vst.msk [vmem:[%s5576] sm:$0xff] %vm968, %v5568
      %5578 = vst.msk [vmem:[%s5576 + $0x8] sm:$0xff] %vm968, %v5569
      %5579 = vst.msk [vmem:[%s5576 + $0x10] sm:$0xff] %vm968, %v5570
      %5580 = vst.msk [vmem:[%s5576 + $0x18] sm:$0xff] %vm968, %v5571
      %s5581 = scalar_lea.vmem %s237, 544
      %5582 = vst.msk [vmem:[%s5581] sm:$0xff] %vm968, %v5572
      %5583 = vst.msk [vmem:[%s5581 + $0x8] sm:$0xff] %vm968, %v5573
      %5584 = vst.msk [vmem:[%s5581 + $0x10] sm:$0xff] %vm968, %v5574
      %5585 = vst.msk [vmem:[%s5581 + $0x18] sm:$0xff] %vm968, %v5575
      %v5586 = vld [vmem:[%s226 + $0x9] sm:$0x1]
      %v5587 = vld [vmem:[%s226 + $0x19] sm:$0x1]
      %v5588 = vld [vmem:[%s226 + $0x29] sm:$0x1]
      %v5589 = vld [vmem:[%s226 + $0x39] sm:$0x1]
      %v5590 = vld [vmem:[%s226 + $0x49] sm:$0x1]
      %v5591 = vld [vmem:[%s226 + $0x59] sm:$0x1]
      %v5592 = vld [vmem:[%s226 + $0x69] sm:$0x1]
      %v5593 = vld [vmem:[%s226 + $0x79] sm:$0x1]
      %v5594 = vld [vmem:[%s226 + $0x89] sm:$0x1]
      %v5595 = vld [vmem:[%s226 + $0x99] sm:$0x1]
      %v5596 = vld [vmem:[%s226 + $0xa9] sm:$0x1]
      %v5597 = vld [vmem:[%s226 + $0xb9] sm:$0x1]
      %v5598 = vld [vmem:[%s226 + $0xc9] sm:$0x1]
      %v5599 = vld [vmem:[%s226 + $0xd9] sm:$0x1]
      %v5600 = vld [vmem:[%s226 + $0xe9] sm:$0x1]
      %v5601 = vld [vmem:[%s226 + $0xf9] sm:$0x1]
      %v5602 = vld [vmem:[%s226 + $0x109] sm:$0x1]
      %v5603 = vld [vmem:[%s226 + $0x119] sm:$0x1]
      %v5604 = vld [vmem:[%s226 + $0x129] sm:$0x1]
      %v5605 = vld [vmem:[%s226 + $0x139] sm:$0x1]
      %v5606 = vld [vmem:[%s226 + $0x149] sm:$0x1]
      %v5607 = vld [vmem:[%s226 + $0x159] sm:$0x1]
      %v5608 = vld [vmem:[%s226 + $0x169] sm:$0x1]
      %v5609 = vld [vmem:[%s226 + $0x179] sm:$0x1]
      %v5610 = vld [vmem:[%s226 + $0x189] sm:$0x1]
      %v5611 = vld [vmem:[%s226 + $0x199] sm:$0x1]
      %v5612 = vld [vmem:[%s226 + $0x1a9] sm:$0x1]
      %v5613 = vld [vmem:[%s226 + $0x1b9] sm:$0x1]
      %v5614 = vld [vmem:[%s226 + $0x1c9] sm:$0x1]
      %v5615 = vld [vmem:[%s226 + $0x1d9] sm:$0x1]
      %v5616 = vld [vmem:[%s226 + $0x1e9] sm:$0x1]
      %v5617 = vld [vmem:[%s226 + $0x1f9] sm:$0x1]
      %v5618 = vld [vmem:[%s226 + $0x209] sm:$0x1]
      %v5619 = vld [vmem:[%s226 + $0x219] sm:$0x1]
      %v5620 = vld [vmem:[%s226 + $0x229] sm:$0x1]
      %v5621 = vld [vmem:[%s226 + $0x239] sm:$0x1]
      %v5622 = vld [vmem:[%s226 + $0x249] sm:$0x1]
      %v5623 = vld [vmem:[%s226 + $0x259] sm:$0x1]
      %v5624 = vld [vmem:[%s226 + $0x269] sm:$0x1]
      %v5625 = vld [vmem:[%s226 + $0x279] sm:$0x1]
      %v5626 = vld [vmem:[%s226 + $0x289] sm:$0x1]
      %v5627 = vld [vmem:[%s226 + $0x299] sm:$0x1]
      %v5628 = vld [vmem:[%s226 + $0x2a9] sm:$0x1]
      %v5629 = vld [vmem:[%s226 + $0x2b9] sm:$0x1]
      %v5630 = vld [vmem:[%s226 + $0x2c9] sm:$0x1]
      %v5631 = vld [vmem:[%s226 + $0x2d9] sm:$0x1]
      %v5632 = vld [vmem:[%s226 + $0x2e9] sm:$0x1]
      %v5633 = vld [vmem:[%s226 + $0x2f9] sm:$0x1]
      %v5634 = vld [vmem:[%s226 + $0x309] sm:$0x1]
      %v5635 = vld [vmem:[%s226 + $0x319] sm:$0x1]
      %v5636 = vld [vmem:[%s226 + $0x329] sm:$0x1]
      %v5637 = vld [vmem:[%s226 + $0x339] sm:$0x1]
      %v5638 = vld [vmem:[%s226 + $0x349] sm:$0x1]
      %v5639 = vld [vmem:[%s226 + $0x359] sm:$0x1]
      %v5640 = vld [vmem:[%s226 + $0x369] sm:$0x1]
      %v5641 = vld [vmem:[%s226 + $0x379] sm:$0x1]
      %v5642 = vld [vmem:[%s226 + $0x389] sm:$0x1]
      %v5643 = vld [vmem:[%s226 + $0x399] sm:$0x1]
      %v5644 = vld [vmem:[%s226 + $0x3a9] sm:$0x1]
      %v5645 = vld [vmem:[%s226 + $0x3b9] sm:$0x1]
      %v5646 = vld [vmem:[%s226 + $0x3c9] sm:$0x1]
      %v5647 = vld [vmem:[%s226 + $0x3d9] sm:$0x1]
      %v5648 = vld [vmem:[%s226 + $0x3e9] sm:$0x1]
      %v5649 = vld [vmem:[%s226 + $0x3f9] sm:$0x1]
      %v5650 = vpack.c.bf16 %v5586, %v5586
      %v5651 = vpack.c.bf16 %v5587, %v5587
      %v5652 = vpack.c.bf16 %v5588, %v5588
      %v5653 = vpack.c.bf16 %v5589, %v5589
      %v5654 = vpack.c.bf16 %v5590, %v5590
      %v5655 = vpack.c.bf16 %v5591, %v5591
      %v5656 = vpack.c.bf16 %v5592, %v5592
      %v5657 = vpack.c.bf16 %v5593, %v5593
      %v5658 = vpack.c.bf16 %v5594, %v5594
      %v5659 = vpack.c.bf16 %v5595, %v5595
      %v5660 = vpack.c.bf16 %v5596, %v5596
      %v5661 = vpack.c.bf16 %v5597, %v5597
      %v5662 = vpack.c.bf16 %v5598, %v5598
      %v5663 = vpack.c.bf16 %v5599, %v5599
      %v5664 = vpack.c.bf16 %v5600, %v5600
      %v5665 = vpack.c.bf16 %v5601, %v5601
      %v5666 = vpack.c.bf16 %v5602, %v5602
      %v5667 = vpack.c.bf16 %v5603, %v5603
      %v5668 = vpack.c.bf16 %v5604, %v5604
      %v5669 = vpack.c.bf16 %v5605, %v5605
      %v5670 = vpack.c.bf16 %v5606, %v5606
      %v5671 = vpack.c.bf16 %v5607, %v5607
      %v5672 = vpack.c.bf16 %v5608, %v5608
      %v5673 = vpack.c.bf16 %v5609, %v5609
      %v5674 = vpack.c.bf16 %v5610, %v5610
      %v5675 = vpack.c.bf16 %v5611, %v5611
      %v5676 = vpack.c.bf16 %v5612, %v5612
      %v5677 = vpack.c.bf16 %v5613, %v5613
      %v5678 = vpack.c.bf16 %v5614, %v5614
      %v5679 = vpack.c.bf16 %v5615, %v5615
      %v5680 = vpack.c.bf16 %v5616, %v5616
      %v5681 = vpack.c.bf16 %v5617, %v5617
      %v5682 = vpack.c.bf16 %v5618, %v5618
      %v5683 = vpack.c.bf16 %v5619, %v5619
      %v5684 = vpack.c.bf16 %v5620, %v5620
      %v5685 = vpack.c.bf16 %v5621, %v5621
      %v5686 = vpack.c.bf16 %v5622, %v5622
      %v5687 = vpack.c.bf16 %v5623, %v5623
      %v5688 = vpack.c.bf16 %v5624, %v5624
      %v5689 = vpack.c.bf16 %v5625, %v5625
      %v5690 = vpack.c.bf16 %v5626, %v5626
      %v5691 = vpack.c.bf16 %v5627, %v5627
      %v5692 = vpack.c.bf16 %v5628, %v5628
      %v5693 = vpack.c.bf16 %v5629, %v5629
      %v5694 = vpack.c.bf16 %v5630, %v5630
      %v5695 = vpack.c.bf16 %v5631, %v5631
      %v5696 = vpack.c.bf16 %v5632, %v5632
      %v5697 = vpack.c.bf16 %v5633, %v5633
      %v5698 = vpack.c.bf16 %v5634, %v5634
      %v5699 = vpack.c.bf16 %v5635, %v5635
      %v5700 = vpack.c.bf16 %v5636, %v5636
      %v5701 = vpack.c.bf16 %v5637, %v5637
      %v5702 = vpack.c.bf16 %v5638, %v5638
      %v5703 = vpack.c.bf16 %v5639, %v5639
      %v5704 = vpack.c.bf16 %v5640, %v5640
      %v5705 = vpack.c.bf16 %v5641, %v5641
      %v5706 = vpack.c.bf16 %v5642, %v5642
      %v5707 = vpack.c.bf16 %v5643, %v5643
      %v5708 = vpack.c.bf16 %v5644, %v5644
      %v5709 = vpack.c.bf16 %v5645, %v5645
      %v5710 = vpack.c.bf16 %v5646, %v5646
      %v5711 = vpack.c.bf16 %v5647, %v5647
      %v5712 = vpack.c.bf16 %v5648, %v5648
      %v5713 = vpack.c.bf16 %v5649, %v5649
      %v5778 = vunpack.c.l.b16 %v5650
      %v5779 = vunpack.c.l.b16 %v5651
      %v5780 = vunpack.c.l.b16 %v5652
      %v5781 = vunpack.c.l.b16 %v5653
      %v5782 = vunpack.c.l.b16 %v5654
      %v5783 = vunpack.c.l.b16 %v5655
      %v5784 = vunpack.c.l.b16 %v5656
      %v5785 = vunpack.c.l.b16 %v5657
      %v5786 = vunpack.c.l.b16 %v5658
      %v5787 = vunpack.c.l.b16 %v5659
      %v5788 = vunpack.c.l.b16 %v5660
      %v5789 = vunpack.c.l.b16 %v5661
      %v5790 = vunpack.c.l.b16 %v5662
      %v5791 = vunpack.c.l.b16 %v5663
      %v5792 = vunpack.c.l.b16 %v5664
      %v5793 = vunpack.c.l.b16 %v5665
      %v5794 = vunpack.c.l.b16 %v5666
      %v5795 = vunpack.c.l.b16 %v5667
      %v5796 = vunpack.c.l.b16 %v5668
      %v5797 = vunpack.c.l.b16 %v5669
      %v5798 = vunpack.c.l.b16 %v5670
      %v5799 = vunpack.c.l.b16 %v5671
      %v5800 = vunpack.c.l.b16 %v5672
      %v5801 = vunpack.c.l.b16 %v5673
      %v5802 = vunpack.c.l.b16 %v5674
      %v5803 = vunpack.c.l.b16 %v5675
      %v5804 = vunpack.c.l.b16 %v5676
      %v5805 = vunpack.c.l.b16 %v5677
      %v5806 = vunpack.c.l.b16 %v5678
      %v5807 = vunpack.c.l.b16 %v5679
      %v5808 = vunpack.c.l.b16 %v5680
      %v5809 = vunpack.c.l.b16 %v5681
      %v5810 = vunpack.c.l.b16 %v5682
      %v5811 = vunpack.c.l.b16 %v5683
      %v5812 = vunpack.c.l.b16 %v5684
      %v5813 = vunpack.c.l.b16 %v5685
      %v5814 = vunpack.c.l.b16 %v5686
      %v5815 = vunpack.c.l.b16 %v5687
      %v5816 = vunpack.c.l.b16 %v5688
      %v5817 = vunpack.c.l.b16 %v5689
      %v5818 = vunpack.c.l.b16 %v5690
      %v5819 = vunpack.c.l.b16 %v5691
      %v5820 = vunpack.c.l.b16 %v5692
      %v5821 = vunpack.c.l.b16 %v5693
      %v5822 = vunpack.c.l.b16 %v5694
      %v5823 = vunpack.c.l.b16 %v5695
      %v5824 = vunpack.c.l.b16 %v5696
      %v5825 = vunpack.c.l.b16 %v5697
      %v5826 = vunpack.c.l.b16 %v5698
      %v5827 = vunpack.c.l.b16 %v5699
      %v5828 = vunpack.c.l.b16 %v5700
      %v5829 = vunpack.c.l.b16 %v5701
      %v5830 = vunpack.c.l.b16 %v5702
      %v5831 = vunpack.c.l.b16 %v5703
      %v5832 = vunpack.c.l.b16 %v5704
      %v5833 = vunpack.c.l.b16 %v5705
      %v5834 = vunpack.c.l.b16 %v5706
      %v5835 = vunpack.c.l.b16 %v5707
      %v5836 = vunpack.c.l.b16 %v5708
      %v5837 = vunpack.c.l.b16 %v5709
      %v5838 = vunpack.c.l.b16 %v5710
      %v5839 = vunpack.c.l.b16 %v5711
      %v5840 = vunpack.c.l.b16 %v5712
      %v5841 = vunpack.c.l.b16 %v5713
      %v5842 = vrot.slane %v5779, 7
      %v5843 = vsel %vm538, %v5842, %v5778
      %v5844 = vrot.slane %v5780, 6
      %v5845 = vsel %vm541, %v5844, %v5843
      %v5846 = vrot.slane %v5781, 5
      %v5847 = vsel %vm544, %v5846, %v5845
      %v5848 = vrot.slane %v5782, 4
      %v5849 = vsel %vm547, %v5848, %v5847
      %v5850 = vrot.slane %v5783, 3
      %v5851 = vsel %vm550, %v5850, %v5849
      %v5852 = vrot.slane %v5784, 2
      %v5853 = vsel %vm553, %v5852, %v5851
      %v5854 = vrot.slane %v5785, 1
      %v5855 = vsel %vm556, %v5854, %v5853
      %v5856 = vrot.slane %v5787, 7
      %v5857 = vsel %vm538, %v5856, %v5786
      %v5858 = vrot.slane %v5788, 6
      %v5859 = vsel %vm541, %v5858, %v5857
      %v5860 = vrot.slane %v5789, 5
      %v5861 = vsel %vm544, %v5860, %v5859
      %v5862 = vrot.slane %v5790, 4
      %v5863 = vsel %vm547, %v5862, %v5861
      %v5864 = vrot.slane %v5791, 3
      %v5865 = vsel %vm550, %v5864, %v5863
      %v5866 = vrot.slane %v5792, 2
      %v5867 = vsel %vm553, %v5866, %v5865
      %v5868 = vrot.slane %v5793, 1
      %v5869 = vsel %vm556, %v5868, %v5867
      %v5870 = vrot.slane %v5795, 7
      %v5871 = vsel %vm538, %v5870, %v5794
      %v5872 = vrot.slane %v5796, 6
      %v5873 = vsel %vm541, %v5872, %v5871
      %v5874 = vrot.slane %v5797, 5
      %v5875 = vsel %vm544, %v5874, %v5873
      %v5876 = vrot.slane %v5798, 4
      %v5877 = vsel %vm547, %v5876, %v5875
      %v5878 = vrot.slane %v5799, 3
      %v5879 = vsel %vm550, %v5878, %v5877
      %v5880 = vrot.slane %v5800, 2
      %v5881 = vsel %vm553, %v5880, %v5879
      %v5882 = vrot.slane %v5801, 1
      %v5883 = vsel %vm556, %v5882, %v5881
      %v5884 = vrot.slane %v5803, 7
      %v5885 = vsel %vm538, %v5884, %v5802
      %v5886 = vrot.slane %v5804, 6
      %v5887 = vsel %vm541, %v5886, %v5885
      %v5888 = vrot.slane %v5805, 5
      %v5889 = vsel %vm544, %v5888, %v5887
      %v5890 = vrot.slane %v5806, 4
      %v5891 = vsel %vm547, %v5890, %v5889
      %v5892 = vrot.slane %v5807, 3
      %v5893 = vsel %vm550, %v5892, %v5891
      %v5894 = vrot.slane %v5808, 2
      %v5895 = vsel %vm553, %v5894, %v5893
      %v5896 = vrot.slane %v5809, 1
      %v5897 = vsel %vm556, %v5896, %v5895
      %v5898 = vrot.slane %v5811, 7
      %v5899 = vsel %vm538, %v5898, %v5810
      %v5900 = vrot.slane %v5812, 6
      %v5901 = vsel %vm541, %v5900, %v5899
      %v5902 = vrot.slane %v5813, 5
      %v5903 = vsel %vm544, %v5902, %v5901
      %v5904 = vrot.slane %v5814, 4
      %v5905 = vsel %vm547, %v5904, %v5903
      %v5906 = vrot.slane %v5815, 3
      %v5907 = vsel %vm550, %v5906, %v5905
      %v5908 = vrot.slane %v5816, 2
      %v5909 = vsel %vm553, %v5908, %v5907
      %v5910 = vrot.slane %v5817, 1
      %v5911 = vsel %vm556, %v5910, %v5909
      %v5912 = vrot.slane %v5819, 7
      %v5913 = vsel %vm538, %v5912, %v5818
      %v5914 = vrot.slane %v5820, 6
      %v5915 = vsel %vm541, %v5914, %v5913
      %v5916 = vrot.slane %v5821, 5
      %v5917 = vsel %vm544, %v5916, %v5915
      %v5918 = vrot.slane %v5822, 4
      %v5919 = vsel %vm547, %v5918, %v5917
      %v5920 = vrot.slane %v5823, 3
      %v5921 = vsel %vm550, %v5920, %v5919
      %v5922 = vrot.slane %v5824, 2
      %v5923 = vsel %vm553, %v5922, %v5921
      %v5924 = vrot.slane %v5825, 1
      %v5925 = vsel %vm556, %v5924, %v5923
      %v5926 = vrot.slane %v5827, 7
      %v5927 = vsel %vm538, %v5926, %v5826
      %v5928 = vrot.slane %v5828, 6
      %v5929 = vsel %vm541, %v5928, %v5927
      %v5930 = vrot.slane %v5829, 5
      %v5931 = vsel %vm544, %v5930, %v5929
      %v5932 = vrot.slane %v5830, 4
      %v5933 = vsel %vm547, %v5932, %v5931
      %v5934 = vrot.slane %v5831, 3
      %v5935 = vsel %vm550, %v5934, %v5933
      %v5936 = vrot.slane %v5832, 2
      %v5937 = vsel %vm553, %v5936, %v5935
      %v5938 = vrot.slane %v5833, 1
      %v5939 = vsel %vm556, %v5938, %v5937
      %v5940 = vrot.slane %v5835, 7
      %v5941 = vsel %vm538, %v5940, %v5834
      %v5942 = vrot.slane %v5836, 6
      %v5943 = vsel %vm541, %v5942, %v5941
      %v5944 = vrot.slane %v5837, 5
      %v5945 = vsel %vm544, %v5944, %v5943
      %v5946 = vrot.slane %v5838, 4
      %v5947 = vsel %vm547, %v5946, %v5945
      %v5948 = vrot.slane %v5839, 3
      %v5949 = vsel %vm550, %v5948, %v5947
      %v5950 = vrot.slane %v5840, 2
      %v5951 = vsel %vm553, %v5950, %v5949
      %v5952 = vrot.slane %v5841, 1
      %v5953 = vsel %vm556, %v5952, %v5951
      %v5954 = vpack.c.b16 %v5869, %v5855
      %v5955 = vpack.c.b16 %v5897, %v5883
      %v5956 = vpack.c.b16 %v5925, %v5911
      %v5957 = vpack.c.b16 %v5953, %v5939
      %v5959 = vsel %vm666, %v5954, 0
      %v5962 = vsel %vm666, %v5955, 0
      %v5965 = vsel %vm666, %v5956, 0
      %v5968 = vsel %vm666, %v5957, 0
      %5970 = vmatprep.subr.bf16.mxu0 0
      %5971 = vmatpush1.bf16.msra.mxu0 %v664
      %5972 = vmatprep.subr.bf16.mxu0 0
      %5973 = vmatpush1.bf16.msra.mxu0 0
      %5974 = vmatprep.subr.bf16.mxu0 0
      %5975 = vmatpush1.bf16.msra.mxu0 0
      %5976 = vmatprep.subr.bf16.mxu0 0
      %5977 = vmatpush1.bf16.msra.mxu0 0
      %5978 = vmatprep.subr.bf16.mxu0 0
      %5979 = vmatpush1.bf16.msra.mxu0 0
      %5980 = vmatprep.subr.bf16.mxu0 0
      %5981 = vmatpush1.bf16.msra.mxu0 0
      %5982 = vmatprep.subr.bf16.mxu0 0
      %5983 = vmatpush1.bf16.msra.mxu0 0
      %5984 = vmatprep.subr.bf16.mxu0 0
      %5985 = vmatpush1.bf16.msra.mxu0 0
      %5986 = vmatprep.subr.bf16.mxu0 0
      %5987 = vmatpush1.bf16.msra.mxu0 0
      %5988 = vmatprep.subr.bf16.mxu0 0
      %5989 = vmatpush1.bf16.msra.mxu0 0
      %5990 = vmatprep.subr.bf16.mxu0 0
      %5991 = vmatpush1.bf16.msra.mxu0 0
      %5992 = vmatprep.subr.bf16.mxu0 0
      %5993 = vmatpush1.bf16.msra.mxu0 0
      %5994 = vmatprep.subr.bf16.mxu0 0
      %5995 = vmatpush1.bf16.msra.mxu0 0
      %5996 = vmatprep.subr.bf16.mxu0 0
      %5997 = vmatpush1.bf16.msra.mxu0 0
      %5998 = vmatprep.subr.bf16.mxu0 0
      %5999 = vmatpush1.bf16.msra.mxu0 0
      %6000 = vmatprep.subr.bf16.mxu0 0
      %6001 = vmatpush1.bf16.msra.mxu0 0
      %6002 = vmatprep.mubr.bf16.mxu0 0
      %6003 = vmatmul.mubr.bf16.gmra.mrb[0].mxu0 %v5959
      %v6004 = vpop.f32.mrb[0].mxu0
      %v6005 = vadd.f32 0.0, %v6004
      %v6006 = vpop.f32.mrb[0].mxu0
      %v6007 = vpop.f32.mrb[0].mxu0
      %v6008 = vadd.f32 0.0, %v6007
      %v6009 = vpop.f32.mrb[0].mxu0
      %6010 = vmatprep.mubr.bf16.mxu0 0
      %6011 = vmatmul.mubr.bf16.gmra.mrb[0].mxu0 %v5962
      %v6012 = vpop.f32.mrb[0].mxu0
      %v6013 = vadd.f32 0.0, %v6012
      %v6014 = vpop.f32.mrb[0].mxu0
      %v6015 = vpop.f32.mrb[0].mxu0
      %v6016 = vadd.f32 0.0, %v6015
      %v6017 = vpop.f32.mrb[0].mxu0
      %6018 = vmatprep.mubr.bf16.mxu0 0
      %6019 = vmatmul.mubr.bf16.gmra.mrb[0].mxu0 %v5965
      %v6020 = vpop.f32.mrb[0].mxu0
      %v6021 = vadd.f32 0.0, %v6020
      %v6022 = vpop.f32.mrb[0].mxu0
      %v6023 = vpop.f32.mrb[0].mxu0
      %v6024 = vadd.f32 0.0, %v6023
      %v6025 = vpop.f32.mrb[0].mxu0
      %6026 = vmatprep.mubr.bf16.mxu0 0
      %6027 = vmatmul.mubr.bf16.gmra.mrb[0].mxu0 %v5968
      %v6028 = vpop.f32.mrb[0].mxu0
      %v6029 = vadd.f32 0.0, %v6028
      %v6030 = vpop.f32.mrb[0].mxu0
      %v6031 = vpop.f32.mrb[0].mxu0
      %v6032 = vadd.f32 0.0, %v6031
      %v6033 = vpop.f32.mrb[0].mxu0
      %6034 = vdwg.mxu0
      %v6035 = vpack.c.bf16 %v6008, %v6005
      %v6036 = vpack.c.bf16 %v6016, %v6013
      %v6037 = vpack.c.bf16 %v6024, %v6021
      %v6038 = vpack.c.bf16 %v6032, %v6029
      %6039 = vmatprep.subr.bf16.mxu0 0
      %6040 = vmatpush1.bf16.msra.mxu0 %v6035
      %6041 = vmatprep.subr.bf16.mxu0 0
      %6042 = vmatpush1.bf16.msra.mxu0 %v6036
      %6043 = vmatprep.subr.bf16.mxu0 0
      %6044 = vmatpush1.bf16.msra.mxu0 %v6037
      %6045 = vmatprep.subr.bf16.mxu0 0
      %6046 = vmatpush1.bf16.msra.mxu0 %v6038
      %6047 = vmatprep.subr.bf16.mxu0 0
      %6048 = vmatpush1.bf16.msra.mxu0 0
      %6049 = vmatprep.subr.bf16.mxu0 0
      %6050 = vmatpush1.bf16.msra.mxu0 0
      %6051 = vmatprep.subr.bf16.mxu0 0
      %6052 = vmatpush1.bf16.msra.mxu0 0
      %6053 = vmatprep.subr.bf16.mxu0 0
      %6054 = vmatpush1.bf16.msra.mxu0 0
      %6055 = vmatprep.subr.bf16.mxu0 0
      %6056 = vmatpush1.bf16.msra.mxu0 0
      %6057 = vmatprep.subr.bf16.mxu0 0
      %6058 = vmatpush1.bf16.msra.mxu0 0
      %6059 = vmatprep.subr.bf16.mxu0 0
      %6060 = vmatpush1.bf16.msra.mxu0 0
      %6061 = vmatprep.subr.bf16.mxu0 0
      %6062 = vmatpush1.bf16.msra.mxu0 0
      %6063 = vmatprep.subr.bf16.mxu0 0
      %6064 = vmatpush1.bf16.msra.mxu0 0
      %6065 = vmatprep.subr.bf16.mxu0 0
      %6066 = vmatpush1.bf16.msra.mxu0 0
      %6067 = vmatprep.subr.bf16.mxu0 0
      %6068 = vmatpush1.bf16.msra.mxu0 0
      %6069 = vmatprep.subr.bf16.mxu0 0
      %6070 = vmatpush1.bf16.msra.mxu0 0
      %6071 = vmatprep.mubr.bf16.mxu0 0
      %6072 = vmatmul.mubr.bf16.gmra.mrb[0].mxu0 %v790
      %v6073 = vpop.f32.mrb[0].mxu0
      %v6074 = vadd.f32 0.0, %v6073
      %v6075 = vpop.f32.mrb[0].mxu0
      %v6076 = vpop.f32.mrb[0].mxu0
      %v6077 = vadd.f32 0.0, %v6076
      %v6078 = vpop.f32.mrb[0].mxu0
      %6079 = vmatprep.mubr.bf16.mxu0 0
      %6080 = vmatmul.mubr.bf16.gmra.mrb[0].mxu0 %v793
      %v6081 = vpop.f32.mrb[0].mxu0
      %v6082 = vadd.f32 0.0, %v6081
      %v6083 = vpop.f32.mrb[0].mxu0
      %v6084 = vpop.f32.mrb[0].mxu0
      %v6085 = vadd.f32 0.0, %v6084
      %v6086 = vpop.f32.mrb[0].mxu0
      %6087 = vmatprep.mubr.bf16.mxu0 0
      %6088 = vmatmul.mubr.bf16.gmra.mrb[0].mxu0 %v796
      %v6089 = vpop.f32.mrb[0].mxu0
      %v6090 = vadd.f32 0.0, %v6089
      %v6091 = vpop.f32.mrb[0].mxu0
      %v6092 = vpop.f32.mrb[0].mxu0
      %v6093 = vadd.f32 0.0, %v6092
      %v6094 = vpop.f32.mrb[0].mxu0
      %6095 = vmatprep.mubr.bf16.mxu0 0
      %6096 = vmatmul.mubr.bf16.gmra.mrb[0].mxu0 %v799
      %v6097 = vpop.f32.mrb[0].mxu0
      %v6098 = vadd.f32 0.0, %v6097
      %v6099 = vpop.f32.mrb[0].mxu0
      %v6100 = vpop.f32.mrb[0].mxu0
      %v6101 = vadd.f32 0.0, %v6100
      %v6102 = vpop.f32.mrb[0].mxu0
      %6103 = vmatprep.mubr.bf16.mxu0 0
      %6104 = vmatmul.mubr.bf16.gmra.mrb[0].mxu0 %v802
      %v6105 = vpop.f32.mrb[0].mxu0
      %v6106 = vadd.f32 0.0, %v6105
      %v6107 = vpop.f32.mrb[0].mxu0
      %v6108 = vpop.f32.mrb[0].mxu0
      %v6109 = vadd.f32 0.0, %v6108
      %v6110 = vpop.f32.mrb[0].mxu0
      %6111 = vmatprep.mubr.bf16.mxu0 0
      %6112 = vmatmul.mubr.bf16.gmra.mrb[0].mxu0 %v805
      %v6113 = vpop.f32.mrb[0].mxu0
      %v6114 = vadd.f32 0.0, %v6113
      %v6115 = vpop.f32.mrb[0].mxu0
      %v6116 = vpop.f32.mrb[0].mxu0
      %v6117 = vadd.f32 0.0, %v6116
      %v6118 = vpop.f32.mrb[0].mxu0
      %6119 = vmatprep.mubr.bf16.mxu0 0
      %6120 = vmatmul.mubr.bf16.gmra.mrb[0].mxu0 %v808
      %v6121 = vpop.f32.mrb[0].mxu0
      %v6122 = vadd.f32 0.0, %v6121
      %v6123 = vpop.f32.mrb[0].mxu0
      %v6124 = vpop.f32.mrb[0].mxu0
      %v6125 = vadd.f32 0.0, %v6124
      %v6126 = vpop.f32.mrb[0].mxu0
      %6127 = vmatprep.mubr.bf16.mxu0 0
      %6128 = vmatmul.mubr.bf16.gmra.mrb[0].mxu0 %v811
      %v6129 = vpop.f32.mrb[0].mxu0
      %v6130 = vadd.f32 0.0, %v6129
      %v6131 = vpop.f32.mrb[0].mxu0
      %v6132 = vpop.f32.mrb[0].mxu0
      %v6133 = vadd.f32 0.0, %v6132
      %v6134 = vpop.f32.mrb[0].mxu0
      %6135 = vdwg.mxu0
      %v6136 = vsel %vm911, %v6074, %v6106
      %v6137 = vsel %vm911, %v6077, %v6109
      %v6138 = vsel %vm911, %v6082, %v6114
      %v6139 = vsel %vm911, %v6085, %v6117
      %v6140 = vsel %vm911, %v6090, %v6122
      %v6141 = vsel %vm911, %v6093, %v6125
      %v6142 = vsel %vm911, %v6098, %v6130
      %v6143 = vsel %vm911, %v6101, %v6133
      %v6144 = vadd.f32 %v6136, %v923
      %v6145 = vadd.f32 %v6137, %v928
      %v6146 = vadd.f32 %v6138, %v933
      %v6147 = vadd.f32 %v6139, %v938
      %v6148 = vadd.f32 %v6140, %v943
      %v6149 = vadd.f32 %v6141, %v948
      %v6150 = vadd.f32 %v6142, %v953
      %v6151 = vadd.f32 %v6143, %v958
      %s6152 = scalar_lea.vmem %s237, 576
      %6153 = vst.msk [vmem:[%s6152] sm:$0xff] %vm968, %v6144
      %6154 = vst.msk [vmem:[%s6152 + $0x8] sm:$0xff] %vm968, %v6145
      %6155 = vst.msk [vmem:[%s6152 + $0x10] sm:$0xff] %vm968, %v6146
      %6156 = vst.msk [vmem:[%s6152 + $0x18] sm:$0xff] %vm968, %v6147
      %s6157 = scalar_lea.vmem %s237, 608
      %6158 = vst.msk [vmem:[%s6157] sm:$0xff] %vm968, %v6148
      %6159 = vst.msk [vmem:[%s6157 + $0x8] sm:$0xff] %vm968, %v6149
      %6160 = vst.msk [vmem:[%s6157 + $0x10] sm:$0xff] %vm968, %v6150
      %6161 = vst.msk [vmem:[%s6157 + $0x18] sm:$0xff] %vm968, %v6151
      %v6162 = vld [vmem:[%s226 + $0xa] sm:$0x1]
      %v6163 = vld [vmem:[%s226 + $0x1a] sm:$0x1]
      %v6164 = vld [vmem:[%s226 + $0x2a] sm:$0x1]
      %v6165 = vld [vmem:[%s226 + $0x3a] sm:$0x1]
      %v6166 = vld [vmem:[%s226 + $0x4a] sm:$0x1]
      %v6167 = vld [vmem:[%s226 + $0x5a] sm:$0x1]
      %v6168 = vld [vmem:[%s226 + $0x6a] sm:$0x1]
      %v6169 = vld [vmem:[%s226 + $0x7a] sm:$0x1]
      %v6170 = vld [vmem:[%s226 + $0x8a] sm:$0x1]
      %v6171 = vld [vmem:[%s226 + $0x9a] sm:$0x1]
      %v6172 = vld [vmem:[%s226 + $0xaa] sm:$0x1]
      %v6173 = vld [vmem:[%s226 + $0xba] sm:$0x1]
      %v6174 = vld [vmem:[%s226 + $0xca] sm:$0x1]
      %v6175 = vld [vmem:[%s226 + $0xda] sm:$0x1]
      %v6176 = vld [vmem:[%s226 + $0xea] sm:$0x1]
      %v6177 = vld [vmem:[%s226 + $0xfa] sm:$0x1]
      %v6178 = vld [vmem:[%s226 + $0x10a] sm:$0x1]
      %v6179 = vld [vmem:[%s226 + $0x11a] sm:$0x1]
      %v6180 = vld [vmem:[%s226 + $0x12a] sm:$0x1]
      %v6181 = vld [vmem:[%s226 + $0x13a] sm:$0x1]
      %v6182 = vld [vmem:[%s226 + $0x14a] sm:$0x1]
      %v6183 = vld [vmem:[%s226 + $0x15a] sm:$0x1]
      %v6184 = vld [vmem:[%s226 + $0x16a] sm:$0x1]
      %v6185 = vld [vmem:[%s226 + $0x17a] sm:$0x1]
      %v6186 = vld [vmem:[%s226 + $0x18a] sm:$0x1]
      %v6187 = vld [vmem:[%s226 + $0x19a] sm:$0x1]
      %v6188 = vld [vmem:[%s226 + $0x1aa] sm:$0x1]
      %v6189 = vld [vmem:[%s226 + $0x1ba] sm:$0x1]
      %v6190 = vld [vmem:[%s226 + $0x1ca] sm:$0x1]
      %v6191 = vld [vmem:[%s226 + $0x1da] sm:$0x1]
      %v6192 = vld [vmem:[%s226 + $0x1ea] sm:$0x1]
      %v6193 = vld [vmem:[%s226 + $0x1fa] sm:$0x1]
      %v6194 = vld [vmem:[%s226 + $0x20a] sm:$0x1]
      %v6195 = vld [vmem:[%s226 + $0x21a] sm:$0x1]
      %v6196 = vld [vmem:[%s226 + $0x22a] sm:$0x1]
      %v6197 = vld [vmem:[%s226 + $0x23a] sm:$0x1]
      %v6198 = vld [vmem:[%s226 + $0x24a] sm:$0x1]
      %v6199 = vld [vmem:[%s226 + $0x25a] sm:$0x1]
      %v6200 = vld [vmem:[%s226 + $0x26a] sm:$0x1]
      %v6201 = vld [vmem:[%s226 + $0x27a] sm:$0x1]
      %v6202 = vld [vmem:[%s226 + $0x28a] sm:$0x1]
      %v6203 = vld [vmem:[%s226 + $0x29a] sm:$0x1]
      %v6204 = vld [vmem:[%s226 + $0x2aa] sm:$0x1]
      %v6205 = vld [vmem:[%s226 + $0x2ba] sm:$0x1]
      %v6206 = vld [vmem:[%s226 + $0x2ca] sm:$0x1]
      %v6207 = vld [vmem:[%s226 + $0x2da] sm:$0x1]
      %v6208 = vld [vmem:[%s226 + $0x2ea] sm:$0x1]
      %v6209 = vld [vmem:[%s226 + $0x2fa] sm:$0x1]
      %v6210 = vld [vmem:[%s226 + $0x30a] sm:$0x1]
      %v6211 = vld [vmem:[%s226 + $0x31a] sm:$0x1]
      %v6212 = vld [vmem:[%s226 + $0x32a] sm:$0x1]
      %v6213 = vld [vmem:[%s226 + $0x33a] sm:$0x1]
      %v6214 = vld [vmem:[%s226 + $0x34a] sm:$0x1]
      %v6215 = vld [vmem:[%s226 + $0x35a] sm:$0x1]
      %v6216 = vld [vmem:[%s226 + $0x36a] sm:$0x1]
      %v6217 = vld [vmem:[%s226 + $0x37a] sm:$0x1]
      %v6218 = vld [vmem:[%s226 + $0x38a] sm:$0x1]
      %v6219 = vld [vmem:[%s226 + $0x39a] sm:$0x1]
      %v6220 = vld [vmem:[%s226 + $0x3aa] sm:$0x1]
      %v6221 = vld [vmem:[%s226 + $0x3ba] sm:$0x1]
      %v6222 = vld [vmem:[%s226 + $0x3ca] sm:$0x1]
      %v6223 = vld [vmem:[%s226 + $0x3da] sm:$0x1]
      %v6224 = vld [vmem:[%s226 + $0x3ea] sm:$0x1]
      %v6225 = vld [vmem:[%s226 + $0x3fa] sm:$0x1]
      %v6226 = vpack.c.bf16 %v6162, %v6162
      %v6227 = vpack.c.bf16 %v6163, %v6163
      %v6228 = vpack.c.bf16 %v6164, %v6164
      %v6229 = vpack.c.bf16 %v6165, %v6165
      %v6230 = vpack.c.bf16 %v6166, %v6166
      %v6231 = vpack.c.bf16 %v6167, %v6167
      %v6232 = vpack.c.bf16 %v6168, %v6168
      %v6233 = vpack.c.bf16 %v6169, %v6169
      %v6234 = vpack.c.bf16 %v6170, %v6170
      %v6235 = vpack.c.bf16 %v6171, %v6171
      %v6236 = vpack.c.bf16 %v6172, %v6172
      %v6237 = vpack.c.bf16 %v6173, %v6173
      %v6238 = vpack.c.bf16 %v6174, %v6174
      %v6239 = vpack.c.bf16 %v6175, %v6175
      %v6240 = vpack.c.bf16 %v6176, %v6176
      %v6241 = vpack.c.bf16 %v6177, %v6177
      %v6242 = vpack.c.bf16 %v6178, %v6178
      %v6243 = vpack.c.bf16 %v6179, %v6179
      %v6244 = vpack.c.bf16 %v6180, %v6180
      %v6245 = vpack.c.bf16 %v6181, %v6181
      %v6246 = vpack.c.bf16 %v6182, %v6182
      %v6247 = vpack.c.bf16 %v6183, %v6183
      %v6248 = vpack.c.bf16 %v6184, %v6184
      %v6249 = vpack.c.bf16 %v6185, %v6185
      %v6250 = vpack.c.bf16 %v6186, %v6186
      %v6251 = vpack.c.bf16 %v6187, %v6187
      %v6252 = vpack.c.bf16 %v6188, %v6188
      %v6253 = vpack.c.bf16 %v6189, %v6189
      %v6254 = vpack.c.bf16 %v6190, %v6190
      %v6255 = vpack.c.bf16 %v6191, %v6191
      %v6256 = vpack.c.bf16 %v6192, %v6192
      %v6257 = vpack.c.bf16 %v6193, %v6193
      %v6258 = vpack.c.bf16 %v6194, %v6194
      %v6259 = vpack.c.bf16 %v6195, %v6195
      %v6260 = vpack.c.bf16 %v6196, %v6196
      %v6261 = vpack.c.bf16 %v6197, %v6197
      %v6262 = vpack.c.bf16 %v6198, %v6198
      %v6263 = vpack.c.bf16 %v6199, %v6199
      %v6264 = vpack.c.bf16 %v6200, %v6200
      %v6265 = vpack.c.bf16 %v6201, %v6201
      %v6266 = vpack.c.bf16 %v6202, %v6202
      %v6267 = vpack.c.bf16 %v6203, %v6203
      %v6268 = vpack.c.bf16 %v6204, %v6204
      %v6269 = vpack.c.bf16 %v6205, %v6205
      %v6270 = vpack.c.bf16 %v6206, %v6206
      %v6271 = vpack.c.bf16 %v6207, %v6207
      %v6272 = vpack.c.bf16 %v6208, %v6208
      %v6273 = vpack.c.bf16 %v6209, %v6209
      %v6274 = vpack.c.bf16 %v6210, %v6210
      %v6275 = vpack.c.bf16 %v6211, %v6211
      %v6276 = vpack.c.bf16 %v6212, %v6212
      %v6277 = vpack.c.bf16 %v6213, %v6213
      %v6278 = vpack.c.bf16 %v6214, %v6214
      %v6279 = vpack.c.bf16 %v6215, %v6215
      %v6280 = vpack.c.bf16 %v6216, %v6216
      %v6281 = vpack.c.bf16 %v6217, %v6217
      %v6282 = vpack.c.bf16 %v6218, %v6218
      %v6283 = vpack.c.bf16 %v6219, %v6219
      %v6284 = vpack.c.bf16 %v6220, %v6220
      %v6285 = vpack.c.bf16 %v6221, %v6221
      %v6286 = vpack.c.bf16 %v6222, %v6222
      %v6287 = vpack.c.bf16 %v6223, %v6223
      %v6288 = vpack.c.bf16 %v6224, %v6224
      %v6289 = vpack.c.bf16 %v6225, %v6225
      %v6354 = vunpack.c.l.b16 %v6226
      %v6355 = vunpack.c.l.b16 %v6227
      %v6356 = vunpack.c.l.b16 %v6228
      %v6357 = vunpack.c.l.b16 %v6229
      %v6358 = vunpack.c.l.b16 %v6230
      %v6359 = vunpack.c.l.b16 %v6231
      %v6360 = vunpack.c.l.b16 %v6232
      %v6361 = vunpack.c.l.b16 %v6233
      %v6362 = vunpack.c.l.b16 %v6234
      %v6363 = vunpack.c.l.b16 %v6235
      %v6364 = vunpack.c.l.b16 %v6236
      %v6365 = vunpack.c.l.b16 %v6237
      %v6366 = vunpack.c.l.b16 %v6238
      %v6367 = vunpack.c.l.b16 %v6239
      %v6368 = vunpack.c.l.b16 %v6240
      %v6369 = vunpack.c.l.b16 %v6241
      %v6370 = vunpack.c.l.b16 %v6242
      %v6371 = vunpack.c.l.b16 %v6243
      %v6372 = vunpack.c.l.b16 %v6244
      %v6373 = vunpack.c.l.b16 %v6245
      %v6374 = vunpack.c.l.b16 %v6246
      %v6375 = vunpack.c.l.b16 %v6247
      %v6376 = vunpack.c.l.b16 %v6248
      %v6377 = vunpack.c.l.b16 %v6249
      %v6378 = vunpack.c.l.b16 %v6250
      %v6379 = vunpack.c.l.b16 %v6251
      %v6380 = vunpack.c.l.b16 %v6252
      %v6381 = vunpack.c.l.b16 %v6253
      %v6382 = vunpack.c.l.b16 %v6254
      %v6383 = vunpack.c.l.b16 %v6255
      %v6384 = vunpack.c.l.b16 %v6256
      %v6385 = vunpack.c.l.b16 %v6257
      %v6386 = vunpack.c.l.b16 %v6258
      %v6387 = vunpack.c.l.b16 %v6259
      %v6388 = vunpack.c.l.b16 %v6260
      %v6389 = vunpack.c.l.b16 %v6261
      %v6390 = vunpack.c.l.b16 %v6262
      %v6391 = vunpack.c.l.b16 %v6263
      %v6392 = vunpack.c.l.b16 %v6264
      %v6393 = vunpack.c.l.b16 %v6265
      %v6394 = vunpack.c.l.b16 %v6266
      %v6395 = vunpack.c.l.b16 %v6267
      %v6396 = vunpack.c.l.b16 %v6268
      %v6397 = vunpack.c.l.b16 %v6269
      %v6398 = vunpack.c.l.b16 %v6270
      %v6399 = vunpack.c.l.b16 %v6271
      %v6400 = vunpack.c.l.b16 %v6272
      %v6401 = vunpack.c.l.b16 %v6273
      %v6402 = vunpack.c.l.b16 %v6274
      %v6403 = vunpack.c.l.b16 %v6275
      %v6404 = vunpack.c.l.b16 %v6276
      %v6405 = vunpack.c.l.b16 %v6277
      %v6406 = vunpack.c.l.b16 %v6278
      %v6407 = vunpack.c.l.b16 %v6279
      %v6408 = vunpack.c.l.b16 %v6280
      %v6409 = vunpack.c.l.b16 %v6281
      %v6410 = vunpack.c.l.b16 %v6282
      %v6411 = vunpack.c.l.b16 %v6283
      %v6412 = vunpack.c.l.b16 %v6284
      %v6413 = vunpack.c.l.b16 %v6285
      %v6414 = vunpack.c.l.b16 %v6286
      %v6415 = vunpack.c.l.b16 %v6287
      %v6416 = vunpack.c.l.b16 %v6288
      %v6417 = vunpack.c.l.b16 %v6289
      %v6418 = vrot.slane %v6355, 7
      %v6419 = vsel %vm538, %v6418, %v6354
      %v6420 = vrot.slane %v6356, 6
      %v6421 = vsel %vm541, %v6420, %v6419
      %v6422 = vrot.slane %v6357, 5
      %v6423 = vsel %vm544, %v6422, %v6421
      %v6424 = vrot.slane %v6358, 4
      %v6425 = vsel %vm547, %v6424, %v6423
      %v6426 = vrot.slane %v6359, 3
      %v6427 = vsel %vm550, %v6426, %v6425
      %v6428 = vrot.slane %v6360, 2
      %v6429 = vsel %vm553, %v6428, %v6427
      %v6430 = vrot.slane %v6361, 1
      %v6431 = vsel %vm556, %v6430, %v6429
      %v6432 = vrot.slane %v6363, 7
      %v6433 = vsel %vm538, %v6432, %v6362
      %v6434 = vrot.slane %v6364, 6
      %v6435 = vsel %vm541, %v6434, %v6433
      %v6436 = vrot.slane %v6365, 5
      %v6437 = vsel %vm544, %v6436, %v6435
      %v6438 = vrot.slane %v6366, 4
      %v6439 = vsel %vm547, %v6438, %v6437
      %v6440 = vrot.slane %v6367, 3
      %v6441 = vsel %vm550, %v6440, %v6439
      %v6442 = vrot.slane %v6368, 2
      %v6443 = vsel %vm553, %v6442, %v6441
      %v6444 = vrot.slane %v6369, 1
      %v6445 = vsel %vm556, %v6444, %v6443
      %v6446 = vrot.slane %v6371, 7
      %v6447 = vsel %vm538, %v6446, %v6370
      %v6448 = vrot.slane %v6372, 6
      %v6449 = vsel %vm541, %v6448, %v6447
      %v6450 = vrot.slane %v6373, 5
      %v6451 = vsel %vm544, %v6450, %v6449
      %v6452 = vrot.slane %v6374, 4
      %v6453 = vsel %vm547, %v6452, %v6451
      %v6454 = vrot.slane %v6375, 3
      %v6455 = vsel %vm550, %v6454, %v6453
      %v6456 = vrot.slane %v6376, 2
      %v6457 = vsel %vm553, %v6456, %v6455
      %v6458 = vrot.slane %v6377, 1
      %v6459 = vsel %vm556, %v6458, %v6457
      %v6460 = vrot.slane %v6379, 7
      %v6461 = vsel %vm538, %v6460, %v6378
      %v6462 = vrot.slane %v6380, 6
      %v6463 = vsel %vm541, %v6462, %v6461
      %v6464 = vrot.slane %v6381, 5
      %v6465 = vsel %vm544, %v6464, %v6463
      %v6466 = vrot.slane %v6382, 4
      %v6467 = vsel %vm547, %v6466, %v6465
      %v6468 = vrot.slane %v6383, 3
      %v6469 = vsel %vm550, %v6468, %v6467
      %v6470 = vrot.slane %v6384, 2
      %v6471 = vsel %vm553, %v6470, %v6469
      %v6472 = vrot.slane %v6385, 1
      %v6473 = vsel %vm556, %v6472, %v6471
      %v6474 = vrot.slane %v6387, 7
      %v6475 = vsel %vm538, %v6474, %v6386
      %v6476 = vrot.slane %v6388, 6
      %v6477 = vsel %vm541, %v6476, %v6475
      %v6478 = vrot.slane %v6389, 5
      %v6479 = vsel %vm544, %v6478, %v6477
      %v6480 = vrot.slane %v6390, 4
      %v6481 = vsel %vm547, %v6480, %v6479
      %v6482 = vrot.slane %v6391, 3
      %v6483 = vsel %vm550, %v6482, %v6481
      %v6484 = vrot.slane %v6392, 2
      %v6485 = vsel %vm553, %v6484, %v6483
      %v6486 = vrot.slane %v6393, 1
      %v6487 = vsel %vm556, %v6486, %v6485
      %v6488 = vrot.slane %v6395, 7
      %v6489 = vsel %vm538, %v6488, %v6394
      %v6490 = vrot.slane %v6396, 6
      %v6491 = vsel %vm541, %v6490, %v6489
      %v6492 = vrot.slane %v6397, 5
      %v6493 = vsel %vm544, %v6492, %v6491
      %v6494 = vrot.slane %v6398, 4
      %v6495 = vsel %vm547, %v6494, %v6493
      %v6496 = vrot.slane %v6399, 3
      %v6497 = vsel %vm550, %v6496, %v6495
      %v6498 = vrot.slane %v6400, 2
      %v6499 = vsel %vm553, %v6498, %v6497
      %v6500 = vrot.slane %v6401, 1
      %v6501 = vsel %vm556, %v6500, %v6499
      %v6502 = vrot.slane %v6403, 7
      %v6503 = vsel %vm538, %v6502, %v6402
      %v6504 = vrot.slane %v6404, 6
      %v6505 = vsel %vm541, %v6504, %v6503
      %v6506 = vrot.slane %v6405, 5
      %v6507 = vsel %vm544, %v6506, %v6505
      %v6508 = vrot.slane %v6406, 4
      %v6509 = vsel %vm547, %v6508, %v6507
      %v6510 = vrot.slane %v6407, 3
      %v6511 = vsel %vm550, %v6510, %v6509
      %v6512 = vrot.slane %v6408, 2
      %v6513 = vsel %vm553, %v6512, %v6511
      %v6514 = vrot.slane %v6409, 1
      %v6515 = vsel %vm556, %v6514, %v6513
      %v6516 = vrot.slane %v6411, 7
      %v6517 = vsel %vm538, %v6516, %v6410
      %v6518 = vrot.slane %v6412, 6
      %v6519 = vsel %vm541, %v6518, %v6517
      %v6520 = vrot.slane %v6413, 5
      %v6521 = vsel %vm544, %v6520, %v6519
      %v6522 = vrot.slane %v6414, 4
      %v6523 = vsel %vm547, %v6522, %v6521
      %v6524 = vrot.slane %v6415, 3
      %v6525 = vsel %vm550, %v6524, %v6523
      %v6526 = vrot.slane %v6416, 2
      %v6527 = vsel %vm553, %v6526, %v6525
      %v6528 = vrot.slane %v6417, 1
      %v6529 = vsel %vm556, %v6528, %v6527
      %v6530 = vpack.c.b16 %v6445, %v6431
      %v6531 = vpack.c.b16 %v6473, %v6459
      %v6532 = vpack.c.b16 %v6501, %v6487
      %v6533 = vpack.c.b16 %v6529, %v6515
      %v6535 = vsel %vm666, %v6530, 0
      %v6538 = vsel %vm666, %v6531, 0
      %v6541 = vsel %vm666, %v6532, 0
      %v6544 = vsel %vm666, %v6533, 0
      %6546 = vmatprep.subr.bf16.mxu0 0
      %6547 = vmatpush1.bf16.msra.mxu0 %v664
      %6548 = vmatprep.subr.bf16.mxu0 0
      %6549 = vmatpush1.bf16.msra.mxu0 0
      %6550 = vmatprep.subr.bf16.mxu0 0
      %6551 = vmatpush1.bf16.msra.mxu0 0
      %6552 = vmatprep.subr.bf16.mxu0 0
      %6553 = vmatpush1.bf16.msra.mxu0 0
      %6554 = vmatprep.subr.bf16.mxu0 0
      %6555 = vmatpush1.bf16.msra.mxu0 0
      %6556 = vmatprep.subr.bf16.mxu0 0
      %6557 = vmatpush1.bf16.msra.mxu0 0
      %6558 = vmatprep.subr.bf16.mxu0 0
      %6559 = vmatpush1.bf16.msra.mxu0 0
      %6560 = vmatprep.subr.bf16.mxu0 0
      %6561 = vmatpush1.bf16.msra.mxu0 0
      %6562 = vmatprep.subr.bf16.mxu0 0
      %6563 = vmatpush1.bf16.msra.mxu0 0
      %6564 = vmatprep.subr.bf16.mxu0 0
      %6565 = vmatpush1.bf16.msra.mxu0 0
      %6566 = vmatprep.subr.bf16.mxu0 0
      %6567 = vmatpush1.bf16.msra.mxu0 0
      %6568 = vmatprep.subr.bf16.mxu0 0
      %6569 = vmatpush1.bf16.msra.mxu0 0
      %6570 = vmatprep.subr.bf16.mxu0 0
      %6571 = vmatpush1.bf16.msra.mxu0 0
      %6572 = vmatprep.subr.bf16.mxu0 0
      %6573 = vmatpush1.bf16.msra.mxu0 0
      %6574 = vmatprep.subr.bf16.mxu0 0
      %6575 = vmatpush1.bf16.msra.mxu0 0
      %6576 = vmatprep.subr.bf16.mxu0 0
      %6577 = vmatpush1.bf16.msra.mxu0 0
      %6578 = vmatprep.mubr.bf16.mxu0 0
      %6579 = vmatmul.mubr.bf16.gmra.mrb[0].mxu0 %v6535
      %v6580 = vpop.f32.mrb[0].mxu0
      %v6581 = vadd.f32 0.0, %v6580
      %v6582 = vpop.f32.mrb[0].mxu0
      %v6583 = vpop.f32.mrb[0].mxu0
      %v6584 = vadd.f32 0.0, %v6583
      %v6585 = vpop.f32.mrb[0].mxu0
      %6586 = vmatprep.mubr.bf16.mxu0 0
      %6587 = vmatmul.mubr.bf16.gmra.mrb[0].mxu0 %v6538
      %v6588 = vpop.f32.mrb[0].mxu0
      %v6589 = vadd.f32 0.0, %v6588
      %v6590 = vpop.f32.mrb[0].mxu0
      %v6591 = vpop.f32.mrb[0].mxu0
      %v6592 = vadd.f32 0.0, %v6591
      %v6593 = vpop.f32.mrb[0].mxu0
      %6594 = vmatprep.mubr.bf16.mxu0 0
      %6595 = vmatmul.mubr.bf16.gmra.mrb[0].mxu0 %v6541
      %v6596 = vpop.f32.mrb[0].mxu0
      %v6597 = vadd.f32 0.0, %v6596
      %v6598 = vpop.f32.mrb[0].mxu0
      %v6599 = vpop.f32.mrb[0].mxu0
      %v6600 = vadd.f32 0.0, %v6599
      %v6601 = vpop.f32.mrb[0].mxu0
      %6602 = vmatprep.mubr.bf16.mxu0 0
      %6603 = vmatmul.mubr.bf16.gmra.mrb[0].mxu0 %v6544
      %v6604 = vpop.f32.mrb[0].mxu0
      %v6605 = vadd.f32 0.0, %v6604
      %v6606 = vpop.f32.mrb[0].mxu0
      %v6607 = vpop.f32.mrb[0].mxu0
      %v6608 = vadd.f32 0.0, %v6607
      %v6609 = vpop.f32.mrb[0].mxu0
      %6610 = vdwg.mxu0
      %v6611 = vpack.c.bf16 %v6584, %v6581
      %v6612 = vpack.c.bf16 %v6592, %v6589
      %v6613 = vpack.c.bf16 %v6600, %v6597
      %v6614 = vpack.c.bf16 %v6608, %v6605
      %6615 = vmatprep.subr.bf16.mxu0 0
      %6616 = vmatpush1.bf16.msra.mxu0 %v6611
      %6617 = vmatprep.subr.bf16.mxu0 0
      %6618 = vmatpush1.bf16.msra.mxu0 %v6612
      %6619 = vmatprep.subr.bf16.mxu0 0
      %6620 = vmatpush1.bf16.msra.mxu0 %v6613
      %6621 = vmatprep.subr.bf16.mxu0 0
      %6622 = vmatpush1.bf16.msra.mxu0 %v6614
      %6623 = vmatprep.subr.bf16.mxu0 0
      %6624 = vmatpush1.bf16.msra.mxu0 0
      %6625 = vmatprep.subr.bf16.mxu0 0
      %6626 = vmatpush1.bf16.msra.mxu0 0
      %6627 = vmatprep.subr.bf16.mxu0 0
      %6628 = vmatpush1.bf16.msra.mxu0 0
      %6629 = vmatprep.subr.bf16.mxu0 0
      %6630 = vmatpush1.bf16.msra.mxu0 0
      %6631 = vmatprep.subr.bf16.mxu0 0
      %6632 = vmatpush1.bf16.msra.mxu0 0
      %6633 = vmatprep.subr.bf16.mxu0 0
      %6634 = vmatpush1.bf16.msra.mxu0 0
      %6635 = vmatprep.subr.bf16.mxu0 0
      %6636 = vmatpush1.bf16.msra.mxu0 0
      %6637 = vmatprep.subr.bf16.mxu0 0
      %6638 = vmatpush1.bf16.msra.mxu0 0
      %6639 = vmatprep.subr.bf16.mxu0 0
      %6640 = vmatpush1.bf16.msra.mxu0 0
      %6641 = vmatprep.subr.bf16.mxu0 0
      %6642 = vmatpush1.bf16.msra.mxu0 0
      %6643 = vmatprep.subr.bf16.mxu0 0
      %6644 = vmatpush1.bf16.msra.mxu0 0
      %6645 = vmatprep.subr.bf16.mxu0 0
      %6646 = vmatpush1.bf16.msra.mxu0 0
      %6647 = vmatprep.mubr.bf16.mxu0 0
      %6648 = vmatmul.mubr.bf16.gmra.mrb[0].mxu0 %v790
      %v6649 = vpop.f32.mrb[0].mxu0
      %v6650 = vadd.f32 0.0, %v6649
      %v6651 = vpop.f32.mrb[0].mxu0
      %v6652 = vpop.f32.mrb[0].mxu0
      %v6653 = vadd.f32 0.0, %v6652
      %v6654 = vpop.f32.mrb[0].mxu0
      %6655 = vmatprep.mubr.bf16.mxu0 0
      %6656 = vmatmul.mubr.bf16.gmra.mrb[0].mxu0 %v793
      %v6657 = vpop.f32.mrb[0].mxu0
      %v6658 = vadd.f32 0.0, %v6657
      %v6659 = vpop.f32.mrb[0].mxu0
      %v6660 = vpop.f32.mrb[0].mxu0
      %v6661 = vadd.f32 0.0, %v6660
      %v6662 = vpop.f32.mrb[0].mxu0
      %6663 = vmatprep.mubr.bf16.mxu0 0
      %6664 = vmatmul.mubr.bf16.gmra.mrb[0].mxu0 %v796
      %v6665 = vpop.f32.mrb[0].mxu0
      %v6666 = vadd.f32 0.0, %v6665
      %v6667 = vpop.f32.mrb[0].mxu0
      %v6668 = vpop.f32.mrb[0].mxu0
      %v6669 = vadd.f32 0.0, %v6668
      %v6670 = vpop.f32.mrb[0].mxu0
      %6671 = vmatprep.mubr.bf16.mxu0 0
      %6672 = vmatmul.mubr.bf16.gmra.mrb[0].mxu0 %v799
      %v6673 = vpop.f32.mrb[0].mxu0
      %v6674 = vadd.f32 0.0, %v6673
      %v6675 = vpop.f32.mrb[0].mxu0
      %v6676 = vpop.f32.mrb[0].mxu0
      %v6677 = vadd.f32 0.0, %v6676
      %v6678 = vpop.f32.mrb[0].mxu0
      %6679 = vmatprep.mubr.bf16.mxu0 0
      %6680 = vmatmul.mubr.bf16.gmra.mrb[0].mxu0 %v802
      %v6681 = vpop.f32.mrb[0].mxu0
      %v6682 = vadd.f32 0.0, %v6681
      %v6683 = vpop.f32.mrb[0].mxu0
      %v6684 = vpop.f32.mrb[0].mxu0
      %v6685 = vadd.f32 0.0, %v6684
      %v6686 = vpop.f32.mrb[0].mxu0
      %6687 = vmatprep.mubr.bf16.mxu0 0
      %6688 = vmatmul.mubr.bf16.gmra.mrb[0].mxu0 %v805
      %v6689 = vpop.f32.mrb[0].mxu0
      %v6690 = vadd.f32 0.0, %v6689
      %v6691 = vpop.f32.mrb[0].mxu0
      %v6692 = vpop.f32.mrb[0].mxu0
      %v6693 = vadd.f32 0.0, %v6692
      %v6694 = vpop.f32.mrb[0].mxu0
      %6695 = vmatprep.mubr.bf16.mxu0 0
      %6696 = vmatmul.mubr.bf16.gmra.mrb[0].mxu0 %v808
      %v6697 = vpop.f32.mrb[0].mxu0
      %v6698 = vadd.f32 0.0, %v6697
      %v6699 = vpop.f32.mrb[0].mxu0
      %v6700 = vpop.f32.mrb[0].mxu0
      %v6701 = vadd.f32 0.0, %v6700
      %v6702 = vpop.f32.mrb[0].mxu0
      %6703 = vmatprep.mubr.bf16.mxu0 0
      %6704 = vmatmul.mubr.bf16.gmra.mrb[0].mxu0 %v811
      %v6705 = vpop.f32.mrb[0].mxu0
      %v6706 = vadd.f32 0.0, %v6705
      %v6707 = vpop.f32.mrb[0].mxu0
      %v6708 = vpop.f32.mrb[0].mxu0
      %v6709 = vadd.f32 0.0, %v6708
      %v6710 = vpop.f32.mrb[0].mxu0
      %6711 = vdwg.mxu0
      %v6712 = vsel %vm911, %v6650, %v6682
      %v6713 = vsel %vm911, %v6653, %v6685
      %v6714 = vsel %vm911, %v6658, %v6690
      %v6715 = vsel %vm911, %v6661, %v6693
      %v6716 = vsel %vm911, %v6666, %v6698
      %v6717 = vsel %vm911, %v6669, %v6701
      %v6718 = vsel %vm911, %v6674, %v6706
      %v6719 = vsel %vm911, %v6677, %v6709
      %v6720 = vadd.f32 %v6712, %v923
      %v6721 = vadd.f32 %v6713, %v928
      %v6722 = vadd.f32 %v6714, %v933
      %v6723 = vadd.f32 %v6715, %v938
      %v6724 = vadd.f32 %v6716, %v943
      %v6725 = vadd.f32 %v6717, %v948
      %v6726 = vadd.f32 %v6718, %v953
      %v6727 = vadd.f32 %v6719, %v958
      %s6728 = scalar_lea.vmem %s237, 640
      %6729 = vst.msk [vmem:[%s6728] sm:$0xff] %vm968, %v6720
      %6730 = vst.msk [vmem:[%s6728 + $0x8] sm:$0xff] %vm968, %v6721
      %6731 = vst.msk [vmem:[%s6728 + $0x10] sm:$0xff] %vm968, %v6722
      %6732 = vst.msk [vmem:[%s6728 + $0x18] sm:$0xff] %vm968, %v6723
      %s6733 = scalar_lea.vmem %s237, 672
      %6734 = vst.msk [vmem:[%s6733] sm:$0xff] %vm968, %v6724
      %6735 = vst.msk [vmem:[%s6733 + $0x8] sm:$0xff] %vm968, %v6725
      %6736 = vst.msk [vmem:[%s6733 + $0x10] sm:$0xff] %vm968, %v6726
      %6737 = vst.msk [vmem:[%s6733 + $0x18] sm:$0xff] %vm968, %v6727
      %v6738 = vld [vmem:[%s226 + $0xb] sm:$0x1]
      %v6739 = vld [vmem:[%s226 + $0x1b] sm:$0x1]
      %v6740 = vld [vmem:[%s226 + $0x2b] sm:$0x1]
      %v6741 = vld [vmem:[%s226 + $0x3b] sm:$0x1]
      %v6742 = vld [vmem:[%s226 + $0x4b] sm:$0x1]
      %v6743 = vld [vmem:[%s226 + $0x5b] sm:$0x1]
      %v6744 = vld [vmem:[%s226 + $0x6b] sm:$0x1]
      %v6745 = vld [vmem:[%s226 + $0x7b] sm:$0x1]
      %v6746 = vld [vmem:[%s226 + $0x8b] sm:$0x1]
      %v6747 = vld [vmem:[%s226 + $0x9b] sm:$0x1]
      %v6748 = vld [vmem:[%s226 + $0xab] sm:$0x1]
      %v6749 = vld [vmem:[%s226 + $0xbb] sm:$0x1]
      %v6750 = vld [vmem:[%s226 + $0xcb] sm:$0x1]
      %v6751 = vld [vmem:[%s226 + $0xdb] sm:$0x1]
      %v6752 = vld [vmem:[%s226 + $0xeb] sm:$0x1]
      %v6753 = vld [vmem:[%s226 + $0xfb] sm:$0x1]
      %v6754 = vld [vmem:[%s226 + $0x10b] sm:$0x1]
      %v6755 = vld [vmem:[%s226 + $0x11b] sm:$0x1]
      %v6756 = vld [vmem:[%s226 + $0x12b] sm:$0x1]
      %v6757 = vld [vmem:[%s226 + $0x13b] sm:$0x1]
      %v6758 = vld [vmem:[%s226 + $0x14b] sm:$0x1]
      %v6759 = vld [vmem:[%s226 + $0x15b] sm:$0x1]
      %v6760 = vld [vmem:[%s226 + $0x16b] sm:$0x1]
      %v6761 = vld [vmem:[%s226 + $0x17b] sm:$0x1]
      %v6762 = vld [vmem:[%s226 + $0x18b] sm:$0x1]
      %v6763 = vld [vmem:[%s226 + $0x19b] sm:$0x1]
      %v6764 = vld [vmem:[%s226 + $0x1ab] sm:$0x1]
      %v6765 = vld [vmem:[%s226 + $0x1bb] sm:$0x1]
      %v6766 = vld [vmem:[%s226 + $0x1cb] sm:$0x1]
      %v6767 = vld [vmem:[%s226 + $0x1db] sm:$0x1]
      %v6768 = vld [vmem:[%s226 + $0x1eb] sm:$0x1]
      %v6769 = vld [vmem:[%s226 + $0x1fb] sm:$0x1]
      %v6770 = vld [vmem:[%s226 + $0x20b] sm:$0x1]
      %v6771 = vld [vmem:[%s226 + $0x21b] sm:$0x1]
      %v6772 = vld [vmem:[%s226 + $0x22b] sm:$0x1]
      %v6773 = vld [vmem:[%s226 + $0x23b] sm:$0x1]
      %v6774 = vld [vmem:[%s226 + $0x24b] sm:$0x1]
      %v6775 = vld [vmem:[%s226 + $0x25b] sm:$0x1]
      %v6776 = vld [vmem:[%s226 + $0x26b] sm:$0x1]
      %v6777 = vld [vmem:[%s226 + $0x27b] sm:$0x1]
      %v6778 = vld [vmem:[%s226 + $0x28b] sm:$0x1]
      %v6779 = vld [vmem:[%s226 + $0x29b] sm:$0x1]
      %v6780 = vld [vmem:[%s226 + $0x2ab] sm:$0x1]
      %v6781 = vld [vmem:[%s226 + $0x2bb] sm:$0x1]
      %v6782 = vld [vmem:[%s226 + $0x2cb] sm:$0x1]
      %v6783 = vld [vmem:[%s226 + $0x2db] sm:$0x1]
      %v6784 = vld [vmem:[%s226 + $0x2eb] sm:$0x1]
      %v6785 = vld [vmem:[%s226 + $0x2fb] sm:$0x1]
      %v6786 = vld [vmem:[%s226 + $0x30b] sm:$0x1]
      %v6787 = vld [vmem:[%s226 + $0x31b] sm:$0x1]
      %v6788 = vld [vmem:[%s226 + $0x32b] sm:$0x1]
      %v6789 = vld [vmem:[%s226 + $0x33b] sm:$0x1]
      %v6790 = vld [vmem:[%s226 + $0x34b] sm:$0x1]
      %v6791 = vld [vmem:[%s226 + $0x35b] sm:$0x1]
      %v6792 = vld [vmem:[%s226 + $0x36b] sm:$0x1]
      %v6793 = vld [vmem:[%s226 + $0x37b] sm:$0x1]
      %v6794 = vld [vmem:[%s226 + $0x38b] sm:$0x1]
      %v6795 = vld [vmem:[%s226 + $0x39b] sm:$0x1]
      %v6796 = vld [vmem:[%s226 + $0x3ab] sm:$0x1]
      %v6797 = vld [vmem:[%s226 + $0x3bb] sm:$0x1]
      %v6798 = vld [vmem:[%s226 + $0x3cb] sm:$0x1]
      %v6799 = vld [vmem:[%s226 + $0x3db] sm:$0x1]
      %v6800 = vld [vmem:[%s226 + $0x3eb] sm:$0x1]
      %v6801 = vld [vmem:[%s226 + $0x3fb] sm:$0x1]
      %v6802 = vpack.c.bf16 %v6738, %v6738
      %v6803 = vpack.c.bf16 %v6739, %v6739
      %v6804 = vpack.c.bf16 %v6740, %v6740
      %v6805 = vpack.c.bf16 %v6741, %v6741
      %v6806 = vpack.c.bf16 %v6742, %v6742
      %v6807 = vpack.c.bf16 %v6743, %v6743
      %v6808 = vpack.c.bf16 %v6744, %v6744
      %v6809 = vpack.c.bf16 %v6745, %v6745
      %v6810 = vpack.c.bf16 %v6746, %v6746
      %v6811 = vpack.c.bf16 %v6747, %v6747
      %v6812 = vpack.c.bf16 %v6748, %v6748
      %v6813 = vpack.c.bf16 %v6749, %v6749
      %v6814 = vpack.c.bf16 %v6750, %v6750
      %v6815 = vpack.c.bf16 %v6751, %v6751
      %v6816 = vpack.c.bf16 %v6752, %v6752
      %v6817 = vpack.c.bf16 %v6753, %v6753
      %v6818 = vpack.c.bf16 %v6754, %v6754
      %v6819 = vpack.c.bf16 %v6755, %v6755
      %v6820 = vpack.c.bf16 %v6756, %v6756
      %v6821 = vpack.c.bf16 %v6757, %v6757
      %v6822 = vpack.c.bf16 %v6758, %v6758
      %v6823 = vpack.c.bf16 %v6759, %v6759
      %v6824 = vpack.c.bf16 %v6760, %v6760
      %v6825 = vpack.c.bf16 %v6761, %v6761
      %v6826 = vpack.c.bf16 %v6762, %v6762
      %v6827 = vpack.c.bf16 %v6763, %v6763
      %v6828 = vpack.c.bf16 %v6764, %v6764
      %v6829 = vpack.c.bf16 %v6765, %v6765
      %v6830 = vpack.c.bf16 %v6766, %v6766
      %v6831 = vpack.c.bf16 %v6767, %v6767
      %v6832 = vpack.c.bf16 %v6768, %v6768
      %v6833 = vpack.c.bf16 %v6769, %v6769
      %v6834 = vpack.c.bf16 %v6770, %v6770
      %v6835 = vpack.c.bf16 %v6771, %v6771
      %v6836 = vpack.c.bf16 %v6772, %v6772
      %v6837 = vpack.c.bf16 %v6773, %v6773
      %v6838 = vpack.c.bf16 %v6774, %v6774
      %v6839 = vpack.c.bf16 %v6775, %v6775
      %v6840 = vpack.c.bf16 %v6776, %v6776
      %v6841 = vpack.c.bf16 %v6777, %v6777
      %v6842 = vpack.c.bf16 %v6778, %v6778
      %v6843 = vpack.c.bf16 %v6779, %v6779
      %v6844 = vpack.c.bf16 %v6780, %v6780
      %v6845 = vpack.c.bf16 %v6781, %v6781
      %v6846 = vpack.c.bf16 %v6782, %v6782
      %v6847 = vpack.c.bf16 %v6783, %v6783
      %v6848 = vpack.c.bf16 %v6784, %v6784
      %v6849 = vpack.c.bf16 %v6785, %v6785
      %v6850 = vpack.c.bf16 %v6786, %v6786
      %v6851 = vpack.c.bf16 %v6787, %v6787
      %v6852 = vpack.c.bf16 %v6788, %v6788
      %v6853 = vpack.c.bf16 %v6789, %v6789
      %v6854 = vpack.c.bf16 %v6790, %v6790
      %v6855 = vpack.c.bf16 %v6791, %v6791
      %v6856 = vpack.c.bf16 %v6792, %v6792
      %v6857 = vpack.c.bf16 %v6793, %v6793
      %v6858 = vpack.c.bf16 %v6794, %v6794
      %v6859 = vpack.c.bf16 %v6795, %v6795
      %v6860 = vpack.c.bf16 %v6796, %v6796
      %v6861 = vpack.c.bf16 %v6797, %v6797
      %v6862 = vpack.c.bf16 %v6798, %v6798
      %v6863 = vpack.c.bf16 %v6799, %v6799
      %v6864 = vpack.c.bf16 %v6800, %v6800
      %v6865 = vpack.c.bf16 %v6801, %v6801
      %v6930 = vunpack.c.l.b16 %v6802
      %v6931 = vunpack.c.l.b16 %v6803
      %v6932 = vunpack.c.l.b16 %v6804
      %v6933 = vunpack.c.l.b16 %v6805
      %v6934 = vunpack.c.l.b16 %v6806
      %v6935 = vunpack.c.l.b16 %v6807
      %v6936 = vunpack.c.l.b16 %v6808
      %v6937 = vunpack.c.l.b16 %v6809
      %v6938 = vunpack.c.l.b16 %v6810
      %v6939 = vunpack.c.l.b16 %v6811
      %v6940 = vunpack.c.l.b16 %v6812
      %v6941 = vunpack.c.l.b16 %v6813
      %v6942 = vunpack.c.l.b16 %v6814
      %v6943 = vunpack.c.l.b16 %v6815
      %v6944 = vunpack.c.l.b16 %v6816
      %v6945 = vunpack.c.l.b16 %v6817
      %v6946 = vunpack.c.l.b16 %v6818
      %v6947 = vunpack.c.l.b16 %v6819
      %v6948 = vunpack.c.l.b16 %v6820
      %v6949 = vunpack.c.l.b16 %v6821
      %v6950 = vunpack.c.l.b16 %v6822
      %v6951 = vunpack.c.l.b16 %v6823
      %v6952 = vunpack.c.l.b16 %v6824
      %v6953 = vunpack.c.l.b16 %v6825
      %v6954 = vunpack.c.l.b16 %v6826
      %v6955 = vunpack.c.l.b16 %v6827
      %v6956 = vunpack.c.l.b16 %v6828
      %v6957 = vunpack.c.l.b16 %v6829
      %v6958 = vunpack.c.l.b16 %v6830
      %v6959 = vunpack.c.l.b16 %v6831
      %v6960 = vunpack.c.l.b16 %v6832
      %v6961 = vunpack.c.l.b16 %v6833
      %v6962 = vunpack.c.l.b16 %v6834
      %v6963 = vunpack.c.l.b16 %v6835
      %v6964 = vunpack.c.l.b16 %v6836
      %v6965 = vunpack.c.l.b16 %v6837
      %v6966 = vunpack.c.l.b16 %v6838
      %v6967 = vunpack.c.l.b16 %v6839
      %v6968 = vunpack.c.l.b16 %v6840
      %v6969 = vunpack.c.l.b16 %v6841
      %v6970 = vunpack.c.l.b16 %v6842
      %v6971 = vunpack.c.l.b16 %v6843
      %v6972 = vunpack.c.l.b16 %v6844
      %v6973 = vunpack.c.l.b16 %v6845
      %v6974 = vunpack.c.l.b16 %v6846
      %v6975 = vunpack.c.l.b16 %v6847
      %v6976 = vunpack.c.l.b16 %v6848
      %v6977 = vunpack.c.l.b16 %v6849
      %v6978 = vunpack.c.l.b16 %v6850
      %v6979 = vunpack.c.l.b16 %v6851
      %v6980 = vunpack.c.l.b16 %v6852
      %v6981 = vunpack.c.l.b16 %v6853
      %v6982 = vunpack.c.l.b16 %v6854
      %v6983 = vunpack.c.l.b16 %v6855
      %v6984 = vunpack.c.l.b16 %v6856
      %v6985 = vunpack.c.l.b16 %v6857
      %v6986 = vunpack.c.l.b16 %v6858
      %v6987 = vunpack.c.l.b16 %v6859
      %v6988 = vunpack.c.l.b16 %v6860
      %v6989 = vunpack.c.l.b16 %v6861
      %v6990 = vunpack.c.l.b16 %v6862
      %v6991 = vunpack.c.l.b16 %v6863
      %v6992 = vunpack.c.l.b16 %v6864
      %v6993 = vunpack.c.l.b16 %v6865
      %v6994 = vrot.slane %v6931, 7
      %v6995 = vsel %vm538, %v6994, %v6930
      %v6996 = vrot.slane %v6932, 6
      %v6997 = vsel %vm541, %v6996, %v6995
      %v6998 = vrot.slane %v6933, 5
      %v6999 = vsel %vm544, %v6998, %v6997
      %v7000 = vrot.slane %v6934, 4
      %v7001 = vsel %vm547, %v7000, %v6999
      %v7002 = vrot.slane %v6935, 3
      %v7003 = vsel %vm550, %v7002, %v7001
      %v7004 = vrot.slane %v6936, 2
      %v7005 = vsel %vm553, %v7004, %v7003
      %v7006 = vrot.slane %v6937, 1
      %v7007 = vsel %vm556, %v7006, %v7005
      %v7008 = vrot.slane %v6939, 7
      %v7009 = vsel %vm538, %v7008, %v6938
      %v7010 = vrot.slane %v6940, 6
      %v7011 = vsel %vm541, %v7010, %v7009
      %v7012 = vrot.slane %v6941, 5
      %v7013 = vsel %vm544, %v7012, %v7011
      %v7014 = vrot.slane %v6942, 4
      %v7015 = vsel %vm547, %v7014, %v7013
      %v7016 = vrot.slane %v6943, 3
      %v7017 = vsel %vm550, %v7016, %v7015
      %v7018 = vrot.slane %v6944, 2
      %v7019 = vsel %vm553, %v7018, %v7017
      %v7020 = vrot.slane %v6945, 1
      %v7021 = vsel %vm556, %v7020, %v7019
      %v7022 = vrot.slane %v6947, 7
      %v7023 = vsel %vm538, %v7022, %v6946
      %v7024 = vrot.slane %v6948, 6
      %v7025 = vsel %vm541, %v7024, %v7023
      %v7026 = vrot.slane %v6949, 5
      %v7027 = vsel %vm544, %v7026, %v7025
      %v7028 = vrot.slane %v6950, 4
      %v7029 = vsel %vm547, %v7028, %v7027
      %v7030 = vrot.slane %v6951, 3
      %v7031 = vsel %vm550, %v7030, %v7029
      %v7032 = vrot.slane %v6952, 2
      %v7033 = vsel %vm553, %v7032, %v7031
      %v7034 = vrot.slane %v6953, 1
      %v7035 = vsel %vm556, %v7034, %v7033
      %v7036 = vrot.slane %v6955, 7
      %v7037 = vsel %vm538, %v7036, %v6954
      %v7038 = vrot.slane %v6956, 6
      %v7039 = vsel %vm541, %v7038, %v7037
      %v7040 = vrot.slane %v6957, 5
      %v7041 = vsel %vm544, %v7040, %v7039
      %v7042 = vrot.slane %v6958, 4
      %v7043 = vsel %vm547, %v7042, %v7041
      %v7044 = vrot.slane %v6959, 3
      %v7045 = vsel %vm550, %v7044, %v7043
      %v7046 = vrot.slane %v6960, 2
      %v7047 = vsel %vm553, %v7046, %v7045
      %v7048 = vrot.slane %v6961, 1
      %v7049 = vsel %vm556, %v7048, %v7047
      %v7050 = vrot.slane %v6963, 7
      %v7051 = vsel %vm538, %v7050, %v6962
      %v7052 = vrot.slane %v6964, 6
      %v7053 = vsel %vm541, %v7052, %v7051
      %v7054 = vrot.slane %v6965, 5
      %v7055 = vsel %vm544, %v7054, %v7053
      %v7056 = vrot.slane %v6966, 4
      %v7057 = vsel %vm547, %v7056, %v7055
      %v7058 = vrot.slane %v6967, 3
      %v7059 = vsel %vm550, %v7058, %v7057
      %v7060 = vrot.slane %v6968, 2
      %v7061 = vsel %vm553, %v7060, %v7059
      %v7062 = vrot.slane %v6969, 1
      %v7063 = vsel %vm556, %v7062, %v7061
      %v7064 = vrot.slane %v6971, 7
      %v7065 = vsel %vm538, %v7064, %v6970
      %v7066 = vrot.slane %v6972, 6
      %v7067 = vsel %vm541, %v7066, %v7065
      %v7068 = vrot.slane %v6973, 5
      %v7069 = vsel %vm544, %v7068, %v7067
      %v7070 = vrot.slane %v6974, 4
      %v7071 = vsel %vm547, %v7070, %v7069
      %v7072 = vrot.slane %v6975, 3
      %v7073 = vsel %vm550, %v7072, %v7071
      %v7074 = vrot.slane %v6976, 2
      %v7075 = vsel %vm553, %v7074, %v7073
      %v7076 = vrot.slane %v6977, 1
      %v7077 = vsel %vm556, %v7076, %v7075
      %v7078 = vrot.slane %v6979, 7
      %v7079 = vsel %vm538, %v7078, %v6978
      %v7080 = vrot.slane %v6980, 6
      %v7081 = vsel %vm541, %v7080, %v7079
      %v7082 = vrot.slane %v6981, 5
      %v7083 = vsel %vm544, %v7082, %v7081
      %v7084 = vrot.slane %v6982, 4
      %v7085 = vsel %vm547, %v7084, %v7083
      %v7086 = vrot.slane %v6983, 3
      %v7087 = vsel %vm550, %v7086, %v7085
      %v7088 = vrot.slane %v6984, 2
      %v7089 = vsel %vm553, %v7088, %v7087
      %v7090 = vrot.slane %v6985, 1
      %v7091 = vsel %vm556, %v7090, %v7089
      %v7092 = vrot.slane %v6987, 7
      %v7093 = vsel %vm538, %v7092, %v6986
      %v7094 = vrot.slane %v6988, 6
      %v7095 = vsel %vm541, %v7094, %v7093
      %v7096 = vrot.slane %v6989, 5
      %v7097 = vsel %vm544, %v7096, %v7095
      %v7098 = vrot.slane %v6990, 4
      %v7099 = vsel %vm547, %v7098, %v7097
      %v7100 = vrot.slane %v6991, 3
      %v7101 = vsel %vm550, %v7100, %v7099
      %v7102 = vrot.slane %v6992, 2
      %v7103 = vsel %vm553, %v7102, %v7101
      %v7104 = vrot.slane %v6993, 1
      %v7105 = vsel %vm556, %v7104, %v7103
      %v7106 = vpack.c.b16 %v7021, %v7007
      %v7107 = vpack.c.b16 %v7049, %v7035
      %v7108 = vpack.c.b16 %v7077, %v7063
      %v7109 = vpack.c.b16 %v7105, %v7091
      %v7111 = vsel %vm666, %v7106, 0
      %v7114 = vsel %vm666, %v7107, 0
      %v7117 = vsel %vm666, %v7108, 0
      %v7120 = vsel %vm666, %v7109, 0
      %7122 = vmatprep.subr.bf16.mxu0 0
      %7123 = vmatpush1.bf16.msra.mxu0 %v664
      %7124 = vmatprep.subr.bf16.mxu0 0
      %7125 = vmatpush1.bf16.msra.mxu0 0
      %7126 = vmatprep.subr.bf16.mxu0 0
      %7127 = vmatpush1.bf16.msra.mxu0 0
      %7128 = vmatprep.subr.bf16.mxu0 0
      %7129 = vmatpush1.bf16.msra.mxu0 0
      %7130 = vmatprep.subr.bf16.mxu0 0
      %7131 = vmatpush1.bf16.msra.mxu0 0
      %7132 = vmatprep.subr.bf16.mxu0 0
      %7133 = vmatpush1.bf16.msra.mxu0 0
      %7134 = vmatprep.subr.bf16.mxu0 0
      %7135 = vmatpush1.bf16.msra.mxu0 0
      %7136 = vmatprep.subr.bf16.mxu0 0
      %7137 = vmatpush1.bf16.msra.mxu0 0
      %7138 = vmatprep.subr.bf16.mxu0 0
      %7139 = vmatpush1.bf16.msra.mxu0 0
      %7140 = vmatprep.subr.bf16.mxu0 0
      %7141 = vmatpush1.bf16.msra.mxu0 0
      %7142 = vmatprep.subr.bf16.mxu0 0
      %7143 = vmatpush1.bf16.msra.mxu0 0
      %7144 = vmatprep.subr.bf16.mxu0 0
      %7145 = vmatpush1.bf16.msra.mxu0 0
      %7146 = vmatprep.subr.bf16.mxu0 0
      %7147 = vmatpush1.bf16.msra.mxu0 0
      %7148 = vmatprep.subr.bf16.mxu0 0
      %7149 = vmatpush1.bf16.msra.mxu0 0
      %7150 = vmatprep.subr.bf16.mxu0 0
      %7151 = vmatpush1.bf16.msra.mxu0 0
      %7152 = vmatprep.subr.bf16.mxu0 0
      %7153 = vmatpush1.bf16.msra.mxu0 0
      %7154 = vmatprep.mubr.bf16.mxu0 0
      %7155 = vmatmul.mubr.bf16.gmra.mrb[0].mxu0 %v7111
      %v7156 = vpop.f32.mrb[0].mxu0
      %v7157 = vadd.f32 0.0, %v7156
      %v7158 = vpop.f32.mrb[0].mxu0
      %v7159 = vpop.f32.mrb[0].mxu0
      %v7160 = vadd.f32 0.0, %v7159
      %v7161 = vpop.f32.mrb[0].mxu0
      %7162 = vmatprep.mubr.bf16.mxu0 0
      %7163 = vmatmul.mubr.bf16.gmra.mrb[0].mxu0 %v7114
      %v7164 = vpop.f32.mrb[0].mxu0
      %v7165 = vadd.f32 0.0, %v7164
      %v7166 = vpop.f32.mrb[0].mxu0
      %v7167 = vpop.f32.mrb[0].mxu0
      %v7168 = vadd.f32 0.0, %v7167
      %v7169 = vpop.f32.mrb[0].mxu0
      %7170 = vmatprep.mubr.bf16.mxu0 0
      %7171 = vmatmul.mubr.bf16.gmra.mrb[0].mxu0 %v7117
      %v7172 = vpop.f32.mrb[0].mxu0
      %v7173 = vadd.f32 0.0, %v7172
      %v7174 = vpop.f32.mrb[0].mxu0
      %v7175 = vpop.f32.mrb[0].mxu0
      %v7176 = vadd.f32 0.0, %v7175
      %v7177 = vpop.f32.mrb[0].mxu0
      %7178 = vmatprep.mubr.bf16.mxu0 0
      %7179 = vmatmul.mubr.bf16.gmra.mrb[0].mxu0 %v7120
      %v7180 = vpop.f32.mrb[0].mxu0
      %v7181 = vadd.f32 0.0, %v7180
      %v7182 = vpop.f32.mrb[0].mxu0
      %v7183 = vpop.f32.mrb[0].mxu0
      %v7184 = vadd.f32 0.0, %v7183
      %v7185 = vpop.f32.mrb[0].mxu0
      %7186 = vdwg.mxu0
      %v7187 = vpack.c.bf16 %v7160, %v7157
      %v7188 = vpack.c.bf16 %v7168, %v7165
      %v7189 = vpack.c.bf16 %v7176, %v7173
      %v7190 = vpack.c.bf16 %v7184, %v7181
      %7191 = vmatprep.subr.bf16.mxu0 0
      %7192 = vmatpush1.bf16.msra.mxu0 %v7187
      %7193 = vmatprep.subr.bf16.mxu0 0
      %7194 = vmatpush1.bf16.msra.mxu0 %v7188
      %7195 = vmatprep.subr.bf16.mxu0 0
      %7196 = vmatpush1.bf16.msra.mxu0 %v7189
      %7197 = vmatprep.subr.bf16.mxu0 0
      %7198 = vmatpush1.bf16.msra.mxu0 %v7190
      %7199 = vmatprep.subr.bf16.mxu0 0
      %7200 = vmatpush1.bf16.msra.mxu0 0
      %7201 = vmatprep.subr.bf16.mxu0 0
      %7202 = vmatpush1.bf16.msra.mxu0 0
      %7203 = vmatprep.subr.bf16.mxu0 0
      %7204 = vmatpush1.bf16.msra.mxu0 0
      %7205 = vmatprep.subr.bf16.mxu0 0
      %7206 = vmatpush1.bf16.msra.mxu0 0
      %7207 = vmatprep.subr.bf16.mxu0 0
      %7208 = vmatpush1.bf16.msra.mxu0 0
      %7209 = vmatprep.subr.bf16.mxu0 0
      %7210 = vmatpush1.bf16.msra.mxu0 0
      %7211 = vmatprep.subr.bf16.mxu0 0
      %7212 = vmatpush1.bf16.msra.mxu0 0
      %7213 = vmatprep.subr.bf16.mxu0 0
      %7214 = vmatpush1.bf16.msra.mxu0 0
      %7215 = vmatprep.subr.bf16.mxu0 0
      %7216 = vmatpush1.bf16.msra.mxu0 0
      %7217 = vmatprep.subr.bf16.mxu0 0
      %7218 = vmatpush1.bf16.msra.mxu0 0
      %7219 = vmatprep.subr.bf16.mxu0 0
      %7220 = vmatpush1.bf16.msra.mxu0 0
      %7221 = vmatprep.subr.bf16.mxu0 0
      %7222 = vmatpush1.bf16.msra.mxu0 0
      %7223 = vmatprep.mubr.bf16.mxu0 0
      %7224 = vmatmul.mubr.bf16.gmra.mrb[0].mxu0 %v790
      %v7225 = vpop.f32.mrb[0].mxu0
      %v7226 = vadd.f32 0.0, %v7225
      %v7227 = vpop.f32.mrb[0].mxu0
      %v7228 = vpop.f32.mrb[0].mxu0
      %v7229 = vadd.f32 0.0, %v7228
      %v7230 = vpop.f32.mrb[0].mxu0
      %7231 = vmatprep.mubr.bf16.mxu0 0
      %7232 = vmatmul.mubr.bf16.gmra.mrb[0].mxu0 %v793
      %v7233 = vpop.f32.mrb[0].mxu0
      %v7234 = vadd.f32 0.0, %v7233
      %v7235 = vpop.f32.mrb[0].mxu0
      %v7236 = vpop.f32.mrb[0].mxu0
      %v7237 = vadd.f32 0.0, %v7236
      %v7238 = vpop.f32.mrb[0].mxu0
      %7239 = vmatprep.mubr.bf16.mxu0 0
      %7240 = vmatmul.mubr.bf16.gmra.mrb[0].mxu0 %v796
      %v7241 = vpop.f32.mrb[0].mxu0
      %v7242 = vadd.f32 0.0, %v7241
      %v7243 = vpop.f32.mrb[0].mxu0
      %v7244 = vpop.f32.mrb[0].mxu0
      %v7245 = vadd.f32 0.0, %v7244
      %v7246 = vpop.f32.mrb[0].mxu0
      %7247 = vmatprep.mubr.bf16.mxu0 0
      %7248 = vmatmul.mubr.bf16.gmra.mrb[0].mxu0 %v799
      %v7249 = vpop.f32.mrb[0].mxu0
      %v7250 = vadd.f32 0.0, %v7249
      %v7251 = vpop.f32.mrb[0].mxu0
      %v7252 = vpop.f32.mrb[0].mxu0
      %v7253 = vadd.f32 0.0, %v7252
      %v7254 = vpop.f32.mrb[0].mxu0
      %7255 = vmatprep.mubr.bf16.mxu0 0
      %7256 = vmatmul.mubr.bf16.gmra.mrb[0].mxu0 %v802
      %v7257 = vpop.f32.mrb[0].mxu0
      %v7258 = vadd.f32 0.0, %v7257
      %v7259 = vpop.f32.mrb[0].mxu0
      %v7260 = vpop.f32.mrb[0].mxu0
      %v7261 = vadd.f32 0.0, %v7260
      %v7262 = vpop.f32.mrb[0].mxu0
      %7263 = vmatprep.mubr.bf16.mxu0 0
      %7264 = vmatmul.mubr.bf16.gmra.mrb[0].mxu0 %v805
      %v7265 = vpop.f32.mrb[0].mxu0
      %v7266 = vadd.f32 0.0, %v7265
      %v7267 = vpop.f32.mrb[0].mxu0
      %v7268 = vpop.f32.mrb[0].mxu0
      %v7269 = vadd.f32 0.0, %v7268
      %v7270 = vpop.f32.mrb[0].mxu0
      %7271 = vmatprep.mubr.bf16.mxu0 0
      %7272 = vmatmul.mubr.bf16.gmra.mrb[0].mxu0 %v808
      %v7273 = vpop.f32.mrb[0].mxu0
      %v7274 = vadd.f32 0.0, %v7273
      %v7275 = vpop.f32.mrb[0].mxu0
      %v7276 = vpop.f32.mrb[0].mxu0
      %v7277 = vadd.f32 0.0, %v7276
      %v7278 = vpop.f32.mrb[0].mxu0
      %7279 = vmatprep.mubr.bf16.mxu0 0
      %7280 = vmatmul.mubr.bf16.gmra.mrb[0].mxu0 %v811
      %v7281 = vpop.f32.mrb[0].mxu0
      %v7282 = vadd.f32 0.0, %v7281
      %v7283 = vpop.f32.mrb[0].mxu0
      %v7284 = vpop.f32.mrb[0].mxu0
      %v7285 = vadd.f32 0.0, %v7284
      %v7286 = vpop.f32.mrb[0].mxu0
      %7287 = vdwg.mxu0
      %v7288 = vsel %vm911, %v7226, %v7258
      %v7289 = vsel %vm911, %v7229, %v7261
      %v7290 = vsel %vm911, %v7234, %v7266
      %v7291 = vsel %vm911, %v7237, %v7269
      %v7292 = vsel %vm911, %v7242, %v7274
      %v7293 = vsel %vm911, %v7245, %v7277
      %v7294 = vsel %vm911, %v7250, %v7282
      %v7295 = vsel %vm911, %v7253, %v7285
      %v7296 = vadd.f32 %v7288, %v923
      %v7297 = vadd.f32 %v7289, %v928
      %v7298 = vadd.f32 %v7290, %v933
      %v7299 = vadd.f32 %v7291, %v938
      %v7300 = vadd.f32 %v7292, %v943
      %v7301 = vadd.f32 %v7293, %v948
      %v7302 = vadd.f32 %v7294, %v953
      %v7303 = vadd.f32 %v7295, %v958
      %s7304 = scalar_lea.vmem %s237, 704
      %7305 = vst.msk [vmem:[%s7304] sm:$0xff] %vm968, %v7296
      %7306 = vst.msk [vmem:[%s7304 + $0x8] sm:$0xff] %vm968, %v7297
      %7307 = vst.msk [vmem:[%s7304 + $0x10] sm:$0xff] %vm968, %v7298
      %7308 = vst.msk [vmem:[%s7304 + $0x18] sm:$0xff] %vm968, %v7299
      %s7309 = scalar_lea.vmem %s237, 736
      %7310 = vst.msk [vmem:[%s7309] sm:$0xff] %vm968, %v7300
      %7311 = vst.msk [vmem:[%s7309 + $0x8] sm:$0xff] %vm968, %v7301
      %7312 = vst.msk [vmem:[%s7309 + $0x10] sm:$0xff] %vm968, %v7302
      %7313 = vst.msk [vmem:[%s7309 + $0x18] sm:$0xff] %vm968, %v7303
      %v7314 = vld [vmem:[%s226 + $0xc] sm:$0x1]
      %v7315 = vld [vmem:[%s226 + $0x1c] sm:$0x1]
      %v7316 = vld [vmem:[%s226 + $0x2c] sm:$0x1]
      %v7317 = vld [vmem:[%s226 + $0x3c] sm:$0x1]
      %v7318 = vld [vmem:[%s226 + $0x4c] sm:$0x1]
      %v7319 = vld [vmem:[%s226 + $0x5c] sm:$0x1]
      %v7320 = vld [vmem:[%s226 + $0x6c] sm:$0x1]
      %v7321 = vld [vmem:[%s226 + $0x7c] sm:$0x1]
      %v7322 = vld [vmem:[%s226 + $0x8c] sm:$0x1]
      %v7323 = vld [vmem:[%s226 + $0x9c] sm:$0x1]
      %v7324 = vld [vmem:[%s226 + $0xac] sm:$0x1]
      %v7325 = vld [vmem:[%s226 + $0xbc] sm:$0x1]
      %v7326 = vld [vmem:[%s226 + $0xcc] sm:$0x1]
      %v7327 = vld [vmem:[%s226 + $0xdc] sm:$0x1]
      %v7328 = vld [vmem:[%s226 + $0xec] sm:$0x1]
      %v7329 = vld [vmem:[%s226 + $0xfc] sm:$0x1]
      %v7330 = vld [vmem:[%s226 + $0x10c] sm:$0x1]
      %v7331 = vld [vmem:[%s226 + $0x11c] sm:$0x1]
      %v7332 = vld [vmem:[%s226 + $0x12c] sm:$0x1]
      %v7333 = vld [vmem:[%s226 + $0x13c] sm:$0x1]
      %v7334 = vld [vmem:[%s226 + $0x14c] sm:$0x1]
      %v7335 = vld [vmem:[%s226 + $0x15c] sm:$0x1]
      %v7336 = vld [vmem:[%s226 + $0x16c] sm:$0x1]
      %v7337 = vld [vmem:[%s226 + $0x17c] sm:$0x1]
      %v7338 = vld [vmem:[%s226 + $0x18c] sm:$0x1]
      %v7339 = vld [vmem:[%s226 + $0x19c] sm:$0x1]
      %v7340 = vld [vmem:[%s226 + $0x1ac] sm:$0x1]
      %v7341 = vld [vmem:[%s226 + $0x1bc] sm:$0x1]
      %v7342 = vld [vmem:[%s226 + $0x1cc] sm:$0x1]
      %v7343 = vld [vmem:[%s226 + $0x1dc] sm:$0x1]
      %v7344 = vld [vmem:[%s226 + $0x1ec] sm:$0x1]
      %v7345 = vld [vmem:[%s226 + $0x1fc] sm:$0x1]
      %v7346 = vld [vmem:[%s226 + $0x20c] sm:$0x1]
      %v7347 = vld [vmem:[%s226 + $0x21c] sm:$0x1]
      %v7348 = vld [vmem:[%s226 + $0x22c] sm:$0x1]
      %v7349 = vld [vmem:[%s226 + $0x23c] sm:$0x1]
      %v7350 = vld [vmem:[%s226 + $0x24c] sm:$0x1]
      %v7351 = vld [vmem:[%s226 + $0x25c] sm:$0x1]
      %v7352 = vld [vmem:[%s226 + $0x26c] sm:$0x1]
      %v7353 = vld [vmem:[%s226 + $0x27c] sm:$0x1]
      %v7354 = vld [vmem:[%s226 + $0x28c] sm:$0x1]
      %v7355 = vld [vmem:[%s226 + $0x29c] sm:$0x1]
      %v7356 = vld [vmem:[%s226 + $0x2ac] sm:$0x1]
      %v7357 = vld [vmem:[%s226 + $0x2bc] sm:$0x1]
      %v7358 = vld [vmem:[%s226 + $0x2cc] sm:$0x1]
      %v7359 = vld [vmem:[%s226 + $0x2dc] sm:$0x1]
      %v7360 = vld [vmem:[%s226 + $0x2ec] sm:$0x1]
      %v7361 = vld [vmem:[%s226 + $0x2fc] sm:$0x1]
      %v7362 = vld [vmem:[%s226 + $0x30c] sm:$0x1]
      %v7363 = vld [vmem:[%s226 + $0x31c] sm:$0x1]
      %v7364 = vld [vmem:[%s226 + $0x32c] sm:$0x1]
      %v7365 = vld [vmem:[%s226 + $0x33c] sm:$0x1]
      %v7366 = vld [vmem:[%s226 + $0x34c] sm:$0x1]
      %v7367 = vld [vmem:[%s226 + $0x35c] sm:$0x1]
      %v7368 = vld [vmem:[%s226 + $0x36c] sm:$0x1]
      %v7369 = vld [vmem:[%s226 + $0x37c] sm:$0x1]
      %v7370 = vld [vmem:[%s226 + $0x38c] sm:$0x1]
      %v7371 = vld [vmem:[%s226 + $0x39c] sm:$0x1]
      %v7372 = vld [vmem:[%s226 + $0x3ac] sm:$0x1]
      %v7373 = vld [vmem:[%s226 + $0x3bc] sm:$0x1]
      %v7374 = vld [vmem:[%s226 + $0x3cc] sm:$0x1]
      %v7375 = vld [vmem:[%s226 + $0x3dc] sm:$0x1]
      %v7376 = vld [vmem:[%s226 + $0x3ec] sm:$0x1]
      %v7377 = vld [vmem:[%s226 + $0x3fc] sm:$0x1]
      %v7378 = vpack.c.bf16 %v7314, %v7314
      %v7379 = vpack.c.bf16 %v7315, %v7315
      %v7380 = vpack.c.bf16 %v7316, %v7316
      %v7381 = vpack.c.bf16 %v7317, %v7317
      %v7382 = vpack.c.bf16 %v7318, %v7318
      %v7383 = vpack.c.bf16 %v7319, %v7319
      %v7384 = vpack.c.bf16 %v7320, %v7320
      %v7385 = vpack.c.bf16 %v7321, %v7321
      %v7386 = vpack.c.bf16 %v7322, %v7322
      %v7387 = vpack.c.bf16 %v7323, %v7323
      %v7388 = vpack.c.bf16 %v7324, %v7324
      %v7389 = vpack.c.bf16 %v7325, %v7325
      %v7390 = vpack.c.bf16 %v7326, %v7326
      %v7391 = vpack.c.bf16 %v7327, %v7327
      %v7392 = vpack.c.bf16 %v7328, %v7328
      %v7393 = vpack.c.bf16 %v7329, %v7329
      %v7394 = vpack.c.bf16 %v7330, %v7330
      %v7395 = vpack.c.bf16 %v7331, %v7331
      %v7396 = vpack.c.bf16 %v7332, %v7332
      %v7397 = vpack.c.bf16 %v7333, %v7333
      %v7398 = vpack.c.bf16 %v7334, %v7334
      %v7399 = vpack.c.bf16 %v7335, %v7335
      %v7400 = vpack.c.bf16 %v7336, %v7336
      %v7401 = vpack.c.bf16 %v7337, %v7337
      %v7402 = vpack.c.bf16 %v7338, %v7338
      %v7403 = vpack.c.bf16 %v7339, %v7339
      %v7404 = vpack.c.bf16 %v7340, %v7340
      %v7405 = vpack.c.bf16 %v7341, %v7341
      %v7406 = vpack.c.bf16 %v7342, %v7342
      %v7407 = vpack.c.bf16 %v7343, %v7343
      %v7408 = vpack.c.bf16 %v7344, %v7344
      %v7409 = vpack.c.bf16 %v7345, %v7345
      %v7410 = vpack.c.bf16 %v7346, %v7346
      %v7411 = vpack.c.bf16 %v7347, %v7347
      %v7412 = vpack.c.bf16 %v7348, %v7348
      %v7413 = vpack.c.bf16 %v7349, %v7349
      %v7414 = vpack.c.bf16 %v7350, %v7350
      %v7415 = vpack.c.bf16 %v7351, %v7351
      %v7416 = vpack.c.bf16 %v7352, %v7352
      %v7417 = vpack.c.bf16 %v7353, %v7353
      %v7418 = vpack.c.bf16 %v7354, %v7354
      %v7419 = vpack.c.bf16 %v7355, %v7355
      %v7420 = vpack.c.bf16 %v7356, %v7356
      %v7421 = vpack.c.bf16 %v7357, %v7357
      %v7422 = vpack.c.bf16 %v7358, %v7358
      %v7423 = vpack.c.bf16 %v7359, %v7359
      %v7424 = vpack.c.bf16 %v7360, %v7360
      %v7425 = vpack.c.bf16 %v7361, %v7361
      %v7426 = vpack.c.bf16 %v7362, %v7362
      %v7427 = vpack.c.bf16 %v7363, %v7363
      %v7428 = vpack.c.bf16 %v7364, %v7364
      %v7429 = vpack.c.bf16 %v7365, %v7365
      %v7430 = vpack.c.bf16 %v7366, %v7366
      %v7431 = vpack.c.bf16 %v7367, %v7367
      %v7432 = vpack.c.bf16 %v7368, %v7368
      %v7433 = vpack.c.bf16 %v7369, %v7369
      %v7434 = vpack.c.bf16 %v7370, %v7370
      %v7435 = vpack.c.bf16 %v7371, %v7371
      %v7436 = vpack.c.bf16 %v7372, %v7372
      %v7437 = vpack.c.bf16 %v7373, %v7373
      %v7438 = vpack.c.bf16 %v7374, %v7374
      %v7439 = vpack.c.bf16 %v7375, %v7375
      %v7440 = vpack.c.bf16 %v7376, %v7376
      %v7441 = vpack.c.bf16 %v7377, %v7377
      %v7506 = vunpack.c.l.b16 %v7378
      %v7507 = vunpack.c.l.b16 %v7379
      %v7508 = vunpack.c.l.b16 %v7380
      %v7509 = vunpack.c.l.b16 %v7381
      %v7510 = vunpack.c.l.b16 %v7382
      %v7511 = vunpack.c.l.b16 %v7383
      %v7512 = vunpack.c.l.b16 %v7384
      %v7513 = vunpack.c.l.b16 %v7385
      %v7514 = vunpack.c.l.b16 %v7386
      %v7515 = vunpack.c.l.b16 %v7387
      %v7516 = vunpack.c.l.b16 %v7388
      %v7517 = vunpack.c.l.b16 %v7389
      %v7518 = vunpack.c.l.b16 %v7390
      %v7519 = vunpack.c.l.b16 %v7391
      %v7520 = vunpack.c.l.b16 %v7392
      %v7521 = vunpack.c.l.b16 %v7393
      %v7522 = vunpack.c.l.b16 %v7394
      %v7523 = vunpack.c.l.b16 %v7395
      %v7524 = vunpack.c.l.b16 %v7396
      %v7525 = vunpack.c.l.b16 %v7397
      %v7526 = vunpack.c.l.b16 %v7398
      %v7527 = vunpack.c.l.b16 %v7399
      %v7528 = vunpack.c.l.b16 %v7400
      %v7529 = vunpack.c.l.b16 %v7401
      %v7530 = vunpack.c.l.b16 %v7402
      %v7531 = vunpack.c.l.b16 %v7403
      %v7532 = vunpack.c.l.b16 %v7404
      %v7533 = vunpack.c.l.b16 %v7405
      %v7534 = vunpack.c.l.b16 %v7406
      %v7535 = vunpack.c.l.b16 %v7407
      %v7536 = vunpack.c.l.b16 %v7408
      %v7537 = vunpack.c.l.b16 %v7409
      %v7538 = vunpack.c.l.b16 %v7410
      %v7539 = vunpack.c.l.b16 %v7411
      %v7540 = vunpack.c.l.b16 %v7412
      %v7541 = vunpack.c.l.b16 %v7413
      %v7542 = vunpack.c.l.b16 %v7414
      %v7543 = vunpack.c.l.b16 %v7415
      %v7544 = vunpack.c.l.b16 %v7416
      %v7545 = vunpack.c.l.b16 %v7417
      %v7546 = vunpack.c.l.b16 %v7418
      %v7547 = vunpack.c.l.b16 %v7419
      %v7548 = vunpack.c.l.b16 %v7420
      %v7549 = vunpack.c.l.b16 %v7421
      %v7550 = vunpack.c.l.b16 %v7422
      %v7551 = vunpack.c.l.b16 %v7423
      %v7552 = vunpack.c.l.b16 %v7424
      %v7553 = vunpack.c.l.b16 %v7425
      %v7554 = vunpack.c.l.b16 %v7426
      %v7555 = vunpack.c.l.b16 %v7427
      %v7556 = vunpack.c.l.b16 %v7428
      %v7557 = vunpack.c.l.b16 %v7429
      %v7558 = vunpack.c.l.b16 %v7430
      %v7559 = vunpack.c.l.b16 %v7431
      %v7560 = vunpack.c.l.b16 %v7432
      %v7561 = vunpack.c.l.b16 %v7433
      %v7562 = vunpack.c.l.b16 %v7434
      %v7563 = vunpack.c.l.b16 %v7435
      %v7564 = vunpack.c.l.b16 %v7436
      %v7565 = vunpack.c.l.b16 %v7437
      %v7566 = vunpack.c.l.b16 %v7438
      %v7567 = vunpack.c.l.b16 %v7439
      %v7568 = vunpack.c.l.b16 %v7440
      %v7569 = vunpack.c.l.b16 %v7441
      %v7570 = vrot.slane %v7507, 7
      %v7571 = vsel %vm538, %v7570, %v7506
      %v7572 = vrot.slane %v7508, 6
      %v7573 = vsel %vm541, %v7572, %v7571
      %v7574 = vrot.slane %v7509, 5
      %v7575 = vsel %vm544, %v7574, %v7573
      %v7576 = vrot.slane %v7510, 4
      %v7577 = vsel %vm547, %v7576, %v7575
      %v7578 = vrot.slane %v7511, 3
      %v7579 = vsel %vm550, %v7578, %v7577
      %v7580 = vrot.slane %v7512, 2
      %v7581 = vsel %vm553, %v7580, %v7579
      %v7582 = vrot.slane %v7513, 1
      %v7583 = vsel %vm556, %v7582, %v7581
      %v7584 = vrot.slane %v7515, 7
      %v7585 = vsel %vm538, %v7584, %v7514
      %v7586 = vrot.slane %v7516, 6
      %v7587 = vsel %vm541, %v7586, %v7585
      %v7588 = vrot.slane %v7517, 5
      %v7589 = vsel %vm544, %v7588, %v7587
      %v7590 = vrot.slane %v7518, 4
      %v7591 = vsel %vm547, %v7590, %v7589
      %v7592 = vrot.slane %v7519, 3
      %v7593 = vsel %vm550, %v7592, %v7591
      %v7594 = vrot.slane %v7520, 2
      %v7595 = vsel %vm553, %v7594, %v7593
      %v7596 = vrot.slane %v7521, 1
      %v7597 = vsel %vm556, %v7596, %v7595
      %v7598 = vrot.slane %v7523, 7
      %v7599 = vsel %vm538, %v7598, %v7522
      %v7600 = vrot.slane %v7524, 6
      %v7601 = vsel %vm541, %v7600, %v7599
      %v7602 = vrot.slane %v7525, 5
      %v7603 = vsel %vm544, %v7602, %v7601
      %v7604 = vrot.slane %v7526, 4
      %v7605 = vsel %vm547, %v7604, %v7603
      %v7606 = vrot.slane %v7527, 3
      %v7607 = vsel %vm550, %v7606, %v7605
      %v7608 = vrot.slane %v7528, 2
      %v7609 = vsel %vm553, %v7608, %v7607
      %v7610 = vrot.slane %v7529, 1
      %v7611 = vsel %vm556, %v7610, %v7609
      %v7612 = vrot.slane %v7531, 7
      %v7613 = vsel %vm538, %v7612, %v7530
      %v7614 = vrot.slane %v7532, 6
      %v7615 = vsel %vm541, %v7614, %v7613
      %v7616 = vrot.slane %v7533, 5
      %v7617 = vsel %vm544, %v7616, %v7615
      %v7618 = vrot.slane %v7534, 4
      %v7619 = vsel %vm547, %v7618, %v7617
      %v7620 = vrot.slane %v7535, 3
      %v7621 = vsel %vm550, %v7620, %v7619
      %v7622 = vrot.slane %v7536, 2
      %v7623 = vsel %vm553, %v7622, %v7621
      %v7624 = vrot.slane %v7537, 1
      %v7625 = vsel %vm556, %v7624, %v7623
      %v7626 = vrot.slane %v7539, 7
      %v7627 = vsel %vm538, %v7626, %v7538
      %v7628 = vrot.slane %v7540, 6
      %v7629 = vsel %vm541, %v7628, %v7627
      %v7630 = vrot.slane %v7541, 5
      %v7631 = vsel %vm544, %v7630, %v7629
      %v7632 = vrot.slane %v7542, 4
      %v7633 = vsel %vm547, %v7632, %v7631
      %v7634 = vrot.slane %v7543, 3
      %v7635 = vsel %vm550, %v7634, %v7633
      %v7636 = vrot.slane %v7544, 2
      %v7637 = vsel %vm553, %v7636, %v7635
      %v7638 = vrot.slane %v7545, 1
      %v7639 = vsel %vm556, %v7638, %v7637
      %v7640 = vrot.slane %v7547, 7
      %v7641 = vsel %vm538, %v7640, %v7546
      %v7642 = vrot.slane %v7548, 6
      %v7643 = vsel %vm541, %v7642, %v7641
      %v7644 = vrot.slane %v7549, 5
      %v7645 = vsel %vm544, %v7644, %v7643
      %v7646 = vrot.slane %v7550, 4
      %v7647 = vsel %vm547, %v7646, %v7645
      %v7648 = vrot.slane %v7551, 3
      %v7649 = vsel %vm550, %v7648, %v7647
      %v7650 = vrot.slane %v7552, 2
      %v7651 = vsel %vm553, %v7650, %v7649
      %v7652 = vrot.slane %v7553, 1
      %v7653 = vsel %vm556, %v7652, %v7651
      %v7654 = vrot.slane %v7555, 7
      %v7655 = vsel %vm538, %v7654, %v7554
      %v7656 = vrot.slane %v7556, 6
      %v7657 = vsel %vm541, %v7656, %v7655
      %v7658 = vrot.slane %v7557, 5
      %v7659 = vsel %vm544, %v7658, %v7657
      %v7660 = vrot.slane %v7558, 4
      %v7661 = vsel %vm547, %v7660, %v7659
      %v7662 = vrot.slane %v7559, 3
      %v7663 = vsel %vm550, %v7662, %v7661
      %v7664 = vrot.slane %v7560, 2
      %v7665 = vsel %vm553, %v7664, %v7663
      %v7666 = vrot.slane %v7561, 1
      %v7667 = vsel %vm556, %v7666, %v7665
      %v7668 = vrot.slane %v7563, 7
      %v7669 = vsel %vm538, %v7668, %v7562
      %v7670 = vrot.slane %v7564, 6
      %v7671 = vsel %vm541, %v7670, %v7669
      %v7672 = vrot.slane %v7565, 5
      %v7673 = vsel %vm544, %v7672, %v7671
      %v7674 = vrot.slane %v7566, 4
      %v7675 = vsel %vm547, %v7674, %v7673
      %v7676 = vrot.slane %v7567, 3
      %v7677 = vsel %vm550, %v7676, %v7675
      %v7678 = vrot.slane %v7568, 2
      %v7679 = vsel %vm553, %v7678, %v7677
      %v7680 = vrot.slane %v7569, 1
      %v7681 = vsel %vm556, %v7680, %v7679
      %v7682 = vpack.c.b16 %v7597, %v7583
      %v7683 = vpack.c.b16 %v7625, %v7611
      %v7684 = vpack.c.b16 %v7653, %v7639
      %v7685 = vpack.c.b16 %v7681, %v7667
      %v7687 = vsel %vm666, %v7682, 0
      %v7690 = vsel %vm666, %v7683, 0
      %v7693 = vsel %vm666, %v7684, 0
      %v7696 = vsel %vm666, %v7685, 0
      %7698 = vmatprep.subr.bf16.mxu0 0
      %7699 = vmatpush1.bf16.msra.mxu0 %v664
      %7700 = vmatprep.subr.bf16.mxu0 0
      %7701 = vmatpush1.bf16.msra.mxu0 0
      %7702 = vmatprep.subr.bf16.mxu0 0
      %7703 = vmatpush1.bf16.msra.mxu0 0
      %7704 = vmatprep.subr.bf16.mxu0 0
      %7705 = vmatpush1.bf16.msra.mxu0 0
      %7706 = vmatprep.subr.bf16.mxu0 0
      %7707 = vmatpush1.bf16.msra.mxu0 0
      %7708 = vmatprep.subr.bf16.mxu0 0
      %7709 = vmatpush1.bf16.msra.mxu0 0
      %7710 = vmatprep.subr.bf16.mxu0 0
      %7711 = vmatpush1.bf16.msra.mxu0 0
      %7712 = vmatprep.subr.bf16.mxu0 0
      %7713 = vmatpush1.bf16.msra.mxu0 0
      %7714 = vmatprep.subr.bf16.mxu0 0
      %7715 = vmatpush1.bf16.msra.mxu0 0
      %7716 = vmatprep.subr.bf16.mxu0 0
      %7717 = vmatpush1.bf16.msra.mxu0 0
      %7718 = vmatprep.subr.bf16.mxu0 0
      %7719 = vmatpush1.bf16.msra.mxu0 0
      %7720 = vmatprep.subr.bf16.mxu0 0
      %7721 = vmatpush1.bf16.msra.mxu0 0
      %7722 = vmatprep.subr.bf16.mxu0 0
      %7723 = vmatpush1.bf16.msra.mxu0 0
      %7724 = vmatprep.subr.bf16.mxu0 0
      %7725 = vmatpush1.bf16.msra.mxu0 0
      %7726 = vmatprep.subr.bf16.mxu0 0
      %7727 = vmatpush1.bf16.msra.mxu0 0
      %7728 = vmatprep.subr.bf16.mxu0 0
      %7729 = vmatpush1.bf16.msra.mxu0 0
      %7730 = vmatprep.mubr.bf16.mxu0 0
      %7731 = vmatmul.mubr.bf16.gmra.mrb[0].mxu0 %v7687
      %v7732 = vpop.f32.mrb[0].mxu0
      %v7733 = vadd.f32 0.0, %v7732
      %v7734 = vpop.f32.mrb[0].mxu0
      %v7735 = vpop.f32.mrb[0].mxu0
      %v7736 = vadd.f32 0.0, %v7735
      %v7737 = vpop.f32.mrb[0].mxu0
      %7738 = vmatprep.mubr.bf16.mxu0 0
      %7739 = vmatmul.mubr.bf16.gmra.mrb[0].mxu0 %v7690
      %v7740 = vpop.f32.mrb[0].mxu0
      %v7741 = vadd.f32 0.0, %v7740
      %v7742 = vpop.f32.mrb[0].mxu0
      %v7743 = vpop.f32.mrb[0].mxu0
      %v7744 = vadd.f32 0.0, %v7743
      %v7745 = vpop.f32.mrb[0].mxu0
      %7746 = vmatprep.mubr.bf16.mxu0 0
      %7747 = vmatmul.mubr.bf16.gmra.mrb[0].mxu0 %v7693
      %v7748 = vpop.f32.mrb[0].mxu0
      %v7749 = vadd.f32 0.0, %v7748
      %v7750 = vpop.f32.mrb[0].mxu0
      %v7751 = vpop.f32.mrb[0].mxu0
      %v7752 = vadd.f32 0.0, %v7751
      %v7753 = vpop.f32.mrb[0].mxu0
      %7754 = vmatprep.mubr.bf16.mxu0 0
      %7755 = vmatmul.mubr.bf16.gmra.mrb[0].mxu0 %v7696
      %v7756 = vpop.f32.mrb[0].mxu0
      %v7757 = vadd.f32 0.0, %v7756
      %v7758 = vpop.f32.mrb[0].mxu0
      %v7759 = vpop.f32.mrb[0].mxu0
      %v7760 = vadd.f32 0.0, %v7759
      %v7761 = vpop.f32.mrb[0].mxu0
      %7762 = vdwg.mxu0
      %v7763 = vpack.c.bf16 %v7736, %v7733
      %v7764 = vpack.c.bf16 %v7744, %v7741
      %v7765 = vpack.c.bf16 %v7752, %v7749
      %v7766 = vpack.c.bf16 %v7760, %v7757
      %7767 = vmatprep.subr.bf16.mxu0 0
      %7768 = vmatpush1.bf16.msra.mxu0 %v7763
      %7769 = vmatprep.subr.bf16.mxu0 0
      %7770 = vmatpush1.bf16.msra.mxu0 %v7764
      %7771 = vmatprep.subr.bf16.mxu0 0
      %7772 = vmatpush1.bf16.msra.mxu0 %v7765
      %7773 = vmatprep.subr.bf16.mxu0 0
      %7774 = vmatpush1.bf16.msra.mxu0 %v7766
      %7775 = vmatprep.subr.bf16.mxu0 0
      %7776 = vmatpush1.bf16.msra.mxu0 0
      %7777 = vmatprep.subr.bf16.mxu0 0
      %7778 = vmatpush1.bf16.msra.mxu0 0
      %7779 = vmatprep.subr.bf16.mxu0 0
      %7780 = vmatpush1.bf16.msra.mxu0 0
      %7781 = vmatprep.subr.bf16.mxu0 0
      %7782 = vmatpush1.bf16.msra.mxu0 0
      %7783 = vmatprep.subr.bf16.mxu0 0
      %7784 = vmatpush1.bf16.msra.mxu0 0
      %7785 = vmatprep.subr.bf16.mxu0 0
      %7786 = vmatpush1.bf16.msra.mxu0 0
      %7787 = vmatprep.subr.bf16.mxu0 0
      %7788 = vmatpush1.bf16.msra.mxu0 0
      %7789 = vmatprep.subr.bf16.mxu0 0
      %7790 = vmatpush1.bf16.msra.mxu0 0
      %7791 = vmatprep.subr.bf16.mxu0 0
      %7792 = vmatpush1.bf16.msra.mxu0 0
      %7793 = vmatprep.subr.bf16.mxu0 0
      %7794 = vmatpush1.bf16.msra.mxu0 0
      %7795 = vmatprep.subr.bf16.mxu0 0
      %7796 = vmatpush1.bf16.msra.mxu0 0
      %7797 = vmatprep.subr.bf16.mxu0 0
      %7798 = vmatpush1.bf16.msra.mxu0 0
      %7799 = vmatprep.mubr.bf16.mxu0 0
      %7800 = vmatmul.mubr.bf16.gmra.mrb[0].mxu0 %v790
      %v7801 = vpop.f32.mrb[0].mxu0
      %v7802 = vadd.f32 0.0, %v7801
      %v7803 = vpop.f32.mrb[0].mxu0
      %v7804 = vpop.f32.mrb[0].mxu0
      %v7805 = vadd.f32 0.0, %v7804
      %v7806 = vpop.f32.mrb[0].mxu0
      %7807 = vmatprep.mubr.bf16.mxu0 0
      %7808 = vmatmul.mubr.bf16.gmra.mrb[0].mxu0 %v793
      %v7809 = vpop.f32.mrb[0].mxu0
      %v7810 = vadd.f32 0.0, %v7809
      %v7811 = vpop.f32.mrb[0].mxu0
      %v7812 = vpop.f32.mrb[0].mxu0
      %v7813 = vadd.f32 0.0, %v7812
      %v7814 = vpop.f32.mrb[0].mxu0
      %7815 = vmatprep.mubr.bf16.mxu0 0
      %7816 = vmatmul.mubr.bf16.gmra.mrb[0].mxu0 %v796
      %v7817 = vpop.f32.mrb[0].mxu0
      %v7818 = vadd.f32 0.0, %v7817
      %v7819 = vpop.f32.mrb[0].mxu0
      %v7820 = vpop.f32.mrb[0].mxu0
      %v7821 = vadd.f32 0.0, %v7820
      %v7822 = vpop.f32.mrb[0].mxu0
      %7823 = vmatprep.mubr.bf16.mxu0 0
      %7824 = vmatmul.mubr.bf16.gmra.mrb[0].mxu0 %v799
      %v7825 = vpop.f32.mrb[0].mxu0
      %v7826 = vadd.f32 0.0, %v7825
      %v7827 = vpop.f32.mrb[0].mxu0
      %v7828 = vpop.f32.mrb[0].mxu0
      %v7829 = vadd.f32 0.0, %v7828
      %v7830 = vpop.f32.mrb[0].mxu0
      %7831 = vmatprep.mubr.bf16.mxu0 0
      %7832 = vmatmul.mubr.bf16.gmra.mrb[0].mxu0 %v802
      %v7833 = vpop.f32.mrb[0].mxu0
      %v7834 = vadd.f32 0.0, %v7833
      %v7835 = vpop.f32.mrb[0].mxu0
      %v7836 = vpop.f32.mrb[0].mxu0
      %v7837 = vadd.f32 0.0, %v7836
      %v7838 = vpop.f32.mrb[0].mxu0
      %7839 = vmatprep.mubr.bf16.mxu0 0
      %7840 = vmatmul.mubr.bf16.gmra.mrb[0].mxu0 %v805
      %v7841 = vpop.f32.mrb[0].mxu0
      %v7842 = vadd.f32 0.0, %v7841
      %v7843 = vpop.f32.mrb[0].mxu0
      %v7844 = vpop.f32.mrb[0].mxu0
      %v7845 = vadd.f32 0.0, %v7844
      %v7846 = vpop.f32.mrb[0].mxu0
      %7847 = vmatprep.mubr.bf16.mxu0 0
      %7848 = vmatmul.mubr.bf16.gmra.mrb[0].mxu0 %v808
      %v7849 = vpop.f32.mrb[0].mxu0
      %v7850 = vadd.f32 0.0, %v7849
      %v7851 = vpop.f32.mrb[0].mxu0
      %v7852 = vpop.f32.mrb[0].mxu0
      %v7853 = vadd.f32 0.0, %v7852
      %v7854 = vpop.f32.mrb[0].mxu0
      %7855 = vmatprep.mubr.bf16.mxu0 0
      %7856 = vmatmul.mubr.bf16.gmra.mrb[0].mxu0 %v811
      %v7857 = vpop.f32.mrb[0].mxu0
      %v7858 = vadd.f32 0.0, %v7857
      %v7859 = vpop.f32.mrb[0].mxu0
      %v7860 = vpop.f32.mrb[0].mxu0
      %v7861 = vadd.f32 0.0, %v7860
      %v7862 = vpop.f32.mrb[0].mxu0
      %7863 = vdwg.mxu0
      %v7864 = vsel %vm911, %v7802, %v7834
      %v7865 = vsel %vm911, %v7805, %v7837
      %v7866 = vsel %vm911, %v7810, %v7842
      %v7867 = vsel %vm911, %v7813, %v7845
      %v7868 = vsel %vm911, %v7818, %v7850
      %v7869 = vsel %vm911, %v7821, %v7853
      %v7870 = vsel %vm911, %v7826, %v7858
      %v7871 = vsel %vm911, %v7829, %v7861
      %v7872 = vadd.f32 %v7864, %v923
      %v7873 = vadd.f32 %v7865, %v928
      %v7874 = vadd.f32 %v7866, %v933
      %v7875 = vadd.f32 %v7867, %v938
      %v7876 = vadd.f32 %v7868, %v943
      %v7877 = vadd.f32 %v7869, %v948
      %v7878 = vadd.f32 %v7870, %v953
      %v7879 = vadd.f32 %v7871, %v958
      %s7880 = scalar_lea.vmem %s237, 768
      %7881 = vst.msk [vmem:[%s7880] sm:$0xff] %vm968, %v7872
      %7882 = vst.msk [vmem:[%s7880 + $0x8] sm:$0xff] %vm968, %v7873
      %7883 = vst.msk [vmem:[%s7880 + $0x10] sm:$0xff] %vm968, %v7874
      %7884 = vst.msk [vmem:[%s7880 + $0x18] sm:$0xff] %vm968, %v7875
      %s7885 = scalar_lea.vmem %s237, 800
      %7886 = vst.msk [vmem:[%s7885] sm:$0xff] %vm968, %v7876
      %7887 = vst.msk [vmem:[%s7885 + $0x8] sm:$0xff] %vm968, %v7877
      %7888 = vst.msk [vmem:[%s7885 + $0x10] sm:$0xff] %vm968, %v7878
      %7889 = vst.msk [vmem:[%s7885 + $0x18] sm:$0xff] %vm968, %v7879
      %v7890 = vld [vmem:[%s226 + $0xd] sm:$0x1]
      %v7891 = vld [vmem:[%s226 + $0x1d] sm:$0x1]
      %v7892 = vld [vmem:[%s226 + $0x2d] sm:$0x1]
      %v7893 = vld [vmem:[%s226 + $0x3d] sm:$0x1]
      %v7894 = vld [vmem:[%s226 + $0x4d] sm:$0x1]
      %v7895 = vld [vmem:[%s226 + $0x5d] sm:$0x1]
      %v7896 = vld [vmem:[%s226 + $0x6d] sm:$0x1]
      %v7897 = vld [vmem:[%s226 + $0x7d] sm:$0x1]
      %v7898 = vld [vmem:[%s226 + $0x8d] sm:$0x1]
      %v7899 = vld [vmem:[%s226 + $0x9d] sm:$0x1]
      %v7900 = vld [vmem:[%s226 + $0xad] sm:$0x1]
      %v7901 = vld [vmem:[%s226 + $0xbd] sm:$0x1]
      %v7902 = vld [vmem:[%s226 + $0xcd] sm:$0x1]
      %v7903 = vld [vmem:[%s226 + $0xdd] sm:$0x1]
      %v7904 = vld [vmem:[%s226 + $0xed] sm:$0x1]
      %v7905 = vld [vmem:[%s226 + $0xfd] sm:$0x1]
      %v7906 = vld [vmem:[%s226 + $0x10d] sm:$0x1]
      %v7907 = vld [vmem:[%s226 + $0x11d] sm:$0x1]
      %v7908 = vld [vmem:[%s226 + $0x12d] sm:$0x1]
      %v7909 = vld [vmem:[%s226 + $0x13d] sm:$0x1]
      %v7910 = vld [vmem:[%s226 + $0x14d] sm:$0x1]
      %v7911 = vld [vmem:[%s226 + $0x15d] sm:$0x1]
      %v7912 = vld [vmem:[%s226 + $0x16d] sm:$0x1]
      %v7913 = vld [vmem:[%s226 + $0x17d] sm:$0x1]
      %v7914 = vld [vmem:[%s226 + $0x18d] sm:$0x1]
      %v7915 = vld [vmem:[%s226 + $0x19d] sm:$0x1]
      %v7916 = vld [vmem:[%s226 + $0x1ad] sm:$0x1]
      %v7917 = vld [vmem:[%s226 + $0x1bd] sm:$0x1]
      %v7918 = vld [vmem:[%s226 + $0x1cd] sm:$0x1]
      %v7919 = vld [vmem:[%s226 + $0x1dd] sm:$0x1]
      %v7920 = vld [vmem:[%s226 + $0x1ed] sm:$0x1]
      %v7921 = vld [vmem:[%s226 + $0x1fd] sm:$0x1]
      %v7922 = vld [vmem:[%s226 + $0x20d] sm:$0x1]
      %v7923 = vld [vmem:[%s226 + $0x21d] sm:$0x1]
      %v7924 = vld [vmem:[%s226 + $0x22d] sm:$0x1]
      %v7925 = vld [vmem:[%s226 + $0x23d] sm:$0x1]
      %v7926 = vld [vmem:[%s226 + $0x24d] sm:$0x1]
      %v7927 = vld [vmem:[%s226 + $0x25d] sm:$0x1]
      %v7928 = vld [vmem:[%s226 + $0x26d] sm:$0x1]
      %v7929 = vld [vmem:[%s226 + $0x27d] sm:$0x1]
      %v7930 = vld [vmem:[%s226 + $0x28d] sm:$0x1]
      %v7931 = vld [vmem:[%s226 + $0x29d] sm:$0x1]
      %v7932 = vld [vmem:[%s226 + $0x2ad] sm:$0x1]
      %v7933 = vld [vmem:[%s226 + $0x2bd] sm:$0x1]
      %v7934 = vld [vmem:[%s226 + $0x2cd] sm:$0x1]
      %v7935 = vld [vmem:[%s226 + $0x2dd] sm:$0x1]
      %v7936 = vld [vmem:[%s226 + $0x2ed] sm:$0x1]
      %v7937 = vld [vmem:[%s226 + $0x2fd] sm:$0x1]
      %v7938 = vld [vmem:[%s226 + $0x30d] sm:$0x1]
      %v7939 = vld [vmem:[%s226 + $0x31d] sm:$0x1]
      %v7940 = vld [vmem:[%s226 + $0x32d] sm:$0x1]
      %v7941 = vld [vmem:[%s226 + $0x33d] sm:$0x1]
      %v7942 = vld [vmem:[%s226 + $0x34d] sm:$0x1]
      %v7943 = vld [vmem:[%s226 + $0x35d] sm:$0x1]
      %v7944 = vld [vmem:[%s226 + $0x36d] sm:$0x1]
      %v7945 = vld [vmem:[%s226 + $0x37d] sm:$0x1]
      %v7946 = vld [vmem:[%s226 + $0x38d] sm:$0x1]
      %v7947 = vld [vmem:[%s226 + $0x39d] sm:$0x1]
      %v7948 = vld [vmem:[%s226 + $0x3ad] sm:$0x1]
      %v7949 = vld [vmem:[%s226 + $0x3bd] sm:$0x1]
      %v7950 = vld [vmem:[%s226 + $0x3cd] sm:$0x1]
      %v7951 = vld [vmem:[%s226 + $0x3dd] sm:$0x1]
      %v7952 = vld [vmem:[%s226 + $0x3ed] sm:$0x1]
      %v7953 = vld [vmem:[%s226 + $0x3fd] sm:$0x1]
      %v7954 = vpack.c.bf16 %v7890, %v7890
      %v7955 = vpack.c.bf16 %v7891, %v7891
      %v7956 = vpack.c.bf16 %v7892, %v7892
      %v7957 = vpack.c.bf16 %v7893, %v7893
      %v7958 = vpack.c.bf16 %v7894, %v7894
      %v7959 = vpack.c.bf16 %v7895, %v7895
      %v7960 = vpack.c.bf16 %v7896, %v7896
      %v7961 = vpack.c.bf16 %v7897, %v7897
      %v7962 = vpack.c.bf16 %v7898, %v7898
      %v7963 = vpack.c.bf16 %v7899, %v7899
      %v7964 = vpack.c.bf16 %v7900, %v7900
      %v7965 = vpack.c.bf16 %v7901, %v7901
      %v7966 = vpack.c.bf16 %v7902, %v7902
      %v7967 = vpack.c.bf16 %v7903, %v7903
      %v7968 = vpack.c.bf16 %v7904, %v7904
      %v7969 = vpack.c.bf16 %v7905, %v7905
      %v7970 = vpack.c.bf16 %v7906, %v7906
      %v7971 = vpack.c.bf16 %v7907, %v7907
      %v7972 = vpack.c.bf16 %v7908, %v7908
      %v7973 = vpack.c.bf16 %v7909, %v7909
      %v7974 = vpack.c.bf16 %v7910, %v7910
      %v7975 = vpack.c.bf16 %v7911, %v7911
      %v7976 = vpack.c.bf16 %v7912, %v7912
      %v7977 = vpack.c.bf16 %v7913, %v7913
      %v7978 = vpack.c.bf16 %v7914, %v7914
      %v7979 = vpack.c.bf16 %v7915, %v7915
      %v7980 = vpack.c.bf16 %v7916, %v7916
      %v7981 = vpack.c.bf16 %v7917, %v7917
      %v7982 = vpack.c.bf16 %v7918, %v7918
      %v7983 = vpack.c.bf16 %v7919, %v7919
      %v7984 = vpack.c.bf16 %v7920, %v7920
      %v7985 = vpack.c.bf16 %v7921, %v7921
      %v7986 = vpack.c.bf16 %v7922, %v7922
      %v7987 = vpack.c.bf16 %v7923, %v7923
      %v7988 = vpack.c.bf16 %v7924, %v7924
      %v7989 = vpack.c.bf16 %v7925, %v7925
      %v7990 = vpack.c.bf16 %v7926, %v7926
      %v7991 = vpack.c.bf16 %v7927, %v7927
      %v7992 = vpack.c.bf16 %v7928, %v7928
      %v7993 = vpack.c.bf16 %v7929, %v7929
      %v7994 = vpack.c.bf16 %v7930, %v7930
      %v7995 = vpack.c.bf16 %v7931, %v7931
      %v7996 = vpack.c.bf16 %v7932, %v7932
      %v7997 = vpack.c.bf16 %v7933, %v7933
      %v7998 = vpack.c.bf16 %v7934, %v7934
      %v7999 = vpack.c.bf16 %v7935, %v7935
      %v8000 = vpack.c.bf16 %v7936, %v7936
      %v8001 = vpack.c.bf16 %v7937, %v7937
      %v8002 = vpack.c.bf16 %v7938, %v7938
      %v8003 = vpack.c.bf16 %v7939, %v7939
      %v8004 = vpack.c.bf16 %v7940, %v7940
      %v8005 = vpack.c.bf16 %v7941, %v7941
      %v8006 = vpack.c.bf16 %v7942, %v7942
      %v8007 = vpack.c.bf16 %v7943, %v7943
      %v8008 = vpack.c.bf16 %v7944, %v7944
      %v8009 = vpack.c.bf16 %v7945, %v7945
      %v8010 = vpack.c.bf16 %v7946, %v7946
      %v8011 = vpack.c.bf16 %v7947, %v7947
      %v8012 = vpack.c.bf16 %v7948, %v7948
      %v8013 = vpack.c.bf16 %v7949, %v7949
      %v8014 = vpack.c.bf16 %v7950, %v7950
      %v8015 = vpack.c.bf16 %v7951, %v7951
      %v8016 = vpack.c.bf16 %v7952, %v7952
      %v8017 = vpack.c.bf16 %v7953, %v7953
      %v8082 = vunpack.c.l.b16 %v7954
      %v8083 = vunpack.c.l.b16 %v7955
      %v8084 = vunpack.c.l.b16 %v7956
      %v8085 = vunpack.c.l.b16 %v7957
      %v8086 = vunpack.c.l.b16 %v7958
      %v8087 = vunpack.c.l.b16 %v7959
      %v8088 = vunpack.c.l.b16 %v7960
      %v8089 = vunpack.c.l.b16 %v7961
      %v8090 = vunpack.c.l.b16 %v7962
      %v8091 = vunpack.c.l.b16 %v7963
      %v8092 = vunpack.c.l.b16 %v7964
      %v8093 = vunpack.c.l.b16 %v7965
      %v8094 = vunpack.c.l.b16 %v7966
      %v8095 = vunpack.c.l.b16 %v7967
      %v8096 = vunpack.c.l.b16 %v7968
      %v8097 = vunpack.c.l.b16 %v7969
      %v8098 = vunpack.c.l.b16 %v7970
      %v8099 = vunpack.c.l.b16 %v7971
      %v8100 = vunpack.c.l.b16 %v7972
      %v8101 = vunpack.c.l.b16 %v7973
      %v8102 = vunpack.c.l.b16 %v7974
      %v8103 = vunpack.c.l.b16 %v7975
      %v8104 = vunpack.c.l.b16 %v7976
      %v8105 = vunpack.c.l.b16 %v7977
      %v8106 = vunpack.c.l.b16 %v7978
      %v8107 = vunpack.c.l.b16 %v7979
      %v8108 = vunpack.c.l.b16 %v7980
      %v8109 = vunpack.c.l.b16 %v7981
      %v8110 = vunpack.c.l.b16 %v7982
      %v8111 = vunpack.c.l.b16 %v7983
      %v8112 = vunpack.c.l.b16 %v7984
      %v8113 = vunpack.c.l.b16 %v7985
      %v8114 = vunpack.c.l.b16 %v7986
      %v8115 = vunpack.c.l.b16 %v7987
      %v8116 = vunpack.c.l.b16 %v7988
      %v8117 = vunpack.c.l.b16 %v7989
      %v8118 = vunpack.c.l.b16 %v7990
      %v8119 = vunpack.c.l.b16 %v7991
      %v8120 = vunpack.c.l.b16 %v7992
      %v8121 = vunpack.c.l.b16 %v7993
      %v8122 = vunpack.c.l.b16 %v7994
      %v8123 = vunpack.c.l.b16 %v7995
      %v8124 = vunpack.c.l.b16 %v7996
      %v8125 = vunpack.c.l.b16 %v7997
      %v8126 = vunpack.c.l.b16 %v7998
      %v8127 = vunpack.c.l.b16 %v7999
      %v8128 = vunpack.c.l.b16 %v8000
      %v8129 = vunpack.c.l.b16 %v8001
      %v8130 = vunpack.c.l.b16 %v8002
      %v8131 = vunpack.c.l.b16 %v8003
      %v8132 = vunpack.c.l.b16 %v8004
      %v8133 = vunpack.c.l.b16 %v8005
      %v8134 = vunpack.c.l.b16 %v8006
      %v8135 = vunpack.c.l.b16 %v8007
      %v8136 = vunpack.c.l.b16 %v8008
      %v8137 = vunpack.c.l.b16 %v8009
      %v8138 = vunpack.c.l.b16 %v8010
      %v8139 = vunpack.c.l.b16 %v8011
      %v8140 = vunpack.c.l.b16 %v8012
      %v8141 = vunpack.c.l.b16 %v8013
      %v8142 = vunpack.c.l.b16 %v8014
      %v8143 = vunpack.c.l.b16 %v8015
      %v8144 = vunpack.c.l.b16 %v8016
      %v8145 = vunpack.c.l.b16 %v8017
      %v8146 = vrot.slane %v8083, 7
      %v8147 = vsel %vm538, %v8146, %v8082
      %v8148 = vrot.slane %v8084, 6
      %v8149 = vsel %vm541, %v8148, %v8147
      %v8150 = vrot.slane %v8085, 5
      %v8151 = vsel %vm544, %v8150, %v8149
      %v8152 = vrot.slane %v8086, 4
      %v8153 = vsel %vm547, %v8152, %v8151
      %v8154 = vrot.slane %v8087, 3
      %v8155 = vsel %vm550, %v8154, %v8153
      %v8156 = vrot.slane %v8088, 2
      %v8157 = vsel %vm553, %v8156, %v8155
      %v8158 = vrot.slane %v8089, 1
      %v8159 = vsel %vm556, %v8158, %v8157
      %v8160 = vrot.slane %v8091, 7
      %v8161 = vsel %vm538, %v8160, %v8090
      %v8162 = vrot.slane %v8092, 6
      %v8163 = vsel %vm541, %v8162, %v8161
      %v8164 = vrot.slane %v8093, 5
      %v8165 = vsel %vm544, %v8164, %v8163
      %v8166 = vrot.slane %v8094, 4
      %v8167 = vsel %vm547, %v8166, %v8165
      %v8168 = vrot.slane %v8095, 3
      %v8169 = vsel %vm550, %v8168, %v8167
      %v8170 = vrot.slane %v8096, 2
      %v8171 = vsel %vm553, %v8170, %v8169
      %v8172 = vrot.slane %v8097, 1
      %v8173 = vsel %vm556, %v8172, %v8171
      %v8174 = vrot.slane %v8099, 7
      %v8175 = vsel %vm538, %v8174, %v8098
      %v8176 = vrot.slane %v8100, 6
      %v8177 = vsel %vm541, %v8176, %v8175
      %v8178 = vrot.slane %v8101, 5
      %v8179 = vsel %vm544, %v8178, %v8177
      %v8180 = vrot.slane %v8102, 4
      %v8181 = vsel %vm547, %v8180, %v8179
      %v8182 = vrot.slane %v8103, 3
      %v8183 = vsel %vm550, %v8182, %v8181
      %v8184 = vrot.slane %v8104, 2
      %v8185 = vsel %vm553, %v8184, %v8183
      %v8186 = vrot.slane %v8105, 1
      %v8187 = vsel %vm556, %v8186, %v8185
      %v8188 = vrot.slane %v8107, 7
      %v8189 = vsel %vm538, %v8188, %v8106
      %v8190 = vrot.slane %v8108, 6
      %v8191 = vsel %vm541, %v8190, %v8189
      %v8192 = vrot.slane %v8109, 5
      %v8193 = vsel %vm544, %v8192, %v8191
      %v8194 = vrot.slane %v8110, 4
      %v8195 = vsel %vm547, %v8194, %v8193
      %v8196 = vrot.slane %v8111, 3
      %v8197 = vsel %vm550, %v8196, %v8195
      %v8198 = vrot.slane %v8112, 2
      %v8199 = vsel %vm553, %v8198, %v8197
      %v8200 = vrot.slane %v8113, 1
      %v8201 = vsel %vm556, %v8200, %v8199
      %v8202 = vrot.slane %v8115, 7
      %v8203 = vsel %vm538, %v8202, %v8114
      %v8204 = vrot.slane %v8116, 6
      %v8205 = vsel %vm541, %v8204, %v8203
      %v8206 = vrot.slane %v8117, 5
      %v8207 = vsel %vm544, %v8206, %v8205
      %v8208 = vrot.slane %v8118, 4
      %v8209 = vsel %vm547, %v8208, %v8207
      %v8210 = vrot.slane %v8119, 3
      %v8211 = vsel %vm550, %v8210, %v8209
      %v8212 = vrot.slane %v8120, 2
      %v8213 = vsel %vm553, %v8212, %v8211
      %v8214 = vrot.slane %v8121, 1
      %v8215 = vsel %vm556, %v8214, %v8213
      %v8216 = vrot.slane %v8123, 7
      %v8217 = vsel %vm538, %v8216, %v8122
      %v8218 = vrot.slane %v8124, 6
      %v8219 = vsel %vm541, %v8218, %v8217
      %v8220 = vrot.slane %v8125, 5
      %v8221 = vsel %vm544, %v8220, %v8219
      %v8222 = vrot.slane %v8126, 4
      %v8223 = vsel %vm547, %v8222, %v8221
      %v8224 = vrot.slane %v8127, 3
      %v8225 = vsel %vm550, %v8224, %v8223
      %v8226 = vrot.slane %v8128, 2
      %v8227 = vsel %vm553, %v8226, %v8225
      %v8228 = vrot.slane %v8129, 1
      %v8229 = vsel %vm556, %v8228, %v8227
      %v8230 = vrot.slane %v8131, 7
      %v8231 = vsel %vm538, %v8230, %v8130
      %v8232 = vrot.slane %v8132, 6
      %v8233 = vsel %vm541, %v8232, %v8231
      %v8234 = vrot.slane %v8133, 5
      %v8235 = vsel %vm544, %v8234, %v8233
      %v8236 = vrot.slane %v8134, 4
      %v8237 = vsel %vm547, %v8236, %v8235
      %v8238 = vrot.slane %v8135, 3
      %v8239 = vsel %vm550, %v8238, %v8237
      %v8240 = vrot.slane %v8136, 2
      %v8241 = vsel %vm553, %v8240, %v8239
      %v8242 = vrot.slane %v8137, 1
      %v8243 = vsel %vm556, %v8242, %v8241
      %v8244 = vrot.slane %v8139, 7
      %v8245 = vsel %vm538, %v8244, %v8138
      %v8246 = vrot.slane %v8140, 6
      %v8247 = vsel %vm541, %v8246, %v8245
      %v8248 = vrot.slane %v8141, 5
      %v8249 = vsel %vm544, %v8248, %v8247
      %v8250 = vrot.slane %v8142, 4
      %v8251 = vsel %vm547, %v8250, %v8249
      %v8252 = vrot.slane %v8143, 3
      %v8253 = vsel %vm550, %v8252, %v8251
      %v8254 = vrot.slane %v8144, 2
      %v8255 = vsel %vm553, %v8254, %v8253
      %v8256 = vrot.slane %v8145, 1
      %v8257 = vsel %vm556, %v8256, %v8255
      %v8258 = vpack.c.b16 %v8173, %v8159
      %v8259 = vpack.c.b16 %v8201, %v8187
      %v8260 = vpack.c.b16 %v8229, %v8215
      %v8261 = vpack.c.b16 %v8257, %v8243
      %v8263 = vsel %vm666, %v8258, 0
      %v8266 = vsel %vm666, %v8259, 0
      %v8269 = vsel %vm666, %v8260, 0
      %v8272 = vsel %vm666, %v8261, 0
      %8274 = vmatprep.subr.bf16.mxu0 0
      %8275 = vmatpush1.bf16.msra.mxu0 %v664
      %8276 = vmatprep.subr.bf16.mxu0 0
      %8277 = vmatpush1.bf16.msra.mxu0 0
      %8278 = vmatprep.subr.bf16.mxu0 0
      %8279 = vmatpush1.bf16.msra.mxu0 0
      %8280 = vmatprep.subr.bf16.mxu0 0
      %8281 = vmatpush1.bf16.msra.mxu0 0
      %8282 = vmatprep.subr.bf16.mxu0 0
      %8283 = vmatpush1.bf16.msra.mxu0 0
      %8284 = vmatprep.subr.bf16.mxu0 0
      %8285 = vmatpush1.bf16.msra.mxu0 0
      %8286 = vmatprep.subr.bf16.mxu0 0
      %8287 = vmatpush1.bf16.msra.mxu0 0
      %8288 = vmatprep.subr.bf16.mxu0 0
      %8289 = vmatpush1.bf16.msra.mxu0 0
      %8290 = vmatprep.subr.bf16.mxu0 0
      %8291 = vmatpush1.bf16.msra.mxu0 0
      %8292 = vmatprep.subr.bf16.mxu0 0
      %8293 = vmatpush1.bf16.msra.mxu0 0
      %8294 = vmatprep.subr.bf16.mxu0 0
      %8295 = vmatpush1.bf16.msra.mxu0 0
      %8296 = vmatprep.subr.bf16.mxu0 0
      %8297 = vmatpush1.bf16.msra.mxu0 0
      %8298 = vmatprep.subr.bf16.mxu0 0
      %8299 = vmatpush1.bf16.msra.mxu0 0
      %8300 = vmatprep.subr.bf16.mxu0 0
      %8301 = vmatpush1.bf16.msra.mxu0 0
      %8302 = vmatprep.subr.bf16.mxu0 0
      %8303 = vmatpush1.bf16.msra.mxu0 0
      %8304 = vmatprep.subr.bf16.mxu0 0
      %8305 = vmatpush1.bf16.msra.mxu0 0
      %8306 = vmatprep.mubr.bf16.mxu0 0
      %8307 = vmatmul.mubr.bf16.gmra.mrb[0].mxu0 %v8263
      %v8308 = vpop.f32.mrb[0].mxu0
      %v8309 = vadd.f32 0.0, %v8308
      %v8310 = vpop.f32.mrb[0].mxu0
      %v8311 = vpop.f32.mrb[0].mxu0
      %v8312 = vadd.f32 0.0, %v8311
      %v8313 = vpop.f32.mrb[0].mxu0
      %8314 = vmatprep.mubr.bf16.mxu0 0
      %8315 = vmatmul.mubr.bf16.gmra.mrb[0].mxu0 %v8266
      %v8316 = vpop.f32.mrb[0].mxu0
      %v8317 = vadd.f32 0.0, %v8316
      %v8318 = vpop.f32.mrb[0].mxu0
      %v8319 = vpop.f32.mrb[0].mxu0
      %v8320 = vadd.f32 0.0, %v8319
      %v8321 = vpop.f32.mrb[0].mxu0
      %8322 = vmatprep.mubr.bf16.mxu0 0
      %8323 = vmatmul.mubr.bf16.gmra.mrb[0].mxu0 %v8269
      %v8324 = vpop.f32.mrb[0].mxu0
      %v8325 = vadd.f32 0.0, %v8324
      %v8326 = vpop.f32.mrb[0].mxu0
      %v8327 = vpop.f32.mrb[0].mxu0
      %v8328 = vadd.f32 0.0, %v8327
      %v8329 = vpop.f32.mrb[0].mxu0
      %8330 = vmatprep.mubr.bf16.mxu0 0
      %8331 = vmatmul.mubr.bf16.gmra.mrb[0].mxu0 %v8272
      %v8332 = vpop.f32.mrb[0].mxu0
      %v8333 = vadd.f32 0.0, %v8332
      %v8334 = vpop.f32.mrb[0].mxu0
      %v8335 = vpop.f32.mrb[0].mxu0
      %v8336 = vadd.f32 0.0, %v8335
      %v8337 = vpop.f32.mrb[0].mxu0
      %8338 = vdwg.mxu0
      %v8339 = vpack.c.bf16 %v8312, %v8309
      %v8340 = vpack.c.bf16 %v8320, %v8317
      %v8341 = vpack.c.bf16 %v8328, %v8325
      %v8342 = vpack.c.bf16 %v8336, %v8333
      %8343 = vmatprep.subr.bf16.mxu0 0
      %8344 = vmatpush1.bf16.msra.mxu0 %v8339
      %8345 = vmatprep.subr.bf16.mxu0 0
      %8346 = vmatpush1.bf16.msra.mxu0 %v8340
      %8347 = vmatprep.subr.bf16.mxu0 0
      %8348 = vmatpush1.bf16.msra.mxu0 %v8341
      %8349 = vmatprep.subr.bf16.mxu0 0
      %8350 = vmatpush1.bf16.msra.mxu0 %v8342
      %8351 = vmatprep.subr.bf16.mxu0 0
      %8352 = vmatpush1.bf16.msra.mxu0 0
      %8353 = vmatprep.subr.bf16.mxu0 0
      %8354 = vmatpush1.bf16.msra.mxu0 0
      %8355 = vmatprep.subr.bf16.mxu0 0
      %8356 = vmatpush1.bf16.msra.mxu0 0
      %8357 = vmatprep.subr.bf16.mxu0 0
      %8358 = vmatpush1.bf16.msra.mxu0 0
      %8359 = vmatprep.subr.bf16.mxu0 0
      %8360 = vmatpush1.bf16.msra.mxu0 0
      %8361 = vmatprep.subr.bf16.mxu0 0
      %8362 = vmatpush1.bf16.msra.mxu0 0
      %8363 = vmatprep.subr.bf16.mxu0 0
      %8364 = vmatpush1.bf16.msra.mxu0 0
      %8365 = vmatprep.subr.bf16.mxu0 0
      %8366 = vmatpush1.bf16.msra.mxu0 0
      %8367 = vmatprep.subr.bf16.mxu0 0
      %8368 = vmatpush1.bf16.msra.mxu0 0
      %8369 = vmatprep.subr.bf16.mxu0 0
      %8370 = vmatpush1.bf16.msra.mxu0 0
      %8371 = vmatprep.subr.bf16.mxu0 0
      %8372 = vmatpush1.bf16.msra.mxu0 0
      %8373 = vmatprep.subr.bf16.mxu0 0
      %8374 = vmatpush1.bf16.msra.mxu0 0
      %8375 = vmatprep.mubr.bf16.mxu0 0
      %8376 = vmatmul.mubr.bf16.gmra.mrb[0].mxu0 %v790
      %v8377 = vpop.f32.mrb[0].mxu0
      %v8378 = vadd.f32 0.0, %v8377
      %v8379 = vpop.f32.mrb[0].mxu0
      %v8380 = vpop.f32.mrb[0].mxu0
      %v8381 = vadd.f32 0.0, %v8380
      %v8382 = vpop.f32.mrb[0].mxu0
      %8383 = vmatprep.mubr.bf16.mxu0 0
      %8384 = vmatmul.mubr.bf16.gmra.mrb[0].mxu0 %v793
      %v8385 = vpop.f32.mrb[0].mxu0
      %v8386 = vadd.f32 0.0, %v8385
      %v8387 = vpop.f32.mrb[0].mxu0
      %v8388 = vpop.f32.mrb[0].mxu0
      %v8389 = vadd.f32 0.0, %v8388
      %v8390 = vpop.f32.mrb[0].mxu0
      %8391 = vmatprep.mubr.bf16.mxu0 0
      %8392 = vmatmul.mubr.bf16.gmra.mrb[0].mxu0 %v796
      %v8393 = vpop.f32.mrb[0].mxu0
      %v8394 = vadd.f32 0.0, %v8393
      %v8395 = vpop.f32.mrb[0].mxu0
      %v8396 = vpop.f32.mrb[0].mxu0
      %v8397 = vadd.f32 0.0, %v8396
      %v8398 = vpop.f32.mrb[0].mxu0
      %8399 = vmatprep.mubr.bf16.mxu0 0
      %8400 = vmatmul.mubr.bf16.gmra.mrb[0].mxu0 %v799
      %v8401 = vpop.f32.mrb[0].mxu0
      %v8402 = vadd.f32 0.0, %v8401
      %v8403 = vpop.f32.mrb[0].mxu0
      %v8404 = vpop.f32.mrb[0].mxu0
      %v8405 = vadd.f32 0.0, %v8404
      %v8406 = vpop.f32.mrb[0].mxu0
      %8407 = vmatprep.mubr.bf16.mxu0 0
      %8408 = vmatmul.mubr.bf16.gmra.mrb[0].mxu0 %v802
      %v8409 = vpop.f32.mrb[0].mxu0
      %v8410 = vadd.f32 0.0, %v8409
      %v8411 = vpop.f32.mrb[0].mxu0
      %v8412 = vpop.f32.mrb[0].mxu0
      %v8413 = vadd.f32 0.0, %v8412
      %v8414 = vpop.f32.mrb[0].mxu0
      %8415 = vmatprep.mubr.bf16.mxu0 0
      %8416 = vmatmul.mubr.bf16.gmra.mrb[0].mxu0 %v805
      %v8417 = vpop.f32.mrb[0].mxu0
      %v8418 = vadd.f32 0.0, %v8417
      %v8419 = vpop.f32.mrb[0].mxu0
      %v8420 = vpop.f32.mrb[0].mxu0
      %v8421 = vadd.f32 0.0, %v8420
      %v8422 = vpop.f32.mrb[0].mxu0
      %8423 = vmatprep.mubr.bf16.mxu0 0
      %8424 = vmatmul.mubr.bf16.gmra.mrb[0].mxu0 %v808
      %v8425 = vpop.f32.mrb[0].mxu0
      %v8426 = vadd.f32 0.0, %v8425
      %v8427 = vpop.f32.mrb[0].mxu0
      %v8428 = vpop.f32.mrb[0].mxu0
      %v8429 = vadd.f32 0.0, %v8428
      %v8430 = vpop.f32.mrb[0].mxu0
      %8431 = vmatprep.mubr.bf16.mxu0 0
      %8432 = vmatmul.mubr.bf16.gmra.mrb[0].mxu0 %v811
      %v8433 = vpop.f32.mrb[0].mxu0
      %v8434 = vadd.f32 0.0, %v8433
      %v8435 = vpop.f32.mrb[0].mxu0
      %v8436 = vpop.f32.mrb[0].mxu0
      %v8437 = vadd.f32 0.0, %v8436
      %v8438 = vpop.f32.mrb[0].mxu0
      %8439 = vdwg.mxu0
      %v8440 = vsel %vm911, %v8378, %v8410
      %v8441 = vsel %vm911, %v8381, %v8413
      %v8442 = vsel %vm911, %v8386, %v8418
      %v8443 = vsel %vm911, %v8389, %v8421
      %v8444 = vsel %vm911, %v8394, %v8426
      %v8445 = vsel %vm911, %v8397, %v8429
      %v8446 = vsel %vm911, %v8402, %v8434
      %v8447 = vsel %vm911, %v8405, %v8437
      %v8448 = vadd.f32 %v8440, %v923
      %v8449 = vadd.f32 %v8441, %v928
      %v8450 = vadd.f32 %v8442, %v933
      %v8451 = vadd.f32 %v8443, %v938
      %v8452 = vadd.f32 %v8444, %v943
      %v8453 = vadd.f32 %v8445, %v948
      %v8454 = vadd.f32 %v8446, %v953
      %v8455 = vadd.f32 %v8447, %v958
      %s8456 = scalar_lea.vmem %s237, 832
      %8457 = vst.msk [vmem:[%s8456] sm:$0xff] %vm968, %v8448
      %8458 = vst.msk [vmem:[%s8456 + $0x8] sm:$0xff] %vm968, %v8449
      %8459 = vst.msk [vmem:[%s8456 + $0x10] sm:$0xff] %vm968, %v8450
      %8460 = vst.msk [vmem:[%s8456 + $0x18] sm:$0xff] %vm968, %v8451
      %s8461 = scalar_lea.vmem %s237, 864
      %8462 = vst.msk [vmem:[%s8461] sm:$0xff] %vm968, %v8452
      %8463 = vst.msk [vmem:[%s8461 + $0x8] sm:$0xff] %vm968, %v8453
      %8464 = vst.msk [vmem:[%s8461 + $0x10] sm:$0xff] %vm968, %v8454
      %8465 = vst.msk [vmem:[%s8461 + $0x18] sm:$0xff] %vm968, %v8455
      %v8466 = vld [vmem:[%s226 + $0xe] sm:$0x1]
      %v8467 = vld [vmem:[%s226 + $0x1e] sm:$0x1]
      %v8468 = vld [vmem:[%s226 + $0x2e] sm:$0x1]
      %v8469 = vld [vmem:[%s226 + $0x3e] sm:$0x1]
      %v8470 = vld [vmem:[%s226 + $0x4e] sm:$0x1]
      %v8471 = vld [vmem:[%s226 + $0x5e] sm:$0x1]
      %v8472 = vld [vmem:[%s226 + $0x6e] sm:$0x1]
      %v8473 = vld [vmem:[%s226 + $0x7e] sm:$0x1]
      %v8474 = vld [vmem:[%s226 + $0x8e] sm:$0x1]
      %v8475 = vld [vmem:[%s226 + $0x9e] sm:$0x1]
      %v8476 = vld [vmem:[%s226 + $0xae] sm:$0x1]
      %v8477 = vld [vmem:[%s226 + $0xbe] sm:$0x1]
      %v8478 = vld [vmem:[%s226 + $0xce] sm:$0x1]
      %v8479 = vld [vmem:[%s226 + $0xde] sm:$0x1]
      %v8480 = vld [vmem:[%s226 + $0xee] sm:$0x1]
      %v8481 = vld [vmem:[%s226 + $0xfe] sm:$0x1]
      %v8482 = vld [vmem:[%s226 + $0x10e] sm:$0x1]
      %v8483 = vld [vmem:[%s226 + $0x11e] sm:$0x1]
      %v8484 = vld [vmem:[%s226 + $0x12e] sm:$0x1]
      %v8485 = vld [vmem:[%s226 + $0x13e] sm:$0x1]
      %v8486 = vld [vmem:[%s226 + $0x14e] sm:$0x1]
      %v8487 = vld [vmem:[%s226 + $0x15e] sm:$0x1]
      %v8488 = vld [vmem:[%s226 + $0x16e] sm:$0x1]
      %v8489 = vld [vmem:[%s226 + $0x17e] sm:$0x1]
      %v8490 = vld [vmem:[%s226 + $0x18e] sm:$0x1]
      %v8491 = vld [vmem:[%s226 + $0x19e] sm:$0x1]
      %v8492 = vld [vmem:[%s226 + $0x1ae] sm:$0x1]
      %v8493 = vld [vmem:[%s226 + $0x1be] sm:$0x1]
      %v8494 = vld [vmem:[%s226 + $0x1ce] sm:$0x1]
      %v8495 = vld [vmem:[%s226 + $0x1de] sm:$0x1]
      %v8496 = vld [vmem:[%s226 + $0x1ee] sm:$0x1]
      %v8497 = vld [vmem:[%s226 + $0x1fe] sm:$0x1]
      %v8498 = vld [vmem:[%s226 + $0x20e] sm:$0x1]
      %v8499 = vld [vmem:[%s226 + $0x21e] sm:$0x1]
      %v8500 = vld [vmem:[%s226 + $0x22e] sm:$0x1]
      %v8501 = vld [vmem:[%s226 + $0x23e] sm:$0x1]
      %v8502 = vld [vmem:[%s226 + $0x24e] sm:$0x1]
      %v8503 = vld [vmem:[%s226 + $0x25e] sm:$0x1]
      %v8504 = vld [vmem:[%s226 + $0x26e] sm:$0x1]
      %v8505 = vld [vmem:[%s226 + $0x27e] sm:$0x1]
      %v8506 = vld [vmem:[%s226 + $0x28e] sm:$0x1]
      %v8507 = vld [vmem:[%s226 + $0x29e] sm:$0x1]
      %v8508 = vld [vmem:[%s226 + $0x2ae] sm:$0x1]
      %v8509 = vld [vmem:[%s226 + $0x2be] sm:$0x1]
      %v8510 = vld [vmem:[%s226 + $0x2ce] sm:$0x1]
      %v8511 = vld [vmem:[%s226 + $0x2de] sm:$0x1]
      %v8512 = vld [vmem:[%s226 + $0x2ee] sm:$0x1]
      %v8513 = vld [vmem:[%s226 + $0x2fe] sm:$0x1]
      %v8514 = vld [vmem:[%s226 + $0x30e] sm:$0x1]
      %v8515 = vld [vmem:[%s226 + $0x31e] sm:$0x1]
      %v8516 = vld [vmem:[%s226 + $0x32e] sm:$0x1]
      %v8517 = vld [vmem:[%s226 + $0x33e] sm:$0x1]
      %v8518 = vld [vmem:[%s226 + $0x34e] sm:$0x1]
      %v8519 = vld [vmem:[%s226 + $0x35e] sm:$0x1]
      %v8520 = vld [vmem:[%s226 + $0x36e] sm:$0x1]
      %v8521 = vld [vmem:[%s226 + $0x37e] sm:$0x1]
      %v8522 = vld [vmem:[%s226 + $0x38e] sm:$0x1]
      %v8523 = vld [vmem:[%s226 + $0x39e] sm:$0x1]
      %v8524 = vld [vmem:[%s226 + $0x3ae] sm:$0x1]
      %v8525 = vld [vmem:[%s226 + $0x3be] sm:$0x1]
      %v8526 = vld [vmem:[%s226 + $0x3ce] sm:$0x1]
      %v8527 = vld [vmem:[%s226 + $0x3de] sm:$0x1]
      %v8528 = vld [vmem:[%s226 + $0x3ee] sm:$0x1]
      %v8529 = vld [vmem:[%s226 + $0x3fe] sm:$0x1]
      %v8530 = vpack.c.bf16 %v8466, %v8466
      %v8531 = vpack.c.bf16 %v8467, %v8467
      %v8532 = vpack.c.bf16 %v8468, %v8468
      %v8533 = vpack.c.bf16 %v8469, %v8469
      %v8534 = vpack.c.bf16 %v8470, %v8470
      %v8535 = vpack.c.bf16 %v8471, %v8471
      %v8536 = vpack.c.bf16 %v8472, %v8472
      %v8537 = vpack.c.bf16 %v8473, %v8473
      %v8538 = vpack.c.bf16 %v8474, %v8474
      %v8539 = vpack.c.bf16 %v8475, %v8475
      %v8540 = vpack.c.bf16 %v8476, %v8476
      %v8541 = vpack.c.bf16 %v8477, %v8477
      %v8542 = vpack.c.bf16 %v8478, %v8478
      %v8543 = vpack.c.bf16 %v8479, %v8479
      %v8544 = vpack.c.bf16 %v8480, %v8480
      %v8545 = vpack.c.bf16 %v8481, %v8481
      %v8546 = vpack.c.bf16 %v8482, %v8482
      %v8547 = vpack.c.bf16 %v8483, %v8483
      %v8548 = vpack.c.bf16 %v8484, %v8484
      %v8549 = vpack.c.bf16 %v8485, %v8485
      %v8550 = vpack.c.bf16 %v8486, %v8486
      %v8551 = vpack.c.bf16 %v8487, %v8487
      %v8552 = vpack.c.bf16 %v8488, %v8488
      %v8553 = vpack.c.bf16 %v8489, %v8489
      %v8554 = vpack.c.bf16 %v8490, %v8490
      %v8555 = vpack.c.bf16 %v8491, %v8491
      %v8556 = vpack.c.bf16 %v8492, %v8492
      %v8557 = vpack.c.bf16 %v8493, %v8493
      %v8558 = vpack.c.bf16 %v8494, %v8494
      %v8559 = vpack.c.bf16 %v8495, %v8495
      %v8560 = vpack.c.bf16 %v8496, %v8496
      %v8561 = vpack.c.bf16 %v8497, %v8497
      %v8562 = vpack.c.bf16 %v8498, %v8498
      %v8563 = vpack.c.bf16 %v8499, %v8499
      %v8564 = vpack.c.bf16 %v8500, %v8500
      %v8565 = vpack.c.bf16 %v8501, %v8501
      %v8566 = vpack.c.bf16 %v8502, %v8502
      %v8567 = vpack.c.bf16 %v8503, %v8503
      %v8568 = vpack.c.bf16 %v8504, %v8504
      %v8569 = vpack.c.bf16 %v8505, %v8505
      %v8570 = vpack.c.bf16 %v8506, %v8506
      %v8571 = vpack.c.bf16 %v8507, %v8507
      %v8572 = vpack.c.bf16 %v8508, %v8508
      %v8573 = vpack.c.bf16 %v8509, %v8509
      %v8574 = vpack.c.bf16 %v8510, %v8510
      %v8575 = vpack.c.bf16 %v8511, %v8511
      %v8576 = vpack.c.bf16 %v8512, %v8512
      %v8577 = vpack.c.bf16 %v8513, %v8513
      %v8578 = vpack.c.bf16 %v8514, %v8514
      %v8579 = vpack.c.bf16 %v8515, %v8515
      %v8580 = vpack.c.bf16 %v8516, %v8516
      %v8581 = vpack.c.bf16 %v8517, %v8517
      %v8582 = vpack.c.bf16 %v8518, %v8518
      %v8583 = vpack.c.bf16 %v8519, %v8519
      %v8584 = vpack.c.bf16 %v8520, %v8520
      %v8585 = vpack.c.bf16 %v8521, %v8521
      %v8586 = vpack.c.bf16 %v8522, %v8522
      %v8587 = vpack.c.bf16 %v8523, %v8523
      %v8588 = vpack.c.bf16 %v8524, %v8524
      %v8589 = vpack.c.bf16 %v8525, %v8525
      %v8590 = vpack.c.bf16 %v8526, %v8526
      %v8591 = vpack.c.bf16 %v8527, %v8527
      %v8592 = vpack.c.bf16 %v8528, %v8528
      %v8593 = vpack.c.bf16 %v8529, %v8529
      %v8658 = vunpack.c.l.b16 %v8530
      %v8659 = vunpack.c.l.b16 %v8531
      %v8660 = vunpack.c.l.b16 %v8532
      %v8661 = vunpack.c.l.b16 %v8533
      %v8662 = vunpack.c.l.b16 %v8534
      %v8663 = vunpack.c.l.b16 %v8535
      %v8664 = vunpack.c.l.b16 %v8536
      %v8665 = vunpack.c.l.b16 %v8537
      %v8666 = vunpack.c.l.b16 %v8538
      %v8667 = vunpack.c.l.b16 %v8539
      %v8668 = vunpack.c.l.b16 %v8540
      %v8669 = vunpack.c.l.b16 %v8541
      %v8670 = vunpack.c.l.b16 %v8542
      %v8671 = vunpack.c.l.b16 %v8543
      %v8672 = vunpack.c.l.b16 %v8544
      %v8673 = vunpack.c.l.b16 %v8545
      %v8674 = vunpack.c.l.b16 %v8546
      %v8675 = vunpack.c.l.b16 %v8547
      %v8676 = vunpack.c.l.b16 %v8548
      %v8677 = vunpack.c.l.b16 %v8549
      %v8678 = vunpack.c.l.b16 %v8550
      %v8679 = vunpack.c.l.b16 %v8551
      %v8680 = vunpack.c.l.b16 %v8552
      %v8681 = vunpack.c.l.b16 %v8553
      %v8682 = vunpack.c.l.b16 %v8554
      %v8683 = vunpack.c.l.b16 %v8555
      %v8684 = vunpack.c.l.b16 %v8556
      %v8685 = vunpack.c.l.b16 %v8557
      %v8686 = vunpack.c.l.b16 %v8558
      %v8687 = vunpack.c.l.b16 %v8559
      %v8688 = vunpack.c.l.b16 %v8560
      %v8689 = vunpack.c.l.b16 %v8561
      %v8690 = vunpack.c.l.b16 %v8562
      %v8691 = vunpack.c.l.b16 %v8563
      %v8692 = vunpack.c.l.b16 %v8564
      %v8693 = vunpack.c.l.b16 %v8565
      %v8694 = vunpack.c.l.b16 %v8566
      %v8695 = vunpack.c.l.b16 %v8567
      %v8696 = vunpack.c.l.b16 %v8568
      %v8697 = vunpack.c.l.b16 %v8569
      %v8698 = vunpack.c.l.b16 %v8570
      %v8699 = vunpack.c.l.b16 %v8571
      %v8700 = vunpack.c.l.b16 %v8572
      %v8701 = vunpack.c.l.b16 %v8573
      %v8702 = vunpack.c.l.b16 %v8574
      %v8703 = vunpack.c.l.b16 %v8575
      %v8704 = vunpack.c.l.b16 %v8576
      %v8705 = vunpack.c.l.b16 %v8577
      %v8706 = vunpack.c.l.b16 %v8578
      %v8707 = vunpack.c.l.b16 %v8579
      %v8708 = vunpack.c.l.b16 %v8580
      %v8709 = vunpack.c.l.b16 %v8581
      %v8710 = vunpack.c.l.b16 %v8582
      %v8711 = vunpack.c.l.b16 %v8583
      %v8712 = vunpack.c.l.b16 %v8584
      %v8713 = vunpack.c.l.b16 %v8585
      %v8714 = vunpack.c.l.b16 %v8586
      %v8715 = vunpack.c.l.b16 %v8587
      %v8716 = vunpack.c.l.b16 %v8588
      %v8717 = vunpack.c.l.b16 %v8589
      %v8718 = vunpack.c.l.b16 %v8590
      %v8719 = vunpack.c.l.b16 %v8591
      %v8720 = vunpack.c.l.b16 %v8592
      %v8721 = vunpack.c.l.b16 %v8593
      %v8722 = vrot.slane %v8659, 7
      %v8723 = vsel %vm538, %v8722, %v8658
      %v8724 = vrot.slane %v8660, 6
      %v8725 = vsel %vm541, %v8724, %v8723
      %v8726 = vrot.slane %v8661, 5
      %v8727 = vsel %vm544, %v8726, %v8725
      %v8728 = vrot.slane %v8662, 4
      %v8729 = vsel %vm547, %v8728, %v8727
      %v8730 = vrot.slane %v8663, 3
      %v8731 = vsel %vm550, %v8730, %v8729
      %v8732 = vrot.slane %v8664, 2
      %v8733 = vsel %vm553, %v8732, %v8731
      %v8734 = vrot.slane %v8665, 1
      %v8735 = vsel %vm556, %v8734, %v8733
      %v8736 = vrot.slane %v8667, 7
      %v8737 = vsel %vm538, %v8736, %v8666
      %v8738 = vrot.slane %v8668, 6
      %v8739 = vsel %vm541, %v8738, %v8737
      %v8740 = vrot.slane %v8669, 5
      %v8741 = vsel %vm544, %v8740, %v8739
      %v8742 = vrot.slane %v8670, 4
      %v8743 = vsel %vm547, %v8742, %v8741
      %v8744 = vrot.slane %v8671, 3
      %v8745 = vsel %vm550, %v8744, %v8743
      %v8746 = vrot.slane %v8672, 2
      %v8747 = vsel %vm553, %v8746, %v8745
      %v8748 = vrot.slane %v8673, 1
      %v8749 = vsel %vm556, %v8748, %v8747
      %v8750 = vrot.slane %v8675, 7
      %v8751 = vsel %vm538, %v8750, %v8674
      %v8752 = vrot.slane %v8676, 6
      %v8753 = vsel %vm541, %v8752, %v8751
      %v8754 = vrot.slane %v8677, 5
      %v8755 = vsel %vm544, %v8754, %v8753
      %v8756 = vrot.slane %v8678, 4
      %v8757 = vsel %vm547, %v8756, %v8755
      %v8758 = vrot.slane %v8679, 3
      %v8759 = vsel %vm550, %v8758, %v8757
      %v8760 = vrot.slane %v8680, 2
      %v8761 = vsel %vm553, %v8760, %v8759
      %v8762 = vrot.slane %v8681, 1
      %v8763 = vsel %vm556, %v8762, %v8761
      %v8764 = vrot.slane %v8683, 7
      %v8765 = vsel %vm538, %v8764, %v8682
      %v8766 = vrot.slane %v8684, 6
      %v8767 = vsel %vm541, %v8766, %v8765
      %v8768 = vrot.slane %v8685, 5
      %v8769 = vsel %vm544, %v8768, %v8767
      %v8770 = vrot.slane %v8686, 4
      %v8771 = vsel %vm547, %v8770, %v8769
      %v8772 = vrot.slane %v8687, 3
      %v8773 = vsel %vm550, %v8772, %v8771
      %v8774 = vrot.slane %v8688, 2
      %v8775 = vsel %vm553, %v8774, %v8773
      %v8776 = vrot.slane %v8689, 1
      %v8777 = vsel %vm556, %v8776, %v8775
      %v8778 = vrot.slane %v8691, 7
      %v8779 = vsel %vm538, %v8778, %v8690
      %v8780 = vrot.slane %v8692, 6
      %v8781 = vsel %vm541, %v8780, %v8779
      %v8782 = vrot.slane %v8693, 5
      %v8783 = vsel %vm544, %v8782, %v8781
      %v8784 = vrot.slane %v8694, 4
      %v8785 = vsel %vm547, %v8784, %v8783
      %v8786 = vrot.slane %v8695, 3
      %v8787 = vsel %vm550, %v8786, %v8785
      %v8788 = vrot.slane %v8696, 2
      %v8789 = vsel %vm553, %v8788, %v8787
      %v8790 = vrot.slane %v8697, 1
      %v8791 = vsel %vm556, %v8790, %v8789
      %v8792 = vrot.slane %v8699, 7
      %v8793 = vsel %vm538, %v8792, %v8698
      %v8794 = vrot.slane %v8700, 6
      %v8795 = vsel %vm541, %v8794, %v8793
      %v8796 = vrot.slane %v8701, 5
      %v8797 = vsel %vm544, %v8796, %v8795
      %v8798 = vrot.slane %v8702, 4
      %v8799 = vsel %vm547, %v8798, %v8797
      %v8800 = vrot.slane %v8703, 3
      %v8801 = vsel %vm550, %v8800, %v8799
      %v8802 = vrot.slane %v8704, 2
      %v8803 = vsel %vm553, %v8802, %v8801
      %v8804 = vrot.slane %v8705, 1
      %v8805 = vsel %vm556, %v8804, %v8803
      %v8806 = vrot.slane %v8707, 7
      %v8807 = vsel %vm538, %v8806, %v8706
      %v8808 = vrot.slane %v8708, 6
      %v8809 = vsel %vm541, %v8808, %v8807
      %v8810 = vrot.slane %v8709, 5
      %v8811 = vsel %vm544, %v8810, %v8809
      %v8812 = vrot.slane %v8710, 4
      %v8813 = vsel %vm547, %v8812, %v8811
      %v8814 = vrot.slane %v8711, 3
      %v8815 = vsel %vm550, %v8814, %v8813
      %v8816 = vrot.slane %v8712, 2
      %v8817 = vsel %vm553, %v8816, %v8815
      %v8818 = vrot.slane %v8713, 1
      %v8819 = vsel %vm556, %v8818, %v8817
      %v8820 = vrot.slane %v8715, 7
      %v8821 = vsel %vm538, %v8820, %v8714
      %v8822 = vrot.slane %v8716, 6
      %v8823 = vsel %vm541, %v8822, %v8821
      %v8824 = vrot.slane %v8717, 5
      %v8825 = vsel %vm544, %v8824, %v8823
      %v8826 = vrot.slane %v8718, 4
      %v8827 = vsel %vm547, %v8826, %v8825
      %v8828 = vrot.slane %v8719, 3
      %v8829 = vsel %vm550, %v8828, %v8827
      %v8830 = vrot.slane %v8720, 2
      %v8831 = vsel %vm553, %v8830, %v8829
      %v8832 = vrot.slane %v8721, 1
      %v8833 = vsel %vm556, %v8832, %v8831
      %v8834 = vpack.c.b16 %v8749, %v8735
      %v8835 = vpack.c.b16 %v8777, %v8763
      %v8836 = vpack.c.b16 %v8805, %v8791
      %v8837 = vpack.c.b16 %v8833, %v8819
      %v8839 = vsel %vm666, %v8834, 0
      %v8842 = vsel %vm666, %v8835, 0
      %v8845 = vsel %vm666, %v8836, 0
      %v8848 = vsel %vm666, %v8837, 0
      %8850 = vmatprep.subr.bf16.mxu0 0
      %8851 = vmatpush1.bf16.msra.mxu0 %v664
      %8852 = vmatprep.subr.bf16.mxu0 0
      %8853 = vmatpush1.bf16.msra.mxu0 0
      %8854 = vmatprep.subr.bf16.mxu0 0
      %8855 = vmatpush1.bf16.msra.mxu0 0
      %8856 = vmatprep.subr.bf16.mxu0 0
      %8857 = vmatpush1.bf16.msra.mxu0 0
      %8858 = vmatprep.subr.bf16.mxu0 0
      %8859 = vmatpush1.bf16.msra.mxu0 0
      %8860 = vmatprep.subr.bf16.mxu0 0
      %8861 = vmatpush1.bf16.msra.mxu0 0
      %8862 = vmatprep.subr.bf16.mxu0 0
      %8863 = vmatpush1.bf16.msra.mxu0 0
      %8864 = vmatprep.subr.bf16.mxu0 0
      %8865 = vmatpush1.bf16.msra.mxu0 0
      %8866 = vmatprep.subr.bf16.mxu0 0
      %8867 = vmatpush1.bf16.msra.mxu0 0
      %8868 = vmatprep.subr.bf16.mxu0 0
      %8869 = vmatpush1.bf16.msra.mxu0 0
      %8870 = vmatprep.subr.bf16.mxu0 0
      %8871 = vmatpush1.bf16.msra.mxu0 0
      %8872 = vmatprep.subr.bf16.mxu0 0
      %8873 = vmatpush1.bf16.msra.mxu0 0
      %8874 = vmatprep.subr.bf16.mxu0 0
      %8875 = vmatpush1.bf16.msra.mxu0 0
      %8876 = vmatprep.subr.bf16.mxu0 0
      %8877 = vmatpush1.bf16.msra.mxu0 0
      %8878 = vmatprep.subr.bf16.mxu0 0
      %8879 = vmatpush1.bf16.msra.mxu0 0
      %8880 = vmatprep.subr.bf16.mxu0 0
      %8881 = vmatpush1.bf16.msra.mxu0 0
      %8882 = vmatprep.mubr.bf16.mxu0 0
      %8883 = vmatmul.mubr.bf16.gmra.mrb[0].mxu0 %v8839
      %v8884 = vpop.f32.mrb[0].mxu0
      %v8885 = vadd.f32 0.0, %v8884
      %v8886 = vpop.f32.mrb[0].mxu0
      %v8887 = vpop.f32.mrb[0].mxu0
      %v8888 = vadd.f32 0.0, %v8887
      %v8889 = vpop.f32.mrb[0].mxu0
      %8890 = vmatprep.mubr.bf16.mxu0 0
      %8891 = vmatmul.mubr.bf16.gmra.mrb[0].mxu0 %v8842
      %v8892 = vpop.f32.mrb[0].mxu0
      %v8893 = vadd.f32 0.0, %v8892
      %v8894 = vpop.f32.mrb[0].mxu0
      %v8895 = vpop.f32.mrb[0].mxu0
      %v8896 = vadd.f32 0.0, %v8895
      %v8897 = vpop.f32.mrb[0].mxu0
      %8898 = vmatprep.mubr.bf16.mxu0 0
      %8899 = vmatmul.mubr.bf16.gmra.mrb[0].mxu0 %v8845
      %v8900 = vpop.f32.mrb[0].mxu0
      %v8901 = vadd.f32 0.0, %v8900
      %v8902 = vpop.f32.mrb[0].mxu0
      %v8903 = vpop.f32.mrb[0].mxu0
      %v8904 = vadd.f32 0.0, %v8903
      %v8905 = vpop.f32.mrb[0].mxu0
      %8906 = vmatprep.mubr.bf16.mxu0 0
      %8907 = vmatmul.mubr.bf16.gmra.mrb[0].mxu0 %v8848
      %v8908 = vpop.f32.mrb[0].mxu0
      %v8909 = vadd.f32 0.0, %v8908
      %v8910 = vpop.f32.mrb[0].mxu0
      %v8911 = vpop.f32.mrb[0].mxu0
      %v8912 = vadd.f32 0.0, %v8911
      %v8913 = vpop.f32.mrb[0].mxu0
      %8914 = vdwg.mxu0
      %v8915 = vpack.c.bf16 %v8888, %v8885
      %v8916 = vpack.c.bf16 %v8896, %v8893
      %v8917 = vpack.c.bf16 %v8904, %v8901
      %v8918 = vpack.c.bf16 %v8912, %v8909
      %8919 = vmatprep.subr.bf16.mxu0 0
      %8920 = vmatpush1.bf16.msra.mxu0 %v8915
      %8921 = vmatprep.subr.bf16.mxu0 0
      %8922 = vmatpush1.bf16.msra.mxu0 %v8916
      %8923 = vmatprep.subr.bf16.mxu0 0
      %8924 = vmatpush1.bf16.msra.mxu0 %v8917
      %8925 = vmatprep.subr.bf16.mxu0 0
      %8926 = vmatpush1.bf16.msra.mxu0 %v8918
      %8927 = vmatprep.subr.bf16.mxu0 0
      %8928 = vmatpush1.bf16.msra.mxu0 0
      %8929 = vmatprep.subr.bf16.mxu0 0
      %8930 = vmatpush1.bf16.msra.mxu0 0
      %8931 = vmatprep.subr.bf16.mxu0 0
      %8932 = vmatpush1.bf16.msra.mxu0 0
      %8933 = vmatprep.subr.bf16.mxu0 0
      %8934 = vmatpush1.bf16.msra.mxu0 0
      %8935 = vmatprep.subr.bf16.mxu0 0
      %8936 = vmatpush1.bf16.msra.mxu0 0
      %8937 = vmatprep.subr.bf16.mxu0 0
      %8938 = vmatpush1.bf16.msra.mxu0 0
      %8939 = vmatprep.subr.bf16.mxu0 0
      %8940 = vmatpush1.bf16.msra.mxu0 0
      %8941 = vmatprep.subr.bf16.mxu0 0
      %8942 = vmatpush1.bf16.msra.mxu0 0
      %8943 = vmatprep.subr.bf16.mxu0 0
      %8944 = vmatpush1.bf16.msra.mxu0 0
      %8945 = vmatprep.subr.bf16.mxu0 0
      %8946 = vmatpush1.bf16.msra.mxu0 0
      %8947 = vmatprep.subr.bf16.mxu0 0
      %8948 = vmatpush1.bf16.msra.mxu0 0
      %8949 = vmatprep.subr.bf16.mxu0 0
      %8950 = vmatpush1.bf16.msra.mxu0 0
      %8951 = vmatprep.mubr.bf16.mxu0 0
      %8952 = vmatmul.mubr.bf16.gmra.mrb[0].mxu0 %v790
      %v8953 = vpop.f32.mrb[0].mxu0
      %v8954 = vadd.f32 0.0, %v8953
      %v8955 = vpop.f32.mrb[0].mxu0
      %v8956 = vpop.f32.mrb[0].mxu0
      %v8957 = vadd.f32 0.0, %v8956
      %v8958 = vpop.f32.mrb[0].mxu0
      %8959 = vmatprep.mubr.bf16.mxu0 0
      %8960 = vmatmul.mubr.bf16.gmra.mrb[0].mxu0 %v793
      %v8961 = vpop.f32.mrb[0].mxu0
      %v8962 = vadd.f32 0.0, %v8961
      %v8963 = vpop.f32.mrb[0].mxu0
      %v8964 = vpop.f32.mrb[0].mxu0
      %v8965 = vadd.f32 0.0, %v8964
      %v8966 = vpop.f32.mrb[0].mxu0
      %8967 = vmatprep.mubr.bf16.mxu0 0
      %8968 = vmatmul.mubr.bf16.gmra.mrb[0].mxu0 %v796
      %v8969 = vpop.f32.mrb[0].mxu0
      %v8970 = vadd.f32 0.0, %v8969
      %v8971 = vpop.f32.mrb[0].mxu0
      %v8972 = vpop.f32.mrb[0].mxu0
      %v8973 = vadd.f32 0.0, %v8972
      %v8974 = vpop.f32.mrb[0].mxu0
      %8975 = vmatprep.mubr.bf16.mxu0 0
      %8976 = vmatmul.mubr.bf16.gmra.mrb[0].mxu0 %v799
      %v8977 = vpop.f32.mrb[0].mxu0
      %v8978 = vadd.f32 0.0, %v8977
      %v8979 = vpop.f32.mrb[0].mxu0
      %v8980 = vpop.f32.mrb[0].mxu0
      %v8981 = vadd.f32 0.0, %v8980
      %v8982 = vpop.f32.mrb[0].mxu0
      %8983 = vmatprep.mubr.bf16.mxu0 0
      %8984 = vmatmul.mubr.bf16.gmra.mrb[0].mxu0 %v802
      %v8985 = vpop.f32.mrb[0].mxu0
      %v8986 = vadd.f32 0.0, %v8985
      %v8987 = vpop.f32.mrb[0].mxu0
      %v8988 = vpop.f32.mrb[0].mxu0
      %v8989 = vadd.f32 0.0, %v8988
      %v8990 = vpop.f32.mrb[0].mxu0
      %8991 = vmatprep.mubr.bf16.mxu0 0
      %8992 = vmatmul.mubr.bf16.gmra.mrb[0].mxu0 %v805
      %v8993 = vpop.f32.mrb[0].mxu0
      %v8994 = vadd.f32 0.0, %v8993
      %v8995 = vpop.f32.mrb[0].mxu0
      %v8996 = vpop.f32.mrb[0].mxu0
      %v8997 = vadd.f32 0.0, %v8996
      %v8998 = vpop.f32.mrb[0].mxu0
      %8999 = vmatprep.mubr.bf16.mxu0 0
      %9000 = vmatmul.mubr.bf16.gmra.mrb[0].mxu0 %v808
      %v9001 = vpop.f32.mrb[0].mxu0
      %v9002 = vadd.f32 0.0, %v9001
      %v9003 = vpop.f32.mrb[0].mxu0
      %v9004 = vpop.f32.mrb[0].mxu0
      %v9005 = vadd.f32 0.0, %v9004
      %v9006 = vpop.f32.mrb[0].mxu0
      %9007 = vmatprep.mubr.bf16.mxu0 0
      %9008 = vmatmul.mubr.bf16.gmra.mrb[0].mxu0 %v811
      %v9009 = vpop.f32.mrb[0].mxu0
      %v9010 = vadd.f32 0.0, %v9009
      %v9011 = vpop.f32.mrb[0].mxu0
      %v9012 = vpop.f32.mrb[0].mxu0
      %v9013 = vadd.f32 0.0, %v9012
      %v9014 = vpop.f32.mrb[0].mxu0
      %9015 = vdwg.mxu0
      %v9016 = vsel %vm911, %v8954, %v8986
      %v9017 = vsel %vm911, %v8957, %v8989
      %v9018 = vsel %vm911, %v8962, %v8994
      %v9019 = vsel %vm911, %v8965, %v8997
      %v9020 = vsel %vm911, %v8970, %v9002
      %v9021 = vsel %vm911, %v8973, %v9005
      %v9022 = vsel %vm911, %v8978, %v9010
      %v9023 = vsel %vm911, %v8981, %v9013
      %v9024 = vadd.f32 %v9016, %v923
      %v9025 = vadd.f32 %v9017, %v928
      %v9026 = vadd.f32 %v9018, %v933
      %v9027 = vadd.f32 %v9019, %v938
      %v9028 = vadd.f32 %v9020, %v943
      %v9029 = vadd.f32 %v9021, %v948
      %v9030 = vadd.f32 %v9022, %v953
      %v9031 = vadd.f32 %v9023, %v958
      %s9032 = scalar_lea.vmem %s237, 896
      %9033 = vst.msk [vmem:[%s9032] sm:$0xff] %vm968, %v9024
      %9034 = vst.msk [vmem:[%s9032 + $0x8] sm:$0xff] %vm968, %v9025
      %9035 = vst.msk [vmem:[%s9032 + $0x10] sm:$0xff] %vm968, %v9026
      %9036 = vst.msk [vmem:[%s9032 + $0x18] sm:$0xff] %vm968, %v9027
      %s9037 = scalar_lea.vmem %s237, 928
      %9038 = vst.msk [vmem:[%s9037] sm:$0xff] %vm968, %v9028
      %9039 = vst.msk [vmem:[%s9037 + $0x8] sm:$0xff] %vm968, %v9029
      %9040 = vst.msk [vmem:[%s9037 + $0x10] sm:$0xff] %vm968, %v9030
      %9041 = vst.msk [vmem:[%s9037 + $0x18] sm:$0xff] %vm968, %v9031
      %v9042 = vld [vmem:[%s226 + $0xf] sm:$0x1]
      %v9043 = vld [vmem:[%s226 + $0x1f] sm:$0x1]
      %v9044 = vld [vmem:[%s226 + $0x2f] sm:$0x1]
      %v9045 = vld [vmem:[%s226 + $0x3f] sm:$0x1]
      %v9046 = vld [vmem:[%s226 + $0x4f] sm:$0x1]
      %v9047 = vld [vmem:[%s226 + $0x5f] sm:$0x1]
      %v9048 = vld [vmem:[%s226 + $0x6f] sm:$0x1]
      %v9049 = vld [vmem:[%s226 + $0x7f] sm:$0x1]
      %v9050 = vld [vmem:[%s226 + $0x8f] sm:$0x1]
      %v9051 = vld [vmem:[%s226 + $0x9f] sm:$0x1]
      %v9052 = vld [vmem:[%s226 + $0xaf] sm:$0x1]
      %v9053 = vld [vmem:[%s226 + $0xbf] sm:$0x1]
      %v9054 = vld [vmem:[%s226 + $0xcf] sm:$0x1]
      %v9055 = vld [vmem:[%s226 + $0xdf] sm:$0x1]
      %v9056 = vld [vmem:[%s226 + $0xef] sm:$0x1]
      %v9057 = vld [vmem:[%s226 + $0xff] sm:$0x1]
      %v9058 = vld [vmem:[%s226 + $0x10f] sm:$0x1]
      %v9059 = vld [vmem:[%s226 + $0x11f] sm:$0x1]
      %v9060 = vld [vmem:[%s226 + $0x12f] sm:$0x1]
      %v9061 = vld [vmem:[%s226 + $0x13f] sm:$0x1]
      %v9062 = vld [vmem:[%s226 + $0x14f] sm:$0x1]
      %v9063 = vld [vmem:[%s226 + $0x15f] sm:$0x1]
      %v9064 = vld [vmem:[%s226 + $0x16f] sm:$0x1]
      %v9065 = vld [vmem:[%s226 + $0x17f] sm:$0x1]
      %v9066 = vld [vmem:[%s226 + $0x18f] sm:$0x1]
      %v9067 = vld [vmem:[%s226 + $0x19f] sm:$0x1]
      %v9068 = vld [vmem:[%s226 + $0x1af] sm:$0x1]
      %v9069 = vld [vmem:[%s226 + $0x1bf] sm:$0x1]
      %v9070 = vld [vmem:[%s226 + $0x1cf] sm:$0x1]
      %v9071 = vld [vmem:[%s226 + $0x1df] sm:$0x1]
      %v9072 = vld [vmem:[%s226 + $0x1ef] sm:$0x1]
      %v9073 = vld [vmem:[%s226 + $0x1ff] sm:$0x1]
      %v9074 = vld [vmem:[%s226 + $0x20f] sm:$0x1]
      %v9075 = vld [vmem:[%s226 + $0x21f] sm:$0x1]
      %v9076 = vld [vmem:[%s226 + $0x22f] sm:$0x1]
      %v9077 = vld [vmem:[%s226 + $0x23f] sm:$0x1]
      %v9078 = vld [vmem:[%s226 + $0x24f] sm:$0x1]
      %v9079 = vld [vmem:[%s226 + $0x25f] sm:$0x1]
      %v9080 = vld [vmem:[%s226 + $0x26f] sm:$0x1]
      %v9081 = vld [vmem:[%s226 + $0x27f] sm:$0x1]
      %v9082 = vld [vmem:[%s226 + $0x28f] sm:$0x1]
      %v9083 = vld [vmem:[%s226 + $0x29f] sm:$0x1]
      %v9084 = vld [vmem:[%s226 + $0x2af] sm:$0x1]
      %v9085 = vld [vmem:[%s226 + $0x2bf] sm:$0x1]
      %v9086 = vld [vmem:[%s226 + $0x2cf] sm:$0x1]
      %v9087 = vld [vmem:[%s226 + $0x2df] sm:$0x1]
      %v9088 = vld [vmem:[%s226 + $0x2ef] sm:$0x1]
      %v9089 = vld [vmem:[%s226 + $0x2ff] sm:$0x1]
      %v9090 = vld [vmem:[%s226 + $0x30f] sm:$0x1]
      %v9091 = vld [vmem:[%s226 + $0x31f] sm:$0x1]
      %v9092 = vld [vmem:[%s226 + $0x32f] sm:$0x1]
      %v9093 = vld [vmem:[%s226 + $0x33f] sm:$0x1]
      %v9094 = vld [vmem:[%s226 + $0x34f] sm:$0x1]
      %v9095 = vld [vmem:[%s226 + $0x35f] sm:$0x1]
      %v9096 = vld [vmem:[%s226 + $0x36f] sm:$0x1]
      %v9097 = vld [vmem:[%s226 + $0x37f] sm:$0x1]
      %v9098 = vld [vmem:[%s226 + $0x38f] sm:$0x1]
      %v9099 = vld [vmem:[%s226 + $0x39f] sm:$0x1]
      %v9100 = vld [vmem:[%s226 + $0x3af] sm:$0x1]
      %v9101 = vld [vmem:[%s226 + $0x3bf] sm:$0x1]
      %v9102 = vld [vmem:[%s226 + $0x3cf] sm:$0x1]
      %v9103 = vld [vmem:[%s226 + $0x3df] sm:$0x1]
      %v9104 = vld [vmem:[%s226 + $0x3ef] sm:$0x1]
      %v9105 = vld [vmem:[%s226 + $0x3ff] sm:$0x1]
      %v9106 = vpack.c.bf16 %v9042, %v9042
      %v9107 = vpack.c.bf16 %v9043, %v9043
      %v9108 = vpack.c.bf16 %v9044, %v9044
      %v9109 = vpack.c.bf16 %v9045, %v9045
      %v9110 = vpack.c.bf16 %v9046, %v9046
      %v9111 = vpack.c.bf16 %v9047, %v9047
      %v9112 = vpack.c.bf16 %v9048, %v9048
      %v9113 = vpack.c.bf16 %v9049, %v9049
      %v9114 = vpack.c.bf16 %v9050, %v9050
      %v9115 = vpack.c.bf16 %v9051, %v9051
      %v9116 = vpack.c.bf16 %v9052, %v9052
      %v9117 = vpack.c.bf16 %v9053, %v9053
      %v9118 = vpack.c.bf16 %v9054, %v9054
      %v9119 = vpack.c.bf16 %v9055, %v9055
      %v9120 = vpack.c.bf16 %v9056, %v9056
      %v9121 = vpack.c.bf16 %v9057, %v9057
      %v9122 = vpack.c.bf16 %v9058, %v9058
      %v9123 = vpack.c.bf16 %v9059, %v9059
      %v9124 = vpack.c.bf16 %v9060, %v9060
      %v9125 = vpack.c.bf16 %v9061, %v9061
      %v9126 = vpack.c.bf16 %v9062, %v9062
      %v9127 = vpack.c.bf16 %v9063, %v9063
      %v9128 = vpack.c.bf16 %v9064, %v9064
      %v9129 = vpack.c.bf16 %v9065, %v9065
      %v9130 = vpack.c.bf16 %v9066, %v9066
      %v9131 = vpack.c.bf16 %v9067, %v9067
      %v9132 = vpack.c.bf16 %v9068, %v9068
      %v9133 = vpack.c.bf16 %v9069, %v9069
      %v9134 = vpack.c.bf16 %v9070, %v9070
      %v9135 = vpack.c.bf16 %v9071, %v9071
      %v9136 = vpack.c.bf16 %v9072, %v9072
      %v9137 = vpack.c.bf16 %v9073, %v9073
      %v9138 = vpack.c.bf16 %v9074, %v9074
      %v9139 = vpack.c.bf16 %v9075, %v9075
      %v9140 = vpack.c.bf16 %v9076, %v9076
      %v9141 = vpack.c.bf16 %v9077, %v9077
      %v9142 = vpack.c.bf16 %v9078, %v9078
      %v9143 = vpack.c.bf16 %v9079, %v9079
      %v9144 = vpack.c.bf16 %v9080, %v9080
      %v9145 = vpack.c.bf16 %v9081, %v9081
      %v9146 = vpack.c.bf16 %v9082, %v9082
      %v9147 = vpack.c.bf16 %v9083, %v9083
      %v9148 = vpack.c.bf16 %v9084, %v9084
      %v9149 = vpack.c.bf16 %v9085, %v9085
      %v9150 = vpack.c.bf16 %v9086, %v9086
      %v9151 = vpack.c.bf16 %v9087, %v9087
      %v9152 = vpack.c.bf16 %v9088, %v9088
      %v9153 = vpack.c.bf16 %v9089, %v9089
      %v9154 = vpack.c.bf16 %v9090, %v9090
      %v9155 = vpack.c.bf16 %v9091, %v9091
      %v9156 = vpack.c.bf16 %v9092, %v9092
      %v9157 = vpack.c.bf16 %v9093, %v9093
      %v9158 = vpack.c.bf16 %v9094, %v9094
      %v9159 = vpack.c.bf16 %v9095, %v9095
      %v9160 = vpack.c.bf16 %v9096, %v9096
      %v9161 = vpack.c.bf16 %v9097, %v9097
      %v9162 = vpack.c.bf16 %v9098, %v9098
      %v9163 = vpack.c.bf16 %v9099, %v9099
      %v9164 = vpack.c.bf16 %v9100, %v9100
      %v9165 = vpack.c.bf16 %v9101, %v9101
      %v9166 = vpack.c.bf16 %v9102, %v9102
      %v9167 = vpack.c.bf16 %v9103, %v9103
      %v9168 = vpack.c.bf16 %v9104, %v9104
      %v9169 = vpack.c.bf16 %v9105, %v9105
      %v9234 = vunpack.c.l.b16 %v9106
      %v9235 = vunpack.c.l.b16 %v9107
      %v9236 = vunpack.c.l.b16 %v9108
      %v9237 = vunpack.c.l.b16 %v9109
      %v9238 = vunpack.c.l.b16 %v9110
      %v9239 = vunpack.c.l.b16 %v9111
      %v9240 = vunpack.c.l.b16 %v9112
      %v9241 = vunpack.c.l.b16 %v9113
      %v9242 = vunpack.c.l.b16 %v9114
      %v9243 = vunpack.c.l.b16 %v9115
      %v9244 = vunpack.c.l.b16 %v9116
      %v9245 = vunpack.c.l.b16 %v9117
      %v9246 = vunpack.c.l.b16 %v9118
      %v9247 = vunpack.c.l.b16 %v9119
      %v9248 = vunpack.c.l.b16 %v9120
      %v9249 = vunpack.c.l.b16 %v9121
      %v9250 = vunpack.c.l.b16 %v9122
      %v9251 = vunpack.c.l.b16 %v9123
      %v9252 = vunpack.c.l.b16 %v9124
      %v9253 = vunpack.c.l.b16 %v9125
      %v9254 = vunpack.c.l.b16 %v9126
      %v9255 = vunpack.c.l.b16 %v9127
      %v9256 = vunpack.c.l.b16 %v9128
      %v9257 = vunpack.c.l.b16 %v9129
      %v9258 = vunpack.c.l.b16 %v9130
      %v9259 = vunpack.c.l.b16 %v9131
      %v9260 = vunpack.c.l.b16 %v9132
      %v9261 = vunpack.c.l.b16 %v9133
      %v9262 = vunpack.c.l.b16 %v9134
      %v9263 = vunpack.c.l.b16 %v9135
      %v9264 = vunpack.c.l.b16 %v9136
      %v9265 = vunpack.c.l.b16 %v9137
      %v9266 = vunpack.c.l.b16 %v9138
      %v9267 = vunpack.c.l.b16 %v9139
      %v9268 = vunpack.c.l.b16 %v9140
      %v9269 = vunpack.c.l.b16 %v9141
      %v9270 = vunpack.c.l.b16 %v9142
      %v9271 = vunpack.c.l.b16 %v9143
      %v9272 = vunpack.c.l.b16 %v9144
      %v9273 = vunpack.c.l.b16 %v9145
      %v9274 = vunpack.c.l.b16 %v9146
      %v9275 = vunpack.c.l.b16 %v9147
      %v9276 = vunpack.c.l.b16 %v9148
      %v9277 = vunpack.c.l.b16 %v9149
      %v9278 = vunpack.c.l.b16 %v9150
      %v9279 = vunpack.c.l.b16 %v9151
      %v9280 = vunpack.c.l.b16 %v9152
      %v9281 = vunpack.c.l.b16 %v9153
      %v9282 = vunpack.c.l.b16 %v9154
      %v9283 = vunpack.c.l.b16 %v9155
      %v9284 = vunpack.c.l.b16 %v9156
      %v9285 = vunpack.c.l.b16 %v9157
      %v9286 = vunpack.c.l.b16 %v9158
      %v9287 = vunpack.c.l.b16 %v9159
      %v9288 = vunpack.c.l.b16 %v9160
      %v9289 = vunpack.c.l.b16 %v9161
      %v9290 = vunpack.c.l.b16 %v9162
      %v9291 = vunpack.c.l.b16 %v9163
      %v9292 = vunpack.c.l.b16 %v9164
      %v9293 = vunpack.c.l.b16 %v9165
      %v9294 = vunpack.c.l.b16 %v9166
      %v9295 = vunpack.c.l.b16 %v9167
      %v9296 = vunpack.c.l.b16 %v9168
      %v9297 = vunpack.c.l.b16 %v9169
      %v9298 = vrot.slane %v9235, 7
      %v9299 = vsel %vm538, %v9298, %v9234
      %v9300 = vrot.slane %v9236, 6
      %v9301 = vsel %vm541, %v9300, %v9299
      %v9302 = vrot.slane %v9237, 5
      %v9303 = vsel %vm544, %v9302, %v9301
      %v9304 = vrot.slane %v9238, 4
      %v9305 = vsel %vm547, %v9304, %v9303
      %v9306 = vrot.slane %v9239, 3
      %v9307 = vsel %vm550, %v9306, %v9305
      %v9308 = vrot.slane %v9240, 2
      %v9309 = vsel %vm553, %v9308, %v9307
      %v9310 = vrot.slane %v9241, 1
      %v9311 = vsel %vm556, %v9310, %v9309
      %v9312 = vrot.slane %v9243, 7
      %v9313 = vsel %vm538, %v9312, %v9242
      %v9314 = vrot.slane %v9244, 6
      %v9315 = vsel %vm541, %v9314, %v9313
      %v9316 = vrot.slane %v9245, 5
      %v9317 = vsel %vm544, %v9316, %v9315
      %v9318 = vrot.slane %v9246, 4
      %v9319 = vsel %vm547, %v9318, %v9317
      %v9320 = vrot.slane %v9247, 3
      %v9321 = vsel %vm550, %v9320, %v9319
      %v9322 = vrot.slane %v9248, 2
      %v9323 = vsel %vm553, %v9322, %v9321
      %v9324 = vrot.slane %v9249, 1
      %v9325 = vsel %vm556, %v9324, %v9323
      %v9326 = vrot.slane %v9251, 7
      %v9327 = vsel %vm538, %v9326, %v9250
      %v9328 = vrot.slane %v9252, 6
      %v9329 = vsel %vm541, %v9328, %v9327
      %v9330 = vrot.slane %v9253, 5
      %v9331 = vsel %vm544, %v9330, %v9329
      %v9332 = vrot.slane %v9254, 4
      %v9333 = vsel %vm547, %v9332, %v9331
      %v9334 = vrot.slane %v9255, 3
      %v9335 = vsel %vm550, %v9334, %v9333
      %v9336 = vrot.slane %v9256, 2
      %v9337 = vsel %vm553, %v9336, %v9335
      %v9338 = vrot.slane %v9257, 1
      %v9339 = vsel %vm556, %v9338, %v9337
      %v9340 = vrot.slane %v9259, 7
      %v9341 = vsel %vm538, %v9340, %v9258
      %v9342 = vrot.slane %v9260, 6
      %v9343 = vsel %vm541, %v9342, %v9341
      %v9344 = vrot.slane %v9261, 5
      %v9345 = vsel %vm544, %v9344, %v9343
      %v9346 = vrot.slane %v9262, 4
      %v9347 = vsel %vm547, %v9346, %v9345
      %v9348 = vrot.slane %v9263, 3
      %v9349 = vsel %vm550, %v9348, %v9347
      %v9350 = vrot.slane %v9264, 2
      %v9351 = vsel %vm553, %v9350, %v9349
      %v9352 = vrot.slane %v9265, 1
      %v9353 = vsel %vm556, %v9352, %v9351
      %v9354 = vrot.slane %v9267, 7
      %v9355 = vsel %vm538, %v9354, %v9266
      %v9356 = vrot.slane %v9268, 6
      %v9357 = vsel %vm541, %v9356, %v9355
      %v9358 = vrot.slane %v9269, 5
      %v9359 = vsel %vm544, %v9358, %v9357
      %v9360 = vrot.slane %v9270, 4
      %v9361 = vsel %vm547, %v9360, %v9359
      %v9362 = vrot.slane %v9271, 3
      %v9363 = vsel %vm550, %v9362, %v9361
      %v9364 = vrot.slane %v9272, 2
      %v9365 = vsel %vm553, %v9364, %v9363
      %v9366 = vrot.slane %v9273, 1
      %v9367 = vsel %vm556, %v9366, %v9365
      %v9368 = vrot.slane %v9275, 7
      %v9369 = vsel %vm538, %v9368, %v9274
      %v9370 = vrot.slane %v9276, 6
      %v9371 = vsel %vm541, %v9370, %v9369
      %v9372 = vrot.slane %v9277, 5
      %v9373 = vsel %vm544, %v9372, %v9371
      %v9374 = vrot.slane %v9278, 4
      %v9375 = vsel %vm547, %v9374, %v9373
      %v9376 = vrot.slane %v9279, 3
      %v9377 = vsel %vm550, %v9376, %v9375
      %v9378 = vrot.slane %v9280, 2
      %v9379 = vsel %vm553, %v9378, %v9377
      %v9380 = vrot.slane %v9281, 1
      %v9381 = vsel %vm556, %v9380, %v9379
      %v9382 = vrot.slane %v9283, 7
      %v9383 = vsel %vm538, %v9382, %v9282
      %v9384 = vrot.slane %v9284, 6
      %v9385 = vsel %vm541, %v9384, %v9383
      %v9386 = vrot.slane %v9285, 5
      %v9387 = vsel %vm544, %v9386, %v9385
      %v9388 = vrot.slane %v9286, 4
      %v9389 = vsel %vm547, %v9388, %v9387
      %v9390 = vrot.slane %v9287, 3
      %v9391 = vsel %vm550, %v9390, %v9389
      %v9392 = vrot.slane %v9288, 2
      %v9393 = vsel %vm553, %v9392, %v9391
      %v9394 = vrot.slane %v9289, 1
      %v9395 = vsel %vm556, %v9394, %v9393
      %v9396 = vrot.slane %v9291, 7
      %v9397 = vsel %vm538, %v9396, %v9290
      %v9398 = vrot.slane %v9292, 6
      %v9399 = vsel %vm541, %v9398, %v9397
      %v9400 = vrot.slane %v9293, 5
      %v9401 = vsel %vm544, %v9400, %v9399
      %v9402 = vrot.slane %v9294, 4
      %v9403 = vsel %vm547, %v9402, %v9401
      %v9404 = vrot.slane %v9295, 3
      %v9405 = vsel %vm550, %v9404, %v9403
      %v9406 = vrot.slane %v9296, 2
      %v9407 = vsel %vm553, %v9406, %v9405
      %v9408 = vrot.slane %v9297, 1
      %v9409 = vsel %vm556, %v9408, %v9407
      %v9410 = vpack.c.b16 %v9325, %v9311
      %v9411 = vpack.c.b16 %v9353, %v9339
      %v9412 = vpack.c.b16 %v9381, %v9367
      %v9413 = vpack.c.b16 %v9409, %v9395
      %v9415 = vsel %vm666, %v9410, 0
      %v9418 = vsel %vm666, %v9411, 0
      %v9421 = vsel %vm666, %v9412, 0
      %v9424 = vsel %vm666, %v9413, 0
      %9426 = vmatprep.subr.bf16.mxu0 0
      %9427 = vmatpush1.bf16.msra.mxu0 %v664
      %9428 = vmatprep.subr.bf16.mxu0 0
      %9429 = vmatpush1.bf16.msra.mxu0 0
      %9430 = vmatprep.subr.bf16.mxu0 0
      %9431 = vmatpush1.bf16.msra.mxu0 0
      %9432 = vmatprep.subr.bf16.mxu0 0
      %9433 = vmatpush1.bf16.msra.mxu0 0
      %9434 = vmatprep.subr.bf16.mxu0 0
      %9435 = vmatpush1.bf16.msra.mxu0 0
      %9436 = vmatprep.subr.bf16.mxu0 0
      %9437 = vmatpush1.bf16.msra.mxu0 0
      %9438 = vmatprep.subr.bf16.mxu0 0
      %9439 = vmatpush1.bf16.msra.mxu0 0
      %9440 = vmatprep.subr.bf16.mxu0 0
      %9441 = vmatpush1.bf16.msra.mxu0 0
      %9442 = vmatprep.subr.bf16.mxu0 0
      %9443 = vmatpush1.bf16.msra.mxu0 0
      %9444 = vmatprep.subr.bf16.mxu0 0
      %9445 = vmatpush1.bf16.msra.mxu0 0
      %9446 = vmatprep.subr.bf16.mxu0 0
      %9447 = vmatpush1.bf16.msra.mxu0 0
      %9448 = vmatprep.subr.bf16.mxu0 0
      %9449 = vmatpush1.bf16.msra.mxu0 0
      %9450 = vmatprep.subr.bf16.mxu0 0
      %9451 = vmatpush1.bf16.msra.mxu0 0
      %9452 = vmatprep.subr.bf16.mxu0 0
      %9453 = vmatpush1.bf16.msra.mxu0 0
      %9454 = vmatprep.subr.bf16.mxu0 0
      %9455 = vmatpush1.bf16.msra.mxu0 0
      %9456 = vmatprep.subr.bf16.mxu0 0
      %9457 = vmatpush1.bf16.msra.mxu0 0
      %9458 = vmatprep.mubr.bf16.mxu0 0
      %9459 = vmatmul.mubr.bf16.gmra.mrb[0].mxu0 %v9415
      %v9460 = vpop.f32.mrb[0].mxu0
      %v9461 = vadd.f32 0.0, %v9460
      %v9462 = vpop.f32.mrb[0].mxu0
      %v9463 = vpop.f32.mrb[0].mxu0
      %v9464 = vadd.f32 0.0, %v9463
      %v9465 = vpop.f32.mrb[0].mxu0
      %9466 = vmatprep.mubr.bf16.mxu0 0
      %9467 = vmatmul.mubr.bf16.gmra.mrb[0].mxu0 %v9418
      %v9468 = vpop.f32.mrb[0].mxu0
      %v9469 = vadd.f32 0.0, %v9468
      %v9470 = vpop.f32.mrb[0].mxu0
      %v9471 = vpop.f32.mrb[0].mxu0
      %v9472 = vadd.f32 0.0, %v9471
      %v9473 = vpop.f32.mrb[0].mxu0
      %9474 = vmatprep.mubr.bf16.mxu0 0
      %9475 = vmatmul.mubr.bf16.gmra.mrb[0].mxu0 %v9421
      %v9476 = vpop.f32.mrb[0].mxu0
      %v9477 = vadd.f32 0.0, %v9476
      %v9478 = vpop.f32.mrb[0].mxu0
      %v9479 = vpop.f32.mrb[0].mxu0
      %v9480 = vadd.f32 0.0, %v9479
      %v9481 = vpop.f32.mrb[0].mxu0
      %9482 = vmatprep.mubr.bf16.mxu0 0
      %9483 = vmatmul.mubr.bf16.gmra.mrb[0].mxu0 %v9424
      %v9484 = vpop.f32.mrb[0].mxu0
      %v9485 = vadd.f32 0.0, %v9484
      %v9486 = vpop.f32.mrb[0].mxu0
      %v9487 = vpop.f32.mrb[0].mxu0
      %v9488 = vadd.f32 0.0, %v9487
      %v9489 = vpop.f32.mrb[0].mxu0
      %9490 = vdwg.mxu0
      %v9491 = vpack.c.bf16 %v9464, %v9461
      %v9492 = vpack.c.bf16 %v9472, %v9469
      %v9493 = vpack.c.bf16 %v9480, %v9477
      %v9494 = vpack.c.bf16 %v9488, %v9485
      %9495 = vmatprep.subr.bf16.mxu0 0
      %9496 = vmatpush1.bf16.msra.mxu0 %v9491
      %9497 = vmatprep.subr.bf16.mxu0 0
      %9498 = vmatpush1.bf16.msra.mxu0 %v9492
      %9499 = vmatprep.subr.bf16.mxu0 0
      %9500 = vmatpush1.bf16.msra.mxu0 %v9493
      %9501 = vmatprep.subr.bf16.mxu0 0
      %9502 = vmatpush1.bf16.msra.mxu0 %v9494
      %9503 = vmatprep.subr.bf16.mxu0 0
      %9504 = vmatpush1.bf16.msra.mxu0 0
      %9505 = vmatprep.subr.bf16.mxu0 0
      %9506 = vmatpush1.bf16.msra.mxu0 0
      %9507 = vmatprep.subr.bf16.mxu0 0
      %9508 = vmatpush1.bf16.msra.mxu0 0
      %9509 = vmatprep.subr.bf16.mxu0 0
      %9510 = vmatpush1.bf16.msra.mxu0 0
      %9511 = vmatprep.subr.bf16.mxu0 0
      %9512 = vmatpush1.bf16.msra.mxu0 0
      %9513 = vmatprep.subr.bf16.mxu0 0
      %9514 = vmatpush1.bf16.msra.mxu0 0
      %9515 = vmatprep.subr.bf16.mxu0 0
      %9516 = vmatpush1.bf16.msra.mxu0 0
      %9517 = vmatprep.subr.bf16.mxu0 0
      %9518 = vmatpush1.bf16.msra.mxu0 0
      %9519 = vmatprep.subr.bf16.mxu0 0
      %9520 = vmatpush1.bf16.msra.mxu0 0
      %9521 = vmatprep.subr.bf16.mxu0 0
      %9522 = vmatpush1.bf16.msra.mxu0 0
      %9523 = vmatprep.subr.bf16.mxu0 0
      %9524 = vmatpush1.bf16.msra.mxu0 0
      %9525 = vmatprep.subr.bf16.mxu0 0
      %9526 = vmatpush1.bf16.msra.mxu0 0
      %9527 = vmatprep.mubr.bf16.mxu0 0
      %9528 = vmatmul.mubr.bf16.gmra.mrb[0].mxu0 %v790
      %v9529 = vpop.f32.mrb[0].mxu0
      %v9530 = vadd.f32 0.0, %v9529
      %v9531 = vpop.f32.mrb[0].mxu0
      %v9532 = vpop.f32.mrb[0].mxu0
      %v9533 = vadd.f32 0.0, %v9532
      %v9534 = vpop.f32.mrb[0].mxu0
      %9535 = vmatprep.mubr.bf16.mxu0 0
      %9536 = vmatmul.mubr.bf16.gmra.mrb[0].mxu0 %v793
      %v9537 = vpop.f32.mrb[0].mxu0
      %v9538 = vadd.f32 0.0, %v9537
      %v9539 = vpop.f32.mrb[0].mxu0
      %v9540 = vpop.f32.mrb[0].mxu0
      %v9541 = vadd.f32 0.0, %v9540
      %v9542 = vpop.f32.mrb[0].mxu0
      %9543 = vmatprep.mubr.bf16.mxu0 0
      %9544 = vmatmul.mubr.bf16.gmra.mrb[0].mxu0 %v796
      %v9545 = vpop.f32.mrb[0].mxu0
      %v9546 = vadd.f32 0.0, %v9545
      %v9547 = vpop.f32.mrb[0].mxu0
      %v9548 = vpop.f32.mrb[0].mxu0
      %v9549 = vadd.f32 0.0, %v9548
      %v9550 = vpop.f32.mrb[0].mxu0
      %9551 = vmatprep.mubr.bf16.mxu0 0
      %9552 = vmatmul.mubr.bf16.gmra.mrb[0].mxu0 %v799
      %v9553 = vpop.f32.mrb[0].mxu0
      %v9554 = vadd.f32 0.0, %v9553
      %v9555 = vpop.f32.mrb[0].mxu0
      %v9556 = vpop.f32.mrb[0].mxu0
      %v9557 = vadd.f32 0.0, %v9556
      %v9558 = vpop.f32.mrb[0].mxu0
      %9559 = vmatprep.mubr.bf16.mxu0 0
      %9560 = vmatmul.mubr.bf16.gmra.mrb[0].mxu0 %v802
      %v9561 = vpop.f32.mrb[0].mxu0
      %v9562 = vadd.f32 0.0, %v9561
      %v9563 = vpop.f32.mrb[0].mxu0
      %v9564 = vpop.f32.mrb[0].mxu0
      %v9565 = vadd.f32 0.0, %v9564
      %v9566 = vpop.f32.mrb[0].mxu0
      %9567 = vmatprep.mubr.bf16.mxu0 0
      %9568 = vmatmul.mubr.bf16.gmra.mrb[0].mxu0 %v805
      %v9569 = vpop.f32.mrb[0].mxu0
      %v9570 = vadd.f32 0.0, %v9569
      %v9571 = vpop.f32.mrb[0].mxu0
      %v9572 = vpop.f32.mrb[0].mxu0
      %v9573 = vadd.f32 0.0, %v9572
      %v9574 = vpop.f32.mrb[0].mxu0
      %9575 = vmatprep.mubr.bf16.mxu0 0
      %9576 = vmatmul.mubr.bf16.gmra.mrb[0].mxu0 %v808
      %v9577 = vpop.f32.mrb[0].mxu0
      %v9578 = vadd.f32 0.0, %v9577
      %v9579 = vpop.f32.mrb[0].mxu0
      %v9580 = vpop.f32.mrb[0].mxu0
      %v9581 = vadd.f32 0.0, %v9580
      %v9582 = vpop.f32.mrb[0].mxu0
      %9583 = vmatprep.mubr.bf16.mxu0 0
      %9584 = vmatmul.mubr.bf16.gmra.mrb[0].mxu0 %v811
      %v9585 = vpop.f32.mrb[0].mxu0
      %v9586 = vadd.f32 0.0, %v9585
      %v9587 = vpop.f32.mrb[0].mxu0
      %v9588 = vpop.f32.mrb[0].mxu0
      %v9589 = vadd.f32 0.0, %v9588
      %v9590 = vpop.f32.mrb[0].mxu0
      %9591 = vdwg.mxu0
      %v9592 = vsel %vm911, %v9530, %v9562
      %v9593 = vsel %vm911, %v9533, %v9565
      %v9594 = vsel %vm911, %v9538, %v9570
      %v9595 = vsel %vm911, %v9541, %v9573
      %v9596 = vsel %vm911, %v9546, %v9578
      %v9597 = vsel %vm911, %v9549, %v9581
      %v9598 = vsel %vm911, %v9554, %v9586
      %v9599 = vsel %vm911, %v9557, %v9589
      %v9600 = vadd.f32 %v9592, %v923
      %v9601 = vadd.f32 %v9593, %v928
      %v9602 = vadd.f32 %v9594, %v933
      %v9603 = vadd.f32 %v9595, %v938
      %v9604 = vadd.f32 %v9596, %v943
      %v9605 = vadd.f32 %v9597, %v948
      %v9606 = vadd.f32 %v9598, %v953
      %v9607 = vadd.f32 %v9599, %v958
      %s9608 = scalar_lea.vmem %s237, 960
      %9609 = vst.msk [vmem:[%s9608] sm:$0xff] %vm968, %v9600
      %9610 = vst.msk [vmem:[%s9608 + $0x8] sm:$0xff] %vm968, %v9601
      %9611 = vst.msk [vmem:[%s9608 + $0x10] sm:$0xff] %vm968, %v9602
      %9612 = vst.msk [vmem:[%s9608 + $0x18] sm:$0xff] %vm968, %v9603
      %s9613 = scalar_lea.vmem %s237, 992
      %9614 = vst.msk [vmem:[%s9613] sm:$0xff] %vm968, %v9604
      %9615 = vst.msk [vmem:[%s9613 + $0x8] sm:$0xff] %vm968, %v9605
      %9616 = vst.msk [vmem:[%s9613 + $0x10] sm:$0xff] %vm968, %v9606
      %9617 = vst.msk [vmem:[%s9613 + $0x18] sm:$0xff] %vm968, %v9607
      %s9618 = smul.u32 32, %s20
      %p9619 = scmp.lt.s32.totalorder %s19, 1
      %s9620 = scalar_select %p9619, %s19, 1
      %p9621 = scmp.lt.s32.totalorder %s9618, 31
      %s9622 = scalar_select %p9621, %s9618, 31
      %s9623 = smul.addr %s9622, 4
      %s9624 = smul.addr %s9620, 128
      %s9625 = sadd.s32 %s9623, %s9624
      %s9626 = smul.addr %s9625, 8
      %s9627 = scalar_lea.vmem %s4, %s9626
      // Predicated region
      $region37: #{upsample_forward.1} parent=35 // pred_check
        %p9628 = pneg %p138
      $region38: #{upsample_forward.1} parent=35 // pred_check_branch
        %9630 = sbr.rel (%p9628) target = $region40
      $region39: #{upsample_forward.1} parent=35 // pred_region
        %s9631 = smul.u32 32, %s20
      $region40: #{upsample_forward.1} parent=35 // pred_fallthru
        _
    $region36: #{upsample_forward.1} parent=5 // pred_fallthru
      _
    %p9632 = scmp.le.s32.totalorder 2, %s10
    // Predicated region
    $region41: #{upsample_forward.1} parent=5 // pred_check
      %p9633 = pneg %p9632
    $region42: #{upsample_forward.1} parent=5 // pred_check_branch
      %9635 = sbr.rel (%p9633) target = $region44
    $region43: #{upsample_forward.1} parent=5 // pred_region
      %s9636 = ssub.s32 %s10, 2
      // Predicated region
      $region45: #{upsample_forward.1} parent=43 // pred_check
        %p9637 = pneg %p144
      $region46: #{upsample_forward.1} parent=43 // pred_check_branch
        %9639 = sbr.rel (%p9637) target = $region48
      $region47: #{upsample_forward.1} parent=43 // pred_region
        %s9640 = smul.u32 32, %s22
        %p9641 = scmp.lt.s32.totalorder %s21, 1
        %s9642 = scalar_select %p9641, %s21, 1
        %p9643 = scmp.lt.s32.totalorder %s9640, 31
        %s9644 = scalar_select %p9643, %s9640, 31
        %s9645 = smul.addr %s9644, 4
        %s9646 = smul.addr %s9642, 128
        %s9647 = sadd.s32 %s9645, %s9646
        %s9648 = smul.addr %s9647, 8
        %s9649 = scalar_lea.vmem %s4, %s9648
      $region48: #{upsample_forward.1} parent=43 // pred_fallthru
        _
    $region44: #{upsample_forward.1} parent=5 // pred_fallthru
      _
  $region6: #{upsample_forward.1} parent=0 // loop_footer
    %s14 = sadd.s32 1, %s10
  $region7: #{upsample_forward.1} parent=0 // loop_footer_branch
    %9 = sbr.rel target = $region3
  $region8: #{upsample_forward.1} parent=0 // loop_exit
    _

</llo_original>
